<compile_context>
chip_gen: v5e
topology: v5e:2x2
jax: 0.10.0
libtpu: 0.0.40
codegen_flags: <defaults>
</compile_context>

<pallas_src>
import functools

import jax
import jax.numpy as jnp
from jax import lax
from jax.experimental import pallas as pl
from jax.experimental.pallas import tpu as pltpu


def _round_up(v, m):
    return ((v + m - 1) // m) * m


# ---------------------------------------------------------------------------
# Pallas kernel 1: tiled fused matmul  (bf16 MXU dot -> bias -> post-act)
# ---------------------------------------------------------------------------
def _mm_kernel_nk1(a_ref, b_ref, bias_ref, o_ref, *, post_act):
    # Single-K-step fast path: no accumulator scratch, single store.
    out = jnp.dot(a_ref[...], b_ref[...], preferred_element_type=jnp.float32)
    out = out + bias_ref[...]
    if post_act == "relu":
        out = jnp.maximum(out, 0.0)
    o_ref[...] = out.astype(o_ref.dtype)


def _mm_kernel_acc(a_ref, b_ref, bias_ref, o_ref, acc_ref, *, post_act, nk):
    k = pl.program_id(2)

    @pl.when(k == 0)
    def _():
        acc_ref[...] = jnp.zeros_like(acc_ref)

    acc_ref[...] += jnp.dot(a_ref[...], b_ref[...],
                            preferred_element_type=jnp.float32)

    @pl.when(k == nk - 1)
    def _():
        out = acc_ref[...] + bias_ref[...]
        if post_act == "relu":
            out = jnp.maximum(out, 0.0)
        o_ref[...] = out.astype(o_ref.dtype)


def matmul_bias_act(a, b, bias, post_act="none"):
    """a @ b + bias -> act.  a:(M,K) (cast to bf16), b:(K,N), bias:(N,) -> (M,N) f32.

    Any pre-activation must already have been applied to `a` (in f32) by the
    caller; `a` is cast to bf16 here so the HBM A operand is half-width.
    """
    M, K = a.shape
    K2, N = b.shape
    assert K == K2

    Kp = _round_up(K, 128)
    Np = _round_up(N, 128)

    # N tiling (parallel): keep whole when small, cap otherwise.
    if Np <= 1024:
        tn = Np
    else:
        tn = max(c for c in (1024, 512, 256, 128) if Np % c == 0)

    # K tiling (arbitrary, innermost, accumulated). nk==1 is the common case.
    if Kp <= 1024:
        tk = Kp
    else:
        tk = max(c for c in (512, 256, 128) if Kp % c == 0)
    nk = Kp // tk

    # M tiling (parallel); bf16 A -> multiples of 16 sublanes.
    if M >= 1024 and Np <= 1024:
        tm = 512
    elif M >= 512:
        tm = 256
    elif M >= 128:
        tm = 128
    else:
        tm = _round_up(M, 16)
    Mp = _round_up(M, tm)

    # Per-call VMEM footprint (double-buffered A/B/bias/out + accumulator).
    footprint = (2 * tm * tk * 2 + 2 * tk * tn * 2 + 2 * tn * 4
                 + 2 * tm * tn * 4 + (tm * tn * 4 if nk > 1 else 0))
    assert footprint <= 28 * 1024 * 1024, footprint
    vmem_limit = int(min(48 * 1024 * 1024, max(32 * 1024 * 1024, 2 * footprint)))

    a_p = a.astype(jnp.bfloat16)
    if (Mp, Kp) != (M, K):
        a_p = jnp.pad(a_p, ((0, Mp - M), (0, Kp - K)))
    b_p = b.astype(jnp.bfloat16)
    if (Kp, Np) != (K, N):
        b_p = jnp.pad(b_p, ((0, Kp - K), (0, Np - N)))
    bias_p = bias.reshape(1, N).astype(jnp.float32)
    if Np != N:
        bias_p = jnp.pad(bias_p, ((0, 0), (0, Np - N)))

    cost = pl.CostEstimate(
        flops=2 * Mp * Kp * Np,
        transcendentals=0,
        # A (bf16) once; B (bf16) re-streamed once per M tile; out (f32) once.
        bytes_accessed=Mp * Kp * 2 + (Mp // tm) * Kp * Np * 2 + Mp * Np * 4 + Np * 4)

    if nk == 1:
        out = pl.pallas_call(
            functools.partial(_mm_kernel_nk1, post_act=post_act),
            out_shape=jax.ShapeDtypeStruct((Mp, Np), jnp.float32),
            grid=(Mp // tm, Np // tn),
            in_specs=[
                pl.BlockSpec((tm, Kp), lambda i, j: (i, 0)),
                pl.BlockSpec((Kp, tn), lambda i, j: (0, j)),
                pl.BlockSpec((1, tn), lambda i, j: (0, j)),
            ],
            out_specs=pl.BlockSpec((tm, tn), lambda i, j: (i, j)),
            compiler_params=pltpu.CompilerParams(
                dimension_semantics=("parallel", "parallel"),
                vmem_limit_bytes=vmem_limit),
            cost_estimate=cost,
        )(a_p, b_p, bias_p)
    else:
        out = pl.pallas_call(
            functools.partial(_mm_kernel_acc, post_act=post_act, nk=nk),
            out_shape=jax.ShapeDtypeStruct((Mp, Np), jnp.float32),
            grid=(Mp // tm, Np // tn, nk),
            in_specs=[
                pl.BlockSpec((tm, tk), lambda i, j, k: (i, k)),
                pl.BlockSpec((tk, tn), lambda i, j, k: (k, j)),
                pl.BlockSpec((1, tn), lambda i, j, k: (0, j)),
            ],
            out_specs=pl.BlockSpec((tm, tn), lambda i, j, k: (i, j)),
            scratch_shapes=[pltpu.VMEM((tm, tn), jnp.float32)],
            compiler_params=pltpu.CompilerParams(
                dimension_semantics=("parallel", "parallel", "arbitrary"),
                vmem_limit_bytes=vmem_limit),
            cost_estimate=cost,
        )(a_p, b_p, bias_p)

    if (Mp, Np) != (M, N):
        out = out[:M, :N]
    return out


# ---------------------------------------------------------------------------
# Pallas kernels 2+3: tiled training-mode BatchNorm (stats pass + apply pass)
# ---------------------------------------------------------------------------
def _bn_stats_kernel(x_ref, o_ref):
    # Output-resident accumulator over the "arbitrary" M-tile axis.
    @pl.when(pl.program_id(0) == 0)
    def _():
        o_ref[...] = jnp.zeros_like(o_ref)

    x = x_ref[...]
    s = jnp.sum(x, axis=0, keepdims=True)
    sq = jnp.sum(x * x, axis=0, keepdims=True)
    o_ref[...] = o_ref[...] + jnp.concatenate([s, sq], axis=0)


def _bn_apply_kernel(x_ref, scale_ref, shift_ref, o_ref, *, post_act):
    y = x_ref[...] * scale_ref[...] + shift_ref[...]
    if post_act == "relu":
        y = jnp.maximum(y, 0.0)
    o_ref[...] = y.astype(o_ref.dtype)


def batchnorm_cols(x2d, gamma, beta, eps=1e-5, post_act="none"):
    M, C = x2d.shape
    Cp = _round_up(C, 128)
    tm = 512 if M >= 512 else _round_up(M, 8)
    Mp = _round_up(M, tm)
    nm = Mp // tm

    xp = x2d.astype(jnp.float32)
    if (Mp, Cp) != (M, C):
        xp = jnp.pad(xp, ((0, Mp - M), (0, Cp - C)))   # zero pads: inert in sums

    sums = pl.pallas_call(
        _bn_stats_kernel,
        out_shape=jax.ShapeDtypeStruct((2, Cp), jnp.float32),
        grid=(nm,),
        in_specs=[pl.BlockSpec((tm, Cp), lambda i: (i, 0))],
        out_specs=pl.BlockSpec((2, Cp), lambda i: (0, 0)),
        compiler_params=pltpu.CompilerParams(
            dimension_semantics=("arbitrary",)),
    )(xp)

    mean = sums[0] / M
    var = jnp.maximum(sums[1] / M - mean * mean, 0.0)    # biased var (PyTorch train)
    gamma_p = gamma.astype(jnp.float32)
    beta_p = beta.astype(jnp.float32)
    if Cp != C:
        gamma_p = jnp.pad(gamma_p, (0, Cp - C))
        beta_p = jnp.pad(beta_p, (0, Cp - C))
    scale = (gamma_p * lax.rsqrt(var + eps)).reshape(1, Cp)
    shift = (beta_p - mean * scale[0]).reshape(1, Cp)

    y = pl.pallas_call(
        functools.partial(_bn_apply_kernel, post_act=post_act),
        out_shape=jax.ShapeDtypeStruct((Mp, Cp), jnp.float32),
        grid=(nm,),
        in_specs=[
            pl.BlockSpec((tm, Cp), lambda i: (i, 0)),
            pl.BlockSpec((1, Cp), lambda i: (0, 0)),
            pl.BlockSpec((1, Cp), lambda i: (0, 0)),
        ],
        out_specs=pl.BlockSpec((tm, Cp), lambda i: (i, 0)),
        compiler_params=pltpu.CompilerParams(
            dimension_semantics=("parallel",)),
    )(xp, scale, shift)

    if (Mp, Cp) != (M, C):
        y = y[:M, :C]
    return y


def batchnorm_nhwc(x, gamma, beta, post_act="none"):
    N, H, W, C = x.shape
    y = batchnorm_cols(x.reshape(N * H * W, C), gamma, beta, post_act=post_act)
    return y.reshape(N, H, W, C)


# ---------------------------------------------------------------------------
# JAX glue: patch extraction (conv), gather-form col2im (conv transpose)
# ---------------------------------------------------------------------------
def im2col_nhwc(x, k, stride, pad):
    """k x k patches (column order kh, kw, c) -> (N, Ho, Wo, k*k*C)."""
    N, H, W, C = x.shape
    xp = jnp.pad(x, ((0, 0), (pad, pad), (pad, pad), (0, 0)))
    Ho = (H + 2 * pad - k) // stride + 1
    Wo = (W + 2 * pad - k) // stride + 1
    cols = []
    for kh in range(k):
        for kw in range(k):
            cols.append(xp[:, kh:kh + (Ho - 1) * stride + 1:stride,
                              kw:kw + (Wo - 1) * stride + 1:stride, :])
    return jnp.concatenate(cols, axis=-1), Ho, Wo


def _col2im_s2_k4(P):
    """Gather-form overlap-add for ConvTranspose2d(k=4, s=2, p=1).

    P: (N, Hi, Wi, 4, 4, Cout); tap (kh, kw) of input pixel (i, j) lands at
    output pixel (2*i + kh - 1, 2*j + kw - 1).  Each of the 4 output parities
    is the sum of 4 shifted slices of P, then the parities are interleaved via
    a depth-to-space reshape so every output element is written exactly once.
    Returns (N, 2Hi, 2Wi, Cout).
    """
    N, Hi, Wi, _, _, Co = P.shape
    Pp = jnp.pad(P, ((0, 0), (1, 1), (1, 1), (0, 0), (0, 0), (0, 0)))

    def tap(kh, kw, di, dj):
        # P[i+di, j+dj, kh, kw] for i in [0,Hi), j in [0,Wi) (zero outside).
        return Pp[:, 1 + di:1 + di + Hi, 1 + dj:1 + dj + Wi, kh, kw, :]

    # even output rows (2m):  P[m, kh=1] + P[m-1, kh=3]
    # odd  output rows (2m+1): P[m+1, kh=0] + P[m, kh=2]     (same for columns)
    taps = {0: ((1, 0), (3, -1)), 1: ((0, 1), (2, 0))}

    quads = []
    for ph in (0, 1):
        for pw in (0, 1):
            acc = None
            for kh, di in taps[ph]:
                for kw, dj in taps[pw]:
                    t = tap(kh, kw, di, dj)
                    acc = t if acc is None else acc + t
            quads.append(acc)

    q = jnp.stack(quads, axis=3).reshape(N, Hi, Wi, 2, 2, Co)
    return jnp.transpose(q, (0, 1, 3, 2, 4, 5)).reshape(N, 2 * Hi, 2 * Wi, Co)


# ---------------------------------------------------------------------------
# Layer wrappers
# ---------------------------------------------------------------------------
def conv4x4_s2(x, w, b, pre_act="none"):
    """[optional LeakyReLU(0.2) ->] Conv2d(k=4, s=2, p=1).  x NHWC, w (Cout,Cin,4,4)."""
    if pre_act == "leaky_relu":
        x = jnp.where(x >= 0.0, x, 0.2 * x)      # f32 once, before patch extraction
    x = x.astype(jnp.bfloat16)                    # bf16 im2col intermediate
    N, H, W, Cin = x.shape
    Cout = w.shape[0]
    cols, Ho, Wo = im2col_nhwc(x, 4, 2, 1)
    A = cols.reshape(N * Ho * Wo, 16 * Cin)
    B = jnp.transpose(w, (2, 3, 1, 0)).reshape(16 * Cin, Cout)
    y = matmul_bias_act(A, B, b)
    return y.reshape(N, Ho, Wo, Cout)


def conv3x3_s1(x, w, b, post_act="none"):
    """Conv2d(k=3, s=1, p=1); pre-activation already applied by the producer."""
    x = x.astype(jnp.bfloat16)
    N, H, W, Cin = x.shape
    Cout = w.shape[0]
    cols, Ho, Wo = im2col_nhwc(x, 3, 1, 1)
    A = cols.reshape(N * Ho * Wo, 9 * Cin)
    B = jnp.transpose(w, (2, 3, 1, 0)).reshape(9 * Cin, Cout)
    y = matmul_bias_act(A, B, b, post_act=post_act)
    return y.reshape(N, Ho, Wo, Cout)


def _convt_project(x, ws):
    """relu(x) @ [W_i], fused over heads.  ws: list of (Cin, Cout, 4, 4) PyTorch
    ConvTranspose weights.  Returns list of P_i of shape (N, Hi, Wi, 4, 4, Cout_i)."""
    N, Hi, Wi, Cin = x.shape
    a = jnp.maximum(x, 0.0).astype(jnp.bfloat16).reshape(N * Hi * Wi, Cin)
    bs, widths = [], []
    for w in ws:
        Cout = w.shape[1]
        bs.append(jnp.transpose(w, (0, 2, 3, 1)).reshape(Cin, 16 * Cout))  # (kh,kw,co)
        widths.append(16 * Cout)
    B = jnp.concatenate(bs, axis=1) if len(bs) > 1 else bs[0]
    P = matmul_bias_act(a, B, jnp.zeros((B.shape[1],), jnp.float32))
    outs, off = [], 0
    for w, width in zip(ws, widths):
        Cout = w.shape[1]
        outs.append(P[:, off:off + width].reshape(N, Hi, Wi, 4, 4, Cout))
        off += width
    return outs


def convtranspose4x4_s2(x, w, b):
    """ReLU -> ConvTranspose2d(k=4, s=2, p=1), direct (no zero-dilation) form."""
    (P,) = _convt_project(x, [w])
    return _col2im_s2_k4(P) + b.reshape(1, 1, 1, -1)


def convtranspose4x4_s2_dual(x, w1, b1, w2, b2):
    """Two heads sharing the same input: one fused matmul, two col2im passes."""
    P1, P2 = _convt_project(x, [w1, w2])
    return (_col2im_s2_k4(P1) + b1.reshape(1, 1, 1, -1),
            _col2im_s2_k4(P2) + b2.reshape(1, 1, 1, -1))


# ---------------------------------------------------------------------------
# UnetSkipConnectionBlock / UnetGenerator forward
# ---------------------------------------------------------------------------
def block_forward(x, p):
    kind = p["kind"]
    if kind == "innermost":
        # [LeakyReLU, Conv] -> [ReLU, ConvT, BN]; cat with input.
        h = conv4x4_s2(x, p["down_w"], p["down_b"], pre_act="leaky_relu")
        y = convtranspose4x4_s2(h, p["up_w"], p["up_b"])
        y = batchnorm_nhwc(y, p["upnorm_g"], p["upnorm_b"])
        return jnp.concatenate([y, x], axis=-1)

    if kind == "middle":
        # [LeakyReLU, Conv, BN] -> submodule -> [ReLU, ConvT, BN]; cat with input.
        h = conv4x4_s2(x, p["down_w"], p["down_b"], pre_act="leaky_relu")
        h = batchnorm_nhwc(h, p["downnorm_g"], p["downnorm_b"])
        h = block_forward(h, p["submodule"])
        y = convtranspose4x4_s2(h, p["up_w"], p["up_b"])
        y = batchnorm_nhwc(y, p["upnorm_g"], p["upnorm_b"])
        return jnp.concatenate([y, x], axis=-1)

    # outermost: [Conv] -> submodule -> two heads, each
    #   [ReLU, ConvT, BN, ReLU, Conv3x3, ReLU, Conv3x3_out]
    d = conv4x4_s2(x, p["down_w"], p["down_b"], pre_act="none")
    ymid = block_forward(d, p["submodule"])
    z1, z2 = convtranspose4x4_s2_dual(
        ymid, p["up1"]["upconv_w"], p["up1"]["upconv_b"],
        p["up2"]["upconv_w"], p["up2"]["upconv_b"])

    def head(z, q):
        z = batchnorm_nhwc(z, q["upnorm_g"], q["upnorm_b"], post_act="relu")
        z = conv3x3_s1(z, q["conv_w"], q["conv_b"], post_act="relu")
        z = conv3x3_s1(z, q["convo_w"], q["convo_b"])
        return z

    return head(z1, p["up1"]), head(z2, p["up2"])


def unet_generator_forward(x_nchw, params):
    x = jnp.transpose(x_nchw, (0, 2, 3, 1))                 # NCHW -> NHWC
    y1, y2 = block_forward(x, params)
    return jnp.transpose(y1, (0, 3, 1, 2)), jnp.transpose(y2, (0, 3, 1, 2))


# ---------------------------------------------------------------------------
# Deterministic parameter init (mirrors the PyTorch module structure)
# ---------------------------------------------------------------------------
def init_unet_params(key, output_nc, num_downs, ngf):
    state = {"key": key}

    def nk():
        state["key"], sub = jax.random.split(state["key"])
        return sub

    def winit(shape, fan_in):
        bound = float(fan_in) ** -0.5
        return jax.random.uniform(nk(), shape, jnp.float32, -bound, bound)

    def conv_p(cin, cout, k):
        fan = cin * k * k
        return winit((cout, cin, k, k), fan), winit((cout,), fan)

    def convT_p(cin, cout, k):
        fan = cout * k * k
        return winit((cin, cout, k, k), fan), winit((cout,), fan)

    def bn_p(c):
        return jnp.ones((c,), jnp.float32), jnp.zeros((c,), jnp.float32)

    def innermost(outer_nc, inner_nc):
        dw, db = conv_p(outer_nc, inner_nc, 4)
        uw, ub = convT_p(inner_nc, outer_nc, 4)
        g, b = bn_p(outer_nc)
        return {"kind": "innermost", "down_w": dw, "down_b": db,
                "up_w": uw, "up_b": ub, "upnorm_g": g, "upnorm_b": b}

    def middle(outer_nc, inner_nc, sub):
        dw, db = conv_p(outer_nc, inner_nc, 4)
        dg, dbt = bn_p(inner_nc)
        uw, ub = convT_p(inner_nc * 2, outer_nc, 4)
        ug, ubt = bn_p(outer_nc)
        return {"kind": "middle", "down_w": dw, "down_b": db,
                "downnorm_g": dg, "downnorm_b": dbt,
                "up_w": uw, "up_b": ub, "upnorm_g": ug, "upnorm_b": ubt,
                "submodule": sub}

    def up_branch(inner_nc, n_out):
        uw, ub = convT_p(inner_nc * 2, inner_nc, 4)
        g, b = bn_p(inner_nc)
        cw, cb = conv_p(inner_nc, inner_nc, 3)
        ow, ob = conv_p(inner_nc, n_out, 3)
        return {"upconv_w": uw, "upconv_b": ub, "upnorm_g": g, "upnorm_b": b,
                "conv_w": cw, "conv_b": cb, "convo_w": ow, "convo_b": ob}

    def outermost(outer_nc, inner_nc, sub):
        dw, db = conv_p(outer_nc, inner_nc, 4)
        return {"kind": "outermost", "down_w": dw, "down_b": db,
                "up1": up_branch(inner_nc, 1), "up2": up_branch(inner_nc, 3),
                "submodule": sub}

    blk = innermost(ngf * 8, ngf * 8)
    for _ in range(num_downs - 5):
        blk = middle(ngf * 8, ngf * 8, blk)
    blk = middle(ngf * 4, ngf * 8, blk)
    blk = middle(ngf * 2, ngf * 4, blk)
    blk = middle(ngf, ngf * 2, blk)
    blk = outermost(output_nc, ngf, blk)
    return blk


if __name__ == "__main__":
    # Small but structurally complete UnetGenerator: num_downs=5, ngf=8.
    # The module's outermost downconv is Conv2d(output_nc, ngf, ...), so the
    # generator input has output_nc channels (as in the original code).
    N, output_nc, ngf, num_downs = 2, 3, 8, 5
    H = W = 32                                   # must be divisible by 2**num_downs

    key = jax.random.PRNGKey(0)
    kx, kp = jax.random.split(key)
    x = jax.random.normal(kx, (N, output_nc, H, W), jnp.float32)
    params = init_unet_params(kp, output_nc=output_nc, num_downs=num_downs, ngf=ngf)

    fwd = jax.jit(lambda inp: unet_generator_forward(inp, params))
    y1, y2 = fwd(x)
    jax.block_until_ready((y1, y2))

    assert y1.shape == (N, 1, H, W), y1.shape
    assert y2.shape == (N, 3, H, W), y2.shape
    assert bool(jnp.all(jnp.isfinite(y1))) and bool(jnp.all(jnp.isfinite(y2)))
    print("KERNEL_OK")
</pallas_src>

<mosaic_0001>
module attributes {stable_mosaic.version = 11 : i64} {
  func.func @_mm_kernel_nk1(%arg0: i32, %arg1: i32, %arg2: memref<256x128xbf16, #tpu.memory_space<vmem>>, %arg3: memref<128x128xbf16, #tpu.memory_space<vmem>>, %arg4: memref<1x128xf32, #tpu.memory_space<vmem>>, %arg5: memref<256x128xf32, #tpu.memory_space<vmem>>) attributes {dimension_semantics = [#tpu.dimension_semantics<parallel>, #tpu.dimension_semantics<parallel>], iteration_bounds = array<i64: 2, 1>, scalar_prefetch = 0 : i64, scratch_operands = 0 : i64, tpu.core_type = #tpu.core_type<tc>, window_params = [{transform_indices = @transform_0, window_bounds = array<i64: 256, 128>}, {transform_indices = @transform_1, window_bounds = array<i64: 128, 128>}, {transform_indices = @transform_2, window_bounds = array<i64: 1, 128>}, {transform_indices = @transform_3, window_bounds = array<i64: 256, 128>}]} {
    %c0 = arith.constant 0 : index
    %c0_0 = arith.constant 0 : index
    %0 = vector.load %arg2[%c0, %c0_0] : memref<256x128xbf16, #tpu.memory_space<vmem>>, vector<256x128xbf16>
    %c0_1 = arith.constant 0 : index
    %c0_2 = arith.constant 0 : index
    %1 = vector.load %arg3[%c0_1, %c0_2] : memref<128x128xbf16, #tpu.memory_space<vmem>>, vector<128x128xbf16>
    %cst = arith.constant dense<0.000000e+00> : vector<256x128xf32>
    %2 = tpu.matmul %0, %1, %cst {dimension_numbers = #tpu.dot_dimension_numbers<[1], [0], [0], [1], [0, 0, 1, 1], [], []>} : vector<256x128xbf16>, vector<128x128xbf16>, vector<256x128xf32> -> vector<256x128xf32>
    %c0_3 = arith.constant 0 : index
    %c0_4 = arith.constant 0 : index
    %3 = vector.load %arg4[%c0_3, %c0_4] : memref<1x128xf32, #tpu.memory_space<vmem>>, vector<1x128xf32>
    %4 = vector.broadcast %3 : vector<1x128xf32> to vector<256x128xf32>
    %5 = arith.addf %2, %4 : vector<256x128xf32>
    %c0_5 = arith.constant 0 : index
    %c0_6 = arith.constant 0 : index
    %6 = vector.load %arg5[%c0_5, %c0_6] : memref<256x128xf32, #tpu.memory_space<vmem>>, vector<256x128xf32>
    tpu.vector_store %arg5[%c0_5, %c0_6], %5 {strides = array<i32>} : memref<256x128xf32, #tpu.memory_space<vmem>>, vector<256x128xf32>,
    return
  }
  func.func @transform_0(%arg0: i32, %arg1: i32) -> (i32, i32) {
    %c0_i32 = arith.constant 0 : i32
    %c0_i32_0 = arith.constant 0 : i32
    return %arg0, %c0_i32 : i32, i32
  }
  func.func @transform_1(%arg0: i32, %arg1: i32) -> (i32, i32) {
    %c0_i32 = arith.constant 0 : i32
    %c0_i32_0 = arith.constant 0 : i32
    return %c0_i32, %arg1 : i32, i32
  }
  func.func @transform_2(%arg0: i32, %arg1: i32) -> (i32, i32) {
    %c0_i32 = arith.constant 0 : i32
    %c0_i32_0 = arith.constant 0 : i32
    return %c0_i32, %arg1 : i32, i32
  }
  func.func @transform_3(%arg0: i32, %arg1: i32) -> (i32, i32) {
    %c0_i32 = arith.constant 0 : i32
    return %arg0, %arg1 : i32, i32
  }
}

module attributes {stable_mosaic.version = 11 : i64} {
  func.func @_mm_kernel_nk1(%arg0: i32, %arg1: i32, %arg2: memref<128x128xbf16, #tpu.memory_space<vmem>>, %arg3: memref<128x128xbf16, #tpu.memory_space<vmem>>, %arg4: memref<1x128xf32, #tpu.memory_space<vmem>>, %arg5: memref<128x128xf32, #tpu.memory_space<vmem>>) attributes {dimension_semantics = [#tpu.dimension_semantics<parallel>, #tpu.dimension_semantics<parallel>], iteration_bounds = array<i64: 1, 1>, scalar_prefetch = 0 : i64, scratch_operands = 0 : i64, tpu.core_type = #tpu.core_type<tc>, window_params = [{transform_indices = @transform_0, window_bounds = array<i64: 128, 128>}, {transform_indices = @transform_1, window_bounds = array<i64: 128, 128>}, {transform_indices = @transform_2, window_bounds = array<i64: 1, 128>}, {transform_indices = @transform_3, window_bounds = array<i64: 128, 128>}]} {
    %c0 = arith.constant 0 : index
    %c0_0 = arith.constant 0 : index
    %0 = vector.load %arg2[%c0, %c0_0] : memref<128x128xbf16, #tpu.memory_space<vmem>>, vector<128x128xbf16>
    %c0_1 = arith.constant 0 : index
    %c0_2 = arith.constant 0 : index
    %1 = vector.load %arg3[%c0_1, %c0_2] : memref<128x128xbf16, #tpu.memory_space<vmem>>, vector<128x128xbf16>
    %cst = arith.constant dense<0.000000e+00> : vector<128x128xf32>
    %2 = tpu.matmul %0, %1, %cst {dimension_numbers = #tpu.dot_dimension_numbers<[1], [0], [0], [1], [0, 0, 1, 1], [], []>} : vector<128x128xbf16>, vector<128x128xbf16>, vector<128x128xf32> -> vector<128x128xf32>
    %c0_3 = arith.constant 0 : index
    %c0_4 = arith.constant 0 : index
    %3 = vector.load %arg4[%c0_3, %c0_4] : memref<1x128xf32, #tpu.memory_space<vmem>>, vector<1x128xf32>
    %4 = vector.broadcast %3 : vector<1x128xf32> to vector<128x128xf32>
    %5 = arith.addf %2, %4 : vector<128x128xf32>
    %c0_5 = arith.constant 0 : index
    %c0_6 = arith.constant 0 : index
    %6 = vector.load %arg5[%c0_5, %c0_6] : memref<128x128xf32, #tpu.memory_space<vmem>>, vector<128x128xf32>
    tpu.vector_store %arg5[%c0_5, %c0_6], %5 {strides = array<i32>} : memref<128x128xf32, #tpu.memory_space<vmem>>, vector<128x128xf32>,
    return
  }
  func.func @transform_0(%arg0: i32, %arg1: i32) -> (i32, i32) {
    %c0_i32 = arith.constant 0 : i32
    %c0_i32_0 = arith.constant 0 : i32
    return %arg0, %c0_i32 : i32, i32
  }
  func.func @transform_1(%arg0: i32, %arg1: i32) -> (i32, i32) {
    %c0_i32 = arith.constant 0 : i32
    %c0_i32_0 = arith.constant 0 : i32
    return %c0_i32, %arg1 : i32, i32
  }
  func.func @transform_2(%arg0: i32, %arg1: i32) -> (i32, i32) {
    %c0_i32 = arith.constant 0 : i32
    %c0_i32_0 = arith.constant 0 : i32
    return %c0_i32, %arg1 : i32, i32
  }
  func.func @transform_3(%arg0: i32, %arg1: i32) -> (i32, i32) {
    %c0_i32 = arith.constant 0 : i32
    return %arg0, %arg1 : i32, i32
  }
}

module attributes {stable_mosaic.version = 11 : i64} {
  func.func @_bn_stats_kernel(%arg0: i32, %arg1: memref<128x128xf32, #tpu.memory_space<vmem>>, %arg2: memref<2x128xf32, #tpu.memory_space<vmem>>) attributes {dimension_semantics = [#tpu.dimension_semantics<arbitrary>], iteration_bounds = array<i64: 1>, scalar_prefetch = 0 : i64, scratch_operands = 0 : i64, tpu.core_type = #tpu.core_type<tc>, window_params = [{transform_indices = @transform_0, window_bounds = array<i64: 128, 128>}, {pipeline_mode = #tpu.pipeline_mode<synchronous>, transform_indices = @transform_1, window_bounds = array<i64: 2, 128>}]} {
    %c0_i32 = arith.constant 0 : i32
    %0 = arith.cmpi eq, %arg0, %c0_i32 : i32
    %1 = arith.extui %0 : i1 to i32
    %c0_i32_0 = arith.constant 0 : i32
    %2 = arith.cmpi ne, %1, %c0_i32_0 : i32
    scf.if %2 {
      %cst_7 = arith.constant 0.000000e+00 : f32
      %13 = vector.broadcast %cst_7 : f32 to vector<2x128xf32>
      %c0_8 = arith.constant 0 : index
      %c0_9 = arith.constant 0 : index
      %14 = vector.load %arg2[%c0_8, %c0_9] : memref<2x128xf32, #tpu.memory_space<vmem>>, vector<2x128xf32>
      tpu.vector_store %arg2[%c0_8, %c0_9], %13 {strides = array<i32>} : memref<2x128xf32, #tpu.memory_space<vmem>>, vector<2x128xf32>,
    } else {
    }
    %c0 = arith.constant 0 : index
    %c0_1 = arith.constant 0 : index
    %3 = vector.load %arg1[%c0, %c0_1] : memref<128x128xf32, #tpu.memory_space<vmem>>, vector<128x128xf32>
    %cst = arith.constant dense<0.000000e+00> : vector<128xf32>
    %4 = vector.multi_reduction <add>, %3, %cst [0] : vector<128x128xf32> to vector<128xf32>
    %5 = vector.shape_cast %4 : vector<128xf32> to vector<1x128xf32>
    %6 = arith.mulf %3, %3 : vector<128x128xf32>
    %cst_2 = arith.constant dense<0.000000e+00> : vector<128xf32>
    %7 = vector.multi_reduction <add>, %6, %cst_2 [0] : vector<128x128xf32> to vector<128xf32>
    %8 = vector.shape_cast %7 : vector<128xf32> to vector<1x128xf32>
    %c0_3 = arith.constant 0 : index
    %c0_4 = arith.constant 0 : index
    %9 = vector.load %arg2[%c0_3, %c0_4] : memref<2x128xf32, #tpu.memory_space<vmem>>, vector<2x128xf32>
    %10 = tpu.concatenate %5, %8 in 0 : vector<1x128xf32>, vector<1x128xf32> -> vector<2x128xf32>
    %11 = arith.addf %9, %10 : vector<2x128xf32>
    %c0_5 = arith.constant 0 : index
    %c0_6 = arith.constant 0 : index
    %12 = vector.load %arg2[%c0_5, %c0_6] : memref<2x128xf32, #tpu.memory_space<vmem>>, vector<2x128xf32>
    tpu.vector_store %arg2[%c0_5, %c0_6], %11 {strides = array<i32>} : memref<2x128xf32, #tpu.memory_space<vmem>>, vector<2x128xf32>,
    return
  }
  func.func @transform_0(%arg0: i32) -> (i32, i32) {
    %c0_i32 = arith.constant 0 : i32
    %c0_i32_0 = arith.constant 0 : i32
    return %arg0, %c0_i32 : i32, i32
  }
  func.func @transform_1(%arg0: i32) -> (i32, i32) {
    %c0_i32 = arith.constant 0 : i32
    %c0_i32_0 = arith.constant 0 : i32
    %c0_i32_1 = arith.constant 0 : i32
    return %c0_i32, %c0_i32_0 : i32, i32
  }
}

module attributes {stable_mosaic.version = 11 : i64} {
  func.func @_bn_apply_kernel(%arg0: i32, %arg1: memref<128x128xf32, #tpu.memory_space<vmem>>, %arg2: memref<1x128xf32, #tpu.memory_space<vmem>>, %arg3: memref<1x128xf32, #tpu.memory_space<vmem>>, %arg4: memref<128x128xf32, #tpu.memory_space<vmem>>) attributes {dimension_semantics = [#tpu.dimension_semantics<parallel>], iteration_bounds = array<i64: 1>, scalar_prefetch = 0 : i64, scratch_operands = 0 : i64, tpu.core_type = #tpu.core_type<tc>, window_params = [{transform_indices = @transform_0, window_bounds = array<i64: 128, 128>}, {pipeline_mode = #tpu.pipeline_mode<synchronous>, transform_indices = @transform_1, window_bounds = array<i64: 1, 128>}, {pipeline_mode = #tpu.pipeline_mode<synchronous>, transform_indices = @transform_2, window_bounds = array<i64: 1, 128>}, {transform_indices = @transform_3, window_bounds = array<i64: 128, 128>}]} {
    %c0 = arith.constant 0 : index
    %c0_0 = arith.constant 0 : index
    %0 = vector.load %arg1[%c0, %c0_0] : memref<128x128xf32, #tpu.memory_space<vmem>>, vector<128x128xf32>
    %c0_1 = arith.constant 0 : index
    %c0_2 = arith.constant 0 : index
    %1 = vector.load %arg2[%c0_1, %c0_2] : memref<1x128xf32, #tpu.memory_space<vmem>>, vector<1x128xf32>
    %2 = vector.broadcast %1 : vector<1x128xf32> to vector<128x128xf32>
    %3 = arith.mulf %0, %2 : vector<128x128xf32>
    %c0_3 = arith.constant 0 : index
    %c0_4 = arith.constant 0 : index
    %4 = vector.load %arg3[%c0_3, %c0_4] : memref<1x128xf32, #tpu.memory_space<vmem>>, vector<1x128xf32>
    %5 = vector.broadcast %4 : vector<1x128xf32> to vector<128x128xf32>
    %6 = arith.addf %3, %5 : vector<128x128xf32>
    %c0_5 = arith.constant 0 : index
    %c0_6 = arith.constant 0 : index
    %7 = vector.load %arg4[%c0_5, %c0_6] : memref<128x128xf32, #tpu.memory_space<vmem>>, vector<128x128xf32>
    tpu.vector_store %arg4[%c0_5, %c0_6], %6 {strides = array<i32>} : memref<128x128xf32, #tpu.memory_space<vmem>>, vector<128x128xf32>,
    return
  }
  func.func @transform_0(%arg0: i32) -> (i32, i32) {
    %c0_i32 = arith.constant 0 : i32
    %c0_i32_0 = arith.constant 0 : i32
    return %arg0, %c0_i32 : i32, i32
  }
  func.func @transform_1(%arg0: i32) -> (i32, i32) {
    %c0_i32 = arith.constant 0 : i32
    %c0_i32_0 = arith.constant 0 : i32
    %c0_i32_1 = arith.constant 0 : i32
    return %c0_i32, %c0_i32_0 : i32, i32
  }
  func.func @transform_2(%arg0: i32) -> (i32, i32) {
    %c0_i32 = arith.constant 0 : i32
    %c0_i32_0 = arith.constant 0 : i32
    %c0_i32_1 = arith.constant 0 : i32
    return %c0_i32, %c0_i32_0 : i32, i32
  }
  func.func @transform_3(%arg0: i32) -> (i32, i32) {
    %c0_i32 = arith.constant 0 : i32
    %c0_i32_0 = arith.constant 0 : i32
    return %arg0, %c0_i32 : i32, i32
  }
}

module attributes {stable_mosaic.version = 11 : i64} {
  func.func @_bn_stats_kernel(%arg0: i32, %arg1: memref<32x128xf32, #tpu.memory_space<vmem>>, %arg2: memref<2x128xf32, #tpu.memory_space<vmem>>) attributes {dimension_semantics = [#tpu.dimension_semantics<arbitrary>], iteration_bounds = array<i64: 1>, scalar_prefetch = 0 : i64, scratch_operands = 0 : i64, tpu.core_type = #tpu.core_type<tc>, window_params = [{transform_indices = @transform_0, window_bounds = array<i64: 32, 128>}, {pipeline_mode = #tpu.pipeline_mode<synchronous>, transform_indices = @transform_1, window_bounds = array<i64: 2, 128>}]} {
    %c0_i32 = arith.constant 0 : i32
    %0 = arith.cmpi eq, %arg0, %c0_i32 : i32
    %1 = arith.extui %0 : i1 to i32
    %c0_i32_0 = arith.constant 0 : i32
    %2 = arith.cmpi ne, %1, %c0_i32_0 : i32
    scf.if %2 {
      %cst_7 = arith.constant 0.000000e+00 : f32
      %13 = vector.broadcast %cst_7 : f32 to vector<2x128xf32>
      %c0_8 = arith.constant 0 : index
      %c0_9 = arith.constant 0 : index
      %14 = vector.load %arg2[%c0_8, %c0_9] : memref<2x128xf32, #tpu.memory_space<vmem>>, vector<2x128xf32>
      tpu.vector_store %arg2[%c0_8, %c0_9], %13 {strides = array<i32>} : memref<2x128xf32, #tpu.memory_space<vmem>>, vector<2x128xf32>,
    } else {
    }
    %c0 = arith.constant 0 : index
    %c0_1 = arith.constant 0 : index
    %3 = vector.load %arg1[%c0, %c0_1] : memref<32x128xf32, #tpu.memory_space<vmem>>, vector<32x128xf32>
    %cst = arith.constant dense<0.000000e+00> : vector<128xf32>
    %4 = vector.multi_reduction <add>, %3, %cst [0] : vector<32x128xf32> to vector<128xf32>
    %5 = vector.shape_cast %4 : vector<128xf32> to vector<1x128xf32>
    %6 = arith.mulf %3, %3 : vector<32x128xf32>
    %cst_2 = arith.constant dense<0.000000e+00> : vector<128xf32>
    %7 = vector.multi_reduction <add>, %6, %cst_2 [0] : vector<32x128xf32> to vector<128xf32>
    %8 = vector.shape_cast %7 : vector<128xf32> to vector<1x128xf32>
    %c0_3 = arith.constant 0 : index
    %c0_4 = arith.constant 0 : index
    %9 = vector.load %arg2[%c0_3, %c0_4] : memref<2x128xf32, #tpu.memory_space<vmem>>, vector<2x128xf32>
    %10 = tpu.concatenate %5, %8 in 0 : vector<1x128xf32>, vector<1x128xf32> -> vector<2x128xf32>
    %11 = arith.addf %9, %10 : vector<2x128xf32>
    %c0_5 = arith.constant 0 : index
    %c0_6 = arith.constant 0 : index
    %12 = vector.load %arg2[%c0_5, %c0_6] : memref<2x128xf32, #tpu.memory_space<vmem>>, vector<2x128xf32>
    tpu.vector_store %arg2[%c0_5, %c0_6], %11 {strides = array<i32>} : memref<2x128xf32, #tpu.memory_space<vmem>>, vector<2x128xf32>,
    return
  }
  func.func @transform_0(%arg0: i32) -> (i32, i32) {
    %c0_i32 = arith.constant 0 : i32
    %c0_i32_0 = arith.constant 0 : i32
    return %arg0, %c0_i32 : i32, i32
  }
  func.func @transform_1(%arg0: i32) -> (i32, i32) {
    %c0_i32 = arith.constant 0 : i32
    %c0_i32_0 = arith.constant 0 : i32
    %c0_i32_1 = arith.constant 0 : i32
    return %c0_i32, %c0_i32_0 : i32, i32
  }
}

module attributes {stable_mosaic.version = 11 : i64} {
  func.func @_bn_apply_kernel(%arg0: i32, %arg1: memref<32x128xf32, #tpu.memory_space<vmem>>, %arg2: memref<1x128xf32, #tpu.memory_space<vmem>>, %arg3: memref<1x128xf32, #tpu.memory_space<vmem>>, %arg4: memref<32x128xf32, #tpu.memory_space<vmem>>) attributes {dimension_semantics = [#tpu.dimension_semantics<parallel>], iteration_bounds = array<i64: 1>, scalar_prefetch = 0 : i64, scratch_operands = 0 : i64, tpu.core_type = #tpu.core_type<tc>, window_params = [{transform_indices = @transform_0, window_bounds = array<i64: 32, 128>}, {pipeline_mode = #tpu.pipeline_mode<synchronous>, transform_indices = @transform_1, window_bounds = array<i64: 1, 128>}, {pipeline_mode = #tpu.pipeline_mode<synchronous>, transform_indices = @transform_2, window_bounds = array<i64: 1, 128>}, {transform_indices = @transform_3, window_bounds = array<i64: 32, 128>}]} {
    %c0 = arith.constant 0 : index
    %c0_0 = arith.constant 0 : index
    %0 = vector.load %arg1[%c0, %c0_0] : memref<32x128xf32, #tpu.memory_space<vmem>>, vector<32x128xf32>
    %c0_1 = arith.constant 0 : index
    %c0_2 = arith.constant 0 : index
    %1 = vector.load %arg2[%c0_1, %c0_2] : memref<1x128xf32, #tpu.memory_space<vmem>>, vector<1x128xf32>
    %2 = vector.broadcast %1 : vector<1x128xf32> to vector<32x128xf32>
    %3 = arith.mulf %0, %2 : vector<32x128xf32>
    %c0_3 = arith.constant 0 : index
    %c0_4 = arith.constant 0 : index
    %4 = vector.load %arg3[%c0_3, %c0_4] : memref<1x128xf32, #tpu.memory_space<vmem>>, vector<1x128xf32>
    %5 = vector.broadcast %4 : vector<1x128xf32> to vector<32x128xf32>
    %6 = arith.addf %3, %5 : vector<32x128xf32>
    %c0_5 = arith.constant 0 : index
    %c0_6 = arith.constant 0 : index
    %7 = vector.load %arg4[%c0_5, %c0_6] : memref<32x128xf32, #tpu.memory_space<vmem>>, vector<32x128xf32>
    tpu.vector_store %arg4[%c0_5, %c0_6], %6 {strides = array<i32>} : memref<32x128xf32, #tpu.memory_space<vmem>>, vector<32x128xf32>,
    return
  }
  func.func @transform_0(%arg0: i32) -> (i32, i32) {
    %c0_i32 = arith.constant 0 : i32
    %c0_i32_0 = arith.constant 0 : i32
    return %arg0, %c0_i32 : i32, i32
  }
  func.func @transform_1(%arg0: i32) -> (i32, i32) {
    %c0_i32 = arith.constant 0 : i32
    %c0_i32_0 = arith.constant 0 : i32
    %c0_i32_1 = arith.constant 0 : i32
    return %c0_i32, %c0_i32_0 : i32, i32
  }
  func.func @transform_2(%arg0: i32) -> (i32, i32) {
    %c0_i32 = arith.constant 0 : i32
    %c0_i32_0 = arith.constant 0 : i32
    %c0_i32_1 = arith.constant 0 : i32
    return %c0_i32, %c0_i32_0 : i32, i32
  }
  func.func @transform_3(%arg0: i32) -> (i32, i32) {
    %c0_i32 = arith.constant 0 : i32
    %c0_i32_0 = arith.constant 0 : i32
    return %arg0, %c0_i32 : i32, i32
  }
}

module attributes {stable_mosaic.version = 11 : i64} {
  func.func @_mm_kernel_nk1(%arg0: i32, %arg1: i32, %arg2: memref<32x256xbf16, #tpu.memory_space<vmem>>, %arg3: memref<256x128xbf16, #tpu.memory_space<vmem>>, %arg4: memref<1x128xf32, #tpu.memory_space<vmem>>, %arg5: memref<32x128xf32, #tpu.memory_space<vmem>>) attributes {dimension_semantics = [#tpu.dimension_semantics<parallel>, #tpu.dimension_semantics<parallel>], iteration_bounds = array<i64: 1, 1>, scalar_prefetch = 0 : i64, scratch_operands = 0 : i64, tpu.core_type = #tpu.core_type<tc>, window_params = [{transform_indices = @transform_0, window_bounds = array<i64: 32, 256>}, {transform_indices = @transform_1, window_bounds = array<i64: 256, 128>}, {transform_indices = @transform_2, window_bounds = array<i64: 1, 128>}, {transform_indices = @transform_3, window_bounds = array<i64: 32, 128>}]} {
    %c0 = arith.constant 0 : index
    %c0_0 = arith.constant 0 : index
    %0 = vector.load %arg2[%c0, %c0_0] : memref<32x256xbf16, #tpu.memory_space<vmem>>, vector<32x256xbf16>
    %c0_1 = arith.constant 0 : index
    %c0_2 = arith.constant 0 : index
    %1 = vector.load %arg3[%c0_1, %c0_2] : memref<256x128xbf16, #tpu.memory_space<vmem>>, vector<256x128xbf16>
    %cst = arith.constant dense<0.000000e+00> : vector<32x128xf32>
    %2 = tpu.matmul %0, %1, %cst {dimension_numbers = #tpu.dot_dimension_numbers<[1], [0], [0], [1], [0, 0, 1, 1], [], []>} : vector<32x256xbf16>, vector<256x128xbf16>, vector<32x128xf32> -> vector<32x128xf32>
    %c0_3 = arith.constant 0 : index
    %c0_4 = arith.constant 0 : index
    %3 = vector.load %arg4[%c0_3, %c0_4] : memref<1x128xf32, #tpu.memory_space<vmem>>, vector<1x128xf32>
    %4 = vector.broadcast %3 : vector<1x128xf32> to vector<32x128xf32>
    %5 = arith.addf %2, %4 : vector<32x128xf32>
    %c0_5 = arith.constant 0 : index
    %c0_6 = arith.constant 0 : index
    %6 = vector.load %arg5[%c0_5, %c0_6] : memref<32x128xf32, #tpu.memory_space<vmem>>, vector<32x128xf32>
    tpu.vector_store %arg5[%c0_5, %c0_6], %5 {strides = array<i32>} : memref<32x128xf32, #tpu.memory_space<vmem>>, vector<32x128xf32>,
    return
  }
  func.func @transform_0(%arg0: i32, %arg1: i32) -> (i32, i32) {
    %c0_i32 = arith.constant 0 : i32
    %c0_i32_0 = arith.constant 0 : i32
    return %arg0, %c0_i32 : i32, i32
  }
  func.func @transform_1(%arg0: i32, %arg1: i32) -> (i32, i32) {
    %c0_i32 = arith.constant 0 : i32
    %c0_i32_0 = arith.constant 0 : i32
    return %c0_i32, %arg1 : i32, i32
  }
  func.func @transform_2(%arg0: i32, %arg1: i32) -> (i32, i32) {
    %c0_i32 = arith.constant 0 : i32
    %c0_i32_0 = arith.constant 0 : i32
    return %c0_i32, %arg1 : i32, i32
  }
  func.func @transform_3(%arg0: i32, %arg1: i32) -> (i32, i32) {
    %c0_i32 = arith.constant 0 : i32
    return %arg0, %arg1 : i32, i32
  }
}

module attributes {stable_mosaic.version = 11 : i64} {
  func.func @_mm_kernel_nk1(%arg0: i32, %arg1: i32, %arg2: memref<16x512xbf16, #tpu.memory_space<vmem>>, %arg3: memref<512x128xbf16, #tpu.memory_space<vmem>>, %arg4: memref<1x128xf32, #tpu.memory_space<vmem>>, %arg5: memref<16x128xf32, #tpu.memory_space<vmem>>) attributes {dimension_semantics = [#tpu.dimension_semantics<parallel>, #tpu.dimension_semantics<parallel>], iteration_bounds = array<i64: 1, 1>, scalar_prefetch = 0 : i64, scratch_operands = 0 : i64, tpu.core_type = #tpu.core_type<tc>, window_params = [{transform_indices = @transform_0, window_bounds = array<i64: 16, 512>}, {transform_indices = @transform_1, window_bounds = array<i64: 512, 128>}, {transform_indices = @transform_2, window_bounds = array<i64: 1, 128>}, {transform_indices = @transform_3, window_bounds = array<i64: 16, 128>}]} {
    %c0 = arith.constant 0 : index
    %c0_0 = arith.constant 0 : index
    %0 = vector.load %arg2[%c0, %c0_0] : memref<16x512xbf16, #tpu.memory_space<vmem>>, vector<16x512xbf16>
    %c0_1 = arith.constant 0 : index
    %c0_2 = arith.constant 0 : index
    %1 = vector.load %arg3[%c0_1, %c0_2] : memref<512x128xbf16, #tpu.memory_space<vmem>>, vector<512x128xbf16>
    %cst = arith.constant dense<0.000000e+00> : vector<16x128xf32>
    %2 = tpu.matmul %0, %1, %cst {dimension_numbers = #tpu.dot_dimension_numbers<[1], [0], [0], [1], [0, 0, 1, 1], [], []>} : vector<16x512xbf16>, vector<512x128xbf16>, vector<16x128xf32> -> vector<16x128xf32>
    %c0_3 = arith.constant 0 : index
    %c0_4 = arith.constant 0 : index
    %3 = vector.load %arg4[%c0_3, %c0_4] : memref<1x128xf32, #tpu.memory_space<vmem>>, vector<1x128xf32>
    %4 = vector.broadcast %3 : vector<1x128xf32> to vector<16x128xf32>
    %5 = arith.addf %2, %4 : vector<16x128xf32>
    %c0_5 = arith.constant 0 : index
    %c0_6 = arith.constant 0 : index
    %6 = vector.load %arg5[%c0_5, %c0_6] : memref<16x128xf32, #tpu.memory_space<vmem>>, vector<16x128xf32>
    tpu.vector_store %arg5[%c0_5, %c0_6], %5 {strides = array<i32>} : memref<16x128xf32, #tpu.memory_space<vmem>>, vector<16x128xf32>,
    return
  }
  func.func @transform_0(%arg0: i32, %arg1: i32) -> (i32, i32) {
    %c0_i32 = arith.constant 0 : i32
    %c0_i32_0 = arith.constant 0 : i32
    return %arg0, %c0_i32 : i32, i32
  }
  func.func @transform_1(%arg0: i32, %arg1: i32) -> (i32, i32) {
    %c0_i32 = arith.constant 0 : i32
    %c0_i32_0 = arith.constant 0 : i32
    return %c0_i32, %arg1 : i32, i32
  }
  func.func @transform_2(%arg0: i32, %arg1: i32) -> (i32, i32) {
    %c0_i32 = arith.constant 0 : i32
    %c0_i32_0 = arith.constant 0 : i32
    return %c0_i32, %arg1 : i32, i32
  }
  func.func @transform_3(%arg0: i32, %arg1: i32) -> (i32, i32) {
    %c0_i32 = arith.constant 0 : i32
    return %arg0, %arg1 : i32, i32
  }
}

module attributes {stable_mosaic.version = 11 : i64} {
  func.func @_bn_apply_kernel(%arg0: i32, %arg1: memref<8x128xf32, #tpu.memory_space<vmem>>, %arg2: memref<1x128xf32, #tpu.memory_space<vmem>>, %arg3: memref<1x128xf32, #tpu.memory_space<vmem>>, %arg4: memref<8x128xf32, #tpu.memory_space<vmem>>) attributes {dimension_semantics = [#tpu.dimension_semantics<parallel>], iteration_bounds = array<i64: 1>, scalar_prefetch = 0 : i64, scratch_operands = 0 : i64, tpu.core_type = #tpu.core_type<tc>, window_params = [{transform_indices = @transform_0, window_bounds = array<i64: 8, 128>}, {pipeline_mode = #tpu.pipeline_mode<synchronous>, transform_indices = @transform_1, window_bounds = array<i64: 1, 128>}, {pipeline_mode = #tpu.pipeline_mode<synchronous>, transform_indices = @transform_2, window_bounds = array<i64: 1, 128>}, {transform_indices = @transform_3, window_bounds = array<i64: 8, 128>}]} {
    %c0 = arith.constant 0 : index
    %c0_0 = arith.constant 0 : index
    %0 = vector.load %arg1[%c0, %c0_0] : memref<8x128xf32, #tpu.memory_space<vmem>>, vector<8x128xf32>
    %c0_1 = arith.constant 0 : index
    %c0_2 = arith.constant 0 : index
    %1 = vector.load %arg2[%c0_1, %c0_2] : memref<1x128xf32, #tpu.memory_space<vmem>>, vector<1x128xf32>
    %2 = vector.broadcast %1 : vector<1x128xf32> to vector<8x128xf32>
    %3 = arith.mulf %0, %2 : vector<8x128xf32>
    %c0_3 = arith.constant 0 : index
    %c0_4 = arith.constant 0 : index
    %4 = vector.load %arg3[%c0_3, %c0_4] : memref<1x128xf32, #tpu.memory_space<vmem>>, vector<1x128xf32>
    %5 = vector.broadcast %4 : vector<1x128xf32> to vector<8x128xf32>
    %6 = arith.addf %3, %5 : vector<8x128xf32>
    %c0_5 = arith.constant 0 : index
    %c0_6 = arith.constant 0 : index
    %7 = vector.load %arg4[%c0_5, %c0_6] : memref<8x128xf32, #tpu.memory_space<vmem>>, vector<8x128xf32>
    tpu.vector_store %arg4[%c0_5, %c0_6], %6 {strides = array<i32>} : memref<8x128xf32, #tpu.memory_space<vmem>>, vector<8x128xf32>,
    return
  }
  func.func @transform_0(%arg0: i32) -> (i32, i32) {
    %c0_i32 = arith.constant 0 : i32
    %c0_i32_0 = arith.constant 0 : i32
    return %arg0, %c0_i32 : i32, i32
  }
  func.func @transform_1(%arg0: i32) -> (i32, i32) {
    %c0_i32 = arith.constant 0 : i32
    %c0_i32_0 = arith.constant 0 : i32
    %c0_i32_1 = arith.constant 0 : i32
    return %c0_i32, %c0_i32_0 : i32, i32
  }
  func.func @transform_2(%arg0: i32) -> (i32, i32) {
    %c0_i32 = arith.constant 0 : i32
    %c0_i32_0 = arith.constant 0 : i32
    %c0_i32_1 = arith.constant 0 : i32
    return %c0_i32, %c0_i32_0 : i32, i32
  }
  func.func @transform_3(%arg0: i32) -> (i32, i32) {
    %c0_i32 = arith.constant 0 : i32
    %c0_i32_0 = arith.constant 0 : i32
    return %arg0, %c0_i32 : i32, i32
  }
}

module attributes {stable_mosaic.version = 11 : i64} {
  func.func @_bn_stats_kernel(%arg0: i32, %arg1: memref<8x128xf32, #tpu.memory_space<vmem>>, %arg2: memref<2x128xf32, #tpu.memory_space<vmem>>) attributes {dimension_semantics = [#tpu.dimension_semantics<arbitrary>], iteration_bounds = array<i64: 1>, scalar_prefetch = 0 : i64, scratch_operands = 0 : i64, tpu.core_type = #tpu.core_type<tc>, window_params = [{transform_indices = @transform_0, window_bounds = array<i64: 8, 128>}, {pipeline_mode = #tpu.pipeline_mode<synchronous>, transform_indices = @transform_1, window_bounds = array<i64: 2, 128>}]} {
    %c0_i32 = arith.constant 0 : i32
    %0 = arith.cmpi eq, %arg0, %c0_i32 : i32
    %1 = arith.extui %0 : i1 to i32
    %c0_i32_0 = arith.constant 0 : i32
    %2 = arith.cmpi ne, %1, %c0_i32_0 : i32
    scf.if %2 {
      %cst_7 = arith.constant 0.000000e+00 : f32
      %13 = vector.broadcast %cst_7 : f32 to vector<2x128xf32>
      %c0_8 = arith.constant 0 : index
      %c0_9 = arith.constant 0 : index
      %14 = vector.load %arg2[%c0_8, %c0_9] : memref<2x128xf32, #tpu.memory_space<vmem>>, vector<2x128xf32>
      tpu.vector_store %arg2[%c0_8, %c0_9], %13 {strides = array<i32>} : memref<2x128xf32, #tpu.memory_space<vmem>>, vector<2x128xf32>,
    } else {
    }
    %c0 = arith.constant 0 : index
    %c0_1 = arith.constant 0 : index
    %3 = vector.load %arg1[%c0, %c0_1] : memref<8x128xf32, #tpu.memory_space<vmem>>, vector<8x128xf32>
    %cst = arith.constant dense<0.000000e+00> : vector<128xf32>
    %4 = vector.multi_reduction <add>, %3, %cst [0] : vector<8x128xf32> to vector<128xf32>
    %5 = vector.shape_cast %4 : vector<128xf32> to vector<1x128xf32>
    %6 = arith.mulf %3, %3 : vector<8x128xf32>
    %cst_2 = arith.constant dense<0.000000e+00> : vector<128xf32>
    %7 = vector.multi_reduction <add>, %6, %cst_2 [0] : vector<8x128xf32> to vector<128xf32>
    %8 = vector.shape_cast %7 : vector<128xf32> to vector<1x128xf32>
    %c0_3 = arith.constant 0 : index
    %c0_4 = arith.constant 0 : index
    %9 = vector.load %arg2[%c0_3, %c0_4] : memref<2x128xf32, #tpu.memory_space<vmem>>, vector<2x128xf32>
    %10 = tpu.concatenate %5, %8 in 0 : vector<1x128xf32>, vector<1x128xf32> -> vector<2x128xf32>
    %11 = arith.addf %9, %10 : vector<2x128xf32>
    %c0_5 = arith.constant 0 : index
    %c0_6 = arith.constant 0 : index
    %12 = vector.load %arg2[%c0_5, %c0_6] : memref<2x128xf32, #tpu.memory_space<vmem>>, vector<2x128xf32>
    tpu.vector_store %arg2[%c0_5, %c0_6], %11 {strides = array<i32>} : memref<2x128xf32, #tpu.memory_space<vmem>>, vector<2x128xf32>,
    return
  }
  func.func @transform_0(%arg0: i32) -> (i32, i32) {
    %c0_i32 = arith.constant 0 : i32
    %c0_i32_0 = arith.constant 0 : i32
    return %arg0, %c0_i32 : i32, i32
  }
  func.func @transform_1(%arg0: i32) -> (i32, i32) {
    %c0_i32 = arith.constant 0 : i32
    %c0_i32_0 = arith.constant 0 : i32
    %c0_i32_1 = arith.constant 0 : i32
    return %c0_i32, %c0_i32_0 : i32, i32
  }
}

module attributes {stable_mosaic.version = 11 : i64} {
  func.func @_mm_kernel_nk1(%arg0: i32, %arg1: i32, %arg2: memref<16x1024xbf16, #tpu.memory_space<vmem>>, %arg3: memref<1024x128xbf16, #tpu.memory_space<vmem>>, %arg4: memref<1x128xf32, #tpu.memory_space<vmem>>, %arg5: memref<16x128xf32, #tpu.memory_space<vmem>>) attributes {dimension_semantics = [#tpu.dimension_semantics<parallel>, #tpu.dimension_semantics<parallel>], iteration_bounds = array<i64: 1, 1>, scalar_prefetch = 0 : i64, scratch_operands = 0 : i64, tpu.core_type = #tpu.core_type<tc>, window_params = [{transform_indices = @transform_0, window_bounds = array<i64: 16, 1024>}, {transform_indices = @transform_1, window_bounds = array<i64: 1024, 128>}, {transform_indices = @transform_2, window_bounds = array<i64: 1, 128>}, {transform_indices = @transform_3, window_bounds = array<i64: 16, 128>}]} {
    %c0 = arith.constant 0 : index
    %c0_0 = arith.constant 0 : index
    %0 = vector.load %arg2[%c0, %c0_0] : memref<16x1024xbf16, #tpu.memory_space<vmem>>, vector<16x1024xbf16>
    %c0_1 = arith.constant 0 : index
    %c0_2 = arith.constant 0 : index
    %1 = vector.load %arg3[%c0_1, %c0_2] : memref<1024x128xbf16, #tpu.memory_space<vmem>>, vector<1024x128xbf16>
    %cst = arith.constant dense<0.000000e+00> : vector<16x128xf32>
    %2 = tpu.matmul %0, %1, %cst {dimension_numbers = #tpu.dot_dimension_numbers<[1], [0], [0], [1], [0, 0, 1, 1], [], []>} : vector<16x1024xbf16>, vector<1024x128xbf16>, vector<16x128xf32> -> vector<16x128xf32>
    %c0_3 = arith.constant 0 : index
    %c0_4 = arith.constant 0 : index
    %3 = vector.load %arg4[%c0_3, %c0_4] : memref<1x128xf32, #tpu.memory_space<vmem>>, vector<1x128xf32>
    %4 = vector.broadcast %3 : vector<1x128xf32> to vector<16x128xf32>
    %5 = arith.addf %2, %4 : vector<16x128xf32>
    %c0_5 = arith.constant 0 : index
    %c0_6 = arith.constant 0 : index
    %6 = vector.load %arg5[%c0_5, %c0_6] : memref<16x128xf32, #tpu.memory_space<vmem>>, vector<16x128xf32>
    tpu.vector_store %arg5[%c0_5, %c0_6], %5 {strides = array<i32>} : memref<16x128xf32, #tpu.memory_space<vmem>>, vector<16x128xf32>,
    return
  }
  func.func @transform_0(%arg0: i32, %arg1: i32) -> (i32, i32) {
    %c0_i32 = arith.constant 0 : i32
    %c0_i32_0 = arith.constant 0 : i32
    return %arg0, %c0_i32 : i32, i32
  }
  func.func @transform_1(%arg0: i32, %arg1: i32) -> (i32, i32) {
    %c0_i32 = arith.constant 0 : i32
    %c0_i32_0 = arith.constant 0 : i32
    return %c0_i32, %arg1 : i32, i32
  }
  func.func @transform_2(%arg0: i32, %arg1: i32) -> (i32, i32) {
    %c0_i32 = arith.constant 0 : i32
    %c0_i32_0 = arith.constant 0 : i32
    return %c0_i32, %arg1 : i32, i32
  }
  func.func @transform_3(%arg0: i32, %arg1: i32) -> (i32, i32) {
    %c0_i32 = arith.constant 0 : i32
    return %arg0, %arg1 : i32, i32
  }
}

module attributes {stable_mosaic.version = 11 : i64} {
  func.func @_mm_kernel_nk1(%arg0: i32, %arg1: i32, %arg2: memref<16x128xbf16, #tpu.memory_space<vmem>>, %arg3: memref<128x1024xbf16, #tpu.memory_space<vmem>>, %arg4: memref<1x1024xf32, #tpu.memory_space<vmem>>, %arg5: memref<16x1024xf32, #tpu.memory_space<vmem>>) attributes {dimension_semantics = [#tpu.dimension_semantics<parallel>, #tpu.dimension_semantics<parallel>], iteration_bounds = array<i64: 1, 1>, scalar_prefetch = 0 : i64, scratch_operands = 0 : i64, tpu.core_type = #tpu.core_type<tc>, window_params = [{transform_indices = @transform_0, window_bounds = array<i64: 16, 128>}, {transform_indices = @transform_1, window_bounds = array<i64: 128, 1024>}, {transform_indices = @transform_2, window_bounds = array<i64: 1, 1024>}, {transform_indices = @transform_3, window_bounds = array<i64: 16, 1024>}]} {
    %c0 = arith.constant 0 : index
    %c0_0 = arith.constant 0 : index
    %0 = vector.load %arg2[%c0, %c0_0] : memref<16x128xbf16, #tpu.memory_space<vmem>>, vector<16x128xbf16>
    %c0_1 = arith.constant 0 : index
    %c0_2 = arith.constant 0 : index
    %1 = vector.load %arg3[%c0_1, %c0_2] : memref<128x1024xbf16, #tpu.memory_space<vmem>>, vector<128x1024xbf16>
    %cst = arith.constant dense<0.000000e+00> : vector<16x1024xf32>
    %2 = tpu.matmul %0, %1, %cst {dimension_numbers = #tpu.dot_dimension_numbers<[1], [0], [0], [1], [0, 0, 1, 1], [], []>} : vector<16x128xbf16>, vector<128x1024xbf16>, vector<16x1024xf32> -> vector<16x1024xf32>
    %c0_3 = arith.constant 0 : index
    %c0_4 = arith.constant 0 : index
    %3 = vector.load %arg4[%c0_3, %c0_4] : memref<1x1024xf32, #tpu.memory_space<vmem>>, vector<1x1024xf32>
    %4 = vector.broadcast %3 : vector<1x1024xf32> to vector<16x1024xf32>
    %5 = arith.addf %2, %4 : vector<16x1024xf32>
    %c0_5 = arith.constant 0 : index
    %c0_6 = arith.constant 0 : index
    %6 = vector.load %arg5[%c0_5, %c0_6] : memref<16x1024xf32, #tpu.memory_space<vmem>>, vector<16x1024xf32>
    tpu.vector_store %arg5[%c0_5, %c0_6], %5 {strides = array<i32>} : memref<16x1024xf32, #tpu.memory_space<vmem>>, vector<16x1024xf32>,
    return
  }
  func.func @transform_0(%arg0: i32, %arg1: i32) -> (i32, i32) {
    %c0_i32 = arith.constant 0 : i32
    %c0_i32_0 = arith.constant 0 : i32
    return %arg0, %c0_i32 : i32, i32
  }
  func.func @transform_1(%arg0: i32, %arg1: i32) -> (i32, i32) {
    %c0_i32 = arith.constant 0 : i32
    %c0_i32_0 = arith.constant 0 : i32
    return %c0_i32, %arg1 : i32, i32
  }
  func.func @transform_2(%arg0: i32, %arg1: i32) -> (i32, i32) {
    %c0_i32 = arith.constant 0 : i32
    %c0_i32_0 = arith.constant 0 : i32
    return %c0_i32, %arg1 : i32, i32
  }
  func.func @transform_3(%arg0: i32, %arg1: i32) -> (i32, i32) {
    %c0_i32 = arith.constant 0 : i32
    return %arg0, %arg1 : i32, i32
  }
}

module attributes {stable_mosaic.version = 11 : i64} {
  func.func @_mm_kernel_nk1(%arg0: i32, %arg1: i32, %arg2: memref<16x128xbf16, #tpu.memory_space<vmem>>, %arg3: memref<128x512xbf16, #tpu.memory_space<vmem>>, %arg4: memref<1x512xf32, #tpu.memory_space<vmem>>, %arg5: memref<16x512xf32, #tpu.memory_space<vmem>>) attributes {dimension_semantics = [#tpu.dimension_semantics<parallel>, #tpu.dimension_semantics<parallel>], iteration_bounds = array<i64: 1, 1>, scalar_prefetch = 0 : i64, scratch_operands = 0 : i64, tpu.core_type = #tpu.core_type<tc>, window_params = [{transform_indices = @transform_0, window_bounds = array<i64: 16, 128>}, {transform_indices = @transform_1, window_bounds = array<i64: 128, 512>}, {transform_indices = @transform_2, window_bounds = array<i64: 1, 512>}, {transform_indices = @transform_3, window_bounds = array<i64: 16, 512>}]} {
    %c0 = arith.constant 0 : index
    %c0_0 = arith.constant 0 : index
    %0 = vector.load %arg2[%c0, %c0_0] : memref<16x128xbf16, #tpu.memory_space<vmem>>, vector<16x128xbf16>
    %c0_1 = arith.constant 0 : index
    %c0_2 = arith.constant 0 : index
    %1 = vector.load %arg3[%c0_1, %c0_2] : memref<128x512xbf16, #tpu.memory_space<vmem>>, vector<128x512xbf16>
    %cst = arith.constant dense<0.000000e+00> : vector<16x512xf32>
    %2 = tpu.matmul %0, %1, %cst {dimension_numbers = #tpu.dot_dimension_numbers<[1], [0], [0], [1], [0, 0, 1, 1], [], []>} : vector<16x128xbf16>, vector<128x512xbf16>, vector<16x512xf32> -> vector<16x512xf32>
    %c0_3 = arith.constant 0 : index
    %c0_4 = arith.constant 0 : index
    %3 = vector.load %arg4[%c0_3, %c0_4] : memref<1x512xf32, #tpu.memory_space<vmem>>, vector<1x512xf32>
    %4 = vector.broadcast %3 : vector<1x512xf32> to vector<16x512xf32>
    %5 = arith.addf %2, %4 : vector<16x512xf32>
    %c0_5 = arith.constant 0 : index
    %c0_6 = arith.constant 0 : index
    %6 = vector.load %arg5[%c0_5, %c0_6] : memref<16x512xf32, #tpu.memory_space<vmem>>, vector<16x512xf32>
    tpu.vector_store %arg5[%c0_5, %c0_6], %5 {strides = array<i32>} : memref<16x512xf32, #tpu.memory_space<vmem>>, vector<16x512xf32>,
    return
  }
  func.func @transform_0(%arg0: i32, %arg1: i32) -> (i32, i32) {
    %c0_i32 = arith.constant 0 : i32
    %c0_i32_0 = arith.constant 0 : i32
    return %arg0, %c0_i32 : i32, i32
  }
  func.func @transform_1(%arg0: i32, %arg1: i32) -> (i32, i32) {
    %c0_i32 = arith.constant 0 : i32
    %c0_i32_0 = arith.constant 0 : i32
    return %c0_i32, %arg1 : i32, i32
  }
  func.func @transform_2(%arg0: i32, %arg1: i32) -> (i32, i32) {
    %c0_i32 = arith.constant 0 : i32
    %c0_i32_0 = arith.constant 0 : i32
    return %c0_i32, %arg1 : i32, i32
  }
  func.func @transform_3(%arg0: i32, %arg1: i32) -> (i32, i32) {
    %c0_i32 = arith.constant 0 : i32
    return %arg0, %arg1 : i32, i32
  }
}

module attributes {stable_mosaic.version = 11 : i64} {
  func.func @_mm_kernel_nk1(%arg0: i32, %arg1: i32, %arg2: memref<32x128xbf16, #tpu.memory_space<vmem>>, %arg3: memref<128x256xbf16, #tpu.memory_space<vmem>>, %arg4: memref<1x256xf32, #tpu.memory_space<vmem>>, %arg5: memref<32x256xf32, #tpu.memory_space<vmem>>) attributes {dimension_semantics = [#tpu.dimension_semantics<parallel>, #tpu.dimension_semantics<parallel>], iteration_bounds = array<i64: 1, 1>, scalar_prefetch = 0 : i64, scratch_operands = 0 : i64, tpu.core_type = #tpu.core_type<tc>, window_params = [{transform_indices = @transform_0, window_bounds = array<i64: 32, 128>}, {transform_indices = @transform_1, window_bounds = array<i64: 128, 256>}, {transform_indices = @transform_2, window_bounds = array<i64: 1, 256>}, {transform_indices = @transform_3, window_bounds = array<i64: 32, 256>}]} {
    %c0 = arith.constant 0 : index
    %c0_0 = arith.constant 0 : index
    %0 = vector.load %arg2[%c0, %c0_0] : memref<32x128xbf16, #tpu.memory_space<vmem>>, vector<32x128xbf16>
    %c0_1 = arith.constant 0 : index
    %c0_2 = arith.constant 0 : index
    %1 = vector.load %arg3[%c0_1, %c0_2] : memref<128x256xbf16, #tpu.memory_space<vmem>>, vector<128x256xbf16>
    %cst = arith.constant dense<0.000000e+00> : vector<32x256xf32>
    %2 = tpu.matmul %0, %1, %cst {dimension_numbers = #tpu.dot_dimension_numbers<[1], [0], [0], [1], [0, 0, 1, 1], [], []>} : vector<32x128xbf16>, vector<128x256xbf16>, vector<32x256xf32> -> vector<32x256xf32>
    %c0_3 = arith.constant 0 : index
    %c0_4 = arith.constant 0 : index
    %3 = vector.load %arg4[%c0_3, %c0_4] : memref<1x256xf32, #tpu.memory_space<vmem>>, vector<1x256xf32>
    %4 = vector.broadcast %3 : vector<1x256xf32> to vector<32x256xf32>
    %5 = arith.addf %2, %4 : vector<32x256xf32>
    %c0_5 = arith.constant 0 : index
    %c0_6 = arith.constant 0 : index
    %6 = vector.load %arg5[%c0_5, %c0_6] : memref<32x256xf32, #tpu.memory_space<vmem>>, vector<32x256xf32>
    tpu.vector_store %arg5[%c0_5, %c0_6], %5 {strides = array<i32>} : memref<32x256xf32, #tpu.memory_space<vmem>>, vector<32x256xf32>,
    return
  }
  func.func @transform_0(%arg0: i32, %arg1: i32) -> (i32, i32) {
    %c0_i32 = arith.constant 0 : i32
    %c0_i32_0 = arith.constant 0 : i32
    return %arg0, %c0_i32 : i32, i32
  }
  func.func @transform_1(%arg0: i32, %arg1: i32) -> (i32, i32) {
    %c0_i32 = arith.constant 0 : i32
    %c0_i32_0 = arith.constant 0 : i32
    return %c0_i32, %arg1 : i32, i32
  }
  func.func @transform_2(%arg0: i32, %arg1: i32) -> (i32, i32) {
    %c0_i32 = arith.constant 0 : i32
    %c0_i32_0 = arith.constant 0 : i32
    return %c0_i32, %arg1 : i32, i32
  }
  func.func @transform_3(%arg0: i32, %arg1: i32) -> (i32, i32) {
    %c0_i32 = arith.constant 0 : i32
    return %arg0, %arg1 : i32, i32
  }
}

module attributes {stable_mosaic.version = 11 : i64} {
  func.func @_bn_stats_kernel(%arg0: i32, %arg1: memref<512x128xf32, #tpu.memory_space<vmem>>, %arg2: memref<2x128xf32, #tpu.memory_space<vmem>>) attributes {dimension_semantics = [#tpu.dimension_semantics<arbitrary>], iteration_bounds = array<i64: 1>, scalar_prefetch = 0 : i64, scratch_operands = 0 : i64, tpu.core_type = #tpu.core_type<tc>, window_params = [{transform_indices = @transform_0, window_bounds = array<i64: 512, 128>}, {pipeline_mode = #tpu.pipeline_mode<synchronous>, transform_indices = @transform_1, window_bounds = array<i64: 2, 128>}]} {
    %c0_i32 = arith.constant 0 : i32
    %0 = arith.cmpi eq, %arg0, %c0_i32 : i32
    %1 = arith.extui %0 : i1 to i32
    %c0_i32_0 = arith.constant 0 : i32
    %2 = arith.cmpi ne, %1, %c0_i32_0 : i32
    scf.if %2 {
      %cst_7 = arith.constant 0.000000e+00 : f32
      %13 = vector.broadcast %cst_7 : f32 to vector<2x128xf32>
      %c0_8 = arith.constant 0 : index
      %c0_9 = arith.constant 0 : index
      %14 = vector.load %arg2[%c0_8, %c0_9] : memref<2x128xf32, #tpu.memory_space<vmem>>, vector<2x128xf32>
      tpu.vector_store %arg2[%c0_8, %c0_9], %13 {strides = array<i32>} : memref<2x128xf32, #tpu.memory_space<vmem>>, vector<2x128xf32>,
    } else {
    }
    %c0 = arith.constant 0 : index
    %c0_1 = arith.constant 0 : index
    %3 = vector.load %arg1[%c0, %c0_1] : memref<512x128xf32, #tpu.memory_space<vmem>>, vector<512x128xf32>
    %cst = arith.constant dense<0.000000e+00> : vector<128xf32>
    %4 = vector.multi_reduction <add>, %3, %cst [0] : vector<512x128xf32> to vector<128xf32>
    %5 = vector.shape_cast %4 : vector<128xf32> to vector<1x128xf32>
    %6 = arith.mulf %3, %3 : vector<512x128xf32>
    %cst_2 = arith.constant dense<0.000000e+00> : vector<128xf32>
    %7 = vector.multi_reduction <add>, %6, %cst_2 [0] : vector<512x128xf32> to vector<128xf32>
    %8 = vector.shape_cast %7 : vector<128xf32> to vector<1x128xf32>
    %c0_3 = arith.constant 0 : index
    %c0_4 = arith.constant 0 : index
    %9 = vector.load %arg2[%c0_3, %c0_4] : memref<2x128xf32, #tpu.memory_space<vmem>>, vector<2x128xf32>
    %10 = tpu.concatenate %5, %8 in 0 : vector<1x128xf32>, vector<1x128xf32> -> vector<2x128xf32>
    %11 = arith.addf %9, %10 : vector<2x128xf32>
    %c0_5 = arith.constant 0 : index
    %c0_6 = arith.constant 0 : index
    %12 = vector.load %arg2[%c0_5, %c0_6] : memref<2x128xf32, #tpu.memory_space<vmem>>, vector<2x128xf32>
    tpu.vector_store %arg2[%c0_5, %c0_6], %11 {strides = array<i32>} : memref<2x128xf32, #tpu.memory_space<vmem>>, vector<2x128xf32>,
    return
  }
  func.func @transform_0(%arg0: i32) -> (i32, i32) {
    %c0_i32 = arith.constant 0 : i32
    %c0_i32_0 = arith.constant 0 : i32
    return %arg0, %c0_i32 : i32, i32
  }
  func.func @transform_1(%arg0: i32) -> (i32, i32) {
    %c0_i32 = arith.constant 0 : i32
    %c0_i32_0 = arith.constant 0 : i32
    %c0_i32_1 = arith.constant 0 : i32
    return %c0_i32, %c0_i32_0 : i32, i32
  }
}

module attributes {stable_mosaic.version = 11 : i64} {
  func.func @_bn_apply_kernel(%arg0: i32, %arg1: memref<512x128xf32, #tpu.memory_space<vmem>>, %arg2: memref<1x128xf32, #tpu.memory_space<vmem>>, %arg3: memref<1x128xf32, #tpu.memory_space<vmem>>, %arg4: memref<512x128xf32, #tpu.memory_space<vmem>>) attributes {dimension_semantics = [#tpu.dimension_semantics<parallel>], iteration_bounds = array<i64: 1>, scalar_prefetch = 0 : i64, scratch_operands = 0 : i64, tpu.core_type = #tpu.core_type<tc>, window_params = [{transform_indices = @transform_0, window_bounds = array<i64: 512, 128>}, {pipeline_mode = #tpu.pipeline_mode<synchronous>, transform_indices = @transform_1, window_bounds = array<i64: 1, 128>}, {pipeline_mode = #tpu.pipeline_mode<synchronous>, transform_indices = @transform_2, window_bounds = array<i64: 1, 128>}, {transform_indices = @transform_3, window_bounds = array<i64: 512, 128>}]} {
    %c0 = arith.constant 0 : index
    %c0_0 = arith.constant 0 : index
    %0 = vector.load %arg1[%c0, %c0_0] : memref<512x128xf32, #tpu.memory_space<vmem>>, vector<512x128xf32>
    %c0_1 = arith.constant 0 : index
    %c0_2 = arith.constant 0 : index
    %1 = vector.load %arg2[%c0_1, %c0_2] : memref<1x128xf32, #tpu.memory_space<vmem>>, vector<1x128xf32>
    %2 = vector.broadcast %1 : vector<1x128xf32> to vector<512x128xf32>
    %3 = arith.mulf %0, %2 : vector<512x128xf32>
    %c0_3 = arith.constant 0 : index
    %c0_4 = arith.constant 0 : index
    %4 = vector.load %arg3[%c0_3, %c0_4] : memref<1x128xf32, #tpu.memory_space<vmem>>, vector<1x128xf32>
    %5 = vector.broadcast %4 : vector<1x128xf32> to vector<512x128xf32>
    %6 = arith.addf %3, %5 : vector<512x128xf32>
    %c0_5 = arith.constant 0 : index
    %c0_6 = arith.constant 0 : index
    %7 = vector.load %arg4[%c0_5, %c0_6] : memref<512x128xf32, #tpu.memory_space<vmem>>, vector<512x128xf32>
    tpu.vector_store %arg4[%c0_5, %c0_6], %6 {strides = array<i32>} : memref<512x128xf32, #tpu.memory_space<vmem>>, vector<512x128xf32>,
    return
  }
  func.func @transform_0(%arg0: i32) -> (i32, i32) {
    %c0_i32 = arith.constant 0 : i32
    %c0_i32_0 = arith.constant 0 : i32
    return %arg0, %c0_i32 : i32, i32
  }
  func.func @transform_1(%arg0: i32) -> (i32, i32) {
    %c0_i32 = arith.constant 0 : i32
    %c0_i32_0 = arith.constant 0 : i32
    %c0_i32_1 = arith.constant 0 : i32
    return %c0_i32, %c0_i32_0 : i32, i32
  }
  func.func @transform_2(%arg0: i32) -> (i32, i32) {
    %c0_i32 = arith.constant 0 : i32
    %c0_i32_0 = arith.constant 0 : i32
    %c0_i32_1 = arith.constant 0 : i32
    return %c0_i32, %c0_i32_0 : i32, i32
  }
  func.func @transform_3(%arg0: i32) -> (i32, i32) {
    %c0_i32 = arith.constant 0 : i32
    %c0_i32_0 = arith.constant 0 : i32
    return %arg0, %c0_i32 : i32, i32
  }
}

module attributes {stable_mosaic.version = 11 : i64} {
  func.func @_mm_kernel_nk1(%arg0: i32, %arg1: i32, %arg2: memref<256x128xbf16, #tpu.memory_space<vmem>>, %arg3: memref<128x256xbf16, #tpu.memory_space<vmem>>, %arg4: memref<1x256xf32, #tpu.memory_space<vmem>>, %arg5: memref<256x256xf32, #tpu.memory_space<vmem>>) attributes {dimension_semantics = [#tpu.dimension_semantics<parallel>, #tpu.dimension_semantics<parallel>], iteration_bounds = array<i64: 2, 1>, scalar_prefetch = 0 : i64, scratch_operands = 0 : i64, tpu.core_type = #tpu.core_type<tc>, window_params = [{transform_indices = @transform_0, window_bounds = array<i64: 256, 128>}, {transform_indices = @transform_1, window_bounds = array<i64: 128, 256>}, {transform_indices = @transform_2, window_bounds = array<i64: 1, 256>}, {transform_indices = @transform_3, window_bounds = array<i64: 256, 256>}]} {
    %c0 = arith.constant 0 : index
    %c0_0 = arith.constant 0 : index
    %0 = vector.load %arg2[%c0, %c0_0] : memref<256x128xbf16, #tpu.memory_space<vmem>>, vector<256x128xbf16>
    %c0_1 = arith.constant 0 : index
    %c0_2 = arith.constant 0 : index
    %1 = vector.load %arg3[%c0_1, %c0_2] : memref<128x256xbf16, #tpu.memory_space<vmem>>, vector<128x256xbf16>
    %cst = arith.constant dense<0.000000e+00> : vector<256x256xf32>
    %2 = tpu.matmul %0, %1, %cst {dimension_numbers = #tpu.dot_dimension_numbers<[1], [0], [0], [1], [0, 0, 1, 1], [], []>} : vector<256x128xbf16>, vector<128x256xbf16>, vector<256x256xf32> -> vector<256x256xf32>
    %c0_3 = arith.constant 0 : index
    %c0_4 = arith.constant 0 : index
    %3 = vector.load %arg4[%c0_3, %c0_4] : memref<1x256xf32, #tpu.memory_space<vmem>>, vector<1x256xf32>
    %4 = vector.broadcast %3 : vector<1x256xf32> to vector<256x256xf32>
    %5 = arith.addf %2, %4 : vector<256x256xf32>
    %c0_5 = arith.constant 0 : index
    %c0_6 = arith.constant 0 : index
    %6 = vector.load %arg5[%c0_5, %c0_6] : memref<256x256xf32, #tpu.memory_space<vmem>>, vector<256x256xf32>
    tpu.vector_store %arg5[%c0_5, %c0_6], %5 {strides = array<i32>} : memref<256x256xf32, #tpu.memory_space<vmem>>, vector<256x256xf32>,
    return
  }
  func.func @transform_0(%arg0: i32, %arg1: i32) -> (i32, i32) {
    %c0_i32 = arith.constant 0 : i32
    %c0_i32_0 = arith.constant 0 : i32
    return %arg0, %c0_i32 : i32, i32
  }
  func.func @transform_1(%arg0: i32, %arg1: i32) -> (i32, i32) {
    %c0_i32 = arith.constant 0 : i32
    %c0_i32_0 = arith.constant 0 : i32
    return %c0_i32, %arg1 : i32, i32
  }
  func.func @transform_2(%arg0: i32, %arg1: i32) -> (i32, i32) {
    %c0_i32 = arith.constant 0 : i32
    %c0_i32_0 = arith.constant 0 : i32
    return %c0_i32, %arg1 : i32, i32
  }
  func.func @transform_3(%arg0: i32, %arg1: i32) -> (i32, i32) {
    %c0_i32 = arith.constant 0 : i32
    return %arg0, %arg1 : i32, i32
  }
}

module attributes {stable_mosaic.version = 11 : i64} {
  func.func @_bn_stats_kernel(%arg0: i32, %arg1: memref<512x128xf32, #tpu.memory_space<vmem>>, %arg2: memref<2x128xf32, #tpu.memory_space<vmem>>) attributes {dimension_semantics = [#tpu.dimension_semantics<arbitrary>], iteration_bounds = array<i64: 4>, scalar_prefetch = 0 : i64, scratch_operands = 0 : i64, tpu.core_type = #tpu.core_type<tc>, window_params = [{transform_indices = @transform_0, window_bounds = array<i64: 512, 128>}, {pipeline_mode = #tpu.pipeline_mode<synchronous>, transform_indices = @transform_1, window_bounds = array<i64: 2, 128>}]} {
    %c0_i32 = arith.constant 0 : i32
    %0 = arith.cmpi eq, %arg0, %c0_i32 : i32
    %1 = arith.extui %0 : i1 to i32
    %c0_i32_0 = arith.constant 0 : i32
    %2 = arith.cmpi ne, %1, %c0_i32_0 : i32
    scf.if %2 {
      %cst_7 = arith.constant 0.000000e+00 : f32
      %13 = vector.broadcast %cst_7 : f32 to vector<2x128xf32>
      %c0_8 = arith.constant 0 : index
      %c0_9 = arith.constant 0 : index
      %14 = vector.load %arg2[%c0_8, %c0_9] : memref<2x128xf32, #tpu.memory_space<vmem>>, vector<2x128xf32>
      tpu.vector_store %arg2[%c0_8, %c0_9], %13 {strides = array<i32>} : memref<2x128xf32, #tpu.memory_space<vmem>>, vector<2x128xf32>,
    } else {
    }
    %c0 = arith.constant 0 : index
    %c0_1 = arith.constant 0 : index
    %3 = vector.load %arg1[%c0, %c0_1] : memref<512x128xf32, #tpu.memory_space<vmem>>, vector<512x128xf32>
    %cst = arith.constant dense<0.000000e+00> : vector<128xf32>
    %4 = vector.multi_reduction <add>, %3, %cst [0] : vector<512x128xf32> to vector<128xf32>
    %5 = vector.shape_cast %4 : vector<128xf32> to vector<1x128xf32>
    %6 = arith.mulf %3, %3 : vector<512x128xf32>
    %cst_2 = arith.constant dense<0.000000e+00> : vector<128xf32>
    %7 = vector.multi_reduction <add>, %6, %cst_2 [0] : vector<512x128xf32> to vector<128xf32>
    %8 = vector.shape_cast %7 : vector<128xf32> to vector<1x128xf32>
    %c0_3 = arith.constant 0 : index
    %c0_4 = arith.constant 0 : index
    %9 = vector.load %arg2[%c0_3, %c0_4] : memref<2x128xf32, #tpu.memory_space<vmem>>, vector<2x128xf32>
    %10 = tpu.concatenate %5, %8 in 0 : vector<1x128xf32>, vector<1x128xf32> -> vector<2x128xf32>
    %11 = arith.addf %9, %10 : vector<2x128xf32>
    %c0_5 = arith.constant 0 : index
    %c0_6 = arith.constant 0 : index
    %12 = vector.load %arg2[%c0_5, %c0_6] : memref<2x128xf32, #tpu.memory_space<vmem>>, vector<2x128xf32>
    tpu.vector_store %arg2[%c0_5, %c0_6], %11 {strides = array<i32>} : memref<2x128xf32, #tpu.memory_space<vmem>>, vector<2x128xf32>,
    return
  }
  func.func @transform_0(%arg0: i32) -> (i32, i32) {
    %c0_i32 = arith.constant 0 : i32
    %c0_i32_0 = arith.constant 0 : i32
    return %arg0, %c0_i32 : i32, i32
  }
  func.func @transform_1(%arg0: i32) -> (i32, i32) {
    %c0_i32 = arith.constant 0 : i32
    %c0_i32_0 = arith.constant 0 : i32
    %c0_i32_1 = arith.constant 0 : i32
    return %c0_i32, %c0_i32_0 : i32, i32
  }
}

module attributes {stable_mosaic.version = 11 : i64} {
  func.func @_bn_apply_kernel(%arg0: i32, %arg1: memref<512x128xf32, #tpu.memory_space<vmem>>, %arg2: memref<1x128xf32, #tpu.memory_space<vmem>>, %arg3: memref<1x128xf32, #tpu.memory_space<vmem>>, %arg4: memref<512x128xf32, #tpu.memory_space<vmem>>) attributes {dimension_semantics = [#tpu.dimension_semantics<parallel>], iteration_bounds = array<i64: 4>, scalar_prefetch = 0 : i64, scratch_operands = 0 : i64, tpu.core_type = #tpu.core_type<tc>, window_params = [{transform_indices = @transform_0, window_bounds = array<i64: 512, 128>}, {pipeline_mode = #tpu.pipeline_mode<synchronous>, transform_indices = @transform_1, window_bounds = array<i64: 1, 128>}, {pipeline_mode = #tpu.pipeline_mode<synchronous>, transform_indices = @transform_2, window_bounds = array<i64: 1, 128>}, {transform_indices = @transform_3, window_bounds = array<i64: 512, 128>}]} {
    %c0 = arith.constant 0 : index
    %c0_0 = arith.constant 0 : index
    %0 = vector.load %arg1[%c0, %c0_0] : memref<512x128xf32, #tpu.memory_space<vmem>>, vector<512x128xf32>
    %c0_1 = arith.constant 0 : index
    %c0_2 = arith.constant 0 : index
    %1 = vector.load %arg2[%c0_1, %c0_2] : memref<1x128xf32, #tpu.memory_space<vmem>>, vector<1x128xf32>
    %2 = vector.broadcast %1 : vector<1x128xf32> to vector<512x128xf32>
    %3 = arith.mulf %0, %2 : vector<512x128xf32>
    %c0_3 = arith.constant 0 : index
    %c0_4 = arith.constant 0 : index
    %4 = vector.load %arg3[%c0_3, %c0_4] : memref<1x128xf32, #tpu.memory_space<vmem>>, vector<1x128xf32>
    %5 = vector.broadcast %4 : vector<1x128xf32> to vector<512x128xf32>
    %6 = arith.addf %3, %5 : vector<512x128xf32>
    %cst = arith.constant 0.000000e+00 : f32
    %7 = vector.broadcast %cst : f32 to vector<512x128xf32>
    %8 = arith.maximumf %6, %7 : vector<512x128xf32>
    %c0_5 = arith.constant 0 : index
    %c0_6 = arith.constant 0 : index
    %9 = vector.load %arg4[%c0_5, %c0_6] : memref<512x128xf32, #tpu.memory_space<vmem>>, vector<512x128xf32>
    tpu.vector_store %arg4[%c0_5, %c0_6], %8 {strides = array<i32>} : memref<512x128xf32, #tpu.memory_space<vmem>>, vector<512x128xf32>,
    return
  }
  func.func @transform_0(%arg0: i32) -> (i32, i32) {
    %c0_i32 = arith.constant 0 : i32
    %c0_i32_0 = arith.constant 0 : i32
    return %arg0, %c0_i32 : i32, i32
  }
  func.func @transform_1(%arg0: i32) -> (i32, i32) {
    %c0_i32 = arith.constant 0 : i32
    %c0_i32_0 = arith.constant 0 : i32
    %c0_i32_1 = arith.constant 0 : i32
    return %c0_i32, %c0_i32_0 : i32, i32
  }
  func.func @transform_2(%arg0: i32) -> (i32, i32) {
    %c0_i32 = arith.constant 0 : i32
    %c0_i32_0 = arith.constant 0 : i32
    %c0_i32_1 = arith.constant 0 : i32
    return %c0_i32, %c0_i32_0 : i32, i32
  }
  func.func @transform_3(%arg0: i32) -> (i32, i32) {
    %c0_i32 = arith.constant 0 : i32
    %c0_i32_0 = arith.constant 0 : i32
    return %arg0, %c0_i32 : i32, i32
  }
}

module attributes {stable_mosaic.version = 11 : i64} {
  func.func @_mm_kernel_nk1(%arg0: i32, %arg1: i32, %arg2: memref<512x128xbf16, #tpu.memory_space<vmem>>, %arg3: memref<128x128xbf16, #tpu.memory_space<vmem>>, %arg4: memref<1x128xf32, #tpu.memory_space<vmem>>, %arg5: memref<512x128xf32, #tpu.memory_space<vmem>>) attributes {dimension_semantics = [#tpu.dimension_semantics<parallel>, #tpu.dimension_semantics<parallel>], iteration_bounds = array<i64: 4, 1>, scalar_prefetch = 0 : i64, scratch_operands = 0 : i64, tpu.core_type = #tpu.core_type<tc>, window_params = [{transform_indices = @transform_0, window_bounds = array<i64: 512, 128>}, {transform_indices = @transform_1, window_bounds = array<i64: 128, 128>}, {transform_indices = @transform_2, window_bounds = array<i64: 1, 128>}, {transform_indices = @transform_3, window_bounds = array<i64: 512, 128>}]} {
    %c0 = arith.constant 0 : index
    %c0_0 = arith.constant 0 : index
    %0 = vector.load %arg2[%c0, %c0_0] : memref<512x128xbf16, #tpu.memory_space<vmem>>, vector<512x128xbf16>
    %c0_1 = arith.constant 0 : index
    %c0_2 = arith.constant 0 : index
    %1 = vector.load %arg3[%c0_1, %c0_2] : memref<128x128xbf16, #tpu.memory_space<vmem>>, vector<128x128xbf16>
    %cst = arith.constant dense<0.000000e+00> : vector<512x128xf32>
    %2 = tpu.matmul %0, %1, %cst {dimension_numbers = #tpu.dot_dimension_numbers<[1], [0], [0], [1], [0, 0, 1, 1], [], []>} : vector<512x128xbf16>, vector<128x128xbf16>, vector<512x128xf32> -> vector<512x128xf32>
    %c0_3 = arith.constant 0 : index
    %c0_4 = arith.constant 0 : index
    %3 = vector.load %arg4[%c0_3, %c0_4] : memref<1x128xf32, #tpu.memory_space<vmem>>, vector<1x128xf32>
    %4 = vector.broadcast %3 : vector<1x128xf32> to vector<512x128xf32>
    %5 = arith.addf %2, %4 : vector<512x128xf32>
    %cst_5 = arith.constant 0.000000e+00 : f32
    %6 = vector.broadcast %cst_5 : f32 to vector<512x128xf32>
    %7 = arith.maximumf %5, %6 : vector<512x128xf32>
    %c0_6 = arith.constant 0 : index
    %c0_7 = arith.constant 0 : index
    %8 = vector.load %arg5[%c0_6, %c0_7] : memref<512x128xf32, #tpu.memory_space<vmem>>, vector<512x128xf32>
    tpu.vector_store %arg5[%c0_6, %c0_7], %7 {strides = array<i32>} : memref<512x128xf32, #tpu.memory_space<vmem>>, vector<512x128xf32>,
    return
  }
  func.func @transform_0(%arg0: i32, %arg1: i32) -> (i32, i32) {
    %c0_i32 = arith.constant 0 : i32
    %c0_i32_0 = arith.constant 0 : i32
    return %arg0, %c0_i32 : i32, i32
  }
  func.func @transform_1(%arg0: i32, %arg1: i32) -> (i32, i32) {
    %c0_i32 = arith.constant 0 : i32
    %c0_i32_0 = arith.constant 0 : i32
    return %c0_i32, %arg1 : i32, i32
  }
  func.func @transform_2(%arg0: i32, %arg1: i32) -> (i32, i32) {
    %c0_i32 = arith.constant 0 : i32
    %c0_i32_0 = arith.constant 0 : i32
    return %c0_i32, %arg1 : i32, i32
  }
  func.func @transform_3(%arg0: i32, %arg1: i32) -> (i32, i32) {
    %c0_i32 = arith.constant 0 : i32
    return %arg0, %arg1 : i32, i32
  }
}

module attributes {stable_mosaic.version = 11 : i64} {
  func.func @_mm_kernel_nk1(%arg0: i32, %arg1: i32, %arg2: memref<512x128xbf16, #tpu.memory_space<vmem>>, %arg3: memref<128x128xbf16, #tpu.memory_space<vmem>>, %arg4: memref<1x128xf32, #tpu.memory_space<vmem>>, %arg5: memref<512x128xf32, #tpu.memory_space<vmem>>) attributes {dimension_semantics = [#tpu.dimension_semantics<parallel>, #tpu.dimension_semantics<parallel>], iteration_bounds = array<i64: 4, 1>, scalar_prefetch = 0 : i64, scratch_operands = 0 : i64, tpu.core_type = #tpu.core_type<tc>, window_params = [{transform_indices = @transform_0, window_bounds = array<i64: 512, 128>}, {transform_indices = @transform_1, window_bounds = array<i64: 128, 128>}, {transform_indices = @transform_2, window_bounds = array<i64: 1, 128>}, {transform_indices = @transform_3, window_bounds = array<i64: 512, 128>}]} {
    %c0 = arith.constant 0 : index
    %c0_0 = arith.constant 0 : index
    %0 = vector.load %arg2[%c0, %c0_0] : memref<512x128xbf16, #tpu.memory_space<vmem>>, vector<512x128xbf16>
    %c0_1 = arith.constant 0 : index
    %c0_2 = arith.constant 0 : index
    %1 = vector.load %arg3[%c0_1, %c0_2] : memref<128x128xbf16, #tpu.memory_space<vmem>>, vector<128x128xbf16>
    %cst = arith.constant dense<0.000000e+00> : vector<512x128xf32>
    %2 = tpu.matmul %0, %1, %cst {dimension_numbers = #tpu.dot_dimension_numbers<[1], [0], [0], [1], [0, 0, 1, 1], [], []>} : vector<512x128xbf16>, vector<128x128xbf16>, vector<512x128xf32> -> vector<512x128xf32>
    %c0_3 = arith.constant 0 : index
    %c0_4 = arith.constant 0 : index
    %3 = vector.load %arg4[%c0_3, %c0_4] : memref<1x128xf32, #tpu.memory_space<vmem>>, vector<1x128xf32>
    %4 = vector.broadcast %3 : vector<1x128xf32> to vector<512x128xf32>
    %5 = arith.addf %2, %4 : vector<512x128xf32>
    %c0_5 = arith.constant 0 : index
    %c0_6 = arith.constant 0 : index
    %6 = vector.load %arg5[%c0_5, %c0_6] : memref<512x128xf32, #tpu.memory_space<vmem>>, vector<512x128xf32>
    tpu.vector_store %arg5[%c0_5, %c0_6], %5 {strides = array<i32>} : memref<512x128xf32, #tpu.memory_space<vmem>>, vector<512x128xf32>,
    return
  }
  func.func @transform_0(%arg0: i32, %arg1: i32) -> (i32, i32) {
    %c0_i32 = arith.constant 0 : i32
    %c0_i32_0 = arith.constant 0 : i32
    return %arg0, %c0_i32 : i32, i32
  }
  func.func @transform_1(%arg0: i32, %arg1: i32) -> (i32, i32) {
    %c0_i32 = arith.constant 0 : i32
    %c0_i32_0 = arith.constant 0 : i32
    return %c0_i32, %arg1 : i32, i32
  }
  func.func @transform_2(%arg0: i32, %arg1: i32) -> (i32, i32) {
    %c0_i32 = arith.constant 0 : i32
    %c0_i32_0 = arith.constant 0 : i32
    return %c0_i32, %arg1 : i32, i32
  }
  func.func @transform_3(%arg0: i32, %arg1: i32) -> (i32, i32) {
    %c0_i32 = arith.constant 0 : i32
    return %arg0, %arg1 : i32, i32
  }
}

</mosaic_0001>

<llo_original>
// kernel: _lambda_.32
$region0: #{_lambda_.32}
  #allocation0 [shape = 'u32[]', space=smem, size = 0x4, offset = 0x4, fixed_abs, tag = 'smem constant byte address 0x4 - core index']
  #allocation1 [shape = 'u32[72,128]{1,0:T(1,128)}', space=vmem, size = 0x9000, scoped, tag = 'internal scratch']
  %s0 = inlined_call_operand.vmem [shape: bf16[512,128], index: 0, kind: input, shape index: {}]
  %s1 = inlined_call_operand.vmem [shape: bf16[128,128], index: 1, kind: input, shape index: {}]
  %s2 = inlined_call_operand.vmem [shape: f32[1,128], index: 2, kind: input, shape index: {}]
  %s3 = inlined_call_operand.vmem [shape: f32[512,128], index: 3, kind: output, shape index: {}]
  %s4 = sld [smem:[#allocation0]]
  $region45: #{_lambda_.32} parent=0
    _
  %s6 = ssub.s32 1, %s4
  %s7 = scalar_select 0, %s6, %s4
  loop: start=0, step=1, limit=4
  $region2: #{_lambda_.32} parent=0 // loop_pre_header
    _
  $region3: #{_lambda_.32} parent=0 // loop_header
    %s9 = sphi 0, %s13
    %p10 = scmp.ge.s32.totalorder %s9, 4
    %s16 = sphi 0, %s28
    %s17 = sphi 0, %s24
    %s18 = sphi 0, %s16
    %s19 = sphi 0, %s17
    %s20 = sphi 0, %s18
    %s21 = sphi 0, %s19
    %s31 = sphi 0, %s33
    %s34 = sphi 0, %s31
    %s35 = sphi 0, %s34
    %s51 = sphi 0, %s35
    %s57 = sphi 0, %s59
    %s60 = sphi 0, %s57
    %s61 = sphi 0, %s60
    %s77 = sphi 0, %s61
    %s83 = sphi 0, %s85
    %s86 = sphi 0, %s83
    %s87 = sphi 0, %s86
    %s103 = sphi 0, %s87
    %s111 = sphi 0, %s113
    %s114 = sphi 0, %s111
    %s115 = sphi 0, %s114
    %s131 = sphi 0, %s115
  $region4: #{_lambda_.32} parent=0 // loop_header_branch
    %12 = sbr.rel (%p10) target = $region8
  $region5: #{_lambda_.32} parent=0 // loop_body
    %s14 = ssub.s32 %s9, 1
    %s15 = ssub.s32 %s9, 2
    %s22 = sadd.s32 1, %s17
    %p23 = scmp.ge.s32.totalorder %s22, 1
    %s24 = scalar_select %p23, 0, %s22
    %s25 = sadd.s32 1, %s16
    %s26 = scalar_select %p23, %s25, %s16
    %p27 = scmp.ge.s32.totalorder %s26, 2
    %s28 = scalar_select %p27, 0, %s26
    %s29 = ssub.s32 %s16, %s28
    %p30 = scmp.eq.s32.totalorder %s29, 0
    %s32 = sadd.s32 %s31, 1
    %s33 = scalar_select %p30, %s31, %s32
    %p36 = pneg %p30
    %p37 = scmp.eq.s32.totalorder %s9, 1
    %p38 = por %p36, %p37
    %p39 = scmp.ne.s32.totalorder %s31, %s34
    %p40 = scmp.eq.s32.totalorder %s9, 0
    %p41 = por %p39, %p40
    %p42 = scmp.ne.s32.totalorder %s31, %s34
    %p43 = scmp.eq.s32.totalorder %s14, 1
    %p44 = por %p42, %p43
    %p45 = scmp.ne.s32.totalorder %s34, %s35
    %p46 = scmp.eq.s32.totalorder %s14, 0
    %p47 = por %p45, %p46
    %p48 = scmp.ne.s32.totalorder %s34, %s35
    %p49 = scmp.eq.s32.totalorder %s15, 1
    %p50 = por %p48, %p49
    %p52 = scmp.ne.s32.totalorder %s35, %s51
    %p53 = scmp.eq.s32.totalorder %s15, 0
    %p54 = por %p52, %p53
    %s55 = ssub.s32 %s17, %s24
    %p56 = scmp.eq.s32.totalorder %s55, 0
    %s58 = sadd.s32 %s57, 1
    %s59 = scalar_select %p56, %s57, %s58
    %p62 = pneg %p56
    %p63 = scmp.eq.s32.totalorder %s9, 1
    %p64 = por %p62, %p63
    %p65 = scmp.ne.s32.totalorder %s57, %s60
    %p66 = scmp.eq.s32.totalorder %s9, 0
    %p67 = por %p65, %p66
    %p68 = scmp.ne.s32.totalorder %s57, %s60
    %p69 = scmp.eq.s32.totalorder %s14, 1
    %p70 = por %p68, %p69
    %p71 = scmp.ne.s32.totalorder %s60, %s61
    %p72 = scmp.eq.s32.totalorder %s14, 0
    %p73 = por %p71, %p72
    %p74 = scmp.ne.s32.totalorder %s60, %s61
    %p75 = scmp.eq.s32.totalorder %s15, 1
    %p76 = por %p74, %p75
    %p78 = scmp.ne.s32.totalorder %s61, %s77
    %p79 = scmp.eq.s32.totalorder %s15, 0
    %p80 = por %p78, %p79
    %s81 = ssub.s32 %s17, %s24
    %p82 = scmp.eq.s32.totalorder %s81, 0
    %s84 = sadd.s32 %s83, 1
    %s85 = scalar_select %p82, %s83, %s84
    %p88 = pneg %p82
    %p89 = scmp.eq.s32.totalorder %s9, 1
    %p90 = por %p88, %p89
    %p91 = scmp.ne.s32.totalorder %s83, %s86
    %p92 = scmp.eq.s32.totalorder %s9, 0
    %p93 = por %p91, %p92
    %p94 = scmp.ne.s32.totalorder %s83, %s86
    %p95 = scmp.eq.s32.totalorder %s14, 1
    %p96 = por %p94, %p95
    %p97 = scmp.ne.s32.totalorder %s86, %s87
    %p98 = scmp.eq.s32.totalorder %s14, 0
    %p99 = por %p97, %p98
    %p100 = scmp.ne.s32.totalorder %s86, %s87
    %p101 = scmp.eq.s32.totalorder %s15, 1
    %p102 = por %p100, %p101
    %p104 = scmp.ne.s32.totalorder %s87, %s103
    %p105 = scmp.eq.s32.totalorder %s15, 0
    %p106 = por %p104, %p105
    %s107 = ssub.s32 %s16, %s28
    %s108 = ssub.s32 %s17, %s24
    %s109 = sor.u32 %s107, %s108
    %p110 = scmp.eq.s32.totalorder %s109, 0
    %s112 = sadd.s32 %s111, 1
    %s113 = scalar_select %p110, %s111, %s112
    %p116 = pneg %p110
    %p117 = scmp.eq.s32.totalorder %s9, 1
    %p118 = por %p116, %p117
    %p119 = scmp.ne.s32.totalorder %s111, %s114
    %p120 = scmp.eq.s32.totalorder %s9, 0
    %p121 = por %p119, %p120
    %p122 = scmp.ne.s32.totalorder %s111, %s114
    %p123 = scmp.eq.s32.totalorder %s14, 1
    %p124 = por %p122, %p123
    %p125 = scmp.ne.s32.totalorder %s114, %s115
    %p126 = scmp.eq.s32.totalorder %s14, 0
    %p127 = por %p125, %p126
    %p128 = scmp.ne.s32.totalorder %s114, %s115
    %p129 = scmp.eq.s32.totalorder %s15, 1
    %p130 = por %p128, %p129
    %p132 = scmp.ne.s32.totalorder %s115, %s131
    %p133 = scmp.eq.s32.totalorder %s15, 0
    %p134 = por %p132, %p133
    %p135 = scmp.le.s32.totalorder 1, %s9
    %p136 = scmp.lt.s32.totalorder %s9, 3
    %p137 = pnand %p135, %p136
    %p138 = pneg %p137
    // Predicated region
    $region9: #{_lambda_.32} parent=5 // pred_check
      _
    $region10: #{_lambda_.32} parent=5 // pred_check_branch
      %140 = sbr.rel (%p137) target = $region12
    $region11: #{_lambda_.32} parent=5 // pred_region
      %s141 = ssub.s32 %s9, 1
      // Predicated region
      $region13: #{_lambda_.32} parent=11 // pred_check
        %p142 = pneg %p73
      $region14: #{_lambda_.32} parent=11 // pred_check_branch
        %144 = sbr.rel (%p142) target = $region16
      $region15: #{_lambda_.32} parent=11 // pred_region
        %p145 = scmp.lt.s32.totalorder %s19, 0
        %s146 = scalar_select %p145, %s19, 0
        %s147 = smul.addr %s146, 4
        %s148 = scalar_lea.vmem %s1, %s147
      $region16: #{_lambda_.32} parent=11 // pred_fallthru
        _
      // Predicated region
      $region17: #{_lambda_.32} parent=11 // pred_check
        %p149 = pneg %p99
      $region18: #{_lambda_.32} parent=11 // pred_check_branch
        %151 = sbr.rel (%p149) target = $region20
      $region19: #{_lambda_.32} parent=11 // pred_region
        %p152 = scmp.lt.s32.totalorder %s19, 0
        %s153 = scalar_select %p152, %s19, 0
        %s154 = scalar_lea.vmem %s2, %s153
      $region20: #{_lambda_.32} parent=11 // pred_fallthru
        _
    $region12: #{_lambda_.32} parent=5 // pred_fallthru
      _
    %p155 = scmp.lt.s32.totalorder %s9, 2
    // Predicated region
    $region21: #{_lambda_.32} parent=5 // pred_check
      %p156 = pneg %p155
    $region22: #{_lambda_.32} parent=5 // pred_check_branch
      %158 = sbr.rel (%p156) target = $region24
    $region23: #{_lambda_.32} parent=5 // pred_region
      // Predicated region
      $region25: #{_lambda_.32} parent=23 // pred_check
        %p159 = pneg %p41
      $region26: #{_lambda_.32} parent=23 // pred_check_branch
        %161 = sbr.rel (%p159) target = $region28
      $region27: #{_lambda_.32} parent=23 // pred_region
        %s162 = smul.u32 32, %s16
        %p163 = scmp.lt.s32.totalorder %s162, 63
        %s164 = scalar_select %p163, %s162, 63
        %s165 = smul.addr %s164, 4
        %s166 = scalar_lea.vmem %s0, %s165
        %s167 = smul.u32 32, %s16
      $region28: #{_lambda_.32} parent=23 // pred_fallthru
        _
    $region24: #{_lambda_.32} parent=5 // pred_fallthru
      _
    %p168 = scmp.le.s32.totalorder 1, %s9
    %p169 = scmp.lt.s32.totalorder %s9, 3
    %p170 = pnand %p168, %p169
    %p171 = pneg %p170
    // Predicated region
    $region29: #{_lambda_.32} parent=5 // pred_check
      _
    $region30: #{_lambda_.32} parent=5 // pred_check_branch
      %173 = sbr.rel (%p170) target = $region32
    $region31: #{_lambda_.32} parent=5 // pred_region
      %s174 = ssub.s32 %s9, 1
      %s175 = smul.u32 32, %s18
      %p176 = scmp.lt.s32.totalorder %s175, 63
      %s177 = scalar_select %p176, %s175, 63
      %s178 = smul.addr %s177, 4
      %s179 = scalar_lea.vmem %s0, %s178
      %p180 = pneg %p47
      %p181 = pneg %p44
      %p182 = scmp.lt.s32.totalorder %s19, 0
      %s183 = scalar_select %p182, %s19, 0
      %s184 = smul.addr %s183, 4
      %s185 = scalar_lea.vmem %s1, %s184
      %p186 = pneg %p73
      %p187 = pneg %p70
      %p188 = scmp.lt.s32.totalorder %s19, 0
      %s189 = scalar_select %p188, %s19, 0
      %s190 = scalar_lea.vmem %s2, %s189
      %p191 = pneg %p99
      %p192 = pneg %p96
      %p193 = pneg %p127
      %p194 = pneg %p124
      %s195 = smul.u32 32, %s18
      %p196 = scmp.lt.s32.totalorder %s195, 63
      %s197 = scalar_select %p196, %s195, 63
      %p198 = scmp.lt.s32.totalorder %s19, 0
      %s199 = scalar_select %p198, %s19, 0
      %s200 = sadd.s32 %s199, %s197
      %s201 = smul.addr %s200, 8
      %s202 = scalar_lea.vmem %s3, %s201
      %s203 = smul.u32 32, %s18
      %p204 = scmp.lt.s32.totalorder %s203, 63
      %s205 = scalar_select %p204, %s203, 63
      %s206 = smul.addr %s205, 4
      %s207 = scalar_lea.vmem %s0, %s206
      %s208 = smul.u32 32, %s18
      %p209 = scmp.lt.s32.totalorder %s19, 0
      %s210 = scalar_select %p209, %s19, 0
      %s211 = smul.addr %s210, 4
      %s212 = scalar_lea.vmem %s1, %s211
      %p213 = scmp.lt.s32.totalorder %s19, 0
      %s214 = scalar_select %p213, %s19, 0
      %s215 = scalar_lea.vmem %s2, %s214
      %s216 = smul.u32 32, %s18
      %p217 = scmp.lt.s32.totalorder %s216, 63
      %s218 = scalar_select %p217, %s216, 63
      %p219 = scmp.lt.s32.totalorder %s19, 0
      %s220 = scalar_select %p219, %s19, 0
      %s221 = sadd.s32 %s220, %s218
      %s222 = smul.addr %s221, 8
      %s223 = scalar_lea.vmem %s3, %s222
      %s224 = smul.u32 32, %s18
      %v225 = vld [vmem:[%s207] sm:$0xf]
      %v226 = vld [vmem:[%s207 + $0x4] sm:$0xf]
      %v227 = vld [vmem:[%s207 + $0x8] sm:$0xf]
      %v228 = vld [vmem:[%s207 + $0xc] sm:$0xf]
      %v229 = vld [vmem:[%s207 + $0x10] sm:$0xf]
      %v230 = vld [vmem:[%s207 + $0x14] sm:$0xf]
      %v231 = vld [vmem:[%s207 + $0x18] sm:$0xf]
      %v232 = vld [vmem:[%s207 + $0x1c] sm:$0xf]
      %v233 = vld [vmem:[%s207 + $0x20] sm:$0xf]
      %v234 = vld [vmem:[%s207 + $0x24] sm:$0xf]
      %v235 = vld [vmem:[%s207 + $0x28] sm:$0xf]
      %v236 = vld [vmem:[%s207 + $0x2c] sm:$0xf]
      %v237 = vld [vmem:[%s207 + $0x30] sm:$0xf]
      %v238 = vld [vmem:[%s207 + $0x34] sm:$0xf]
      %v239 = vld [vmem:[%s207 + $0x38] sm:$0xf]
      %v240 = vld [vmem:[%s207 + $0x3c] sm:$0xf]
      %v241 = vld [vmem:[%s207 + $0x40] sm:$0xf]
      %v242 = vld [vmem:[%s207 + $0x44] sm:$0xf]
      %v243 = vld [vmem:[%s207 + $0x48] sm:$0xf]
      %v244 = vld [vmem:[%s207 + $0x4c] sm:$0xf]
      %v245 = vld [vmem:[%s207 + $0x50] sm:$0xf]
      %v246 = vld [vmem:[%s207 + $0x54] sm:$0xf]
      %v247 = vld [vmem:[%s207 + $0x58] sm:$0xf]
      %v248 = vld [vmem:[%s207 + $0x5c] sm:$0xf]
      %v249 = vld [vmem:[%s207 + $0x60] sm:$0xf]
      %v250 = vld [vmem:[%s207 + $0x64] sm:$0xf]
      %v251 = vld [vmem:[%s207 + $0x68] sm:$0xf]
      %v252 = vld [vmem:[%s207 + $0x6c] sm:$0xf]
      %v253 = vld [vmem:[%s207 + $0x70] sm:$0xf]
      %v254 = vld [vmem:[%s207 + $0x74] sm:$0xf]
      %v255 = vld [vmem:[%s207 + $0x78] sm:$0xf]
      %v256 = vld [vmem:[%s207 + $0x7c] sm:$0xf]
      %v257 = vld [vmem:[%s212] sm:$0xf]
      %v258 = vld [vmem:[%s212 + $0x4] sm:$0xf]
      %v259 = vld [vmem:[%s212 + $0x8] sm:$0xf]
      %v260 = vld [vmem:[%s212 + $0xc] sm:$0xf]
      %v261 = vld [vmem:[%s212 + $0x10] sm:$0xf]
      %v262 = vld [vmem:[%s212 + $0x14] sm:$0xf]
      %v263 = vld [vmem:[%s212 + $0x18] sm:$0xf]
      %v264 = vld [vmem:[%s212 + $0x1c] sm:$0xf]
      %v265 = vld [vmem:[%s212 + $0x20] sm:$0xf]
      %v266 = vld [vmem:[%s212 + $0x24] sm:$0xf]
      %v267 = vld [vmem:[%s212 + $0x28] sm:$0xf]
      %v268 = vld [vmem:[%s212 + $0x2c] sm:$0xf]
      %v269 = vld [vmem:[%s212 + $0x30] sm:$0xf]
      %v270 = vld [vmem:[%s212 + $0x34] sm:$0xf]
      %v271 = vld [vmem:[%s212 + $0x38] sm:$0xf]
      %v272 = vld [vmem:[%s212 + $0x3c] sm:$0xf]
      %v273 = vld [vmem:[%s215] sm:$0x1]
      %v275 = vperm.slane %v273, 0
      %v309 = vunpack.c.l.b16 %v225
      %v310 = vunpack.c.l.b16 %v226
      %v311 = vunpack.c.l.b16 %v227
      %v312 = vunpack.c.l.b16 %v228
      %v313 = vunpack.c.l.b16 %v229
      %v314 = vunpack.c.l.b16 %v230
      %v315 = vunpack.c.l.b16 %v231
      %v316 = vunpack.c.l.b16 %v232
      %v317 = vunpack.c.l.b16 %v233
      %v318 = vunpack.c.l.b16 %v234
      %v319 = vunpack.c.l.b16 %v235
      %v320 = vunpack.c.l.b16 %v236
      %v321 = vunpack.c.l.b16 %v237
      %v322 = vunpack.c.l.b16 %v238
      %v323 = vunpack.c.l.b16 %v239
      %v324 = vunpack.c.l.b16 %v240
      %v325 = vunpack.c.l.b16 %v241
      %v326 = vunpack.c.l.b16 %v242
      %v327 = vunpack.c.l.b16 %v243
      %v328 = vunpack.c.l.b16 %v244
      %v329 = vunpack.c.l.b16 %v245
      %v330 = vunpack.c.l.b16 %v246
      %v331 = vunpack.c.l.b16 %v247
      %v332 = vunpack.c.l.b16 %v248
      %v333 = vunpack.c.l.b16 %v249
      %v334 = vunpack.c.l.b16 %v250
      %v335 = vunpack.c.l.b16 %v251
      %v336 = vunpack.c.l.b16 %v252
      %v337 = vunpack.c.l.b16 %v253
      %v338 = vunpack.c.l.b16 %v254
      %v339 = vunpack.c.l.b16 %v255
      %v340 = vunpack.c.l.b16 %v256
      %v341 = vpack.c.b16 %v310, %v309
      %v342 = vpack.c.b16 %v312, %v311
      %v343 = vpack.c.b16 %v314, %v313
      %v344 = vpack.c.b16 %v316, %v315
      %v345 = vpack.c.b16 %v318, %v317
      %v346 = vpack.c.b16 %v320, %v319
      %v347 = vpack.c.b16 %v322, %v321
      %v348 = vpack.c.b16 %v324, %v323
      %v349 = vpack.c.b16 %v326, %v325
      %v350 = vpack.c.b16 %v328, %v327
      %v351 = vpack.c.b16 %v330, %v329
      %v352 = vpack.c.b16 %v332, %v331
      %v353 = vpack.c.b16 %v334, %v333
      %v354 = vpack.c.b16 %v336, %v335
      %v355 = vpack.c.b16 %v338, %v337
      %v356 = vpack.c.b16 %v340, %v339
      %v389 = vunpack.c.l.b16 %v257
      %v390 = vunpack.c.l.b16 %v258
      %v391 = vunpack.c.l.b16 %v259
      %v392 = vunpack.c.l.b16 %v260
      %v393 = vunpack.c.l.b16 %v261
      %v394 = vunpack.c.l.b16 %v262
      %v395 = vunpack.c.l.b16 %v263
      %v396 = vunpack.c.l.b16 %v264
      %v397 = vunpack.c.l.b16 %v265
      %v398 = vunpack.c.l.b16 %v266
      %v399 = vunpack.c.l.b16 %v267
      %v400 = vunpack.c.l.b16 %v268
      %v401 = vunpack.c.l.b16 %v269
      %v402 = vunpack.c.l.b16 %v270
      %v403 = vunpack.c.l.b16 %v271
      %v404 = vunpack.c.l.b16 %v272
      %v405 = vpack.c.b16 %v390, %v389
      %v406 = vpack.c.b16 %v392, %v391
      %v407 = vpack.c.b16 %v394, %v393
      %v408 = vpack.c.b16 %v396, %v395
      %v409 = vpack.c.b16 %v398, %v397
      %v410 = vpack.c.b16 %v400, %v399
      %v411 = vpack.c.b16 %v402, %v401
      %v412 = vpack.c.b16 %v404, %v403
      %421 = vmatpush.bf16.msra.mxu0 %v412
      %422 = vmatpush.bf16.msra.mxu0 %v411
      %423 = vmatpush.bf16.msra.mxu0 %v410
      %424 = vmatpush.bf16.msra.mxu0 %v409
      %425 = vmatpush.bf16.msra.mxu0 %v408
      %426 = vmatpush.bf16.msra.mxu0 %v407
      %427 = vmatpush.bf16.msra.mxu0 %v406
      %428 = vmatpush.bf16.msra.mxu0 %v405
      %429 = vmatmul.bf16.gmra.mxu0 %v341
      %v430 = vpop.f32.mrf.mxu0
      %v431 = vadd.f32 %v275, %v430
      %v432 = vpop.f32.mrf.mxu0
      %v433 = vadd.f32 %v275, %v432
      %434 = vmatmul.bf16.gmra.mxu0 %v342
      %v435 = vpop.f32.mrf.mxu0
      %v436 = vadd.f32 %v275, %v435
      %v437 = vpop.f32.mrf.mxu0
      %v438 = vadd.f32 %v275, %v437
      %439 = vmatmul.bf16.gmra.mxu0 %v343
      %v440 = vpop.f32.mrf.mxu0
      %v441 = vadd.f32 %v275, %v440
      %v442 = vpop.f32.mrf.mxu0
      %v443 = vadd.f32 %v275, %v442
      %444 = vmatmul.bf16.gmra.mxu0 %v344
      %v445 = vpop.f32.mrf.mxu0
      %v446 = vadd.f32 %v275, %v445
      %v447 = vpop.f32.mrf.mxu0
      %v448 = vadd.f32 %v275, %v447
      %449 = vmatmul.bf16.gmra.mxu0 %v345
      %v450 = vpop.f32.mrf.mxu0
      %v451 = vadd.f32 %v275, %v450
      %v452 = vpop.f32.mrf.mxu0
      %v453 = vadd.f32 %v275, %v452
      %454 = vmatmul.bf16.gmra.mxu0 %v346
      %v455 = vpop.f32.mrf.mxu0
      %v456 = vadd.f32 %v275, %v455
      %v457 = vpop.f32.mrf.mxu0
      %v458 = vadd.f32 %v275, %v457
      %459 = vmatmul.bf16.gmra.mxu0 %v347
      %v460 = vpop.f32.mrf.mxu0
      %v461 = vadd.f32 %v275, %v460
      %v462 = vpop.f32.mrf.mxu0
      %v463 = vadd.f32 %v275, %v462
      %464 = vmatmul.bf16.gmra.mxu0 %v348
      %v465 = vpop.f32.mrf.mxu0
      %v466 = vadd.f32 %v275, %v465
      %v467 = vpop.f32.mrf.mxu0
      %v468 = vadd.f32 %v275, %v467
      %469 = vmatmul.bf16.gmra.mxu0 %v349
      %v470 = vpop.f32.mrf.mxu0
      %v471 = vadd.f32 %v275, %v470
      %v472 = vpop.f32.mrf.mxu0
      %v473 = vadd.f32 %v275, %v472
      %474 = vmatmul.bf16.gmra.mxu0 %v350
      %v475 = vpop.f32.mrf.mxu0
      %v476 = vadd.f32 %v275, %v475
      %v477 = vpop.f32.mrf.mxu0
      %v478 = vadd.f32 %v275, %v477
      %479 = vmatmul.bf16.gmra.mxu0 %v351
      %v480 = vpop.f32.mrf.mxu0
      %v481 = vadd.f32 %v275, %v480
      %v482 = vpop.f32.mrf.mxu0
      %v483 = vadd.f32 %v275, %v482
      %484 = vmatmul.bf16.gmra.mxu0 %v352
      %v485 = vpop.f32.mrf.mxu0
      %v486 = vadd.f32 %v275, %v485
      %v487 = vpop.f32.mrf.mxu0
      %v488 = vadd.f32 %v275, %v487
      %489 = vmatmul.bf16.gmra.mxu0 %v353
      %v490 = vpop.f32.mrf.mxu0
      %v491 = vadd.f32 %v275, %v490
      %v492 = vpop.f32.mrf.mxu0
      %v493 = vadd.f32 %v275, %v492
      %494 = vmatmul.bf16.gmra.mxu0 %v354
      %v495 = vpop.f32.mrf.mxu0
      %v496 = vadd.f32 %v275, %v495
      %v497 = vpop.f32.mrf.mxu0
      %v498 = vadd.f32 %v275, %v497
      %499 = vmatmul.bf16.gmra.mxu0 %v355
      %v500 = vpop.f32.mrf.mxu0
      %v501 = vadd.f32 %v275, %v500
      %v502 = vpop.f32.mrf.mxu0
      %v503 = vadd.f32 %v275, %v502
      %504 = vmatmul.bf16.gmra.mxu0 %v356
      %v505 = vpop.f32.mrf.mxu0
      %v506 = vadd.f32 %v275, %v505
      %v507 = vpop.f32.mrf.mxu0
      %v508 = vadd.f32 %v275, %v507
      %509 = vdwg.mxu0
      %510 = vst [vmem:[%s223] sm:$0xff] %v431
      %511 = vst [vmem:[%s223 + $0x8] sm:$0xff] %v433
      %512 = vst [vmem:[%s223 + $0x10] sm:$0xff] %v436
      %513 = vst [vmem:[%s223 + $0x18] sm:$0xff] %v438
      %514 = vst [vmem:[%s223 + $0x20] sm:$0xff] %v441
      %515 = vst [vmem:[%s223 + $0x28] sm:$0xff] %v443
      %516 = vst [vmem:[%s223 + $0x30] sm:$0xff] %v446
      %517 = vst [vmem:[%s223 + $0x38] sm:$0xff] %v448
      %518 = vst [vmem:[%s223 + $0x40] sm:$0xff] %v451
      %519 = vst [vmem:[%s223 + $0x48] sm:$0xff] %v453
      %520 = vst [vmem:[%s223 + $0x50] sm:$0xff] %v456
      %521 = vst [vmem:[%s223 + $0x58] sm:$0xff] %v458
      %522 = vst [vmem:[%s223 + $0x60] sm:$0xff] %v461
      %523 = vst [vmem:[%s223 + $0x68] sm:$0xff] %v463
      %524 = vst [vmem:[%s223 + $0x70] sm:$0xff] %v466
      %525 = vst [vmem:[%s223 + $0x78] sm:$0xff] %v468
      %526 = vst [vmem:[%s223 + $0x80] sm:$0xff] %v471
      %527 = vst [vmem:[%s223 + $0x88] sm:$0xff] %v473
      %528 = vst [vmem:[%s223 + $0x90] sm:$0xff] %v476
      %529 = vst [vmem:[%s223 + $0x98] sm:$0xff] %v478
      %530 = vst [vmem:[%s223 + $0xa0] sm:$0xff] %v481
      %531 = vst [vmem:[%s223 + $0xa8] sm:$0xff] %v483
      %532 = vst [vmem:[%s223 + $0xb0] sm:$0xff] %v486
      %533 = vst [vmem:[%s223 + $0xb8] sm:$0xff] %v488
      %534 = vst [vmem:[%s223 + $0xc0] sm:$0xff] %v491
      %535 = vst [vmem:[%s223 + $0xc8] sm:$0xff] %v493
      %536 = vst [vmem:[%s223 + $0xd0] sm:$0xff] %v496
      %537 = vst [vmem:[%s223 + $0xd8] sm:$0xff] %v498
      %538 = vst [vmem:[%s223 + $0xe0] sm:$0xff] %v501
      %539 = vst [vmem:[%s223 + $0xe8] sm:$0xff] %v503
      %540 = vst [vmem:[%s223 + $0xf0] sm:$0xff] %v506
      %541 = vst [vmem:[%s223 + $0xf8] sm:$0xff] %v508
      %s542 = smul.u32 32, %s18
      %p543 = scmp.lt.s32.totalorder %s542, 63
      %s544 = scalar_select %p543, %s542, 63
      %p545 = scmp.lt.s32.totalorder %s19, 0
      %s546 = scalar_select %p545, %s19, 0
      %s547 = sadd.s32 %s546, %s544
      %s548 = smul.addr %s547, 8
      %s549 = scalar_lea.vmem %s3, %s548
      // Predicated region
      $region33: #{_lambda_.32} parent=31 // pred_check
        %p550 = pneg %p124
      $region34: #{_lambda_.32} parent=31 // pred_check_branch
        %552 = sbr.rel (%p550) target = $region36
      $region35: #{_lambda_.32} parent=31 // pred_region
        %s553 = smul.u32 32, %s18
      $region36: #{_lambda_.32} parent=31 // pred_fallthru
        _
    $region32: #{_lambda_.32} parent=5 // pred_fallthru
      _
    %p554 = scmp.le.s32.totalorder 2, %s9
    // Predicated region
    $region37: #{_lambda_.32} parent=5 // pred_check
      %p555 = pneg %p554
    $region38: #{_lambda_.32} parent=5 // pred_check_branch
      %557 = sbr.rel (%p555) target = $region40
    $region39: #{_lambda_.32} parent=5 // pred_region
      %s558 = ssub.s32 %s9, 2
      // Predicated region
      $region41: #{_lambda_.32} parent=39 // pred_check
        %p559 = pneg %p130
      $region42: #{_lambda_.32} parent=39 // pred_check_branch
        %561 = sbr.rel (%p559) target = $region44
      $region43: #{_lambda_.32} parent=39 // pred_region
        %s562 = smul.u32 32, %s20
        %p563 = scmp.lt.s32.totalorder %s562, 63
        %s564 = scalar_select %p563, %s562, 63
        %p565 = scmp.lt.s32.totalorder %s21, 0
        %s566 = scalar_select %p565, %s21, 0
        %s567 = sadd.s32 %s566, %s564
        %s568 = smul.addr %s567, 8
        %s569 = scalar_lea.vmem %s3, %s568
      $region44: #{_lambda_.32} parent=39 // pred_fallthru
        _
    $region40: #{_lambda_.32} parent=5 // pred_fallthru
      _
  $region6: #{_lambda_.32} parent=0 // loop_footer
    %s13 = sadd.s32 1, %s9
  $region7: #{_lambda_.32} parent=0 // loop_footer_branch
    %8 = sbr.rel target = $region3
  $region8: #{_lambda_.32} parent=0 // loop_exit
    _

// kernel: _lambda_.33
$region0: #{_lambda_.33}
  #allocation0 [shape = 'u32[]', space=smem, size = 0x4, offset = 0x4, fixed_abs, tag = 'smem constant byte address 0x4 - core index']
  #allocation1 [shape = 'u32[72,128]{1,0:T(1,128)}', space=vmem, size = 0x9000, scoped, tag = 'internal scratch']
  %s0 = inlined_call_operand.vmem [shape: bf16[128,128], index: 0, kind: input, shape index: {}]
  %s1 = inlined_call_operand.vmem [shape: bf16[128,128], index: 1, kind: input, shape index: {}]
  %s2 = inlined_call_operand.vmem [shape: f32[1,128], index: 2, kind: input, shape index: {}]
  %s3 = inlined_call_operand.vmem [shape: f32[128,128], index: 3, kind: output, shape index: {}]
  %s4 = sld [smem:[#allocation0]]
  $region22: #{_lambda_.33} parent=0
    _
  %s6 = ssub.s32 1, %s4
  %s7 = scalar_select 0, %s6, %s4
  // Predicated region
  $region2: #{_lambda_.33} parent=0 // pred_check
    _
  $region3: #{_lambda_.33} parent=0 // pred_check_branch
    %9 = sbr.rel (0) target = $region5
  $region4: #{_lambda_.33} parent=0 // pred_region
    _
  $region5: #{_lambda_.33} parent=0 // pred_fallthru
    _
  // Predicated region
  $region6: #{_lambda_.33} parent=0 // pred_check
    _
  $region7: #{_lambda_.33} parent=0 // pred_check_branch
    %11 = sbr.rel (0) target = $region9
  $region8: #{_lambda_.33} parent=0 // pred_region
    _
  $region9: #{_lambda_.33} parent=0 // pred_fallthru
    _
  // Predicated region
  $region10: #{_lambda_.33} parent=0 // pred_check
    _
  $region11: #{_lambda_.33} parent=0 // pred_check_branch
    %13 = sbr.rel (0) target = $region13
  $region12: #{_lambda_.33} parent=0 // pred_region
    _
  $region13: #{_lambda_.33} parent=0 // pred_fallthru
    _
  %v14 = vld [vmem:[%s0] sm:$0xf]
  %v15 = vld [vmem:[%s0 + $0x4] sm:$0xf]
  %v16 = vld [vmem:[%s0 + $0x8] sm:$0xf]
  %v17 = vld [vmem:[%s0 + $0xc] sm:$0xf]
  %v18 = vld [vmem:[%s0 + $0x10] sm:$0xf]
  %v19 = vld [vmem:[%s0 + $0x14] sm:$0xf]
  %v20 = vld [vmem:[%s0 + $0x18] sm:$0xf]
  %v21 = vld [vmem:[%s0 + $0x1c] sm:$0xf]
  %v22 = vld [vmem:[%s0 + $0x20] sm:$0xf]
  %v23 = vld [vmem:[%s0 + $0x24] sm:$0xf]
  %v24 = vld [vmem:[%s0 + $0x28] sm:$0xf]
  %v25 = vld [vmem:[%s0 + $0x2c] sm:$0xf]
  %v26 = vld [vmem:[%s0 + $0x30] sm:$0xf]
  %v27 = vld [vmem:[%s0 + $0x34] sm:$0xf]
  %v28 = vld [vmem:[%s0 + $0x38] sm:$0xf]
  %v29 = vld [vmem:[%s0 + $0x3c] sm:$0xf]
  %v30 = vld [vmem:[%s1] sm:$0xf]
  %v31 = vld [vmem:[%s1 + $0x4] sm:$0xf]
  %v32 = vld [vmem:[%s1 + $0x8] sm:$0xf]
  %v33 = vld [vmem:[%s1 + $0xc] sm:$0xf]
  %v34 = vld [vmem:[%s1 + $0x10] sm:$0xf]
  %v35 = vld [vmem:[%s1 + $0x14] sm:$0xf]
  %v36 = vld [vmem:[%s1 + $0x18] sm:$0xf]
  %v37 = vld [vmem:[%s1 + $0x1c] sm:$0xf]
  %v38 = vld [vmem:[%s1 + $0x20] sm:$0xf]
  %v39 = vld [vmem:[%s1 + $0x24] sm:$0xf]
  %v40 = vld [vmem:[%s1 + $0x28] sm:$0xf]
  %v41 = vld [vmem:[%s1 + $0x2c] sm:$0xf]
  %v42 = vld [vmem:[%s1 + $0x30] sm:$0xf]
  %v43 = vld [vmem:[%s1 + $0x34] sm:$0xf]
  %v44 = vld [vmem:[%s1 + $0x38] sm:$0xf]
  %v45 = vld [vmem:[%s1 + $0x3c] sm:$0xf]
  %v46 = vld [vmem:[%s2] sm:$0x1]
  %v48 = vperm.slane %v46, 0
  %v66 = vunpack.c.l.b16 %v14
  %v67 = vunpack.c.l.b16 %v15
  %v68 = vunpack.c.l.b16 %v16
  %v69 = vunpack.c.l.b16 %v17
  %v70 = vunpack.c.l.b16 %v18
  %v71 = vunpack.c.l.b16 %v19
  %v72 = vunpack.c.l.b16 %v20
  %v73 = vunpack.c.l.b16 %v21
  %v74 = vunpack.c.l.b16 %v22
  %v75 = vunpack.c.l.b16 %v23
  %v76 = vunpack.c.l.b16 %v24
  %v77 = vunpack.c.l.b16 %v25
  %v78 = vunpack.c.l.b16 %v26
  %v79 = vunpack.c.l.b16 %v27
  %v80 = vunpack.c.l.b16 %v28
  %v81 = vunpack.c.l.b16 %v29
  %v82 = vpack.c.b16 %v67, %v66
  %v83 = vpack.c.b16 %v69, %v68
  %v84 = vpack.c.b16 %v71, %v70
  %v85 = vpack.c.b16 %v73, %v72
  %v86 = vpack.c.b16 %v75, %v74
  %v87 = vpack.c.b16 %v77, %v76
  %v88 = vpack.c.b16 %v79, %v78
  %v89 = vpack.c.b16 %v81, %v80
  %v114 = vunpack.c.l.b16 %v30
  %v115 = vunpack.c.l.b16 %v31
  %v116 = vunpack.c.l.b16 %v32
  %v117 = vunpack.c.l.b16 %v33
  %v118 = vunpack.c.l.b16 %v34
  %v119 = vunpack.c.l.b16 %v35
  %v120 = vunpack.c.l.b16 %v36
  %v121 = vunpack.c.l.b16 %v37
  %v122 = vunpack.c.l.b16 %v38
  %v123 = vunpack.c.l.b16 %v39
  %v124 = vunpack.c.l.b16 %v40
  %v125 = vunpack.c.l.b16 %v41
  %v126 = vunpack.c.l.b16 %v42
  %v127 = vunpack.c.l.b16 %v43
  %v128 = vunpack.c.l.b16 %v44
  %v129 = vunpack.c.l.b16 %v45
  %v130 = vpack.c.b16 %v115, %v114
  %v131 = vpack.c.b16 %v117, %v116
  %v132 = vpack.c.b16 %v119, %v118
  %v133 = vpack.c.b16 %v121, %v120
  %v134 = vpack.c.b16 %v123, %v122
  %v135 = vpack.c.b16 %v125, %v124
  %v136 = vpack.c.b16 %v127, %v126
  %v137 = vpack.c.b16 %v129, %v128
  %146 = vmatpush.bf16.msra.mxu0 %v137
  %147 = vmatpush.bf16.msra.mxu0 %v136
  %148 = vmatpush.bf16.msra.mxu0 %v135
  %149 = vmatpush.bf16.msra.mxu0 %v134
  %150 = vmatpush.bf16.msra.mxu0 %v133
  %151 = vmatpush.bf16.msra.mxu0 %v132
  %152 = vmatpush.bf16.msra.mxu0 %v131
  %153 = vmatpush.bf16.msra.mxu0 %v130
  %154 = vmatmul.bf16.gmra.mxu0 %v82
  %v155 = vpop.f32.mrf.mxu0
  %v156 = vadd.f32 %v48, %v155
  %v157 = vpop.f32.mrf.mxu0
  %v158 = vadd.f32 %v48, %v157
  %159 = vmatmul.bf16.gmra.mxu0 %v83
  %v160 = vpop.f32.mrf.mxu0
  %v161 = vadd.f32 %v48, %v160
  %v162 = vpop.f32.mrf.mxu0
  %v163 = vadd.f32 %v48, %v162
  %164 = vmatmul.bf16.gmra.mxu0 %v84
  %v165 = vpop.f32.mrf.mxu0
  %v166 = vadd.f32 %v48, %v165
  %v167 = vpop.f32.mrf.mxu0
  %v168 = vadd.f32 %v48, %v167
  %169 = vmatmul.bf16.gmra.mxu0 %v85
  %v170 = vpop.f32.mrf.mxu0
  %v171 = vadd.f32 %v48, %v170
  %v172 = vpop.f32.mrf.mxu0
  %v173 = vadd.f32 %v48, %v172
  %174 = vmatmul.bf16.gmra.mxu0 %v86
  %v175 = vpop.f32.mrf.mxu0
  %v176 = vadd.f32 %v48, %v175
  %v177 = vpop.f32.mrf.mxu0
  %v178 = vadd.f32 %v48, %v177
  %179 = vmatmul.bf16.gmra.mxu0 %v87
  %v180 = vpop.f32.mrf.mxu0
  %v181 = vadd.f32 %v48, %v180
  %v182 = vpop.f32.mrf.mxu0
  %v183 = vadd.f32 %v48, %v182
  %184 = vmatmul.bf16.gmra.mxu0 %v88
  %v185 = vpop.f32.mrf.mxu0
  %v186 = vadd.f32 %v48, %v185
  %v187 = vpop.f32.mrf.mxu0
  %v188 = vadd.f32 %v48, %v187
  %189 = vmatmul.bf16.gmra.mxu0 %v89
  %v190 = vpop.f32.mrf.mxu0
  %v191 = vadd.f32 %v48, %v190
  %v192 = vpop.f32.mrf.mxu0
  %v193 = vadd.f32 %v48, %v192
  %194 = vdwg.mxu0
  %195 = vst [vmem:[%s3] sm:$0xff] %v156
  %196 = vst [vmem:[%s3 + $0x8] sm:$0xff] %v158
  %197 = vst [vmem:[%s3 + $0x10] sm:$0xff] %v161
  %198 = vst [vmem:[%s3 + $0x18] sm:$0xff] %v163
  %199 = vst [vmem:[%s3 + $0x20] sm:$0xff] %v166
  %200 = vst [vmem:[%s3 + $0x28] sm:$0xff] %v168
  %201 = vst [vmem:[%s3 + $0x30] sm:$0xff] %v171
  %202 = vst [vmem:[%s3 + $0x38] sm:$0xff] %v173
  %203 = vst [vmem:[%s3 + $0x40] sm:$0xff] %v176
  %204 = vst [vmem:[%s3 + $0x48] sm:$0xff] %v178
  %205 = vst [vmem:[%s3 + $0x50] sm:$0xff] %v181
  %206 = vst [vmem:[%s3 + $0x58] sm:$0xff] %v183
  %207 = vst [vmem:[%s3 + $0x60] sm:$0xff] %v186
  %208 = vst [vmem:[%s3 + $0x68] sm:$0xff] %v188
  %209 = vst [vmem:[%s3 + $0x70] sm:$0xff] %v191
  %210 = vst [vmem:[%s3 + $0x78] sm:$0xff] %v193
  // Predicated region
  $region14: #{_lambda_.33} parent=0 // pred_check
    _
  $region15: #{_lambda_.33} parent=0 // pred_check_branch
    %212 = sbr.rel (0) target = $region17
  $region16: #{_lambda_.33} parent=0 // pred_region
    _
  $region17: #{_lambda_.33} parent=0 // pred_fallthru
    _
  // Predicated region
  $region18: #{_lambda_.33} parent=0 // pred_check
    _
  $region19: #{_lambda_.33} parent=0 // pred_check_branch
    %214 = sbr.rel (0) target = $region21
  $region20: #{_lambda_.33} parent=0 // pred_region
    _
  $region21: #{_lambda_.33} parent=0 // pred_fallthru
    _

// kernel: _lambda_.34
$region0: #{_lambda_.34}
  #allocation0 [shape = 'u32[]', space=smem, size = 0x4, offset = 0x4, fixed_abs, tag = 'smem constant byte address 0x4 - core index']
  #allocation1 [shape = 'u32[72,128]{1,0:T(1,128)}', space=vmem, size = 0x9000, scoped, tag = 'internal scratch']
  %s0 = inlined_call_operand.vmem [shape: f32[128,128], index: 0, kind: input, shape index: {}]
  %s1 = inlined_call_operand.vmem [shape: f32[2,128], index: 1, kind: output, shape index: {}]
  %s2 = sld [smem:[#allocation0]]
  $region18: #{_lambda_.34} parent=0
    _
  %s4 = ssub.s32 1, %s2
  %s5 = scalar_select 0, %s4, %s2
  // Predicated region
  $region2: #{_lambda_.34} parent=0 // pred_check
    _
  $region3: #{_lambda_.34} parent=0 // pred_check_branch
    %7 = sbr.rel (0) target = $region5
  $region4: #{_lambda_.34} parent=0 // pred_region
    _
  $region5: #{_lambda_.34} parent=0 // pred_fallthru
    _
  %p8 = scmp.eq.s32.totalorder 0, 0
  // Predicated region
  $region6: #{_lambda_.34} parent=0 // pred_check
    %p9 = pneg %p8
  $region7: #{_lambda_.34} parent=0 // pred_check_branch
    %11 = sbr.rel (%p9) target = $region9
  $region8: #{_lambda_.34} parent=0 // pred_region
    %12 = vst [vmem:[%s1] sm:$0x3] 0.0
  $region9: #{_lambda_.34} parent=0 // pred_fallthru
    _
  %v13 = vld [vmem:[%s0] sm:$0xff]
  %v14 = vld [vmem:[%s0 + $0x8] sm:$0xff]
  %v15 = vld [vmem:[%s0 + $0x10] sm:$0xff]
  %v16 = vld [vmem:[%s0 + $0x18] sm:$0xff]
  %v17 = vld [vmem:[%s0 + $0x20] sm:$0xff]
  %v18 = vld [vmem:[%s0 + $0x28] sm:$0xff]
  %v19 = vld [vmem:[%s0 + $0x30] sm:$0xff]
  %v20 = vld [vmem:[%s0 + $0x38] sm:$0xff]
  %v21 = vld [vmem:[%s0 + $0x40] sm:$0xff]
  %v22 = vld [vmem:[%s0 + $0x48] sm:$0xff]
  %v23 = vld [vmem:[%s0 + $0x50] sm:$0xff]
  %v24 = vld [vmem:[%s0 + $0x58] sm:$0xff]
  %v25 = vld [vmem:[%s0 + $0x60] sm:$0xff]
  %v26 = vld [vmem:[%s0 + $0x68] sm:$0xff]
  %v27 = vld [vmem:[%s0 + $0x70] sm:$0xff]
  %v28 = vld [vmem:[%s0 + $0x78] sm:$0xff]
  %v29 = vadd.f32 %v13, %v14
  %v30 = vadd.f32 %v29, %v15
  %v31 = vadd.f32 %v30, %v16
  %v32 = vadd.f32 %v31, %v17
  %v33 = vadd.f32 %v32, %v18
  %v34 = vadd.f32 %v33, %v19
  %v35 = vadd.f32 %v34, %v20
  %v36 = vadd.f32 %v35, %v21
  %v37 = vadd.f32 %v36, %v22
  %v38 = vadd.f32 %v37, %v23
  %v39 = vadd.f32 %v38, %v24
  %v40 = vadd.f32 %v39, %v25
  %v41 = vadd.f32 %v40, %v26
  %v42 = vadd.f32 %v41, %v27
  %v43 = vadd.f32 %v42, %v28
  %v44 = vrot.slane %v43, 4
  %v45 = vadd.f32 %v43, %v44
  %v46 = vrot.slane %v45, 2
  %v47 = vadd.f32 %v45, %v46
  %v48 = vrot.slane %v47, 1
  %v49 = vadd.f32 %v47, %v48
  %v50 = vmul.f32 %v13, %v13
  %v51 = vmul.f32 %v14, %v14
  %v52 = vmul.f32 %v15, %v15
  %v53 = vmul.f32 %v16, %v16
  %v54 = vmul.f32 %v17, %v17
  %v55 = vmul.f32 %v18, %v18
  %v56 = vmul.f32 %v19, %v19
  %v57 = vmul.f32 %v20, %v20
  %v58 = vmul.f32 %v21, %v21
  %v59 = vmul.f32 %v22, %v22
  %v60 = vmul.f32 %v23, %v23
  %v61 = vmul.f32 %v24, %v24
  %v62 = vmul.f32 %v25, %v25
  %v63 = vmul.f32 %v26, %v26
  %v64 = vmul.f32 %v27, %v27
  %v65 = vmul.f32 %v28, %v28
  %v66 = vadd.f32 %v50, %v51
  %v67 = vadd.f32 %v66, %v52
  %v68 = vadd.f32 %v67, %v53
  %v69 = vadd.f32 %v68, %v54
  %v70 = vadd.f32 %v69, %v55
  %v71 = vadd.f32 %v70, %v56
  %v72 = vadd.f32 %v71, %v57
  %v73 = vadd.f32 %v72, %v58
  %v74 = vadd.f32 %v73, %v59
  %v75 = vadd.f32 %v74, %v60
  %v76 = vadd.f32 %v75, %v61
  %v77 = vadd.f32 %v76, %v62
  %v78 = vadd.f32 %v77, %v63
  %v79 = vadd.f32 %v78, %v64
  %v80 = vadd.f32 %v79, %v65
  %v81 = vrot.slane %v80, 4
  %v82 = vadd.f32 %v80, %v81
  %v83 = vrot.slane %v82, 2
  %v84 = vadd.f32 %v82, %v83
  %v85 = vrot.slane %v84, 1
  %v86 = vadd.f32 %v84, %v85
  %v87 = vld [vmem:[%s1] sm:$0x3]
  %vm88 = vcmask 1040384
  %v89 = vsel %vm88, %v49, %v86
  %v90 = vadd.f32 %v87, %v89
  %91 = vst [vmem:[%s1] sm:$0x3] %v90
  // Predicated region
  $region10: #{_lambda_.34} parent=0 // pred_check
    _
  $region11: #{_lambda_.34} parent=0 // pred_check_branch
    %93 = sbr.rel (0) target = $region13
  $region12: #{_lambda_.34} parent=0 // pred_region
    _
  $region13: #{_lambda_.34} parent=0 // pred_fallthru
    _
  // Predicated region
  $region14: #{_lambda_.34} parent=0 // pred_check
    _
  $region15: #{_lambda_.34} parent=0 // pred_check_branch
    %95 = sbr.rel (0) target = $region17
  $region16: #{_lambda_.34} parent=0 // pred_region
    _
  $region17: #{_lambda_.34} parent=0 // pred_fallthru
    _

// kernel: _lambda_.35
$region0: #{_lambda_.35}
  #allocation0 [shape = 'u32[]', space=smem, size = 0x4, offset = 0x4, fixed_abs, tag = 'smem constant byte address 0x4 - core index']
  #allocation1 [shape = 'u32[72,128]{1,0:T(1,128)}', space=vmem, size = 0x9000, scoped, tag = 'internal scratch']
  %s0 = inlined_call_operand.vmem [shape: f32[128,128], index: 0, kind: input, shape index: {}]
  %s1 = inlined_call_operand.vmem [shape: f32[1,128], index: 1, kind: input, shape index: {}]
  %s2 = inlined_call_operand.vmem [shape: f32[1,128], index: 2, kind: input, shape index: {}]
  %s3 = inlined_call_operand.vmem [shape: f32[128,128], index: 3, kind: output, shape index: {}]
  %s4 = sld [smem:[#allocation0]]
  $region22: #{_lambda_.35} parent=0
    _
  %s6 = ssub.s32 1, %s4
  %s7 = scalar_select 0, %s6, %s4
  // Predicated region
  $region2: #{_lambda_.35} parent=0 // pred_check
    _
  $region3: #{_lambda_.35} parent=0 // pred_check_branch
    %9 = sbr.rel (0) target = $region5
  $region4: #{_lambda_.35} parent=0 // pred_region
    _
  $region5: #{_lambda_.35} parent=0 // pred_fallthru
    _
  // Predicated region
  $region6: #{_lambda_.35} parent=0 // pred_check
    _
  $region7: #{_lambda_.35} parent=0 // pred_check_branch
    %11 = sbr.rel (0) target = $region9
  $region8: #{_lambda_.35} parent=0 // pred_region
    _
  $region9: #{_lambda_.35} parent=0 // pred_fallthru
    _
  // Predicated region
  $region10: #{_lambda_.35} parent=0 // pred_check
    _
  $region11: #{_lambda_.35} parent=0 // pred_check_branch
    %13 = sbr.rel (0) target = $region13
  $region12: #{_lambda_.35} parent=0 // pred_region
    _
  $region13: #{_lambda_.35} parent=0 // pred_fallthru
    _
  %v14 = vld [vmem:[%s0] sm:$0xff]
  %v15 = vld [vmem:[%s0 + $0x8] sm:$0xff]
  %v16 = vld [vmem:[%s0 + $0x10] sm:$0xff]
  %v17 = vld [vmem:[%s0 + $0x18] sm:$0xff]
  %v18 = vld [vmem:[%s0 + $0x20] sm:$0xff]
  %v19 = vld [vmem:[%s0 + $0x28] sm:$0xff]
  %v20 = vld [vmem:[%s0 + $0x30] sm:$0xff]
  %v21 = vld [vmem:[%s0 + $0x38] sm:$0xff]
  %v22 = vld [vmem:[%s0 + $0x40] sm:$0xff]
  %v23 = vld [vmem:[%s0 + $0x48] sm:$0xff]
  %v24 = vld [vmem:[%s0 + $0x50] sm:$0xff]
  %v25 = vld [vmem:[%s0 + $0x58] sm:$0xff]
  %v26 = vld [vmem:[%s0 + $0x60] sm:$0xff]
  %v27 = vld [vmem:[%s0 + $0x68] sm:$0xff]
  %v28 = vld [vmem:[%s0 + $0x70] sm:$0xff]
  %v29 = vld [vmem:[%s0 + $0x78] sm:$0xff]
  %v30 = vld [vmem:[%s1] sm:$0x1]
  %v32 = vperm.slane %v30, 0
  %v34 = vmul.f32 %v14, %v32
  %v35 = vmul.f32 %v15, %v32
  %v36 = vmul.f32 %v16, %v32
  %v37 = vmul.f32 %v17, %v32
  %v38 = vmul.f32 %v18, %v32
  %v39 = vmul.f32 %v19, %v32
  %v40 = vmul.f32 %v20, %v32
  %v41 = vmul.f32 %v21, %v32
  %v42 = vmul.f32 %v22, %v32
  %v43 = vmul.f32 %v23, %v32
  %v44 = vmul.f32 %v24, %v32
  %v45 = vmul.f32 %v25, %v32
  %v46 = vmul.f32 %v26, %v32
  %v47 = vmul.f32 %v27, %v32
  %v48 = vmul.f32 %v28, %v32
  %v49 = vmul.f32 %v29, %v32
  %v50 = vld [vmem:[%s2] sm:$0x1]
  %v52 = vperm.slane %v50, 0
  %v54 = vadd.f32 %v34, %v52
  %v55 = vadd.f32 %v35, %v52
  %v56 = vadd.f32 %v36, %v52
  %v57 = vadd.f32 %v37, %v52
  %v58 = vadd.f32 %v38, %v52
  %v59 = vadd.f32 %v39, %v52
  %v60 = vadd.f32 %v40, %v52
  %v61 = vadd.f32 %v41, %v52
  %v62 = vadd.f32 %v42, %v52
  %v63 = vadd.f32 %v43, %v52
  %v64 = vadd.f32 %v44, %v52
  %v65 = vadd.f32 %v45, %v52
  %v66 = vadd.f32 %v46, %v52
  %v67 = vadd.f32 %v47, %v52
  %v68 = vadd.f32 %v48, %v52
  %v69 = vadd.f32 %v49, %v52
  %70 = vst [vmem:[%s3] sm:$0xff] %v54
  %71 = vst [vmem:[%s3 + $0x8] sm:$0xff] %v55
  %72 = vst [vmem:[%s3 + $0x10] sm:$0xff] %v56
  %73 = vst [vmem:[%s3 + $0x18] sm:$0xff] %v57
  %74 = vst [vmem:[%s3 + $0x20] sm:$0xff] %v58
  %75 = vst [vmem:[%s3 + $0x28] sm:$0xff] %v59
  %76 = vst [vmem:[%s3 + $0x30] sm:$0xff] %v60
  %77 = vst [vmem:[%s3 + $0x38] sm:$0xff] %v61
  %78 = vst [vmem:[%s3 + $0x40] sm:$0xff] %v62
  %79 = vst [vmem:[%s3 + $0x48] sm:$0xff] %v63
  %80 = vst [vmem:[%s3 + $0x50] sm:$0xff] %v64
  %81 = vst [vmem:[%s3 + $0x58] sm:$0xff] %v65
  %82 = vst [vmem:[%s3 + $0x60] sm:$0xff] %v66
  %83 = vst [vmem:[%s3 + $0x68] sm:$0xff] %v67
  %84 = vst [vmem:[%s3 + $0x70] sm:$0xff] %v68
  %85 = vst [vmem:[%s3 + $0x78] sm:$0xff] %v69
  // Predicated region
  $region14: #{_lambda_.35} parent=0 // pred_check
    _
  $region15: #{_lambda_.35} parent=0 // pred_check_branch
    %87 = sbr.rel (0) target = $region17
  $region16: #{_lambda_.35} parent=0 // pred_region
    _
  $region17: #{_lambda_.35} parent=0 // pred_fallthru
    _
  // Predicated region
  $region18: #{_lambda_.35} parent=0 // pred_check
    _
  $region19: #{_lambda_.35} parent=0 // pred_check_branch
    %89 = sbr.rel (0) target = $region21
  $region20: #{_lambda_.35} parent=0 // pred_region
    _
  $region21: #{_lambda_.35} parent=0 // pred_fallthru
    _

// kernel: _lambda_.38
$region0: #{_lambda_.38}
  #allocation0 [shape = 'u32[]', space=smem, size = 0x4, offset = 0x4, fixed_abs, tag = 'smem constant byte address 0x4 - core index']
  #allocation1 [shape = 'u32[72,128]{1,0:T(1,128)}', space=vmem, size = 0x9000, scoped, tag = 'internal scratch']
  %s0 = inlined_call_operand.vmem [shape: f32[32,128], index: 0, kind: input, shape index: {}]
  %s1 = inlined_call_operand.vmem [shape: f32[1,128], index: 1, kind: input, shape index: {}]
  %s2 = inlined_call_operand.vmem [shape: f32[1,128], index: 2, kind: input, shape index: {}]
  %s3 = inlined_call_operand.vmem [shape: f32[32,128], index: 3, kind: output, shape index: {}]
  %s4 = sld [smem:[#allocation0]]
  $region22: #{_lambda_.38} parent=0
    _
  %s6 = ssub.s32 1, %s4
  %s7 = scalar_select 0, %s6, %s4
  // Predicated region
  $region2: #{_lambda_.38} parent=0 // pred_check
    _
  $region3: #{_lambda_.38} parent=0 // pred_check_branch
    %9 = sbr.rel (0) target = $region5
  $region4: #{_lambda_.38} parent=0 // pred_region
    _
  $region5: #{_lambda_.38} parent=0 // pred_fallthru
    _
  // Predicated region
  $region6: #{_lambda_.38} parent=0 // pred_check
    _
  $region7: #{_lambda_.38} parent=0 // pred_check_branch
    %11 = sbr.rel (0) target = $region9
  $region8: #{_lambda_.38} parent=0 // pred_region
    _
  $region9: #{_lambda_.38} parent=0 // pred_fallthru
    _
  // Predicated region
  $region10: #{_lambda_.38} parent=0 // pred_check
    _
  $region11: #{_lambda_.38} parent=0 // pred_check_branch
    %13 = sbr.rel (0) target = $region13
  $region12: #{_lambda_.38} parent=0 // pred_region
    _
  $region13: #{_lambda_.38} parent=0 // pred_fallthru
    _
  %v14 = vld [vmem:[%s0] sm:$0xff]
  %v15 = vld [vmem:[%s0 + $0x8] sm:$0xff]
  %v16 = vld [vmem:[%s0 + $0x10] sm:$0xff]
  %v17 = vld [vmem:[%s0 + $0x18] sm:$0xff]
  %v18 = vld [vmem:[%s1] sm:$0x1]
  %v20 = vperm.slane %v18, 0
  %v22 = vmul.f32 %v14, %v20
  %v23 = vmul.f32 %v15, %v20
  %v24 = vmul.f32 %v16, %v20
  %v25 = vmul.f32 %v17, %v20
  %v26 = vld [vmem:[%s2] sm:$0x1]
  %v28 = vperm.slane %v26, 0
  %v30 = vadd.f32 %v22, %v28
  %v31 = vadd.f32 %v23, %v28
  %v32 = vadd.f32 %v24, %v28
  %v33 = vadd.f32 %v25, %v28
  %34 = vst [vmem:[%s3] sm:$0xff] %v30
  %35 = vst [vmem:[%s3 + $0x8] sm:$0xff] %v31
  %36 = vst [vmem:[%s3 + $0x10] sm:$0xff] %v32
  %37 = vst [vmem:[%s3 + $0x18] sm:$0xff] %v33
  // Predicated region
  $region14: #{_lambda_.38} parent=0 // pred_check
    _
  $region15: #{_lambda_.38} parent=0 // pred_check_branch
    %39 = sbr.rel (0) target = $region17
  $region16: #{_lambda_.38} parent=0 // pred_region
    _
  $region17: #{_lambda_.38} parent=0 // pred_fallthru
    _
  // Predicated region
  $region18: #{_lambda_.38} parent=0 // pred_check
    _
  $region19: #{_lambda_.38} parent=0 // pred_check_branch
    %41 = sbr.rel (0) target = $region21
  $region20: #{_lambda_.38} parent=0 // pred_region
    _
  $region21: #{_lambda_.38} parent=0 // pred_fallthru
    _

// kernel: _lambda_.37
$region0: #{_lambda_.37}
  #allocation0 [shape = 'u32[]', space=smem, size = 0x4, offset = 0x4, fixed_abs, tag = 'smem constant byte address 0x4 - core index']
  #allocation1 [shape = 'u32[72,128]{1,0:T(1,128)}', space=vmem, size = 0x9000, scoped, tag = 'internal scratch']
  %s0 = inlined_call_operand.vmem [shape: f32[32,128], index: 0, kind: input, shape index: {}]
  %s1 = inlined_call_operand.vmem [shape: f32[2,128], index: 1, kind: output, shape index: {}]
  %s2 = sld [smem:[#allocation0]]
  $region18: #{_lambda_.37} parent=0
    _
  %s4 = ssub.s32 1, %s2
  %s5 = scalar_select 0, %s4, %s2
  // Predicated region
  $region2: #{_lambda_.37} parent=0 // pred_check
    _
  $region3: #{_lambda_.37} parent=0 // pred_check_branch
    %7 = sbr.rel (0) target = $region5
  $region4: #{_lambda_.37} parent=0 // pred_region
    _
  $region5: #{_lambda_.37} parent=0 // pred_fallthru
    _
  %p8 = scmp.eq.s32.totalorder 0, 0
  // Predicated region
  $region6: #{_lambda_.37} parent=0 // pred_check
    %p9 = pneg %p8
  $region7: #{_lambda_.37} parent=0 // pred_check_branch
    %11 = sbr.rel (%p9) target = $region9
  $region8: #{_lambda_.37} parent=0 // pred_region
    %12 = vst [vmem:[%s1] sm:$0x3] 0.0
  $region9: #{_lambda_.37} parent=0 // pred_fallthru
    _
  %v13 = vld [vmem:[%s0] sm:$0xff]
  %v14 = vld [vmem:[%s0 + $0x8] sm:$0xff]
  %v15 = vld [vmem:[%s0 + $0x10] sm:$0xff]
  %v16 = vld [vmem:[%s0 + $0x18] sm:$0xff]
  %v17 = vadd.f32 %v13, %v14
  %v18 = vadd.f32 %v17, %v15
  %v19 = vadd.f32 %v18, %v16
  %v20 = vrot.slane %v19, 4
  %v21 = vadd.f32 %v19, %v20
  %v22 = vrot.slane %v21, 2
  %v23 = vadd.f32 %v21, %v22
  %v24 = vrot.slane %v23, 1
  %v25 = vadd.f32 %v23, %v24
  %v26 = vmul.f32 %v13, %v13
  %v27 = vmul.f32 %v14, %v14
  %v28 = vmul.f32 %v15, %v15
  %v29 = vmul.f32 %v16, %v16
  %v30 = vadd.f32 %v26, %v27
  %v31 = vadd.f32 %v30, %v28
  %v32 = vadd.f32 %v31, %v29
  %v33 = vrot.slane %v32, 4
  %v34 = vadd.f32 %v32, %v33
  %v35 = vrot.slane %v34, 2
  %v36 = vadd.f32 %v34, %v35
  %v37 = vrot.slane %v36, 1
  %v38 = vadd.f32 %v36, %v37
  %v39 = vld [vmem:[%s1] sm:$0x3]
  %vm40 = vcmask 1040384
  %v41 = vsel %vm40, %v25, %v38
  %v42 = vadd.f32 %v39, %v41
  %43 = vst [vmem:[%s1] sm:$0x3] %v42
  // Predicated region
  $region10: #{_lambda_.37} parent=0 // pred_check
    _
  $region11: #{_lambda_.37} parent=0 // pred_check_branch
    %45 = sbr.rel (0) target = $region13
  $region12: #{_lambda_.37} parent=0 // pred_region
    _
  $region13: #{_lambda_.37} parent=0 // pred_fallthru
    _
  // Predicated region
  $region14: #{_lambda_.37} parent=0 // pred_check
    _
  $region15: #{_lambda_.37} parent=0 // pred_check_branch
    %47 = sbr.rel (0) target = $region17
  $region16: #{_lambda_.37} parent=0 // pred_region
    _
  $region17: #{_lambda_.37} parent=0 // pred_fallthru
    _

// kernel: _lambda_.36
$region0: #{_lambda_.36}
  #allocation0 [shape = 'u32[]', space=smem, size = 0x4, offset = 0x4, fixed_abs, tag = 'smem constant byte address 0x4 - core index']
  #allocation1 [shape = 'u32[72,128]{1,0:T(1,128)}', space=vmem, size = 0x9000, scoped, tag = 'internal scratch']
  %s0 = inlined_call_operand.vmem [shape: bf16[32,256], index: 0, kind: input, shape index: {}]
  %s1 = inlined_call_operand.vmem [shape: bf16[256,128], index: 1, kind: input, shape index: {}]
  %s2 = inlined_call_operand.vmem [shape: f32[1,128], index: 2, kind: input, shape index: {}]
  %s3 = inlined_call_operand.vmem [shape: f32[32,128], index: 3, kind: output, shape index: {}]
  %s4 = sld [smem:[#allocation0]]
  $region22: #{_lambda_.36} parent=0
    _
  %s6 = ssub.s32 1, %s4
  %s7 = scalar_select 0, %s6, %s4
  // Predicated region
  $region2: #{_lambda_.36} parent=0 // pred_check
    _
  $region3: #{_lambda_.36} parent=0 // pred_check_branch
    %9 = sbr.rel (0) target = $region5
  $region4: #{_lambda_.36} parent=0 // pred_region
    _
  $region5: #{_lambda_.36} parent=0 // pred_fallthru
    _
  // Predicated region
  $region6: #{_lambda_.36} parent=0 // pred_check
    _
  $region7: #{_lambda_.36} parent=0 // pred_check_branch
    %11 = sbr.rel (0) target = $region9
  $region8: #{_lambda_.36} parent=0 // pred_region
    _
  $region9: #{_lambda_.36} parent=0 // pred_fallthru
    _
  // Predicated region
  $region10: #{_lambda_.36} parent=0 // pred_check
    _
  $region11: #{_lambda_.36} parent=0 // pred_check_branch
    %13 = sbr.rel (0) target = $region13
  $region12: #{_lambda_.36} parent=0 // pred_region
    _
  $region13: #{_lambda_.36} parent=0 // pred_fallthru
    _
  %v14 = vld [vmem:[%s0] sm:$0xff]
  %v15 = vld [vmem:[%s0 + $0x8] sm:$0xff]
  %v16 = vld [vmem:[%s0 + $0x10] sm:$0xff]
  %v17 = vld [vmem:[%s0 + $0x18] sm:$0xff]
  %v18 = vld [vmem:[%s1] sm:$0xf]
  %v19 = vld [vmem:[%s1 + $0x4] sm:$0xf]
  %v20 = vld [vmem:[%s1 + $0x8] sm:$0xf]
  %v21 = vld [vmem:[%s1 + $0xc] sm:$0xf]
  %v22 = vld [vmem:[%s1 + $0x10] sm:$0xf]
  %v23 = vld [vmem:[%s1 + $0x14] sm:$0xf]
  %v24 = vld [vmem:[%s1 + $0x18] sm:$0xf]
  %v25 = vld [vmem:[%s1 + $0x1c] sm:$0xf]
  %v26 = vld [vmem:[%s1 + $0x20] sm:$0xf]
  %v27 = vld [vmem:[%s1 + $0x24] sm:$0xf]
  %v28 = vld [vmem:[%s1 + $0x28] sm:$0xf]
  %v29 = vld [vmem:[%s1 + $0x2c] sm:$0xf]
  %v30 = vld [vmem:[%s1 + $0x30] sm:$0xf]
  %v31 = vld [vmem:[%s1 + $0x34] sm:$0xf]
  %v32 = vld [vmem:[%s1 + $0x38] sm:$0xf]
  %v33 = vld [vmem:[%s1 + $0x3c] sm:$0xf]
  %v34 = vld [vmem:[%s1 + $0x40] sm:$0xf]
  %v35 = vld [vmem:[%s1 + $0x44] sm:$0xf]
  %v36 = vld [vmem:[%s1 + $0x48] sm:$0xf]
  %v37 = vld [vmem:[%s1 + $0x4c] sm:$0xf]
  %v38 = vld [vmem:[%s1 + $0x50] sm:$0xf]
  %v39 = vld [vmem:[%s1 + $0x54] sm:$0xf]
  %v40 = vld [vmem:[%s1 + $0x58] sm:$0xf]
  %v41 = vld [vmem:[%s1 + $0x5c] sm:$0xf]
  %v42 = vld [vmem:[%s1 + $0x60] sm:$0xf]
  %v43 = vld [vmem:[%s1 + $0x64] sm:$0xf]
  %v44 = vld [vmem:[%s1 + $0x68] sm:$0xf]
  %v45 = vld [vmem:[%s1 + $0x6c] sm:$0xf]
  %v46 = vld [vmem:[%s1 + $0x70] sm:$0xf]
  %v47 = vld [vmem:[%s1 + $0x74] sm:$0xf]
  %v48 = vld [vmem:[%s1 + $0x78] sm:$0xf]
  %v49 = vld [vmem:[%s1 + $0x7c] sm:$0xf]
  %v50 = vld [vmem:[%s2] sm:$0x1]
  %v52 = vperm.slane %v50, 0
  %v58 = vunpack.c.l.b16 %v14
  %v59 = vunpack.c.h.b16 %v14
  %v60 = vunpack.c.l.b16 %v15
  %v61 = vunpack.c.h.b16 %v15
  %v62 = vunpack.c.l.b16 %v16
  %v63 = vunpack.c.h.b16 %v16
  %v64 = vunpack.c.l.b16 %v17
  %v65 = vunpack.c.h.b16 %v17
  %v66 = vpack.c.b16 %v60, %v58
  %v67 = vpack.c.b16 %v61, %v59
  %v68 = vpack.c.b16 %v64, %v62
  %v69 = vpack.c.b16 %v65, %v63
  %v106 = vunpack.c.l.b16 %v18
  %v107 = vunpack.c.l.b16 %v19
  %v108 = vunpack.c.l.b16 %v20
  %v109 = vunpack.c.l.b16 %v21
  %v110 = vunpack.c.l.b16 %v22
  %v111 = vunpack.c.l.b16 %v23
  %v112 = vunpack.c.l.b16 %v24
  %v113 = vunpack.c.l.b16 %v25
  %v114 = vunpack.c.l.b16 %v26
  %v115 = vunpack.c.l.b16 %v27
  %v116 = vunpack.c.l.b16 %v28
  %v117 = vunpack.c.l.b16 %v29
  %v118 = vunpack.c.l.b16 %v30
  %v119 = vunpack.c.l.b16 %v31
  %v120 = vunpack.c.l.b16 %v32
  %v121 = vunpack.c.l.b16 %v33
  %v122 = vunpack.c.l.b16 %v34
  %v123 = vunpack.c.l.b16 %v35
  %v124 = vunpack.c.l.b16 %v36
  %v125 = vunpack.c.l.b16 %v37
  %v126 = vunpack.c.l.b16 %v38
  %v127 = vunpack.c.l.b16 %v39
  %v128 = vunpack.c.l.b16 %v40
  %v129 = vunpack.c.l.b16 %v41
  %v130 = vunpack.c.l.b16 %v42
  %v131 = vunpack.c.l.b16 %v43
  %v132 = vunpack.c.l.b16 %v44
  %v133 = vunpack.c.l.b16 %v45
  %v134 = vunpack.c.l.b16 %v46
  %v135 = vunpack.c.l.b16 %v47
  %v136 = vunpack.c.l.b16 %v48
  %v137 = vunpack.c.l.b16 %v49
  %v138 = vpack.c.b16 %v107, %v106
  %v139 = vpack.c.b16 %v109, %v108
  %v140 = vpack.c.b16 %v111, %v110
  %v141 = vpack.c.b16 %v113, %v112
  %v142 = vpack.c.b16 %v115, %v114
  %v143 = vpack.c.b16 %v117, %v116
  %v144 = vpack.c.b16 %v119, %v118
  %v145 = vpack.c.b16 %v121, %v120
  %v146 = vpack.c.b16 %v123, %v122
  %v147 = vpack.c.b16 %v125, %v124
  %v148 = vpack.c.b16 %v127, %v126
  %v149 = vpack.c.b16 %v129, %v128
  %v150 = vpack.c.b16 %v131, %v130
  %v151 = vpack.c.b16 %v133, %v132
  %v152 = vpack.c.b16 %v135, %v134
  %v153 = vpack.c.b16 %v137, %v136
  %170 = vmatpush.bf16.msra.mxu0 %v145
  %171 = vmatpush.bf16.msra.mxu0 %v144
  %172 = vmatpush.bf16.msra.mxu0 %v143
  %173 = vmatpush.bf16.msra.mxu0 %v142
  %174 = vmatpush.bf16.msra.mxu0 %v141
  %175 = vmatpush.bf16.msra.mxu0 %v140
  %176 = vmatpush.bf16.msra.mxu0 %v139
  %177 = vmatpush.bf16.msra.mxu0 %v138
  %178 = vmatmul.bf16.gmra.mxu0 %v66
  %v179 = vpop.f32.mrf.mxu0
  %v180 = vadd.f32 %v52, %v179
  %v181 = vpop.f32.mrf.mxu0
  %v182 = vadd.f32 %v52, %v181
  %183 = vmatmul.bf16.gmra.mxu0 %v68
  %v184 = vpop.f32.mrf.mxu0
  %v185 = vadd.f32 %v52, %v184
  %v186 = vpop.f32.mrf.mxu0
  %v187 = vadd.f32 %v52, %v186
  %188 = vdwg.mxu0
  %189 = vmatpush.bf16.msra.mxu0 %v153
  %190 = vmatpush.bf16.msra.mxu0 %v152
  %191 = vmatpush.bf16.msra.mxu0 %v151
  %192 = vmatpush.bf16.msra.mxu0 %v150
  %193 = vmatpush.bf16.msra.mxu0 %v149
  %194 = vmatpush.bf16.msra.mxu0 %v148
  %195 = vmatpush.bf16.msra.mxu0 %v147
  %196 = vmatpush.bf16.msra.mxu0 %v146
  %197 = vmatmul.bf16.gmra.mxu0 %v67
  %v198 = vpop.f32.mrf.mxu0
  %v199 = vadd.f32 %v180, %v198
  %v200 = vpop.f32.mrf.mxu0
  %v201 = vadd.f32 %v182, %v200
  %202 = vmatmul.bf16.gmra.mxu0 %v69
  %v203 = vpop.f32.mrf.mxu0
  %v204 = vadd.f32 %v185, %v203
  %v205 = vpop.f32.mrf.mxu0
  %v206 = vadd.f32 %v187, %v205
  %207 = vdwg.mxu0
  %208 = vst [vmem:[%s3] sm:$0xff] %v199
  %209 = vst [vmem:[%s3 + $0x8] sm:$0xff] %v201
  %210 = vst [vmem:[%s3 + $0x10] sm:$0xff] %v204
  %211 = vst [vmem:[%s3 + $0x18] sm:$0xff] %v206
  // Predicated region
  $region14: #{_lambda_.36} parent=0 // pred_check
    _
  $region15: #{_lambda_.36} parent=0 // pred_check_branch
    %213 = sbr.rel (0) target = $region17
  $region16: #{_lambda_.36} parent=0 // pred_region
    _
  $region17: #{_lambda_.36} parent=0 // pred_fallthru
    _
  // Predicated region
  $region18: #{_lambda_.36} parent=0 // pred_check
    _
  $region19: #{_lambda_.36} parent=0 // pred_check_branch
    %215 = sbr.rel (0) target = $region21
  $region20: #{_lambda_.36} parent=0 // pred_region
    _
  $region21: #{_lambda_.36} parent=0 // pred_fallthru
    _

// kernel: _lambda_.39
$region0: #{_lambda_.39}
  #allocation0 [shape = 'u32[]', space=smem, size = 0x4, offset = 0x4, fixed_abs, tag = 'smem constant byte address 0x4 - core index']
  #allocation1 [shape = 'u32[72,128]{1,0:T(1,128)}', space=vmem, size = 0x9000, scoped, tag = 'internal scratch']
  %s0 = inlined_call_operand.vmem [shape: bf16[16,512], index: 0, kind: input, shape index: {}]
  %s1 = inlined_call_operand.vmem [shape: bf16[512,128], index: 1, kind: input, shape index: {}]
  %s2 = inlined_call_operand.vmem [shape: f32[1,128], index: 2, kind: input, shape index: {}]
  %s3 = inlined_call_operand.vmem [shape: f32[16,128], index: 3, kind: output, shape index: {}]
  %s4 = sld [smem:[#allocation0]]
  $region22: #{_lambda_.39} parent=0
    _
  %s6 = ssub.s32 1, %s4
  %s7 = scalar_select 0, %s6, %s4
  // Predicated region
  $region2: #{_lambda_.39} parent=0 // pred_check
    _
  $region3: #{_lambda_.39} parent=0 // pred_check_branch
    %9 = sbr.rel (0) target = $region5
  $region4: #{_lambda_.39} parent=0 // pred_region
    _
  $region5: #{_lambda_.39} parent=0 // pred_fallthru
    _
  // Predicated region
  $region6: #{_lambda_.39} parent=0 // pred_check
    _
  $region7: #{_lambda_.39} parent=0 // pred_check_branch
    %11 = sbr.rel (0) target = $region9
  $region8: #{_lambda_.39} parent=0 // pred_region
    _
  $region9: #{_lambda_.39} parent=0 // pred_fallthru
    _
  // Predicated region
  $region10: #{_lambda_.39} parent=0 // pred_check
    _
  $region11: #{_lambda_.39} parent=0 // pred_check_branch
    %13 = sbr.rel (0) target = $region13
  $region12: #{_lambda_.39} parent=0 // pred_region
    _
  $region13: #{_lambda_.39} parent=0 // pred_fallthru
    _
  %v14 = vld [vmem:[%s0] sm:$0xff]
  %v15 = vld [vmem:[%s0 + $0x8] sm:$0xff]
  %v16 = vld [vmem:[%s0 + $0x10] sm:$0xff]
  %v17 = vld [vmem:[%s0 + $0x18] sm:$0xff]
  %v18 = vld [vmem:[%s1] sm:$0xf]
  %v19 = vld [vmem:[%s1 + $0x4] sm:$0xf]
  %v20 = vld [vmem:[%s1 + $0x8] sm:$0xf]
  %v21 = vld [vmem:[%s1 + $0xc] sm:$0xf]
  %v22 = vld [vmem:[%s1 + $0x10] sm:$0xf]
  %v23 = vld [vmem:[%s1 + $0x14] sm:$0xf]
  %v24 = vld [vmem:[%s1 + $0x18] sm:$0xf]
  %v25 = vld [vmem:[%s1 + $0x1c] sm:$0xf]
  %v26 = vld [vmem:[%s1 + $0x20] sm:$0xf]
  %v27 = vld [vmem:[%s1 + $0x24] sm:$0xf]
  %v28 = vld [vmem:[%s1 + $0x28] sm:$0xf]
  %v29 = vld [vmem:[%s1 + $0x2c] sm:$0xf]
  %v30 = vld [vmem:[%s1 + $0x30] sm:$0xf]
  %v31 = vld [vmem:[%s1 + $0x34] sm:$0xf]
  %v32 = vld [vmem:[%s1 + $0x38] sm:$0xf]
  %v33 = vld [vmem:[%s1 + $0x3c] sm:$0xf]
  %v34 = vld [vmem:[%s1 + $0x40] sm:$0xf]
  %v35 = vld [vmem:[%s1 + $0x44] sm:$0xf]
  %v36 = vld [vmem:[%s1 + $0x48] sm:$0xf]
  %v37 = vld [vmem:[%s1 + $0x4c] sm:$0xf]
  %v38 = vld [vmem:[%s1 + $0x50] sm:$0xf]
  %v39 = vld [vmem:[%s1 + $0x54] sm:$0xf]
  %v40 = vld [vmem:[%s1 + $0x58] sm:$0xf]
  %v41 = vld [vmem:[%s1 + $0x5c] sm:$0xf]
  %v42 = vld [vmem:[%s1 + $0x60] sm:$0xf]
  %v43 = vld [vmem:[%s1 + $0x64] sm:$0xf]
  %v44 = vld [vmem:[%s1 + $0x68] sm:$0xf]
  %v45 = vld [vmem:[%s1 + $0x6c] sm:$0xf]
  %v46 = vld [vmem:[%s1 + $0x70] sm:$0xf]
  %v47 = vld [vmem:[%s1 + $0x74] sm:$0xf]
  %v48 = vld [vmem:[%s1 + $0x78] sm:$0xf]
  %v49 = vld [vmem:[%s1 + $0x7c] sm:$0xf]
  %v50 = vld [vmem:[%s1 + $0x80] sm:$0xf]
  %v51 = vld [vmem:[%s1 + $0x84] sm:$0xf]
  %v52 = vld [vmem:[%s1 + $0x88] sm:$0xf]
  %v53 = vld [vmem:[%s1 + $0x8c] sm:$0xf]
  %v54 = vld [vmem:[%s1 + $0x90] sm:$0xf]
  %v55 = vld [vmem:[%s1 + $0x94] sm:$0xf]
  %v56 = vld [vmem:[%s1 + $0x98] sm:$0xf]
  %v57 = vld [vmem:[%s1 + $0x9c] sm:$0xf]
  %v58 = vld [vmem:[%s1 + $0xa0] sm:$0xf]
  %v59 = vld [vmem:[%s1 + $0xa4] sm:$0xf]
  %v60 = vld [vmem:[%s1 + $0xa8] sm:$0xf]
  %v61 = vld [vmem:[%s1 + $0xac] sm:$0xf]
  %v62 = vld [vmem:[%s1 + $0xb0] sm:$0xf]
  %v63 = vld [vmem:[%s1 + $0xb4] sm:$0xf]
  %v64 = vld [vmem:[%s1 + $0xb8] sm:$0xf]
  %v65 = vld [vmem:[%s1 + $0xbc] sm:$0xf]
  %v66 = vld [vmem:[%s1 + $0xc0] sm:$0xf]
  %v67 = vld [vmem:[%s1 + $0xc4] sm:$0xf]
  %v68 = vld [vmem:[%s1 + $0xc8] sm:$0xf]
  %v69 = vld [vmem:[%s1 + $0xcc] sm:$0xf]
  %v70 = vld [vmem:[%s1 + $0xd0] sm:$0xf]
  %v71 = vld [vmem:[%s1 + $0xd4] sm:$0xf]
  %v72 = vld [vmem:[%s1 + $0xd8] sm:$0xf]
  %v73 = vld [vmem:[%s1 + $0xdc] sm:$0xf]
  %v74 = vld [vmem:[%s1 + $0xe0] sm:$0xf]
  %v75 = vld [vmem:[%s1 + $0xe4] sm:$0xf]
  %v76 = vld [vmem:[%s1 + $0xe8] sm:$0xf]
  %v77 = vld [vmem:[%s1 + $0xec] sm:$0xf]
  %v78 = vld [vmem:[%s1 + $0xf0] sm:$0xf]
  %v79 = vld [vmem:[%s1 + $0xf4] sm:$0xf]
  %v80 = vld [vmem:[%s1 + $0xf8] sm:$0xf]
  %v81 = vld [vmem:[%s1 + $0xfc] sm:$0xf]
  %v82 = vld [vmem:[%s2] sm:$0x1]
  %v84 = vperm.slane %v82, 0
  %v90 = vunpack.c.l.b16 %v14
  %v91 = vunpack.c.h.b16 %v14
  %v92 = vunpack.c.l.b16 %v15
  %v93 = vunpack.c.h.b16 %v15
  %v94 = vunpack.c.l.b16 %v16
  %v95 = vunpack.c.h.b16 %v16
  %v96 = vunpack.c.l.b16 %v17
  %v97 = vunpack.c.h.b16 %v17
  %v98 = vpack.c.b16 %v94, %v90
  %v99 = vpack.c.b16 %v95, %v91
  %v100 = vpack.c.b16 %v96, %v92
  %v101 = vpack.c.b16 %v97, %v93
  %v170 = vunpack.c.l.b16 %v18
  %v171 = vunpack.c.l.b16 %v19
  %v172 = vunpack.c.l.b16 %v20
  %v173 = vunpack.c.l.b16 %v21
  %v174 = vunpack.c.l.b16 %v22
  %v175 = vunpack.c.l.b16 %v23
  %v176 = vunpack.c.l.b16 %v24
  %v177 = vunpack.c.l.b16 %v25
  %v178 = vunpack.c.l.b16 %v26
  %v179 = vunpack.c.l.b16 %v27
  %v180 = vunpack.c.l.b16 %v28
  %v181 = vunpack.c.l.b16 %v29
  %v182 = vunpack.c.l.b16 %v30
  %v183 = vunpack.c.l.b16 %v31
  %v184 = vunpack.c.l.b16 %v32
  %v185 = vunpack.c.l.b16 %v33
  %v186 = vunpack.c.l.b16 %v34
  %v187 = vunpack.c.l.b16 %v35
  %v188 = vunpack.c.l.b16 %v36
  %v189 = vunpack.c.l.b16 %v37
  %v190 = vunpack.c.l.b16 %v38
  %v191 = vunpack.c.l.b16 %v39
  %v192 = vunpack.c.l.b16 %v40
  %v193 = vunpack.c.l.b16 %v41
  %v194 = vunpack.c.l.b16 %v42
  %v195 = vunpack.c.l.b16 %v43
  %v196 = vunpack.c.l.b16 %v44
  %v197 = vunpack.c.l.b16 %v45
  %v198 = vunpack.c.l.b16 %v46
  %v199 = vunpack.c.l.b16 %v47
  %v200 = vunpack.c.l.b16 %v48
  %v201 = vunpack.c.l.b16 %v49
  %v202 = vunpack.c.l.b16 %v50
  %v203 = vunpack.c.l.b16 %v51
  %v204 = vunpack.c.l.b16 %v52
  %v205 = vunpack.c.l.b16 %v53
  %v206 = vunpack.c.l.b16 %v54
  %v207 = vunpack.c.l.b16 %v55
  %v208 = vunpack.c.l.b16 %v56
  %v209 = vunpack.c.l.b16 %v57
  %v210 = vunpack.c.l.b16 %v58
  %v211 = vunpack.c.l.b16 %v59
  %v212 = vunpack.c.l.b16 %v60
  %v213 = vunpack.c.l.b16 %v61
  %v214 = vunpack.c.l.b16 %v62
  %v215 = vunpack.c.l.b16 %v63
  %v216 = vunpack.c.l.b16 %v64
  %v217 = vunpack.c.l.b16 %v65
  %v218 = vunpack.c.l.b16 %v66
  %v219 = vunpack.c.l.b16 %v67
  %v220 = vunpack.c.l.b16 %v68
  %v221 = vunpack.c.l.b16 %v69
  %v222 = vunpack.c.l.b16 %v70
  %v223 = vunpack.c.l.b16 %v71
  %v224 = vunpack.c.l.b16 %v72
  %v225 = vunpack.c.l.b16 %v73
  %v226 = vunpack.c.l.b16 %v74
  %v227 = vunpack.c.l.b16 %v75
  %v228 = vunpack.c.l.b16 %v76
  %v229 = vunpack.c.l.b16 %v77
  %v230 = vunpack.c.l.b16 %v78
  %v231 = vunpack.c.l.b16 %v79
  %v232 = vunpack.c.l.b16 %v80
  %v233 = vunpack.c.l.b16 %v81
  %v234 = vpack.c.b16 %v171, %v170
  %v235 = vpack.c.b16 %v173, %v172
  %v236 = vpack.c.b16 %v175, %v174
  %v237 = vpack.c.b16 %v177, %v176
  %v238 = vpack.c.b16 %v179, %v178
  %v239 = vpack.c.b16 %v181, %v180
  %v240 = vpack.c.b16 %v183, %v182
  %v241 = vpack.c.b16 %v185, %v184
  %v242 = vpack.c.b16 %v187, %v186
  %v243 = vpack.c.b16 %v189, %v188
  %v244 = vpack.c.b16 %v191, %v190
  %v245 = vpack.c.b16 %v193, %v192
  %v246 = vpack.c.b16 %v195, %v194
  %v247 = vpack.c.b16 %v197, %v196
  %v248 = vpack.c.b16 %v199, %v198
  %v249 = vpack.c.b16 %v201, %v200
  %v250 = vpack.c.b16 %v203, %v202
  %v251 = vpack.c.b16 %v205, %v204
  %v252 = vpack.c.b16 %v207, %v206
  %v253 = vpack.c.b16 %v209, %v208
  %v254 = vpack.c.b16 %v211, %v210
  %v255 = vpack.c.b16 %v213, %v212
  %v256 = vpack.c.b16 %v215, %v214
  %v257 = vpack.c.b16 %v217, %v216
  %v258 = vpack.c.b16 %v219, %v218
  %v259 = vpack.c.b16 %v221, %v220
  %v260 = vpack.c.b16 %v223, %v222
  %v261 = vpack.c.b16 %v225, %v224
  %v262 = vpack.c.b16 %v227, %v226
  %v263 = vpack.c.b16 %v229, %v228
  %v264 = vpack.c.b16 %v231, %v230
  %v265 = vpack.c.b16 %v233, %v232
  %298 = vmatpush.bf16.msra.mxu0 %v241
  %299 = vmatpush.bf16.msra.mxu0 %v240
  %300 = vmatpush.bf16.msra.mxu0 %v239
  %301 = vmatpush.bf16.msra.mxu0 %v238
  %302 = vmatpush.bf16.msra.mxu0 %v237
  %303 = vmatpush.bf16.msra.mxu0 %v236
  %304 = vmatpush.bf16.msra.mxu0 %v235
  %305 = vmatpush.bf16.msra.mxu0 %v234
  %306 = vmatmul.bf16.gmra.mxu0 %v98
  %v307 = vpop.f32.mrf.mxu0
  %v308 = vadd.f32 %v84, %v307
  %v309 = vpop.f32.mrf.mxu0
  %v310 = vadd.f32 %v84, %v309
  %311 = vdwg.mxu0
  %312 = vmatpush.bf16.msra.mxu0 %v249
  %313 = vmatpush.bf16.msra.mxu0 %v248
  %314 = vmatpush.bf16.msra.mxu0 %v247
  %315 = vmatpush.bf16.msra.mxu0 %v246
  %316 = vmatpush.bf16.msra.mxu0 %v245
  %317 = vmatpush.bf16.msra.mxu0 %v244
  %318 = vmatpush.bf16.msra.mxu0 %v243
  %319 = vmatpush.bf16.msra.mxu0 %v242
  %320 = vmatmul.bf16.gmra.mxu0 %v99
  %v321 = vpop.f32.mrf.mxu0
  %v322 = vadd.f32 %v308, %v321
  %v323 = vpop.f32.mrf.mxu0
  %v324 = vadd.f32 %v310, %v323
  %325 = vdwg.mxu0
  %326 = vmatpush.bf16.msra.mxu0 %v257
  %327 = vmatpush.bf16.msra.mxu0 %v256
  %328 = vmatpush.bf16.msra.mxu0 %v255
  %329 = vmatpush.bf16.msra.mxu0 %v254
  %330 = vmatpush.bf16.msra.mxu0 %v253
  %331 = vmatpush.bf16.msra.mxu0 %v252
  %332 = vmatpush.bf16.msra.mxu0 %v251
  %333 = vmatpush.bf16.msra.mxu0 %v250
  %334 = vmatmul.bf16.gmra.mxu0 %v100
  %v335 = vpop.f32.mrf.mxu0
  %v336 = vadd.f32 %v322, %v335
  %v337 = vpop.f32.mrf.mxu0
  %v338 = vadd.f32 %v324, %v337
  %339 = vdwg.mxu0
  %340 = vmatpush.bf16.msra.mxu0 %v265
  %341 = vmatpush.bf16.msra.mxu0 %v264
  %342 = vmatpush.bf16.msra.mxu0 %v263
  %343 = vmatpush.bf16.msra.mxu0 %v262
  %344 = vmatpush.bf16.msra.mxu0 %v261
  %345 = vmatpush.bf16.msra.mxu0 %v260
  %346 = vmatpush.bf16.msra.mxu0 %v259
  %347 = vmatpush.bf16.msra.mxu0 %v258
  %348 = vmatmul.bf16.gmra.mxu0 %v101
  %v349 = vpop.f32.mrf.mxu0
  %v350 = vadd.f32 %v336, %v349
  %v351 = vpop.f32.mrf.mxu0
  %v352 = vadd.f32 %v338, %v351
  %353 = vdwg.mxu0
  %354 = vst [vmem:[%s3] sm:$0xff] %v350
  %355 = vst [vmem:[%s3 + $0x8] sm:$0xff] %v352
  // Predicated region
  $region14: #{_lambda_.39} parent=0 // pred_check
    _
  $region15: #{_lambda_.39} parent=0 // pred_check_branch
    %357 = sbr.rel (0) target = $region17
  $region16: #{_lambda_.39} parent=0 // pred_region
    _
  $region17: #{_lambda_.39} parent=0 // pred_fallthru
    _
  // Predicated region
  $region18: #{_lambda_.39} parent=0 // pred_check
    _
  $region19: #{_lambda_.39} parent=0 // pred_check_branch
    %359 = sbr.rel (0) target = $region21
  $region20: #{_lambda_.39} parent=0 // pred_region
    _
  $region21: #{_lambda_.39} parent=0 // pred_fallthru
    _

// kernel: _lambda_.41
$region0: #{_lambda_.41}
  #allocation0 [shape = 'u32[]', space=smem, size = 0x4, offset = 0x4, fixed_abs, tag = 'smem constant byte address 0x4 - core index']
  #allocation1 [shape = 'u32[72,128]{1,0:T(1,128)}', space=vmem, size = 0x9000, scoped, tag = 'internal scratch']
  %s0 = inlined_call_operand.vmem [shape: f32[8,128], index: 0, kind: input, shape index: {}]
  %s1 = inlined_call_operand.vmem [shape: f32[1,128], index: 1, kind: input, shape index: {}]
  %s2 = inlined_call_operand.vmem [shape: f32[1,128], index: 2, kind: input, shape index: {}]
  %s3 = inlined_call_operand.vmem [shape: f32[8,128], index: 3, kind: output, shape index: {}]
  %s4 = sld [smem:[#allocation0]]
  $region22: #{_lambda_.41} parent=0
    _
  %s6 = ssub.s32 1, %s4
  %s7 = scalar_select 0, %s6, %s4
  // Predicated region
  $region2: #{_lambda_.41} parent=0 // pred_check
    _
  $region3: #{_lambda_.41} parent=0 // pred_check_branch
    %9 = sbr.rel (0) target = $region5
  $region4: #{_lambda_.41} parent=0 // pred_region
    _
  $region5: #{_lambda_.41} parent=0 // pred_fallthru
    _
  // Predicated region
  $region6: #{_lambda_.41} parent=0 // pred_check
    _
  $region7: #{_lambda_.41} parent=0 // pred_check_branch
    %11 = sbr.rel (0) target = $region9
  $region8: #{_lambda_.41} parent=0 // pred_region
    _
  $region9: #{_lambda_.41} parent=0 // pred_fallthru
    _
  // Predicated region
  $region10: #{_lambda_.41} parent=0 // pred_check
    _
  $region11: #{_lambda_.41} parent=0 // pred_check_branch
    %13 = sbr.rel (0) target = $region13
  $region12: #{_lambda_.41} parent=0 // pred_region
    _
  $region13: #{_lambda_.41} parent=0 // pred_fallthru
    _
  %v14 = vld [vmem:[%s0] sm:$0xff]
  %v15 = vld [vmem:[%s1] sm:$0x1]
  %v17 = vperm.slane %v15, 0
  %v19 = vmul.f32 %v14, %v17
  %v20 = vld [vmem:[%s2] sm:$0x1]
  %v22 = vperm.slane %v20, 0
  %v24 = vadd.f32 %v19, %v22
  %25 = vst [vmem:[%s3] sm:$0xff] %v24
  // Predicated region
  $region14: #{_lambda_.41} parent=0 // pred_check
    _
  $region15: #{_lambda_.41} parent=0 // pred_check_branch
    %27 = sbr.rel (0) target = $region17
  $region16: #{_lambda_.41} parent=0 // pred_region
    _
  $region17: #{_lambda_.41} parent=0 // pred_fallthru
    _
  // Predicated region
  $region18: #{_lambda_.41} parent=0 // pred_check
    _
  $region19: #{_lambda_.41} parent=0 // pred_check_branch
    %29 = sbr.rel (0) target = $region21
  $region20: #{_lambda_.41} parent=0 // pred_region
    _
  $region21: #{_lambda_.41} parent=0 // pred_fallthru
    _

// kernel: _lambda_.40
$region0: #{_lambda_.40}
  #allocation0 [shape = 'u32[]', space=smem, size = 0x4, offset = 0x4, fixed_abs, tag = 'smem constant byte address 0x4 - core index']
  #allocation1 [shape = 'u32[72,128]{1,0:T(1,128)}', space=vmem, size = 0x9000, scoped, tag = 'internal scratch']
  %s0 = inlined_call_operand.vmem [shape: f32[8,128], index: 0, kind: input, shape index: {}]
  %s1 = inlined_call_operand.vmem [shape: f32[2,128], index: 1, kind: output, shape index: {}]
  %s2 = sld [smem:[#allocation0]]
  $region18: #{_lambda_.40} parent=0
    _
  %s4 = ssub.s32 1, %s2
  %s5 = scalar_select 0, %s4, %s2
  // Predicated region
  $region2: #{_lambda_.40} parent=0 // pred_check
    _
  $region3: #{_lambda_.40} parent=0 // pred_check_branch
    %7 = sbr.rel (0) target = $region5
  $region4: #{_lambda_.40} parent=0 // pred_region
    _
  $region5: #{_lambda_.40} parent=0 // pred_fallthru
    _
  %p8 = scmp.eq.s32.totalorder 0, 0
  // Predicated region
  $region6: #{_lambda_.40} parent=0 // pred_check
    %p9 = pneg %p8
  $region7: #{_lambda_.40} parent=0 // pred_check_branch
    %11 = sbr.rel (%p9) target = $region9
  $region8: #{_lambda_.40} parent=0 // pred_region
    %12 = vst [vmem:[%s1] sm:$0x3] 0.0
  $region9: #{_lambda_.40} parent=0 // pred_fallthru
    _
  %v13 = vld [vmem:[%s0] sm:$0xff]
  %v14 = vrot.slane %v13, 4
  %v15 = vadd.f32 %v13, %v14
  %v16 = vrot.slane %v15, 2
  %v17 = vadd.f32 %v15, %v16
  %v18 = vrot.slane %v17, 1
  %v19 = vadd.f32 %v17, %v18
  %v20 = vmul.f32 %v13, %v13
  %v21 = vrot.slane %v20, 4
  %v22 = vadd.f32 %v20, %v21
  %v23 = vrot.slane %v22, 2
  %v24 = vadd.f32 %v22, %v23
  %v25 = vrot.slane %v24, 1
  %v26 = vadd.f32 %v24, %v25
  %v27 = vld [vmem:[%s1] sm:$0x3]
  %vm28 = vcmask 1040384
  %v29 = vsel %vm28, %v19, %v26
  %v30 = vadd.f32 %v27, %v29
  %31 = vst [vmem:[%s1] sm:$0x3] %v30
  // Predicated region
  $region10: #{_lambda_.40} parent=0 // pred_check
    _
  $region11: #{_lambda_.40} parent=0 // pred_check_branch
    %33 = sbr.rel (0) target = $region13
  $region12: #{_lambda_.40} parent=0 // pred_region
    _
  $region13: #{_lambda_.40} parent=0 // pred_fallthru
    _
  // Predicated region
  $region14: #{_lambda_.40} parent=0 // pred_check
    _
  $region15: #{_lambda_.40} parent=0 // pred_check_branch
    %35 = sbr.rel (0) target = $region17
  $region16: #{_lambda_.40} parent=0 // pred_region
    _
  $region17: #{_lambda_.40} parent=0 // pred_fallthru
    _

// kernel: _lambda_.42
$region0: #{_lambda_.42}
  #allocation0 [shape = 'u32[]', space=smem, size = 0x4, offset = 0x4, fixed_abs, tag = 'smem constant byte address 0x4 - core index']
  #allocation1 [shape = 'u32[72,128]{1,0:T(1,128)}', space=vmem, size = 0x9000, scoped, tag = 'internal scratch']
  %s0 = inlined_call_operand.vmem [shape: bf16[16,1024], index: 0, kind: input, shape index: {}]
  %s1 = inlined_call_operand.vmem [shape: bf16[1024,128], index: 1, kind: input, shape index: {}]
  %s2 = inlined_call_operand.vmem [shape: f32[1,128], index: 2, kind: input, shape index: {}]
  %s3 = inlined_call_operand.vmem [shape: f32[16,128], index: 3, kind: output, shape index: {}]
  %s4 = sld [smem:[#allocation0]]
  $region22: #{_lambda_.42} parent=0
    _
  %s6 = ssub.s32 1, %s4
  %s7 = scalar_select 0, %s6, %s4
  // Predicated region
  $region2: #{_lambda_.42} parent=0 // pred_check
    _
  $region3: #{_lambda_.42} parent=0 // pred_check_branch
    %9 = sbr.rel (0) target = $region5
  $region4: #{_lambda_.42} parent=0 // pred_region
    _
  $region5: #{_lambda_.42} parent=0 // pred_fallthru
    _
  // Predicated region
  $region6: #{_lambda_.42} parent=0 // pred_check
    _
  $region7: #{_lambda_.42} parent=0 // pred_check_branch
    %11 = sbr.rel (0) target = $region9
  $region8: #{_lambda_.42} parent=0 // pred_region
    _
  $region9: #{_lambda_.42} parent=0 // pred_fallthru
    _
  // Predicated region
  $region10: #{_lambda_.42} parent=0 // pred_check
    _
  $region11: #{_lambda_.42} parent=0 // pred_check_branch
    %13 = sbr.rel (0) target = $region13
  $region12: #{_lambda_.42} parent=0 // pred_region
    _
  $region13: #{_lambda_.42} parent=0 // pred_fallthru
    _
  %v14 = vld [vmem:[%s0] sm:$0xff]
  %v15 = vld [vmem:[%s0 + $0x8] sm:$0xff]
  %v16 = vld [vmem:[%s0 + $0x10] sm:$0xff]
  %v17 = vld [vmem:[%s0 + $0x18] sm:$0xff]
  %v18 = vld [vmem:[%s0 + $0x20] sm:$0xff]
  %v19 = vld [vmem:[%s0 + $0x28] sm:$0xff]
  %v20 = vld [vmem:[%s0 + $0x30] sm:$0xff]
  %v21 = vld [vmem:[%s0 + $0x38] sm:$0xff]
  %v22 = vld [vmem:[%s1] sm:$0xf]
  %v23 = vld [vmem:[%s1 + $0x4] sm:$0xf]
  %v24 = vld [vmem:[%s1 + $0x8] sm:$0xf]
  %v25 = vld [vmem:[%s1 + $0xc] sm:$0xf]
  %v26 = vld [vmem:[%s1 + $0x10] sm:$0xf]
  %v27 = vld [vmem:[%s1 + $0x14] sm:$0xf]
  %v28 = vld [vmem:[%s1 + $0x18] sm:$0xf]
  %v29 = vld [vmem:[%s1 + $0x1c] sm:$0xf]
  %v30 = vld [vmem:[%s1 + $0x20] sm:$0xf]
  %v31 = vld [vmem:[%s1 + $0x24] sm:$0xf]
  %v32 = vld [vmem:[%s1 + $0x28] sm:$0xf]
  %v33 = vld [vmem:[%s1 + $0x2c] sm:$0xf]
  %v34 = vld [vmem:[%s1 + $0x30] sm:$0xf]
  %v35 = vld [vmem:[%s1 + $0x34] sm:$0xf]
  %v36 = vld [vmem:[%s1 + $0x38] sm:$0xf]
  %v37 = vld [vmem:[%s1 + $0x3c] sm:$0xf]
  %v38 = vld [vmem:[%s1 + $0x40] sm:$0xf]
  %v39 = vld [vmem:[%s1 + $0x44] sm:$0xf]
  %v40 = vld [vmem:[%s1 + $0x48] sm:$0xf]
  %v41 = vld [vmem:[%s1 + $0x4c] sm:$0xf]
  %v42 = vld [vmem:[%s1 + $0x50] sm:$0xf]
  %v43 = vld [vmem:[%s1 + $0x54] sm:$0xf]
  %v44 = vld [vmem:[%s1 + $0x58] sm:$0xf]
  %v45 = vld [vmem:[%s1 + $0x5c] sm:$0xf]
  %v46 = vld [vmem:[%s1 + $0x60] sm:$0xf]
  %v47 = vld [vmem:[%s1 + $0x64] sm:$0xf]
  %v48 = vld [vmem:[%s1 + $0x68] sm:$0xf]
  %v49 = vld [vmem:[%s1 + $0x6c] sm:$0xf]
  %v50 = vld [vmem:[%s1 + $0x70] sm:$0xf]
  %v51 = vld [vmem:[%s1 + $0x74] sm:$0xf]
  %v52 = vld [vmem:[%s1 + $0x78] sm:$0xf]
  %v53 = vld [vmem:[%s1 + $0x7c] sm:$0xf]
  %v54 = vld [vmem:[%s1 + $0x80] sm:$0xf]
  %v55 = vld [vmem:[%s1 + $0x84] sm:$0xf]
  %v56 = vld [vmem:[%s1 + $0x88] sm:$0xf]
  %v57 = vld [vmem:[%s1 + $0x8c] sm:$0xf]
  %v58 = vld [vmem:[%s1 + $0x90] sm:$0xf]
  %v59 = vld [vmem:[%s1 + $0x94] sm:$0xf]
  %v60 = vld [vmem:[%s1 + $0x98] sm:$0xf]
  %v61 = vld [vmem:[%s1 + $0x9c] sm:$0xf]
  %v62 = vld [vmem:[%s1 + $0xa0] sm:$0xf]
  %v63 = vld [vmem:[%s1 + $0xa4] sm:$0xf]
  %v64 = vld [vmem:[%s1 + $0xa8] sm:$0xf]
  %v65 = vld [vmem:[%s1 + $0xac] sm:$0xf]
  %v66 = vld [vmem:[%s1 + $0xb0] sm:$0xf]
  %v67 = vld [vmem:[%s1 + $0xb4] sm:$0xf]
  %v68 = vld [vmem:[%s1 + $0xb8] sm:$0xf]
  %v69 = vld [vmem:[%s1 + $0xbc] sm:$0xf]
  %v70 = vld [vmem:[%s1 + $0xc0] sm:$0xf]
  %v71 = vld [vmem:[%s1 + $0xc4] sm:$0xf]
  %v72 = vld [vmem:[%s1 + $0xc8] sm:$0xf]
  %v73 = vld [vmem:[%s1 + $0xcc] sm:$0xf]
  %v74 = vld [vmem:[%s1 + $0xd0] sm:$0xf]
  %v75 = vld [vmem:[%s1 + $0xd4] sm:$0xf]
  %v76 = vld [vmem:[%s1 + $0xd8] sm:$0xf]
  %v77 = vld [vmem:[%s1 + $0xdc] sm:$0xf]
  %v78 = vld [vmem:[%s1 + $0xe0] sm:$0xf]
  %v79 = vld [vmem:[%s1 + $0xe4] sm:$0xf]
  %v80 = vld [vmem:[%s1 + $0xe8] sm:$0xf]
  %v81 = vld [vmem:[%s1 + $0xec] sm:$0xf]
  %v82 = vld [vmem:[%s1 + $0xf0] sm:$0xf]
  %v83 = vld [vmem:[%s1 + $0xf4] sm:$0xf]
  %v84 = vld [vmem:[%s1 + $0xf8] sm:$0xf]
  %v85 = vld [vmem:[%s1 + $0xfc] sm:$0xf]
  %v86 = vld [vmem:[%s1 + $0x100] sm:$0xf]
  %v87 = vld [vmem:[%s1 + $0x104] sm:$0xf]
  %v88 = vld [vmem:[%s1 + $0x108] sm:$0xf]
  %v89 = vld [vmem:[%s1 + $0x10c] sm:$0xf]
  %v90 = vld [vmem:[%s1 + $0x110] sm:$0xf]
  %v91 = vld [vmem:[%s1 + $0x114] sm:$0xf]
  %v92 = vld [vmem:[%s1 + $0x118] sm:$0xf]
  %v93 = vld [vmem:[%s1 + $0x11c] sm:$0xf]
  %v94 = vld [vmem:[%s1 + $0x120] sm:$0xf]
  %v95 = vld [vmem:[%s1 + $0x124] sm:$0xf]
  %v96 = vld [vmem:[%s1 + $0x128] sm:$0xf]
  %v97 = vld [vmem:[%s1 + $0x12c] sm:$0xf]
  %v98 = vld [vmem:[%s1 + $0x130] sm:$0xf]
  %v99 = vld [vmem:[%s1 + $0x134] sm:$0xf]
  %v100 = vld [vmem:[%s1 + $0x138] sm:$0xf]
  %v101 = vld [vmem:[%s1 + $0x13c] sm:$0xf]
  %v102 = vld [vmem:[%s1 + $0x140] sm:$0xf]
  %v103 = vld [vmem:[%s1 + $0x144] sm:$0xf]
  %v104 = vld [vmem:[%s1 + $0x148] sm:$0xf]
  %v105 = vld [vmem:[%s1 + $0x14c] sm:$0xf]
  %v106 = vld [vmem:[%s1 + $0x150] sm:$0xf]
  %v107 = vld [vmem:[%s1 + $0x154] sm:$0xf]
  %v108 = vld [vmem:[%s1 + $0x158] sm:$0xf]
  %v109 = vld [vmem:[%s1 + $0x15c] sm:$0xf]
  %v110 = vld [vmem:[%s1 + $0x160] sm:$0xf]
  %v111 = vld [vmem:[%s1 + $0x164] sm:$0xf]
  %v112 = vld [vmem:[%s1 + $0x168] sm:$0xf]
  %v113 = vld [vmem:[%s1 + $0x16c] sm:$0xf]
  %v114 = vld [vmem:[%s1 + $0x170] sm:$0xf]
  %v115 = vld [vmem:[%s1 + $0x174] sm:$0xf]
  %v116 = vld [vmem:[%s1 + $0x178] sm:$0xf]
  %v117 = vld [vmem:[%s1 + $0x17c] sm:$0xf]
  %v118 = vld [vmem:[%s1 + $0x180] sm:$0xf]
  %v119 = vld [vmem:[%s1 + $0x184] sm:$0xf]
  %v120 = vld [vmem:[%s1 + $0x188] sm:$0xf]
  %v121 = vld [vmem:[%s1 + $0x18c] sm:$0xf]
  %v122 = vld [vmem:[%s1 + $0x190] sm:$0xf]
  %v123 = vld [vmem:[%s1 + $0x194] sm:$0xf]
  %v124 = vld [vmem:[%s1 + $0x198] sm:$0xf]
  %v125 = vld [vmem:[%s1 + $0x19c] sm:$0xf]
  %v126 = vld [vmem:[%s1 + $0x1a0] sm:$0xf]
  %v127 = vld [vmem:[%s1 + $0x1a4] sm:$0xf]
  %v128 = vld [vmem:[%s1 + $0x1a8] sm:$0xf]
  %v129 = vld [vmem:[%s1 + $0x1ac] sm:$0xf]
  %v130 = vld [vmem:[%s1 + $0x1b0] sm:$0xf]
  %v131 = vld [vmem:[%s1 + $0x1b4] sm:$0xf]
  %v132 = vld [vmem:[%s1 + $0x1b8] sm:$0xf]
  %v133 = vld [vmem:[%s1 + $0x1bc] sm:$0xf]
  %v134 = vld [vmem:[%s1 + $0x1c0] sm:$0xf]
  %v135 = vld [vmem:[%s1 + $0x1c4] sm:$0xf]
  %v136 = vld [vmem:[%s1 + $0x1c8] sm:$0xf]
  %v137 = vld [vmem:[%s1 + $0x1cc] sm:$0xf]
  %v138 = vld [vmem:[%s1 + $0x1d0] sm:$0xf]
  %v139 = vld [vmem:[%s1 + $0x1d4] sm:$0xf]
  %v140 = vld [vmem:[%s1 + $0x1d8] sm:$0xf]
  %v141 = vld [vmem:[%s1 + $0x1dc] sm:$0xf]
  %v142 = vld [vmem:[%s1 + $0x1e0] sm:$0xf]
  %v143 = vld [vmem:[%s1 + $0x1e4] sm:$0xf]
  %v144 = vld [vmem:[%s1 + $0x1e8] sm:$0xf]
  %v145 = vld [vmem:[%s1 + $0x1ec] sm:$0xf]
  %v146 = vld [vmem:[%s1 + $0x1f0] sm:$0xf]
  %v147 = vld [vmem:[%s1 + $0x1f4] sm:$0xf]
  %v148 = vld [vmem:[%s1 + $0x1f8] sm:$0xf]
  %v149 = vld [vmem:[%s1 + $0x1fc] sm:$0xf]
  %v150 = vld [vmem:[%s2] sm:$0x1]
  %v152 = vperm.slane %v150, 0
  %v162 = vunpack.c.l.b16 %v14
  %v163 = vunpack.c.h.b16 %v14
  %v164 = vunpack.c.l.b16 %v15
  %v165 = vunpack.c.h.b16 %v15
  %v166 = vunpack.c.l.b16 %v16
  %v167 = vunpack.c.h.b16 %v16
  %v168 = vunpack.c.l.b16 %v17
  %v169 = vunpack.c.h.b16 %v17
  %v170 = vunpack.c.l.b16 %v18
  %v171 = vunpack.c.h.b16 %v18
  %v172 = vunpack.c.l.b16 %v19
  %v173 = vunpack.c.h.b16 %v19
  %v174 = vunpack.c.l.b16 %v20
  %v175 = vunpack.c.h.b16 %v20
  %v176 = vunpack.c.l.b16 %v21
  %v177 = vunpack.c.h.b16 %v21
  %v178 = vpack.c.b16 %v170, %v162
  %v179 = vpack.c.b16 %v171, %v163
  %v180 = vpack.c.b16 %v172, %v164
  %v181 = vpack.c.b16 %v173, %v165
  %v182 = vpack.c.b16 %v174, %v166
  %v183 = vpack.c.b16 %v175, %v167
  %v184 = vpack.c.b16 %v176, %v168
  %v185 = vpack.c.b16 %v177, %v169
  %v322 = vunpack.c.l.b16 %v22
  %v323 = vunpack.c.l.b16 %v23
  %v324 = vunpack.c.l.b16 %v24
  %v325 = vunpack.c.l.b16 %v25
  %v326 = vunpack.c.l.b16 %v26
  %v327 = vunpack.c.l.b16 %v27
  %v328 = vunpack.c.l.b16 %v28
  %v329 = vunpack.c.l.b16 %v29
  %v330 = vunpack.c.l.b16 %v30
  %v331 = vunpack.c.l.b16 %v31
  %v332 = vunpack.c.l.b16 %v32
  %v333 = vunpack.c.l.b16 %v33
  %v334 = vunpack.c.l.b16 %v34
  %v335 = vunpack.c.l.b16 %v35
  %v336 = vunpack.c.l.b16 %v36
  %v337 = vunpack.c.l.b16 %v37
  %v338 = vunpack.c.l.b16 %v38
  %v339 = vunpack.c.l.b16 %v39
  %v340 = vunpack.c.l.b16 %v40
  %v341 = vunpack.c.l.b16 %v41
  %v342 = vunpack.c.l.b16 %v42
  %v343 = vunpack.c.l.b16 %v43
  %v344 = vunpack.c.l.b16 %v44
  %v345 = vunpack.c.l.b16 %v45
  %v346 = vunpack.c.l.b16 %v46
  %v347 = vunpack.c.l.b16 %v47
  %v348 = vunpack.c.l.b16 %v48
  %v349 = vunpack.c.l.b16 %v49
  %v350 = vunpack.c.l.b16 %v50
  %v351 = vunpack.c.l.b16 %v51
  %v352 = vunpack.c.l.b16 %v52
  %v353 = vunpack.c.l.b16 %v53
  %v354 = vunpack.c.l.b16 %v54
  %v355 = vunpack.c.l.b16 %v55
  %v356 = vunpack.c.l.b16 %v56
  %v357 = vunpack.c.l.b16 %v57
  %v358 = vunpack.c.l.b16 %v58
  %v359 = vunpack.c.l.b16 %v59
  %v360 = vunpack.c.l.b16 %v60
  %v361 = vunpack.c.l.b16 %v61
  %v362 = vunpack.c.l.b16 %v62
  %v363 = vunpack.c.l.b16 %v63
  %v364 = vunpack.c.l.b16 %v64
  %v365 = vunpack.c.l.b16 %v65
  %v366 = vunpack.c.l.b16 %v66
  %v367 = vunpack.c.l.b16 %v67
  %v368 = vunpack.c.l.b16 %v68
  %v369 = vunpack.c.l.b16 %v69
  %v370 = vunpack.c.l.b16 %v70
  %v371 = vunpack.c.l.b16 %v71
  %v372 = vunpack.c.l.b16 %v72
  %v373 = vunpack.c.l.b16 %v73
  %v374 = vunpack.c.l.b16 %v74
  %v375 = vunpack.c.l.b16 %v75
  %v376 = vunpack.c.l.b16 %v76
  %v377 = vunpack.c.l.b16 %v77
  %v378 = vunpack.c.l.b16 %v78
  %v379 = vunpack.c.l.b16 %v79
  %v380 = vunpack.c.l.b16 %v80
  %v381 = vunpack.c.l.b16 %v81
  %v382 = vunpack.c.l.b16 %v82
  %v383 = vunpack.c.l.b16 %v83
  %v384 = vunpack.c.l.b16 %v84
  %v385 = vunpack.c.l.b16 %v85
  %v386 = vunpack.c.l.b16 %v86
  %v387 = vunpack.c.l.b16 %v87
  %v388 = vunpack.c.l.b16 %v88
  %v389 = vunpack.c.l.b16 %v89
  %v390 = vunpack.c.l.b16 %v90
  %v391 = vunpack.c.l.b16 %v91
  %v392 = vunpack.c.l.b16 %v92
  %v393 = vunpack.c.l.b16 %v93
  %v394 = vunpack.c.l.b16 %v94
  %v395 = vunpack.c.l.b16 %v95
  %v396 = vunpack.c.l.b16 %v96
  %v397 = vunpack.c.l.b16 %v97
  %v398 = vunpack.c.l.b16 %v98
  %v399 = vunpack.c.l.b16 %v99
  %v400 = vunpack.c.l.b16 %v100
  %v401 = vunpack.c.l.b16 %v101
  %v402 = vunpack.c.l.b16 %v102
  %v403 = vunpack.c.l.b16 %v103
  %v404 = vunpack.c.l.b16 %v104
  %v405 = vunpack.c.l.b16 %v105
  %v406 = vunpack.c.l.b16 %v106
  %v407 = vunpack.c.l.b16 %v107
  %v408 = vunpack.c.l.b16 %v108
  %v409 = vunpack.c.l.b16 %v109
  %v410 = vunpack.c.l.b16 %v110
  %v411 = vunpack.c.l.b16 %v111
  %v412 = vunpack.c.l.b16 %v112
  %v413 = vunpack.c.l.b16 %v113
  %v414 = vunpack.c.l.b16 %v114
  %v415 = vunpack.c.l.b16 %v115
  %v416 = vunpack.c.l.b16 %v116
  %v417 = vunpack.c.l.b16 %v117
  %v418 = vunpack.c.l.b16 %v118
  %v419 = vunpack.c.l.b16 %v119
  %v420 = vunpack.c.l.b16 %v120
  %v421 = vunpack.c.l.b16 %v121
  %v422 = vunpack.c.l.b16 %v122
  %v423 = vunpack.c.l.b16 %v123
  %v424 = vunpack.c.l.b16 %v124
  %v425 = vunpack.c.l.b16 %v125
  %v426 = vunpack.c.l.b16 %v126
  %v427 = vunpack.c.l.b16 %v127
  %v428 = vunpack.c.l.b16 %v128
  %v429 = vunpack.c.l.b16 %v129
  %v430 = vunpack.c.l.b16 %v130
  %v431 = vunpack.c.l.b16 %v131
  %v432 = vunpack.c.l.b16 %v132
  %v433 = vunpack.c.l.b16 %v133
  %v434 = vunpack.c.l.b16 %v134
  %v435 = vunpack.c.l.b16 %v135
  %v436 = vunpack.c.l.b16 %v136
  %v437 = vunpack.c.l.b16 %v137
  %v438 = vunpack.c.l.b16 %v138
  %v439 = vunpack.c.l.b16 %v139
  %v440 = vunpack.c.l.b16 %v140
  %v441 = vunpack.c.l.b16 %v141
  %v442 = vunpack.c.l.b16 %v142
  %v443 = vunpack.c.l.b16 %v143
  %v444 = vunpack.c.l.b16 %v144
  %v445 = vunpack.c.l.b16 %v145
  %v446 = vunpack.c.l.b16 %v146
  %v447 = vunpack.c.l.b16 %v147
  %v448 = vunpack.c.l.b16 %v148
  %v449 = vunpack.c.l.b16 %v149
  %v450 = vpack.c.b16 %v323, %v322
  %v451 = vpack.c.b16 %v325, %v324
  %v452 = vpack.c.b16 %v327, %v326
  %v453 = vpack.c.b16 %v329, %v328
  %v454 = vpack.c.b16 %v331, %v330
  %v455 = vpack.c.b16 %v333, %v332
  %v456 = vpack.c.b16 %v335, %v334
  %v457 = vpack.c.b16 %v337, %v336
  %v458 = vpack.c.b16 %v339, %v338
  %v459 = vpack.c.b16 %v341, %v340
  %v460 = vpack.c.b16 %v343, %v342
  %v461 = vpack.c.b16 %v345, %v344
  %v462 = vpack.c.b16 %v347, %v346
  %v463 = vpack.c.b16 %v349, %v348
  %v464 = vpack.c.b16 %v351, %v350
  %v465 = vpack.c.b16 %v353, %v352
  %v466 = vpack.c.b16 %v355, %v354
  %v467 = vpack.c.b16 %v357, %v356
  %v468 = vpack.c.b16 %v359, %v358
  %v469 = vpack.c.b16 %v361, %v360
  %v470 = vpack.c.b16 %v363, %v362
  %v471 = vpack.c.b16 %v365, %v364
  %v472 = vpack.c.b16 %v367, %v366
  %v473 = vpack.c.b16 %v369, %v368
  %v474 = vpack.c.b16 %v371, %v370
  %v475 = vpack.c.b16 %v373, %v372
  %v476 = vpack.c.b16 %v375, %v374
  %v477 = vpack.c.b16 %v377, %v376
  %v478 = vpack.c.b16 %v379, %v378
  %v479 = vpack.c.b16 %v381, %v380
  %v480 = vpack.c.b16 %v383, %v382
  %v481 = vpack.c.b16 %v385, %v384
  %v482 = vpack.c.b16 %v387, %v386
  %v483 = vpack.c.b16 %v389, %v388
  %v484 = vpack.c.b16 %v391, %v390
  %v485 = vpack.c.b16 %v393, %v392
  %v486 = vpack.c.b16 %v395, %v394
  %v487 = vpack.c.b16 %v397, %v396
  %v488 = vpack.c.b16 %v399, %v398
  %v489 = vpack.c.b16 %v401, %v400
  %v490 = vpack.c.b16 %v403, %v402
  %v491 = vpack.c.b16 %v405, %v404
  %v492 = vpack.c.b16 %v407, %v406
  %v493 = vpack.c.b16 %v409, %v408
  %v494 = vpack.c.b16 %v411, %v410
  %v495 = vpack.c.b16 %v413, %v412
  %v496 = vpack.c.b16 %v415, %v414
  %v497 = vpack.c.b16 %v417, %v416
  %v498 = vpack.c.b16 %v419, %v418
  %v499 = vpack.c.b16 %v421, %v420
  %v500 = vpack.c.b16 %v423, %v422
  %v501 = vpack.c.b16 %v425, %v424
  %v502 = vpack.c.b16 %v427, %v426
  %v503 = vpack.c.b16 %v429, %v428
  %v504 = vpack.c.b16 %v431, %v430
  %v505 = vpack.c.b16 %v433, %v432
  %v506 = vpack.c.b16 %v435, %v434
  %v507 = vpack.c.b16 %v437, %v436
  %v508 = vpack.c.b16 %v439, %v438
  %v509 = vpack.c.b16 %v441, %v440
  %v510 = vpack.c.b16 %v443, %v442
  %v511 = vpack.c.b16 %v445, %v444
  %v512 = vpack.c.b16 %v447, %v446
  %v513 = vpack.c.b16 %v449, %v448
  %578 = vmatpush.bf16.msra.mxu0 %v457
  %579 = vmatpush.bf16.msra.mxu0 %v456
  %580 = vmatpush.bf16.msra.mxu0 %v455
  %581 = vmatpush.bf16.msra.mxu0 %v454
  %582 = vmatpush.bf16.msra.mxu0 %v453
  %583 = vmatpush.bf16.msra.mxu0 %v452
  %584 = vmatpush.bf16.msra.mxu0 %v451
  %585 = vmatpush.bf16.msra.mxu0 %v450
  %586 = vmatmul.bf16.gmra.mxu0 %v178
  %v587 = vpop.f32.mrf.mxu0
  %v588 = vadd.f32 %v152, %v587
  %v589 = vpop.f32.mrf.mxu0
  %v590 = vadd.f32 %v152, %v589
  %591 = vdwg.mxu0
  %592 = vmatpush.bf16.msra.mxu0 %v465
  %593 = vmatpush.bf16.msra.mxu0 %v464
  %594 = vmatpush.bf16.msra.mxu0 %v463
  %595 = vmatpush.bf16.msra.mxu0 %v462
  %596 = vmatpush.bf16.msra.mxu0 %v461
  %597 = vmatpush.bf16.msra.mxu0 %v460
  %598 = vmatpush.bf16.msra.mxu0 %v459
  %599 = vmatpush.bf16.msra.mxu0 %v458
  %600 = vmatmul.bf16.gmra.mxu0 %v179
  %v601 = vpop.f32.mrf.mxu0
  %v602 = vadd.f32 %v588, %v601
  %v603 = vpop.f32.mrf.mxu0
  %v604 = vadd.f32 %v590, %v603
  %605 = vdwg.mxu0
  %606 = vmatpush.bf16.msra.mxu0 %v473
  %607 = vmatpush.bf16.msra.mxu0 %v472
  %608 = vmatpush.bf16.msra.mxu0 %v471
  %609 = vmatpush.bf16.msra.mxu0 %v470
  %610 = vmatpush.bf16.msra.mxu0 %v469
  %611 = vmatpush.bf16.msra.mxu0 %v468
  %612 = vmatpush.bf16.msra.mxu0 %v467
  %613 = vmatpush.bf16.msra.mxu0 %v466
  %614 = vmatmul.bf16.gmra.mxu0 %v180
  %v615 = vpop.f32.mrf.mxu0
  %v616 = vadd.f32 %v602, %v615
  %v617 = vpop.f32.mrf.mxu0
  %v618 = vadd.f32 %v604, %v617
  %619 = vdwg.mxu0
  %620 = vmatpush.bf16.msra.mxu0 %v481
  %621 = vmatpush.bf16.msra.mxu0 %v480
  %622 = vmatpush.bf16.msra.mxu0 %v479
  %623 = vmatpush.bf16.msra.mxu0 %v478
  %624 = vmatpush.bf16.msra.mxu0 %v477
  %625 = vmatpush.bf16.msra.mxu0 %v476
  %626 = vmatpush.bf16.msra.mxu0 %v475
  %627 = vmatpush.bf16.msra.mxu0 %v474
  %628 = vmatmul.bf16.gmra.mxu0 %v181
  %v629 = vpop.f32.mrf.mxu0
  %v630 = vadd.f32 %v616, %v629
  %v631 = vpop.f32.mrf.mxu0
  %v632 = vadd.f32 %v618, %v631
  %633 = vdwg.mxu0
  %634 = vmatpush.bf16.msra.mxu0 %v489
  %635 = vmatpush.bf16.msra.mxu0 %v488
  %636 = vmatpush.bf16.msra.mxu0 %v487
  %637 = vmatpush.bf16.msra.mxu0 %v486
  %638 = vmatpush.bf16.msra.mxu0 %v485
  %639 = vmatpush.bf16.msra.mxu0 %v484
  %640 = vmatpush.bf16.msra.mxu0 %v483
  %641 = vmatpush.bf16.msra.mxu0 %v482
  %642 = vmatmul.bf16.gmra.mxu0 %v182
  %v643 = vpop.f32.mrf.mxu0
  %v644 = vadd.f32 %v630, %v643
  %v645 = vpop.f32.mrf.mxu0
  %v646 = vadd.f32 %v632, %v645
  %647 = vdwg.mxu0
  %648 = vmatpush.bf16.msra.mxu0 %v497
  %649 = vmatpush.bf16.msra.mxu0 %v496
  %650 = vmatpush.bf16.msra.mxu0 %v495
  %651 = vmatpush.bf16.msra.mxu0 %v494
  %652 = vmatpush.bf16.msra.mxu0 %v493
  %653 = vmatpush.bf16.msra.mxu0 %v492
  %654 = vmatpush.bf16.msra.mxu0 %v491
  %655 = vmatpush.bf16.msra.mxu0 %v490
  %656 = vmatmul.bf16.gmra.mxu0 %v183
  %v657 = vpop.f32.mrf.mxu0
  %v658 = vadd.f32 %v644, %v657
  %v659 = vpop.f32.mrf.mxu0
  %v660 = vadd.f32 %v646, %v659
  %661 = vdwg.mxu0
  %662 = vmatpush.bf16.msra.mxu0 %v505
  %663 = vmatpush.bf16.msra.mxu0 %v504
  %664 = vmatpush.bf16.msra.mxu0 %v503
  %665 = vmatpush.bf16.msra.mxu0 %v502
  %666 = vmatpush.bf16.msra.mxu0 %v501
  %667 = vmatpush.bf16.msra.mxu0 %v500
  %668 = vmatpush.bf16.msra.mxu0 %v499
  %669 = vmatpush.bf16.msra.mxu0 %v498
  %670 = vmatmul.bf16.gmra.mxu0 %v184
  %v671 = vpop.f32.mrf.mxu0
  %v672 = vadd.f32 %v658, %v671
  %v673 = vpop.f32.mrf.mxu0
  %v674 = vadd.f32 %v660, %v673
  %675 = vdwg.mxu0
  %676 = vmatpush.bf16.msra.mxu0 %v513
  %677 = vmatpush.bf16.msra.mxu0 %v512
  %678 = vmatpush.bf16.msra.mxu0 %v511
  %679 = vmatpush.bf16.msra.mxu0 %v510
  %680 = vmatpush.bf16.msra.mxu0 %v509
  %681 = vmatpush.bf16.msra.mxu0 %v508
  %682 = vmatpush.bf16.msra.mxu0 %v507
  %683 = vmatpush.bf16.msra.mxu0 %v506
  %684 = vmatmul.bf16.gmra.mxu0 %v185
  %v685 = vpop.f32.mrf.mxu0
  %v686 = vadd.f32 %v672, %v685
  %v687 = vpop.f32.mrf.mxu0
  %v688 = vadd.f32 %v674, %v687
  %689 = vdwg.mxu0
  %690 = vst [vmem:[%s3] sm:$0xff] %v686
  %691 = vst [vmem:[%s3 + $0x8] sm:$0xff] %v688
  // Predicated region
  $region14: #{_lambda_.42} parent=0 // pred_check
    _
  $region15: #{_lambda_.42} parent=0 // pred_check_branch
    %693 = sbr.rel (0) target = $region17
  $region16: #{_lambda_.42} parent=0 // pred_region
    _
  $region17: #{_lambda_.42} parent=0 // pred_fallthru
    _
  // Predicated region
  $region18: #{_lambda_.42} parent=0 // pred_check
    _
  $region19: #{_lambda_.42} parent=0 // pred_check_branch
    %695 = sbr.rel (0) target = $region21
  $region20: #{_lambda_.42} parent=0 // pred_region
    _
  $region21: #{_lambda_.42} parent=0 // pred_fallthru
    _

// kernel: _lambda_.43
$region0: #{_lambda_.43}
  #allocation0 [shape = 'u32[]', space=smem, size = 0x4, offset = 0x4, fixed_abs, tag = 'smem constant byte address 0x4 - core index']
  #allocation1 [shape = 'u32[72,128]{1,0:T(1,128)}', space=vmem, size = 0x9000, scoped, tag = 'internal scratch']
  %s0 = inlined_call_operand.vmem [shape: bf16[16,128], index: 0, kind: input, shape index: {}]
  %s1 = inlined_call_operand.vmem [shape: bf16[128,1024], index: 1, kind: input, shape index: {}]
  %s2 = inlined_call_operand.vmem [shape: f32[1,1024], index: 2, kind: input, shape index: {}]
  %s3 = inlined_call_operand.vmem [shape: f32[16,1024], index: 3, kind: output, shape index: {}]
  %s4 = sld [smem:[#allocation0]]
  $region22: #{_lambda_.43} parent=0
    _
  %s6 = ssub.s32 1, %s4
  %s7 = scalar_select 0, %s6, %s4
  // Predicated region
  $region2: #{_lambda_.43} parent=0 // pred_check
    _
  $region3: #{_lambda_.43} parent=0 // pred_check_branch
    %9 = sbr.rel (0) target = $region5
  $region4: #{_lambda_.43} parent=0 // pred_region
    _
  $region5: #{_lambda_.43} parent=0 // pred_fallthru
    _
  // Predicated region
  $region6: #{_lambda_.43} parent=0 // pred_check
    _
  $region7: #{_lambda_.43} parent=0 // pred_check_branch
    %11 = sbr.rel (0) target = $region9
  $region8: #{_lambda_.43} parent=0 // pred_region
    _
  $region9: #{_lambda_.43} parent=0 // pred_fallthru
    _
  // Predicated region
  $region10: #{_lambda_.43} parent=0 // pred_check
    _
  $region11: #{_lambda_.43} parent=0 // pred_check_branch
    %13 = sbr.rel (0) target = $region13
  $region12: #{_lambda_.43} parent=0 // pred_region
    _
  $region13: #{_lambda_.43} parent=0 // pred_fallthru
    _
  %v14 = vld [vmem:[%s0] sm:$0xf]
  %v15 = vld [vmem:[%s0 + $0x4] sm:$0xf]
  %v16 = vld [vmem:[%s1] sm:$0xff]
  %v17 = vld [vmem:[%s1 + $0x8] sm:$0xff]
  %v18 = vld [vmem:[%s1 + $0x10] sm:$0xff]
  %v19 = vld [vmem:[%s1 + $0x18] sm:$0xff]
  %v20 = vld [vmem:[%s1 + $0x20] sm:$0xff]
  %v21 = vld [vmem:[%s1 + $0x28] sm:$0xff]
  %v22 = vld [vmem:[%s1 + $0x30] sm:$0xff]
  %v23 = vld [vmem:[%s1 + $0x38] sm:$0xff]
  %v24 = vld [vmem:[%s1 + $0x40] sm:$0xff]
  %v25 = vld [vmem:[%s1 + $0x48] sm:$0xff]
  %v26 = vld [vmem:[%s1 + $0x50] sm:$0xff]
  %v27 = vld [vmem:[%s1 + $0x58] sm:$0xff]
  %v28 = vld [vmem:[%s1 + $0x60] sm:$0xff]
  %v29 = vld [vmem:[%s1 + $0x68] sm:$0xff]
  %v30 = vld [vmem:[%s1 + $0x70] sm:$0xff]
  %v31 = vld [vmem:[%s1 + $0x78] sm:$0xff]
  %v32 = vld [vmem:[%s1 + $0x80] sm:$0xff]
  %v33 = vld [vmem:[%s1 + $0x88] sm:$0xff]
  %v34 = vld [vmem:[%s1 + $0x90] sm:$0xff]
  %v35 = vld [vmem:[%s1 + $0x98] sm:$0xff]
  %v36 = vld [vmem:[%s1 + $0xa0] sm:$0xff]
  %v37 = vld [vmem:[%s1 + $0xa8] sm:$0xff]
  %v38 = vld [vmem:[%s1 + $0xb0] sm:$0xff]
  %v39 = vld [vmem:[%s1 + $0xb8] sm:$0xff]
  %v40 = vld [vmem:[%s1 + $0xc0] sm:$0xff]
  %v41 = vld [vmem:[%s1 + $0xc8] sm:$0xff]
  %v42 = vld [vmem:[%s1 + $0xd0] sm:$0xff]
  %v43 = vld [vmem:[%s1 + $0xd8] sm:$0xff]
  %v44 = vld [vmem:[%s1 + $0xe0] sm:$0xff]
  %v45 = vld [vmem:[%s1 + $0xe8] sm:$0xff]
  %v46 = vld [vmem:[%s1 + $0xf0] sm:$0xff]
  %v47 = vld [vmem:[%s1 + $0xf8] sm:$0xff]
  %v48 = vld [vmem:[%s1 + $0x100] sm:$0xff]
  %v49 = vld [vmem:[%s1 + $0x108] sm:$0xff]
  %v50 = vld [vmem:[%s1 + $0x110] sm:$0xff]
  %v51 = vld [vmem:[%s1 + $0x118] sm:$0xff]
  %v52 = vld [vmem:[%s1 + $0x120] sm:$0xff]
  %v53 = vld [vmem:[%s1 + $0x128] sm:$0xff]
  %v54 = vld [vmem:[%s1 + $0x130] sm:$0xff]
  %v55 = vld [vmem:[%s1 + $0x138] sm:$0xff]
  %v56 = vld [vmem:[%s1 + $0x140] sm:$0xff]
  %v57 = vld [vmem:[%s1 + $0x148] sm:$0xff]
  %v58 = vld [vmem:[%s1 + $0x150] sm:$0xff]
  %v59 = vld [vmem:[%s1 + $0x158] sm:$0xff]
  %v60 = vld [vmem:[%s1 + $0x160] sm:$0xff]
  %v61 = vld [vmem:[%s1 + $0x168] sm:$0xff]
  %v62 = vld [vmem:[%s1 + $0x170] sm:$0xff]
  %v63 = vld [vmem:[%s1 + $0x178] sm:$0xff]
  %v64 = vld [vmem:[%s1 + $0x180] sm:$0xff]
  %v65 = vld [vmem:[%s1 + $0x188] sm:$0xff]
  %v66 = vld [vmem:[%s1 + $0x190] sm:$0xff]
  %v67 = vld [vmem:[%s1 + $0x198] sm:$0xff]
  %v68 = vld [vmem:[%s1 + $0x1a0] sm:$0xff]
  %v69 = vld [vmem:[%s1 + $0x1a8] sm:$0xff]
  %v70 = vld [vmem:[%s1 + $0x1b0] sm:$0xff]
  %v71 = vld [vmem:[%s1 + $0x1b8] sm:$0xff]
  %v72 = vld [vmem:[%s1 + $0x1c0] sm:$0xff]
  %v73 = vld [vmem:[%s1 + $0x1c8] sm:$0xff]
  %v74 = vld [vmem:[%s1 + $0x1d0] sm:$0xff]
  %v75 = vld [vmem:[%s1 + $0x1d8] sm:$0xff]
  %v76 = vld [vmem:[%s1 + $0x1e0] sm:$0xff]
  %v77 = vld [vmem:[%s1 + $0x1e8] sm:$0xff]
  %v78 = vld [vmem:[%s1 + $0x1f0] sm:$0xff]
  %v79 = vld [vmem:[%s1 + $0x1f8] sm:$0xff]
  %v80 = vld [vmem:[%s2] sm:$0xff]
  %v82 = vperm.slane %v80, 0
  %v83 = vperm.slane %v80, 1
  %v84 = vperm.slane %v80, 2
  %v85 = vperm.slane %v80, 3
  %v86 = vperm.slane %v80, 4
  %v87 = vperm.slane %v80, 5
  %v88 = vperm.slane %v80, 6
  %v89 = vperm.slane %v80, 7
  %v100 = vunpack.c.l.b16 %v14
  %v101 = vunpack.c.l.b16 %v15
  %v102 = vpack.c.b16 %v101, %v100
  %v168 = vunpack.c.l.b16 %v16
  %v169 = vunpack.c.h.b16 %v16
  %v170 = vunpack.c.l.b16 %v17
  %v171 = vunpack.c.h.b16 %v17
  %v172 = vunpack.c.l.b16 %v18
  %v173 = vunpack.c.h.b16 %v18
  %v174 = vunpack.c.l.b16 %v19
  %v175 = vunpack.c.h.b16 %v19
  %v176 = vunpack.c.l.b16 %v20
  %v177 = vunpack.c.h.b16 %v20
  %v178 = vunpack.c.l.b16 %v21
  %v179 = vunpack.c.h.b16 %v21
  %v180 = vunpack.c.l.b16 %v22
  %v181 = vunpack.c.h.b16 %v22
  %v182 = vunpack.c.l.b16 %v23
  %v183 = vunpack.c.h.b16 %v23
  %v184 = vunpack.c.l.b16 %v24
  %v185 = vunpack.c.h.b16 %v24
  %v186 = vunpack.c.l.b16 %v25
  %v187 = vunpack.c.h.b16 %v25
  %v188 = vunpack.c.l.b16 %v26
  %v189 = vunpack.c.h.b16 %v26
  %v190 = vunpack.c.l.b16 %v27
  %v191 = vunpack.c.h.b16 %v27
  %v192 = vunpack.c.l.b16 %v28
  %v193 = vunpack.c.h.b16 %v28
  %v194 = vunpack.c.l.b16 %v29
  %v195 = vunpack.c.h.b16 %v29
  %v196 = vunpack.c.l.b16 %v30
  %v197 = vunpack.c.h.b16 %v30
  %v198 = vunpack.c.l.b16 %v31
  %v199 = vunpack.c.h.b16 %v31
  %v200 = vunpack.c.l.b16 %v32
  %v201 = vunpack.c.h.b16 %v32
  %v202 = vunpack.c.l.b16 %v33
  %v203 = vunpack.c.h.b16 %v33
  %v204 = vunpack.c.l.b16 %v34
  %v205 = vunpack.c.h.b16 %v34
  %v206 = vunpack.c.l.b16 %v35
  %v207 = vunpack.c.h.b16 %v35
  %v208 = vunpack.c.l.b16 %v36
  %v209 = vunpack.c.h.b16 %v36
  %v210 = vunpack.c.l.b16 %v37
  %v211 = vunpack.c.h.b16 %v37
  %v212 = vunpack.c.l.b16 %v38
  %v213 = vunpack.c.h.b16 %v38
  %v214 = vunpack.c.l.b16 %v39
  %v215 = vunpack.c.h.b16 %v39
  %v216 = vunpack.c.l.b16 %v40
  %v217 = vunpack.c.h.b16 %v40
  %v218 = vunpack.c.l.b16 %v41
  %v219 = vunpack.c.h.b16 %v41
  %v220 = vunpack.c.l.b16 %v42
  %v221 = vunpack.c.h.b16 %v42
  %v222 = vunpack.c.l.b16 %v43
  %v223 = vunpack.c.h.b16 %v43
  %v224 = vunpack.c.l.b16 %v44
  %v225 = vunpack.c.h.b16 %v44
  %v226 = vunpack.c.l.b16 %v45
  %v227 = vunpack.c.h.b16 %v45
  %v228 = vunpack.c.l.b16 %v46
  %v229 = vunpack.c.h.b16 %v46
  %v230 = vunpack.c.l.b16 %v47
  %v231 = vunpack.c.h.b16 %v47
  %v232 = vunpack.c.l.b16 %v48
  %v233 = vunpack.c.h.b16 %v48
  %v234 = vunpack.c.l.b16 %v49
  %v235 = vunpack.c.h.b16 %v49
  %v236 = vunpack.c.l.b16 %v50
  %v237 = vunpack.c.h.b16 %v50
  %v238 = vunpack.c.l.b16 %v51
  %v239 = vunpack.c.h.b16 %v51
  %v240 = vunpack.c.l.b16 %v52
  %v241 = vunpack.c.h.b16 %v52
  %v242 = vunpack.c.l.b16 %v53
  %v243 = vunpack.c.h.b16 %v53
  %v244 = vunpack.c.l.b16 %v54
  %v245 = vunpack.c.h.b16 %v54
  %v246 = vunpack.c.l.b16 %v55
  %v247 = vunpack.c.h.b16 %v55
  %v248 = vunpack.c.l.b16 %v56
  %v249 = vunpack.c.h.b16 %v56
  %v250 = vunpack.c.l.b16 %v57
  %v251 = vunpack.c.h.b16 %v57
  %v252 = vunpack.c.l.b16 %v58
  %v253 = vunpack.c.h.b16 %v58
  %v254 = vunpack.c.l.b16 %v59
  %v255 = vunpack.c.h.b16 %v59
  %v256 = vunpack.c.l.b16 %v60
  %v257 = vunpack.c.h.b16 %v60
  %v258 = vunpack.c.l.b16 %v61
  %v259 = vunpack.c.h.b16 %v61
  %v260 = vunpack.c.l.b16 %v62
  %v261 = vunpack.c.h.b16 %v62
  %v262 = vunpack.c.l.b16 %v63
  %v263 = vunpack.c.h.b16 %v63
  %v264 = vunpack.c.l.b16 %v64
  %v265 = vunpack.c.h.b16 %v64
  %v266 = vunpack.c.l.b16 %v65
  %v267 = vunpack.c.h.b16 %v65
  %v268 = vunpack.c.l.b16 %v66
  %v269 = vunpack.c.h.b16 %v66
  %v270 = vunpack.c.l.b16 %v67
  %v271 = vunpack.c.h.b16 %v67
  %v272 = vunpack.c.l.b16 %v68
  %v273 = vunpack.c.h.b16 %v68
  %v274 = vunpack.c.l.b16 %v69
  %v275 = vunpack.c.h.b16 %v69
  %v276 = vunpack.c.l.b16 %v70
  %v277 = vunpack.c.h.b16 %v70
  %v278 = vunpack.c.l.b16 %v71
  %v279 = vunpack.c.h.b16 %v71
  %v280 = vunpack.c.l.b16 %v72
  %v281 = vunpack.c.h.b16 %v72
  %v282 = vunpack.c.l.b16 %v73
  %v283 = vunpack.c.h.b16 %v73
  %v284 = vunpack.c.l.b16 %v74
  %v285 = vunpack.c.h.b16 %v74
  %v286 = vunpack.c.l.b16 %v75
  %v287 = vunpack.c.h.b16 %v75
  %v288 = vunpack.c.l.b16 %v76
  %v289 = vunpack.c.h.b16 %v76
  %v290 = vunpack.c.l.b16 %v77
  %v291 = vunpack.c.h.b16 %v77
  %v292 = vunpack.c.l.b16 %v78
  %v293 = vunpack.c.h.b16 %v78
  %v294 = vunpack.c.l.b16 %v79
  %v295 = vunpack.c.h.b16 %v79
  %v296 = vpack.c.b16 %v176, %v168
  %v297 = vpack.c.b16 %v177, %v169
  %v298 = vpack.c.b16 %v178, %v170
  %v299 = vpack.c.b16 %v179, %v171
  %v300 = vpack.c.b16 %v180, %v172
  %v301 = vpack.c.b16 %v181, %v173
  %v302 = vpack.c.b16 %v182, %v174
  %v303 = vpack.c.b16 %v183, %v175
  %v304 = vpack.c.b16 %v192, %v184
  %v305 = vpack.c.b16 %v193, %v185
  %v306 = vpack.c.b16 %v194, %v186
  %v307 = vpack.c.b16 %v195, %v187
  %v308 = vpack.c.b16 %v196, %v188
  %v309 = vpack.c.b16 %v197, %v189
  %v310 = vpack.c.b16 %v198, %v190
  %v311 = vpack.c.b16 %v199, %v191
  %v312 = vpack.c.b16 %v208, %v200
  %v313 = vpack.c.b16 %v209, %v201
  %v314 = vpack.c.b16 %v210, %v202
  %v315 = vpack.c.b16 %v211, %v203
  %v316 = vpack.c.b16 %v212, %v204
  %v317 = vpack.c.b16 %v213, %v205
  %v318 = vpack.c.b16 %v214, %v206
  %v319 = vpack.c.b16 %v215, %v207
  %v320 = vpack.c.b16 %v224, %v216
  %v321 = vpack.c.b16 %v225, %v217
  %v322 = vpack.c.b16 %v226, %v218
  %v323 = vpack.c.b16 %v227, %v219
  %v324 = vpack.c.b16 %v228, %v220
  %v325 = vpack.c.b16 %v229, %v221
  %v326 = vpack.c.b16 %v230, %v222
  %v327 = vpack.c.b16 %v231, %v223
  %v328 = vpack.c.b16 %v240, %v232
  %v329 = vpack.c.b16 %v241, %v233
  %v330 = vpack.c.b16 %v242, %v234
  %v331 = vpack.c.b16 %v243, %v235
  %v332 = vpack.c.b16 %v244, %v236
  %v333 = vpack.c.b16 %v245, %v237
  %v334 = vpack.c.b16 %v246, %v238
  %v335 = vpack.c.b16 %v247, %v239
  %v336 = vpack.c.b16 %v256, %v248
  %v337 = vpack.c.b16 %v257, %v249
  %v338 = vpack.c.b16 %v258, %v250
  %v339 = vpack.c.b16 %v259, %v251
  %v340 = vpack.c.b16 %v260, %v252
  %v341 = vpack.c.b16 %v261, %v253
  %v342 = vpack.c.b16 %v262, %v254
  %v343 = vpack.c.b16 %v263, %v255
  %v344 = vpack.c.b16 %v272, %v264
  %v345 = vpack.c.b16 %v273, %v265
  %v346 = vpack.c.b16 %v274, %v266
  %v347 = vpack.c.b16 %v275, %v267
  %v348 = vpack.c.b16 %v276, %v268
  %v349 = vpack.c.b16 %v277, %v269
  %v350 = vpack.c.b16 %v278, %v270
  %v351 = vpack.c.b16 %v279, %v271
  %v352 = vpack.c.b16 %v288, %v280
  %v353 = vpack.c.b16 %v289, %v281
  %v354 = vpack.c.b16 %v290, %v282
  %v355 = vpack.c.b16 %v291, %v283
  %v356 = vpack.c.b16 %v292, %v284
  %v357 = vpack.c.b16 %v293, %v285
  %v358 = vpack.c.b16 %v294, %v286
  %v359 = vpack.c.b16 %v295, %v287
  %424 = vmatpush.bf16.msra.mxu0 %v352
  %425 = vmatpush.bf16.msra.mxu0 %v344
  %426 = vmatpush.bf16.msra.mxu0 %v336
  %427 = vmatpush.bf16.msra.mxu0 %v328
  %428 = vmatpush.bf16.msra.mxu0 %v320
  %429 = vmatpush.bf16.msra.mxu0 %v312
  %430 = vmatpush.bf16.msra.mxu0 %v304
  %431 = vmatpush.bf16.msra.mxu0 %v296
  %432 = vmatmul.bf16.gmra.mxu0 %v102
  %v433 = vpop.f32.mrf.mxu0
  %v434 = vadd.f32 %v82, %v433
  %v435 = vpop.f32.mrf.mxu0
  %v436 = vadd.f32 %v82, %v435
  %437 = vdwg.mxu0
  %438 = vmatpush.bf16.msra.mxu0 %v353
  %439 = vmatpush.bf16.msra.mxu0 %v345
  %440 = vmatpush.bf16.msra.mxu0 %v337
  %441 = vmatpush.bf16.msra.mxu0 %v329
  %442 = vmatpush.bf16.msra.mxu0 %v321
  %443 = vmatpush.bf16.msra.mxu0 %v313
  %444 = vmatpush.bf16.msra.mxu0 %v305
  %445 = vmatpush.bf16.msra.mxu0 %v297
  %446 = vmatmul.bf16.gmra.mxu0 %v102
  %v447 = vpop.f32.mrf.mxu0
  %v448 = vadd.f32 %v83, %v447
  %v449 = vpop.f32.mrf.mxu0
  %v450 = vadd.f32 %v83, %v449
  %451 = vdwg.mxu0
  %452 = vmatpush.bf16.msra.mxu0 %v354
  %453 = vmatpush.bf16.msra.mxu0 %v346
  %454 = vmatpush.bf16.msra.mxu0 %v338
  %455 = vmatpush.bf16.msra.mxu0 %v330
  %456 = vmatpush.bf16.msra.mxu0 %v322
  %457 = vmatpush.bf16.msra.mxu0 %v314
  %458 = vmatpush.bf16.msra.mxu0 %v306
  %459 = vmatpush.bf16.msra.mxu0 %v298
  %460 = vmatmul.bf16.gmra.mxu0 %v102
  %v461 = vpop.f32.mrf.mxu0
  %v462 = vadd.f32 %v84, %v461
  %v463 = vpop.f32.mrf.mxu0
  %v464 = vadd.f32 %v84, %v463
  %465 = vdwg.mxu0
  %466 = vmatpush.bf16.msra.mxu0 %v355
  %467 = vmatpush.bf16.msra.mxu0 %v347
  %468 = vmatpush.bf16.msra.mxu0 %v339
  %469 = vmatpush.bf16.msra.mxu0 %v331
  %470 = vmatpush.bf16.msra.mxu0 %v323
  %471 = vmatpush.bf16.msra.mxu0 %v315
  %472 = vmatpush.bf16.msra.mxu0 %v307
  %473 = vmatpush.bf16.msra.mxu0 %v299
  %474 = vmatmul.bf16.gmra.mxu0 %v102
  %v475 = vpop.f32.mrf.mxu0
  %v476 = vadd.f32 %v85, %v475
  %v477 = vpop.f32.mrf.mxu0
  %v478 = vadd.f32 %v85, %v477
  %479 = vdwg.mxu0
  %480 = vmatpush.bf16.msra.mxu0 %v356
  %481 = vmatpush.bf16.msra.mxu0 %v348
  %482 = vmatpush.bf16.msra.mxu0 %v340
  %483 = vmatpush.bf16.msra.mxu0 %v332
  %484 = vmatpush.bf16.msra.mxu0 %v324
  %485 = vmatpush.bf16.msra.mxu0 %v316
  %486 = vmatpush.bf16.msra.mxu0 %v308
  %487 = vmatpush.bf16.msra.mxu0 %v300
  %488 = vmatmul.bf16.gmra.mxu0 %v102
  %v489 = vpop.f32.mrf.mxu0
  %v490 = vadd.f32 %v86, %v489
  %v491 = vpop.f32.mrf.mxu0
  %v492 = vadd.f32 %v86, %v491
  %493 = vdwg.mxu0
  %494 = vmatpush.bf16.msra.mxu0 %v357
  %495 = vmatpush.bf16.msra.mxu0 %v349
  %496 = vmatpush.bf16.msra.mxu0 %v341
  %497 = vmatpush.bf16.msra.mxu0 %v333
  %498 = vmatpush.bf16.msra.mxu0 %v325
  %499 = vmatpush.bf16.msra.mxu0 %v317
  %500 = vmatpush.bf16.msra.mxu0 %v309
  %501 = vmatpush.bf16.msra.mxu0 %v301
  %502 = vmatmul.bf16.gmra.mxu0 %v102
  %v503 = vpop.f32.mrf.mxu0
  %v504 = vadd.f32 %v87, %v503
  %v505 = vpop.f32.mrf.mxu0
  %v506 = vadd.f32 %v87, %v505
  %507 = vdwg.mxu0
  %508 = vmatpush.bf16.msra.mxu0 %v358
  %509 = vmatpush.bf16.msra.mxu0 %v350
  %510 = vmatpush.bf16.msra.mxu0 %v342
  %511 = vmatpush.bf16.msra.mxu0 %v334
  %512 = vmatpush.bf16.msra.mxu0 %v326
  %513 = vmatpush.bf16.msra.mxu0 %v318
  %514 = vmatpush.bf16.msra.mxu0 %v310
  %515 = vmatpush.bf16.msra.mxu0 %v302
  %516 = vmatmul.bf16.gmra.mxu0 %v102
  %v517 = vpop.f32.mrf.mxu0
  %v518 = vadd.f32 %v88, %v517
  %v519 = vpop.f32.mrf.mxu0
  %v520 = vadd.f32 %v88, %v519
  %521 = vdwg.mxu0
  %522 = vmatpush.bf16.msra.mxu0 %v359
  %523 = vmatpush.bf16.msra.mxu0 %v351
  %524 = vmatpush.bf16.msra.mxu0 %v343
  %525 = vmatpush.bf16.msra.mxu0 %v335
  %526 = vmatpush.bf16.msra.mxu0 %v327
  %527 = vmatpush.bf16.msra.mxu0 %v319
  %528 = vmatpush.bf16.msra.mxu0 %v311
  %529 = vmatpush.bf16.msra.mxu0 %v303
  %530 = vmatmul.bf16.gmra.mxu0 %v102
  %v531 = vpop.f32.mrf.mxu0
  %v532 = vadd.f32 %v89, %v531
  %v533 = vpop.f32.mrf.mxu0
  %v534 = vadd.f32 %v89, %v533
  %535 = vdwg.mxu0
  %536 = vst [vmem:[%s3] sm:$0xff] %v434
  %537 = vst [vmem:[%s3 + $0x8] sm:$0xff] %v448
  %538 = vst [vmem:[%s3 + $0x10] sm:$0xff] %v462
  %539 = vst [vmem:[%s3 + $0x18] sm:$0xff] %v476
  %540 = vst [vmem:[%s3 + $0x20] sm:$0xff] %v490
  %541 = vst [vmem:[%s3 + $0x28] sm:$0xff] %v504
  %542 = vst [vmem:[%s3 + $0x30] sm:$0xff] %v518
  %543 = vst [vmem:[%s3 + $0x38] sm:$0xff] %v532
  %544 = vst [vmem:[%s3 + $0x40] sm:$0xff] %v436
  %545 = vst [vmem:[%s3 + $0x48] sm:$0xff] %v450
  %546 = vst [vmem:[%s3 + $0x50] sm:$0xff] %v464
  %547 = vst [vmem:[%s3 + $0x58] sm:$0xff] %v478
  %548 = vst [vmem:[%s3 + $0x60] sm:$0xff] %v492
  %549 = vst [vmem:[%s3 + $0x68] sm:$0xff] %v506
  %550 = vst [vmem:[%s3 + $0x70] sm:$0xff] %v520
  %551 = vst [vmem:[%s3 + $0x78] sm:$0xff] %v534
  // Predicated region
  $region14: #{_lambda_.43} parent=0 // pred_check
    _
  $region15: #{_lambda_.43} parent=0 // pred_check_branch
    %553 = sbr.rel (0) target = $region17
  $region16: #{_lambda_.43} parent=0 // pred_region
    _
  $region17: #{_lambda_.43} parent=0 // pred_fallthru
    _
  // Predicated region
  $region18: #{_lambda_.43} parent=0 // pred_check
    _
  $region19: #{_lambda_.43} parent=0 // pred_check_branch
    %555 = sbr.rel (0) target = $region21
  $region20: #{_lambda_.43} parent=0 // pred_region
    _
  $region21: #{_lambda_.43} parent=0 // pred_fallthru
    _

// kernel: _lambda_.46
$region0: #{_lambda_.46}
  #allocation0 [shape = 'u32[]', space=smem, size = 0x4, offset = 0x4, fixed_abs, tag = 'smem constant byte address 0x4 - core index']
  #allocation1 [shape = 'u32[72,128]{1,0:T(1,128)}', space=vmem, size = 0x9000, scoped, tag = 'internal scratch']
  %s0 = inlined_call_operand.vmem [shape: bf16[16,128], index: 0, kind: input, shape index: {}]
  %s1 = inlined_call_operand.vmem [shape: bf16[128,512], index: 1, kind: input, shape index: {}]
  %s2 = inlined_call_operand.vmem [shape: f32[1,512], index: 2, kind: input, shape index: {}]
  %s3 = inlined_call_operand.vmem [shape: f32[16,512], index: 3, kind: output, shape index: {}]
  %s4 = sld [smem:[#allocation0]]
  $region22: #{_lambda_.46} parent=0
    _
  %s6 = ssub.s32 1, %s4
  %s7 = scalar_select 0, %s6, %s4
  // Predicated region
  $region2: #{_lambda_.46} parent=0 // pred_check
    _
  $region3: #{_lambda_.46} parent=0 // pred_check_branch
    %9 = sbr.rel (0) target = $region5
  $region4: #{_lambda_.46} parent=0 // pred_region
    _
  $region5: #{_lambda_.46} parent=0 // pred_fallthru
    _
  // Predicated region
  $region6: #{_lambda_.46} parent=0 // pred_check
    _
  $region7: #{_lambda_.46} parent=0 // pred_check_branch
    %11 = sbr.rel (0) target = $region9
  $region8: #{_lambda_.46} parent=0 // pred_region
    _
  $region9: #{_lambda_.46} parent=0 // pred_fallthru
    _
  // Predicated region
  $region10: #{_lambda_.46} parent=0 // pred_check
    _
  $region11: #{_lambda_.46} parent=0 // pred_check_branch
    %13 = sbr.rel (0) target = $region13
  $region12: #{_lambda_.46} parent=0 // pred_region
    _
  $region13: #{_lambda_.46} parent=0 // pred_fallthru
    _
  %v14 = vld [vmem:[%s0] sm:$0xf]
  %v15 = vld [vmem:[%s0 + $0x4] sm:$0xf]
  %v16 = vld [vmem:[%s1] sm:$0xff]
  %v17 = vld [vmem:[%s1 + $0x8] sm:$0xff]
  %v18 = vld [vmem:[%s1 + $0x10] sm:$0xff]
  %v19 = vld [vmem:[%s1 + $0x18] sm:$0xff]
  %v20 = vld [vmem:[%s1 + $0x20] sm:$0xff]
  %v21 = vld [vmem:[%s1 + $0x28] sm:$0xff]
  %v22 = vld [vmem:[%s1 + $0x30] sm:$0xff]
  %v23 = vld [vmem:[%s1 + $0x38] sm:$0xff]
  %v24 = vld [vmem:[%s1 + $0x40] sm:$0xff]
  %v25 = vld [vmem:[%s1 + $0x48] sm:$0xff]
  %v26 = vld [vmem:[%s1 + $0x50] sm:$0xff]
  %v27 = vld [vmem:[%s1 + $0x58] sm:$0xff]
  %v28 = vld [vmem:[%s1 + $0x60] sm:$0xff]
  %v29 = vld [vmem:[%s1 + $0x68] sm:$0xff]
  %v30 = vld [vmem:[%s1 + $0x70] sm:$0xff]
  %v31 = vld [vmem:[%s1 + $0x78] sm:$0xff]
  %v32 = vld [vmem:[%s1 + $0x80] sm:$0xff]
  %v33 = vld [vmem:[%s1 + $0x88] sm:$0xff]
  %v34 = vld [vmem:[%s1 + $0x90] sm:$0xff]
  %v35 = vld [vmem:[%s1 + $0x98] sm:$0xff]
  %v36 = vld [vmem:[%s1 + $0xa0] sm:$0xff]
  %v37 = vld [vmem:[%s1 + $0xa8] sm:$0xff]
  %v38 = vld [vmem:[%s1 + $0xb0] sm:$0xff]
  %v39 = vld [vmem:[%s1 + $0xb8] sm:$0xff]
  %v40 = vld [vmem:[%s1 + $0xc0] sm:$0xff]
  %v41 = vld [vmem:[%s1 + $0xc8] sm:$0xff]
  %v42 = vld [vmem:[%s1 + $0xd0] sm:$0xff]
  %v43 = vld [vmem:[%s1 + $0xd8] sm:$0xff]
  %v44 = vld [vmem:[%s1 + $0xe0] sm:$0xff]
  %v45 = vld [vmem:[%s1 + $0xe8] sm:$0xff]
  %v46 = vld [vmem:[%s1 + $0xf0] sm:$0xff]
  %v47 = vld [vmem:[%s1 + $0xf8] sm:$0xff]
  %v48 = vld [vmem:[%s2] sm:$0xf]
  %v50 = vperm.slane %v48, 0
  %v51 = vperm.slane %v48, 1
  %v52 = vperm.slane %v48, 2
  %v53 = vperm.slane %v48, 3
  %v60 = vunpack.c.l.b16 %v14
  %v61 = vunpack.c.l.b16 %v15
  %v62 = vpack.c.b16 %v61, %v60
  %v96 = vunpack.c.l.b16 %v16
  %v97 = vunpack.c.h.b16 %v16
  %v98 = vunpack.c.l.b16 %v17
  %v99 = vunpack.c.h.b16 %v17
  %v100 = vunpack.c.l.b16 %v18
  %v101 = vunpack.c.h.b16 %v18
  %v102 = vunpack.c.l.b16 %v19
  %v103 = vunpack.c.h.b16 %v19
  %v104 = vunpack.c.l.b16 %v20
  %v105 = vunpack.c.h.b16 %v20
  %v106 = vunpack.c.l.b16 %v21
  %v107 = vunpack.c.h.b16 %v21
  %v108 = vunpack.c.l.b16 %v22
  %v109 = vunpack.c.h.b16 %v22
  %v110 = vunpack.c.l.b16 %v23
  %v111 = vunpack.c.h.b16 %v23
  %v112 = vunpack.c.l.b16 %v24
  %v113 = vunpack.c.h.b16 %v24
  %v114 = vunpack.c.l.b16 %v25
  %v115 = vunpack.c.h.b16 %v25
  %v116 = vunpack.c.l.b16 %v26
  %v117 = vunpack.c.h.b16 %v26
  %v118 = vunpack.c.l.b16 %v27
  %v119 = vunpack.c.h.b16 %v27
  %v120 = vunpack.c.l.b16 %v28
  %v121 = vunpack.c.h.b16 %v28
  %v122 = vunpack.c.l.b16 %v29
  %v123 = vunpack.c.h.b16 %v29
  %v124 = vunpack.c.l.b16 %v30
  %v125 = vunpack.c.h.b16 %v30
  %v126 = vunpack.c.l.b16 %v31
  %v127 = vunpack.c.h.b16 %v31
  %v128 = vunpack.c.l.b16 %v32
  %v129 = vunpack.c.h.b16 %v32
  %v130 = vunpack.c.l.b16 %v33
  %v131 = vunpack.c.h.b16 %v33
  %v132 = vunpack.c.l.b16 %v34
  %v133 = vunpack.c.h.b16 %v34
  %v134 = vunpack.c.l.b16 %v35
  %v135 = vunpack.c.h.b16 %v35
  %v136 = vunpack.c.l.b16 %v36
  %v137 = vunpack.c.h.b16 %v36
  %v138 = vunpack.c.l.b16 %v37
  %v139 = vunpack.c.h.b16 %v37
  %v140 = vunpack.c.l.b16 %v38
  %v141 = vunpack.c.h.b16 %v38
  %v142 = vunpack.c.l.b16 %v39
  %v143 = vunpack.c.h.b16 %v39
  %v144 = vunpack.c.l.b16 %v40
  %v145 = vunpack.c.h.b16 %v40
  %v146 = vunpack.c.l.b16 %v41
  %v147 = vunpack.c.h.b16 %v41
  %v148 = vunpack.c.l.b16 %v42
  %v149 = vunpack.c.h.b16 %v42
  %v150 = vunpack.c.l.b16 %v43
  %v151 = vunpack.c.h.b16 %v43
  %v152 = vunpack.c.l.b16 %v44
  %v153 = vunpack.c.h.b16 %v44
  %v154 = vunpack.c.l.b16 %v45
  %v155 = vunpack.c.h.b16 %v45
  %v156 = vunpack.c.l.b16 %v46
  %v157 = vunpack.c.h.b16 %v46
  %v158 = vunpack.c.l.b16 %v47
  %v159 = vunpack.c.h.b16 %v47
  %v160 = vpack.c.b16 %v100, %v96
  %v161 = vpack.c.b16 %v101, %v97
  %v162 = vpack.c.b16 %v102, %v98
  %v163 = vpack.c.b16 %v103, %v99
  %v164 = vpack.c.b16 %v108, %v104
  %v165 = vpack.c.b16 %v109, %v105
  %v166 = vpack.c.b16 %v110, %v106
  %v167 = vpack.c.b16 %v111, %v107
  %v168 = vpack.c.b16 %v116, %v112
  %v169 = vpack.c.b16 %v117, %v113
  %v170 = vpack.c.b16 %v118, %v114
  %v171 = vpack.c.b16 %v119, %v115
  %v172 = vpack.c.b16 %v124, %v120
  %v173 = vpack.c.b16 %v125, %v121
  %v174 = vpack.c.b16 %v126, %v122
  %v175 = vpack.c.b16 %v127, %v123
  %v176 = vpack.c.b16 %v132, %v128
  %v177 = vpack.c.b16 %v133, %v129
  %v178 = vpack.c.b16 %v134, %v130
  %v179 = vpack.c.b16 %v135, %v131
  %v180 = vpack.c.b16 %v140, %v136
  %v181 = vpack.c.b16 %v141, %v137
  %v182 = vpack.c.b16 %v142, %v138
  %v183 = vpack.c.b16 %v143, %v139
  %v184 = vpack.c.b16 %v148, %v144
  %v185 = vpack.c.b16 %v149, %v145
  %v186 = vpack.c.b16 %v150, %v146
  %v187 = vpack.c.b16 %v151, %v147
  %v188 = vpack.c.b16 %v156, %v152
  %v189 = vpack.c.b16 %v157, %v153
  %v190 = vpack.c.b16 %v158, %v154
  %v191 = vpack.c.b16 %v159, %v155
  %224 = vmatpush.bf16.msra.mxu0 %v188
  %225 = vmatpush.bf16.msra.mxu0 %v184
  %226 = vmatpush.bf16.msra.mxu0 %v180
  %227 = vmatpush.bf16.msra.mxu0 %v176
  %228 = vmatpush.bf16.msra.mxu0 %v172
  %229 = vmatpush.bf16.msra.mxu0 %v168
  %230 = vmatpush.bf16.msra.mxu0 %v164
  %231 = vmatpush.bf16.msra.mxu0 %v160
  %232 = vmatmul.bf16.gmra.mxu0 %v62
  %v233 = vpop.f32.mrf.mxu0
  %v234 = vadd.f32 %v50, %v233
  %v235 = vpop.f32.mrf.mxu0
  %v236 = vadd.f32 %v50, %v235
  %237 = vdwg.mxu0
  %238 = vmatpush.bf16.msra.mxu0 %v189
  %239 = vmatpush.bf16.msra.mxu0 %v185
  %240 = vmatpush.bf16.msra.mxu0 %v181
  %241 = vmatpush.bf16.msra.mxu0 %v177
  %242 = vmatpush.bf16.msra.mxu0 %v173
  %243 = vmatpush.bf16.msra.mxu0 %v169
  %244 = vmatpush.bf16.msra.mxu0 %v165
  %245 = vmatpush.bf16.msra.mxu0 %v161
  %246 = vmatmul.bf16.gmra.mxu0 %v62
  %v247 = vpop.f32.mrf.mxu0
  %v248 = vadd.f32 %v51, %v247
  %v249 = vpop.f32.mrf.mxu0
  %v250 = vadd.f32 %v51, %v249
  %251 = vdwg.mxu0
  %252 = vmatpush.bf16.msra.mxu0 %v190
  %253 = vmatpush.bf16.msra.mxu0 %v186
  %254 = vmatpush.bf16.msra.mxu0 %v182
  %255 = vmatpush.bf16.msra.mxu0 %v178
  %256 = vmatpush.bf16.msra.mxu0 %v174
  %257 = vmatpush.bf16.msra.mxu0 %v170
  %258 = vmatpush.bf16.msra.mxu0 %v166
  %259 = vmatpush.bf16.msra.mxu0 %v162
  %260 = vmatmul.bf16.gmra.mxu0 %v62
  %v261 = vpop.f32.mrf.mxu0
  %v262 = vadd.f32 %v52, %v261
  %v263 = vpop.f32.mrf.mxu0
  %v264 = vadd.f32 %v52, %v263
  %265 = vdwg.mxu0
  %266 = vmatpush.bf16.msra.mxu0 %v191
  %267 = vmatpush.bf16.msra.mxu0 %v187
  %268 = vmatpush.bf16.msra.mxu0 %v183
  %269 = vmatpush.bf16.msra.mxu0 %v179
  %270 = vmatpush.bf16.msra.mxu0 %v175
  %271 = vmatpush.bf16.msra.mxu0 %v171
  %272 = vmatpush.bf16.msra.mxu0 %v167
  %273 = vmatpush.bf16.msra.mxu0 %v163
  %274 = vmatmul.bf16.gmra.mxu0 %v62
  %v275 = vpop.f32.mrf.mxu0
  %v276 = vadd.f32 %v53, %v275
  %v277 = vpop.f32.mrf.mxu0
  %v278 = vadd.f32 %v53, %v277
  %279 = vdwg.mxu0
  %280 = vst [vmem:[%s3] sm:$0xff] %v234
  %281 = vst [vmem:[%s3 + $0x8] sm:$0xff] %v248
  %282 = vst [vmem:[%s3 + $0x10] sm:$0xff] %v262
  %283 = vst [vmem:[%s3 + $0x18] sm:$0xff] %v276
  %284 = vst [vmem:[%s3 + $0x20] sm:$0xff] %v236
  %285 = vst [vmem:[%s3 + $0x28] sm:$0xff] %v250
  %286 = vst [vmem:[%s3 + $0x30] sm:$0xff] %v264
  %287 = vst [vmem:[%s3 + $0x38] sm:$0xff] %v278
  // Predicated region
  $region14: #{_lambda_.46} parent=0 // pred_check
    _
  $region15: #{_lambda_.46} parent=0 // pred_check_branch
    %289 = sbr.rel (0) target = $region17
  $region16: #{_lambda_.46} parent=0 // pred_region
    _
  $region17: #{_lambda_.46} parent=0 // pred_fallthru
    _
  // Predicated region
  $region18: #{_lambda_.46} parent=0 // pred_check
    _
  $region19: #{_lambda_.46} parent=0 // pred_check_branch
    %291 = sbr.rel (0) target = $region21
  $region20: #{_lambda_.46} parent=0 // pred_region
    _
  $region21: #{_lambda_.46} parent=0 // pred_fallthru
    _

// kernel: _lambda_.49
$region0: #{_lambda_.49}
  #allocation0 [shape = 'u32[]', space=smem, size = 0x4, offset = 0x4, fixed_abs, tag = 'smem constant byte address 0x4 - core index']
  #allocation1 [shape = 'u32[72,128]{1,0:T(1,128)}', space=vmem, size = 0x9000, scoped, tag = 'internal scratch']
  %s0 = inlined_call_operand.vmem [shape: bf16[32,128], index: 0, kind: input, shape index: {}]
  %s1 = inlined_call_operand.vmem [shape: bf16[128,256], index: 1, kind: input, shape index: {}]
  %s2 = inlined_call_operand.vmem [shape: f32[1,256], index: 2, kind: input, shape index: {}]
  %s3 = inlined_call_operand.vmem [shape: f32[32,256], index: 3, kind: output, shape index: {}]
  %s4 = sld [smem:[#allocation0]]
  $region22: #{_lambda_.49} parent=0
    _
  %s6 = ssub.s32 1, %s4
  %s7 = scalar_select 0, %s6, %s4
  // Predicated region
  $region2: #{_lambda_.49} parent=0 // pred_check
    _
  $region3: #{_lambda_.49} parent=0 // pred_check_branch
    %9 = sbr.rel (0) target = $region5
  $region4: #{_lambda_.49} parent=0 // pred_region
    _
  $region5: #{_lambda_.49} parent=0 // pred_fallthru
    _
  // Predicated region
  $region6: #{_lambda_.49} parent=0 // pred_check
    _
  $region7: #{_lambda_.49} parent=0 // pred_check_branch
    %11 = sbr.rel (0) target = $region9
  $region8: #{_lambda_.49} parent=0 // pred_region
    _
  $region9: #{_lambda_.49} parent=0 // pred_fallthru
    _
  // Predicated region
  $region10: #{_lambda_.49} parent=0 // pred_check
    _
  $region11: #{_lambda_.49} parent=0 // pred_check_branch
    %13 = sbr.rel (0) target = $region13
  $region12: #{_lambda_.49} parent=0 // pred_region
    _
  $region13: #{_lambda_.49} parent=0 // pred_fallthru
    _
  %v14 = vld [vmem:[%s0] sm:$0xf]
  %v15 = vld [vmem:[%s0 + $0x4] sm:$0xf]
  %v16 = vld [vmem:[%s0 + $0x8] sm:$0xf]
  %v17 = vld [vmem:[%s0 + $0xc] sm:$0xf]
  %v18 = vld [vmem:[%s1] sm:$0xff]
  %v19 = vld [vmem:[%s1 + $0x8] sm:$0xff]
  %v20 = vld [vmem:[%s1 + $0x10] sm:$0xff]
  %v21 = vld [vmem:[%s1 + $0x18] sm:$0xff]
  %v22 = vld [vmem:[%s1 + $0x20] sm:$0xff]
  %v23 = vld [vmem:[%s1 + $0x28] sm:$0xff]
  %v24 = vld [vmem:[%s1 + $0x30] sm:$0xff]
  %v25 = vld [vmem:[%s1 + $0x38] sm:$0xff]
  %v26 = vld [vmem:[%s1 + $0x40] sm:$0xff]
  %v27 = vld [vmem:[%s1 + $0x48] sm:$0xff]
  %v28 = vld [vmem:[%s1 + $0x50] sm:$0xff]
  %v29 = vld [vmem:[%s1 + $0x58] sm:$0xff]
  %v30 = vld [vmem:[%s1 + $0x60] sm:$0xff]
  %v31 = vld [vmem:[%s1 + $0x68] sm:$0xff]
  %v32 = vld [vmem:[%s1 + $0x70] sm:$0xff]
  %v33 = vld [vmem:[%s1 + $0x78] sm:$0xff]
  %v34 = vld [vmem:[%s2] sm:$0x3]
  %v36 = vperm.slane %v34, 0
  %v37 = vperm.slane %v34, 1
  %v44 = vunpack.c.l.b16 %v14
  %v45 = vunpack.c.l.b16 %v15
  %v46 = vunpack.c.l.b16 %v16
  %v47 = vunpack.c.l.b16 %v17
  %v48 = vpack.c.b16 %v45, %v44
  %v49 = vpack.c.b16 %v47, %v46
  %v68 = vunpack.c.l.b16 %v18
  %v69 = vunpack.c.h.b16 %v18
  %v70 = vunpack.c.l.b16 %v19
  %v71 = vunpack.c.h.b16 %v19
  %v72 = vunpack.c.l.b16 %v20
  %v73 = vunpack.c.h.b16 %v20
  %v74 = vunpack.c.l.b16 %v21
  %v75 = vunpack.c.h.b16 %v21
  %v76 = vunpack.c.l.b16 %v22
  %v77 = vunpack.c.h.b16 %v22
  %v78 = vunpack.c.l.b16 %v23
  %v79 = vunpack.c.h.b16 %v23
  %v80 = vunpack.c.l.b16 %v24
  %v81 = vunpack.c.h.b16 %v24
  %v82 = vunpack.c.l.b16 %v25
  %v83 = vunpack.c.h.b16 %v25
  %v84 = vunpack.c.l.b16 %v26
  %v85 = vunpack.c.h.b16 %v26
  %v86 = vunpack.c.l.b16 %v27
  %v87 = vunpack.c.h.b16 %v27
  %v88 = vunpack.c.l.b16 %v28
  %v89 = vunpack.c.h.b16 %v28
  %v90 = vunpack.c.l.b16 %v29
  %v91 = vunpack.c.h.b16 %v29
  %v92 = vunpack.c.l.b16 %v30
  %v93 = vunpack.c.h.b16 %v30
  %v94 = vunpack.c.l.b16 %v31
  %v95 = vunpack.c.h.b16 %v31
  %v96 = vunpack.c.l.b16 %v32
  %v97 = vunpack.c.h.b16 %v32
  %v98 = vunpack.c.l.b16 %v33
  %v99 = vunpack.c.h.b16 %v33
  %v100 = vpack.c.b16 %v70, %v68
  %v101 = vpack.c.b16 %v71, %v69
  %v102 = vpack.c.b16 %v74, %v72
  %v103 = vpack.c.b16 %v75, %v73
  %v104 = vpack.c.b16 %v78, %v76
  %v105 = vpack.c.b16 %v79, %v77
  %v106 = vpack.c.b16 %v82, %v80
  %v107 = vpack.c.b16 %v83, %v81
  %v108 = vpack.c.b16 %v86, %v84
  %v109 = vpack.c.b16 %v87, %v85
  %v110 = vpack.c.b16 %v90, %v88
  %v111 = vpack.c.b16 %v91, %v89
  %v112 = vpack.c.b16 %v94, %v92
  %v113 = vpack.c.b16 %v95, %v93
  %v114 = vpack.c.b16 %v98, %v96
  %v115 = vpack.c.b16 %v99, %v97
  %132 = vmatpush.bf16.msra.mxu0 %v114
  %133 = vmatpush.bf16.msra.mxu0 %v112
  %134 = vmatpush.bf16.msra.mxu0 %v110
  %135 = vmatpush.bf16.msra.mxu0 %v108
  %136 = vmatpush.bf16.msra.mxu0 %v106
  %137 = vmatpush.bf16.msra.mxu0 %v104
  %138 = vmatpush.bf16.msra.mxu0 %v102
  %139 = vmatpush.bf16.msra.mxu0 %v100
  %140 = vmatmul.bf16.gmra.mxu0 %v48
  %v141 = vpop.f32.mrf.mxu0
  %v142 = vadd.f32 %v36, %v141
  %v143 = vpop.f32.mrf.mxu0
  %v144 = vadd.f32 %v36, %v143
  %145 = vmatmul.bf16.gmra.mxu0 %v49
  %v146 = vpop.f32.mrf.mxu0
  %v147 = vadd.f32 %v36, %v146
  %v148 = vpop.f32.mrf.mxu0
  %v149 = vadd.f32 %v36, %v148
  %150 = vdwg.mxu0
  %151 = vmatpush.bf16.msra.mxu0 %v115
  %152 = vmatpush.bf16.msra.mxu0 %v113
  %153 = vmatpush.bf16.msra.mxu0 %v111
  %154 = vmatpush.bf16.msra.mxu0 %v109
  %155 = vmatpush.bf16.msra.mxu0 %v107
  %156 = vmatpush.bf16.msra.mxu0 %v105
  %157 = vmatpush.bf16.msra.mxu0 %v103
  %158 = vmatpush.bf16.msra.mxu0 %v101
  %159 = vmatmul.bf16.gmra.mxu0 %v48
  %v160 = vpop.f32.mrf.mxu0
  %v161 = vadd.f32 %v37, %v160
  %v162 = vpop.f32.mrf.mxu0
  %v163 = vadd.f32 %v37, %v162
  %164 = vmatmul.bf16.gmra.mxu0 %v49
  %v165 = vpop.f32.mrf.mxu0
  %v166 = vadd.f32 %v37, %v165
  %v167 = vpop.f32.mrf.mxu0
  %v168 = vadd.f32 %v37, %v167
  %169 = vdwg.mxu0
  %170 = vst [vmem:[%s3] sm:$0xff] %v142
  %171 = vst [vmem:[%s3 + $0x8] sm:$0xff] %v161
  %172 = vst [vmem:[%s3 + $0x10] sm:$0xff] %v144
  %173 = vst [vmem:[%s3 + $0x18] sm:$0xff] %v163
  %174 = vst [vmem:[%s3 + $0x20] sm:$0xff] %v147
  %175 = vst [vmem:[%s3 + $0x28] sm:$0xff] %v166
  %176 = vst [vmem:[%s3 + $0x30] sm:$0xff] %v149
  %177 = vst [vmem:[%s3 + $0x38] sm:$0xff] %v168
  // Predicated region
  $region14: #{_lambda_.49} parent=0 // pred_check
    _
  $region15: #{_lambda_.49} parent=0 // pred_check_branch
    %179 = sbr.rel (0) target = $region17
  $region16: #{_lambda_.49} parent=0 // pred_region
    _
  $region17: #{_lambda_.49} parent=0 // pred_fallthru
    _
  // Predicated region
  $region18: #{_lambda_.49} parent=0 // pred_check
    _
  $region19: #{_lambda_.49} parent=0 // pred_check_branch
    %181 = sbr.rel (0) target = $region21
  $region20: #{_lambda_.49} parent=0 // pred_region
    _
  $region21: #{_lambda_.49} parent=0 // pred_fallthru
    _

// kernel: _lambda_.53
$region0: #{_lambda_.53}
  #allocation0 [shape = 'u32[]', space=smem, size = 0x4, offset = 0x4, fixed_abs, tag = 'smem constant byte address 0x4 - core index']
  #allocation1 [shape = 'u32[72,128]{1,0:T(1,128)}', space=vmem, size = 0x9000, scoped, tag = 'internal scratch']
  %s0 = inlined_call_operand.vmem [shape: f32[512,128], index: 0, kind: input, shape index: {}]
  %s1 = inlined_call_operand.vmem [shape: f32[2,128], index: 1, kind: output, shape index: {}]
  %s2 = sld [smem:[#allocation0]]
  $region18: #{_lambda_.53} parent=0
    _
  %s4 = ssub.s32 1, %s2
  %s5 = scalar_select 0, %s4, %s2
  // Predicated region
  $region2: #{_lambda_.53} parent=0 // pred_check
    _
  $region3: #{_lambda_.53} parent=0 // pred_check_branch
    %7 = sbr.rel (0) target = $region5
  $region4: #{_lambda_.53} parent=0 // pred_region
    _
  $region5: #{_lambda_.53} parent=0 // pred_fallthru
    _
  %p8 = scmp.eq.s32.totalorder 0, 0
  // Predicated region
  $region6: #{_lambda_.53} parent=0 // pred_check
    %p9 = pneg %p8
  $region7: #{_lambda_.53} parent=0 // pred_check_branch
    %11 = sbr.rel (%p9) target = $region9
  $region8: #{_lambda_.53} parent=0 // pred_region
    %12 = vst [vmem:[%s1] sm:$0x3] 0.0
  $region9: #{_lambda_.53} parent=0 // pred_fallthru
    _
  %v13 = vld [vmem:[%s0] sm:$0xff]
  %v14 = vld [vmem:[%s0 + $0x8] sm:$0xff]
  %v15 = vld [vmem:[%s0 + $0x10] sm:$0xff]
  %v16 = vld [vmem:[%s0 + $0x18] sm:$0xff]
  %v17 = vld [vmem:[%s0 + $0x20] sm:$0xff]
  %v18 = vld [vmem:[%s0 + $0x28] sm:$0xff]
  %v19 = vld [vmem:[%s0 + $0x30] sm:$0xff]
  %v20 = vld [vmem:[%s0 + $0x38] sm:$0xff]
  %v21 = vld [vmem:[%s0 + $0x40] sm:$0xff]
  %v22 = vld [vmem:[%s0 + $0x48] sm:$0xff]
  %v23 = vld [vmem:[%s0 + $0x50] sm:$0xff]
  %v24 = vld [vmem:[%s0 + $0x58] sm:$0xff]
  %v25 = vld [vmem:[%s0 + $0x60] sm:$0xff]
  %v26 = vld [vmem:[%s0 + $0x68] sm:$0xff]
  %v27 = vld [vmem:[%s0 + $0x70] sm:$0xff]
  %v28 = vld [vmem:[%s0 + $0x78] sm:$0xff]
  %v29 = vld [vmem:[%s0 + $0x80] sm:$0xff]
  %v30 = vld [vmem:[%s0 + $0x88] sm:$0xff]
  %v31 = vld [vmem:[%s0 + $0x90] sm:$0xff]
  %v32 = vld [vmem:[%s0 + $0x98] sm:$0xff]
  %v33 = vld [vmem:[%s0 + $0xa0] sm:$0xff]
  %v34 = vld [vmem:[%s0 + $0xa8] sm:$0xff]
  %v35 = vld [vmem:[%s0 + $0xb0] sm:$0xff]
  %v36 = vld [vmem:[%s0 + $0xb8] sm:$0xff]
  %v37 = vld [vmem:[%s0 + $0xc0] sm:$0xff]
  %v38 = vld [vmem:[%s0 + $0xc8] sm:$0xff]
  %v39 = vld [vmem:[%s0 + $0xd0] sm:$0xff]
  %v40 = vld [vmem:[%s0 + $0xd8] sm:$0xff]
  %v41 = vld [vmem:[%s0 + $0xe0] sm:$0xff]
  %v42 = vld [vmem:[%s0 + $0xe8] sm:$0xff]
  %v43 = vld [vmem:[%s0 + $0xf0] sm:$0xff]
  %v44 = vld [vmem:[%s0 + $0xf8] sm:$0xff]
  %v45 = vld [vmem:[%s0 + $0x100] sm:$0xff]
  %v46 = vld [vmem:[%s0 + $0x108] sm:$0xff]
  %v47 = vld [vmem:[%s0 + $0x110] sm:$0xff]
  %v48 = vld [vmem:[%s0 + $0x118] sm:$0xff]
  %v49 = vld [vmem:[%s0 + $0x120] sm:$0xff]
  %v50 = vld [vmem:[%s0 + $0x128] sm:$0xff]
  %v51 = vld [vmem:[%s0 + $0x130] sm:$0xff]
  %v52 = vld [vmem:[%s0 + $0x138] sm:$0xff]
  %v53 = vld [vmem:[%s0 + $0x140] sm:$0xff]
  %v54 = vld [vmem:[%s0 + $0x148] sm:$0xff]
  %v55 = vld [vmem:[%s0 + $0x150] sm:$0xff]
  %v56 = vld [vmem:[%s0 + $0x158] sm:$0xff]
  %v57 = vld [vmem:[%s0 + $0x160] sm:$0xff]
  %v58 = vld [vmem:[%s0 + $0x168] sm:$0xff]
  %v59 = vld [vmem:[%s0 + $0x170] sm:$0xff]
  %v60 = vld [vmem:[%s0 + $0x178] sm:$0xff]
  %v61 = vld [vmem:[%s0 + $0x180] sm:$0xff]
  %v62 = vld [vmem:[%s0 + $0x188] sm:$0xff]
  %v63 = vld [vmem:[%s0 + $0x190] sm:$0xff]
  %v64 = vld [vmem:[%s0 + $0x198] sm:$0xff]
  %v65 = vld [vmem:[%s0 + $0x1a0] sm:$0xff]
  %v66 = vld [vmem:[%s0 + $0x1a8] sm:$0xff]
  %v67 = vld [vmem:[%s0 + $0x1b0] sm:$0xff]
  %v68 = vld [vmem:[%s0 + $0x1b8] sm:$0xff]
  %v69 = vld [vmem:[%s0 + $0x1c0] sm:$0xff]
  %v70 = vld [vmem:[%s0 + $0x1c8] sm:$0xff]
  %v71 = vld [vmem:[%s0 + $0x1d0] sm:$0xff]
  %v72 = vld [vmem:[%s0 + $0x1d8] sm:$0xff]
  %v73 = vld [vmem:[%s0 + $0x1e0] sm:$0xff]
  %v74 = vld [vmem:[%s0 + $0x1e8] sm:$0xff]
  %v75 = vld [vmem:[%s0 + $0x1f0] sm:$0xff]
  %v76 = vld [vmem:[%s0 + $0x1f8] sm:$0xff]
  %v77 = vadd.f32 %v13, %v14
  %v78 = vadd.f32 %v77, %v15
  %v79 = vadd.f32 %v78, %v16
  %v80 = vadd.f32 %v79, %v17
  %v81 = vadd.f32 %v80, %v18
  %v82 = vadd.f32 %v81, %v19
  %v83 = vadd.f32 %v82, %v20
  %v84 = vadd.f32 %v83, %v21
  %v85 = vadd.f32 %v84, %v22
  %v86 = vadd.f32 %v85, %v23
  %v87 = vadd.f32 %v86, %v24
  %v88 = vadd.f32 %v87, %v25
  %v89 = vadd.f32 %v88, %v26
  %v90 = vadd.f32 %v89, %v27
  %v91 = vadd.f32 %v90, %v28
  %v92 = vadd.f32 %v91, %v29
  %v93 = vadd.f32 %v92, %v30
  %v94 = vadd.f32 %v93, %v31
  %v95 = vadd.f32 %v94, %v32
  %v96 = vadd.f32 %v95, %v33
  %v97 = vadd.f32 %v96, %v34
  %v98 = vadd.f32 %v97, %v35
  %v99 = vadd.f32 %v98, %v36
  %v100 = vadd.f32 %v99, %v37
  %v101 = vadd.f32 %v100, %v38
  %v102 = vadd.f32 %v101, %v39
  %v103 = vadd.f32 %v102, %v40
  %v104 = vadd.f32 %v103, %v41
  %v105 = vadd.f32 %v104, %v42
  %v106 = vadd.f32 %v105, %v43
  %v107 = vadd.f32 %v106, %v44
  %v108 = vadd.f32 %v107, %v45
  %v109 = vadd.f32 %v108, %v46
  %v110 = vadd.f32 %v109, %v47
  %v111 = vadd.f32 %v110, %v48
  %v112 = vadd.f32 %v111, %v49
  %v113 = vadd.f32 %v112, %v50
  %v114 = vadd.f32 %v113, %v51
  %v115 = vadd.f32 %v114, %v52
  %v116 = vadd.f32 %v115, %v53
  %v117 = vadd.f32 %v116, %v54
  %v118 = vadd.f32 %v117, %v55
  %v119 = vadd.f32 %v118, %v56
  %v120 = vadd.f32 %v119, %v57
  %v121 = vadd.f32 %v120, %v58
  %v122 = vadd.f32 %v121, %v59
  %v123 = vadd.f32 %v122, %v60
  %v124 = vadd.f32 %v123, %v61
  %v125 = vadd.f32 %v124, %v62
  %v126 = vadd.f32 %v125, %v63
  %v127 = vadd.f32 %v126, %v64
  %v128 = vadd.f32 %v127, %v65
  %v129 = vadd.f32 %v128, %v66
  %v130 = vadd.f32 %v129, %v67
  %v131 = vadd.f32 %v130, %v68
  %v132 = vadd.f32 %v131, %v69
  %v133 = vadd.f32 %v132, %v70
  %v134 = vadd.f32 %v133, %v71
  %v135 = vadd.f32 %v134, %v72
  %v136 = vadd.f32 %v135, %v73
  %v137 = vadd.f32 %v136, %v74
  %v138 = vadd.f32 %v137, %v75
  %v139 = vadd.f32 %v138, %v76
  %v140 = vrot.slane %v139, 4
  %v141 = vadd.f32 %v139, %v140
  %v142 = vrot.slane %v141, 2
  %v143 = vadd.f32 %v141, %v142
  %v144 = vrot.slane %v143, 1
  %v145 = vadd.f32 %v143, %v144
  %v146 = vmul.f32 %v13, %v13
  %v147 = vmul.f32 %v14, %v14
  %v148 = vmul.f32 %v15, %v15
  %v149 = vmul.f32 %v16, %v16
  %v150 = vmul.f32 %v17, %v17
  %v151 = vmul.f32 %v18, %v18
  %v152 = vmul.f32 %v19, %v19
  %v153 = vmul.f32 %v20, %v20
  %v154 = vmul.f32 %v21, %v21
  %v155 = vmul.f32 %v22, %v22
  %v156 = vmul.f32 %v23, %v23
  %v157 = vmul.f32 %v24, %v24
  %v158 = vmul.f32 %v25, %v25
  %v159 = vmul.f32 %v26, %v26
  %v160 = vmul.f32 %v27, %v27
  %v161 = vmul.f32 %v28, %v28
  %v162 = vmul.f32 %v29, %v29
  %v163 = vmul.f32 %v30, %v30
  %v164 = vmul.f32 %v31, %v31
  %v165 = vmul.f32 %v32, %v32
  %v166 = vmul.f32 %v33, %v33
  %v167 = vmul.f32 %v34, %v34
  %v168 = vmul.f32 %v35, %v35
  %v169 = vmul.f32 %v36, %v36
  %v170 = vmul.f32 %v37, %v37
  %v171 = vmul.f32 %v38, %v38
  %v172 = vmul.f32 %v39, %v39
  %v173 = vmul.f32 %v40, %v40
  %v174 = vmul.f32 %v41, %v41
  %v175 = vmul.f32 %v42, %v42
  %v176 = vmul.f32 %v43, %v43
  %v177 = vmul.f32 %v44, %v44
  %v178 = vmul.f32 %v45, %v45
  %v179 = vmul.f32 %v46, %v46
  %v180 = vmul.f32 %v47, %v47
  %v181 = vmul.f32 %v48, %v48
  %v182 = vmul.f32 %v49, %v49
  %v183 = vmul.f32 %v50, %v50
  %v184 = vmul.f32 %v51, %v51
  %v185 = vmul.f32 %v52, %v52
  %v186 = vmul.f32 %v53, %v53
  %v187 = vmul.f32 %v54, %v54
  %v188 = vmul.f32 %v55, %v55
  %v189 = vmul.f32 %v56, %v56
  %v190 = vmul.f32 %v57, %v57
  %v191 = vmul.f32 %v58, %v58
  %v192 = vmul.f32 %v59, %v59
  %v193 = vmul.f32 %v60, %v60
  %v194 = vmul.f32 %v61, %v61
  %v195 = vmul.f32 %v62, %v62
  %v196 = vmul.f32 %v63, %v63
  %v197 = vmul.f32 %v64, %v64
  %v198 = vmul.f32 %v65, %v65
  %v199 = vmul.f32 %v66, %v66
  %v200 = vmul.f32 %v67, %v67
  %v201 = vmul.f32 %v68, %v68
  %v202 = vmul.f32 %v69, %v69
  %v203 = vmul.f32 %v70, %v70
  %v204 = vmul.f32 %v71, %v71
  %v205 = vmul.f32 %v72, %v72
  %v206 = vmul.f32 %v73, %v73
  %v207 = vmul.f32 %v74, %v74
  %v208 = vmul.f32 %v75, %v75
  %v209 = vmul.f32 %v76, %v76
  %v210 = vadd.f32 %v146, %v147
  %v211 = vadd.f32 %v210, %v148
  %v212 = vadd.f32 %v211, %v149
  %v213 = vadd.f32 %v212, %v150
  %v214 = vadd.f32 %v213, %v151
  %v215 = vadd.f32 %v214, %v152
  %v216 = vadd.f32 %v215, %v153
  %v217 = vadd.f32 %v216, %v154
  %v218 = vadd.f32 %v217, %v155
  %v219 = vadd.f32 %v218, %v156
  %v220 = vadd.f32 %v219, %v157
  %v221 = vadd.f32 %v220, %v158
  %v222 = vadd.f32 %v221, %v159
  %v223 = vadd.f32 %v222, %v160
  %v224 = vadd.f32 %v223, %v161
  %v225 = vadd.f32 %v224, %v162
  %v226 = vadd.f32 %v225, %v163
  %v227 = vadd.f32 %v226, %v164
  %v228 = vadd.f32 %v227, %v165
  %v229 = vadd.f32 %v228, %v166
  %v230 = vadd.f32 %v229, %v167
  %v231 = vadd.f32 %v230, %v168
  %v232 = vadd.f32 %v231, %v169
  %v233 = vadd.f32 %v232, %v170
  %v234 = vadd.f32 %v233, %v171
  %v235 = vadd.f32 %v234, %v172
  %v236 = vadd.f32 %v235, %v173
  %v237 = vadd.f32 %v236, %v174
  %v238 = vadd.f32 %v237, %v175
  %v239 = vadd.f32 %v238, %v176
  %v240 = vadd.f32 %v239, %v177
  %v241 = vadd.f32 %v240, %v178
  %v242 = vadd.f32 %v241, %v179
  %v243 = vadd.f32 %v242, %v180
  %v244 = vadd.f32 %v243, %v181
  %v245 = vadd.f32 %v244, %v182
  %v246 = vadd.f32 %v245, %v183
  %v247 = vadd.f32 %v246, %v184
  %v248 = vadd.f32 %v247, %v185
  %v249 = vadd.f32 %v248, %v186
  %v250 = vadd.f32 %v249, %v187
  %v251 = vadd.f32 %v250, %v188
  %v252 = vadd.f32 %v251, %v189
  %v253 = vadd.f32 %v252, %v190
  %v254 = vadd.f32 %v253, %v191
  %v255 = vadd.f32 %v254, %v192
  %v256 = vadd.f32 %v255, %v193
  %v257 = vadd.f32 %v256, %v194
  %v258 = vadd.f32 %v257, %v195
  %v259 = vadd.f32 %v258, %v196
  %v260 = vadd.f32 %v259, %v197
  %v261 = vadd.f32 %v260, %v198
  %v262 = vadd.f32 %v261, %v199
  %v263 = vadd.f32 %v262, %v200
  %v264 = vadd.f32 %v263, %v201
  %v265 = vadd.f32 %v264, %v202
  %v266 = vadd.f32 %v265, %v203
  %v267 = vadd.f32 %v266, %v204
  %v268 = vadd.f32 %v267, %v205
  %v269 = vadd.f32 %v268, %v206
  %v270 = vadd.f32 %v269, %v207
  %v271 = vadd.f32 %v270, %v208
  %v272 = vadd.f32 %v271, %v209
  %v273 = vrot.slane %v272, 4
  %v274 = vadd.f32 %v272, %v273
  %v275 = vrot.slane %v274, 2
  %v276 = vadd.f32 %v274, %v275
  %v277 = vrot.slane %v276, 1
  %v278 = vadd.f32 %v276, %v277
  %v279 = vld [vmem:[%s1] sm:$0x3]
  %vm280 = vcmask 1040384
  %v281 = vsel %vm280, %v145, %v278
  %v282 = vadd.f32 %v279, %v281
  %283 = vst [vmem:[%s1] sm:$0x3] %v282
  // Predicated region
  $region10: #{_lambda_.53} parent=0 // pred_check
    _
  $region11: #{_lambda_.53} parent=0 // pred_check_branch
    %285 = sbr.rel (0) target = $region13
  $region12: #{_lambda_.53} parent=0 // pred_region
    _
  $region13: #{_lambda_.53} parent=0 // pred_fallthru
    _
  // Predicated region
  $region14: #{_lambda_.53} parent=0 // pred_check
    _
  $region15: #{_lambda_.53} parent=0 // pred_check_branch
    %287 = sbr.rel (0) target = $region17
  $region16: #{_lambda_.53} parent=0 // pred_region
    _
  $region17: #{_lambda_.53} parent=0 // pred_fallthru
    _

// kernel: _lambda_.54
$region0: #{_lambda_.54}
  #allocation0 [shape = 'u32[]', space=smem, size = 0x4, offset = 0x4, fixed_abs, tag = 'smem constant byte address 0x4 - core index']
  #allocation1 [shape = 'u32[72,128]{1,0:T(1,128)}', space=vmem, size = 0x9000, scoped, tag = 'internal scratch']
  %s0 = inlined_call_operand.vmem [shape: f32[512,128], index: 0, kind: input, shape index: {}]
  %s1 = inlined_call_operand.vmem [shape: f32[1,128], index: 1, kind: input, shape index: {}]
  %s2 = inlined_call_operand.vmem [shape: f32[1,128], index: 2, kind: input, shape index: {}]
  %s3 = inlined_call_operand.vmem [shape: f32[512,128], index: 3, kind: output, shape index: {}]
  %s4 = sld [smem:[#allocation0]]
  $region22: #{_lambda_.54} parent=0
    _
  %s6 = ssub.s32 1, %s4
  %s7 = scalar_select 0, %s6, %s4
  // Predicated region
  $region2: #{_lambda_.54} parent=0 // pred_check
    _
  $region3: #{_lambda_.54} parent=0 // pred_check_branch
    %9 = sbr.rel (0) target = $region5
  $region4: #{_lambda_.54} parent=0 // pred_region
    _
  $region5: #{_lambda_.54} parent=0 // pred_fallthru
    _
  // Predicated region
  $region6: #{_lambda_.54} parent=0 // pred_check
    _
  $region7: #{_lambda_.54} parent=0 // pred_check_branch
    %11 = sbr.rel (0) target = $region9
  $region8: #{_lambda_.54} parent=0 // pred_region
    _
  $region9: #{_lambda_.54} parent=0 // pred_fallthru
    _
  // Predicated region
  $region10: #{_lambda_.54} parent=0 // pred_check
    _
  $region11: #{_lambda_.54} parent=0 // pred_check_branch
    %13 = sbr.rel (0) target = $region13
  $region12: #{_lambda_.54} parent=0 // pred_region
    _
  $region13: #{_lambda_.54} parent=0 // pred_fallthru
    _
  %v14 = vld [vmem:[%s0] sm:$0xff]
  %v15 = vld [vmem:[%s0 + $0x8] sm:$0xff]
  %v16 = vld [vmem:[%s0 + $0x10] sm:$0xff]
  %v17 = vld [vmem:[%s0 + $0x18] sm:$0xff]
  %v18 = vld [vmem:[%s0 + $0x20] sm:$0xff]
  %v19 = vld [vmem:[%s0 + $0x28] sm:$0xff]
  %v20 = vld [vmem:[%s0 + $0x30] sm:$0xff]
  %v21 = vld [vmem:[%s0 + $0x38] sm:$0xff]
  %v22 = vld [vmem:[%s0 + $0x40] sm:$0xff]
  %v23 = vld [vmem:[%s0 + $0x48] sm:$0xff]
  %v24 = vld [vmem:[%s0 + $0x50] sm:$0xff]
  %v25 = vld [vmem:[%s0 + $0x58] sm:$0xff]
  %v26 = vld [vmem:[%s0 + $0x60] sm:$0xff]
  %v27 = vld [vmem:[%s0 + $0x68] sm:$0xff]
  %v28 = vld [vmem:[%s0 + $0x70] sm:$0xff]
  %v29 = vld [vmem:[%s0 + $0x78] sm:$0xff]
  %v30 = vld [vmem:[%s0 + $0x80] sm:$0xff]
  %v31 = vld [vmem:[%s0 + $0x88] sm:$0xff]
  %v32 = vld [vmem:[%s0 + $0x90] sm:$0xff]
  %v33 = vld [vmem:[%s0 + $0x98] sm:$0xff]
  %v34 = vld [vmem:[%s0 + $0xa0] sm:$0xff]
  %v35 = vld [vmem:[%s0 + $0xa8] sm:$0xff]
  %v36 = vld [vmem:[%s0 + $0xb0] sm:$0xff]
  %v37 = vld [vmem:[%s0 + $0xb8] sm:$0xff]
  %v38 = vld [vmem:[%s0 + $0xc0] sm:$0xff]
  %v39 = vld [vmem:[%s0 + $0xc8] sm:$0xff]
  %v40 = vld [vmem:[%s0 + $0xd0] sm:$0xff]
  %v41 = vld [vmem:[%s0 + $0xd8] sm:$0xff]
  %v42 = vld [vmem:[%s0 + $0xe0] sm:$0xff]
  %v43 = vld [vmem:[%s0 + $0xe8] sm:$0xff]
  %v44 = vld [vmem:[%s0 + $0xf0] sm:$0xff]
  %v45 = vld [vmem:[%s0 + $0xf8] sm:$0xff]
  %v46 = vld [vmem:[%s0 + $0x100] sm:$0xff]
  %v47 = vld [vmem:[%s0 + $0x108] sm:$0xff]
  %v48 = vld [vmem:[%s0 + $0x110] sm:$0xff]
  %v49 = vld [vmem:[%s0 + $0x118] sm:$0xff]
  %v50 = vld [vmem:[%s0 + $0x120] sm:$0xff]
  %v51 = vld [vmem:[%s0 + $0x128] sm:$0xff]
  %v52 = vld [vmem:[%s0 + $0x130] sm:$0xff]
  %v53 = vld [vmem:[%s0 + $0x138] sm:$0xff]
  %v54 = vld [vmem:[%s0 + $0x140] sm:$0xff]
  %v55 = vld [vmem:[%s0 + $0x148] sm:$0xff]
  %v56 = vld [vmem:[%s0 + $0x150] sm:$0xff]
  %v57 = vld [vmem:[%s0 + $0x158] sm:$0xff]
  %v58 = vld [vmem:[%s0 + $0x160] sm:$0xff]
  %v59 = vld [vmem:[%s0 + $0x168] sm:$0xff]
  %v60 = vld [vmem:[%s0 + $0x170] sm:$0xff]
  %v61 = vld [vmem:[%s0 + $0x178] sm:$0xff]
  %v62 = vld [vmem:[%s0 + $0x180] sm:$0xff]
  %v63 = vld [vmem:[%s0 + $0x188] sm:$0xff]
  %v64 = vld [vmem:[%s0 + $0x190] sm:$0xff]
  %v65 = vld [vmem:[%s0 + $0x198] sm:$0xff]
  %v66 = vld [vmem:[%s0 + $0x1a0] sm:$0xff]
  %v67 = vld [vmem:[%s0 + $0x1a8] sm:$0xff]
  %v68 = vld [vmem:[%s0 + $0x1b0] sm:$0xff]
  %v69 = vld [vmem:[%s0 + $0x1b8] sm:$0xff]
  %v70 = vld [vmem:[%s0 + $0x1c0] sm:$0xff]
  %v71 = vld [vmem:[%s0 + $0x1c8] sm:$0xff]
  %v72 = vld [vmem:[%s0 + $0x1d0] sm:$0xff]
  %v73 = vld [vmem:[%s0 + $0x1d8] sm:$0xff]
  %v74 = vld [vmem:[%s0 + $0x1e0] sm:$0xff]
  %v75 = vld [vmem:[%s0 + $0x1e8] sm:$0xff]
  %v76 = vld [vmem:[%s0 + $0x1f0] sm:$0xff]
  %v77 = vld [vmem:[%s0 + $0x1f8] sm:$0xff]
  %v78 = vld [vmem:[%s1] sm:$0x1]
  %v80 = vperm.slane %v78, 0
  %v82 = vmul.f32 %v14, %v80
  %v83 = vmul.f32 %v15, %v80
  %v84 = vmul.f32 %v16, %v80
  %v85 = vmul.f32 %v17, %v80
  %v86 = vmul.f32 %v18, %v80
  %v87 = vmul.f32 %v19, %v80
  %v88 = vmul.f32 %v20, %v80
  %v89 = vmul.f32 %v21, %v80
  %v90 = vmul.f32 %v22, %v80
  %v91 = vmul.f32 %v23, %v80
  %v92 = vmul.f32 %v24, %v80
  %v93 = vmul.f32 %v25, %v80
  %v94 = vmul.f32 %v26, %v80
  %v95 = vmul.f32 %v27, %v80
  %v96 = vmul.f32 %v28, %v80
  %v97 = vmul.f32 %v29, %v80
  %v98 = vmul.f32 %v30, %v80
  %v99 = vmul.f32 %v31, %v80
  %v100 = vmul.f32 %v32, %v80
  %v101 = vmul.f32 %v33, %v80
  %v102 = vmul.f32 %v34, %v80
  %v103 = vmul.f32 %v35, %v80
  %v104 = vmul.f32 %v36, %v80
  %v105 = vmul.f32 %v37, %v80
  %v106 = vmul.f32 %v38, %v80
  %v107 = vmul.f32 %v39, %v80
  %v108 = vmul.f32 %v40, %v80
  %v109 = vmul.f32 %v41, %v80
  %v110 = vmul.f32 %v42, %v80
  %v111 = vmul.f32 %v43, %v80
  %v112 = vmul.f32 %v44, %v80
  %v113 = vmul.f32 %v45, %v80
  %v114 = vmul.f32 %v46, %v80
  %v115 = vmul.f32 %v47, %v80
  %v116 = vmul.f32 %v48, %v80
  %v117 = vmul.f32 %v49, %v80
  %v118 = vmul.f32 %v50, %v80
  %v119 = vmul.f32 %v51, %v80
  %v120 = vmul.f32 %v52, %v80
  %v121 = vmul.f32 %v53, %v80
  %v122 = vmul.f32 %v54, %v80
  %v123 = vmul.f32 %v55, %v80
  %v124 = vmul.f32 %v56, %v80
  %v125 = vmul.f32 %v57, %v80
  %v126 = vmul.f32 %v58, %v80
  %v127 = vmul.f32 %v59, %v80
  %v128 = vmul.f32 %v60, %v80
  %v129 = vmul.f32 %v61, %v80
  %v130 = vmul.f32 %v62, %v80
  %v131 = vmul.f32 %v63, %v80
  %v132 = vmul.f32 %v64, %v80
  %v133 = vmul.f32 %v65, %v80
  %v134 = vmul.f32 %v66, %v80
  %v135 = vmul.f32 %v67, %v80
  %v136 = vmul.f32 %v68, %v80
  %v137 = vmul.f32 %v69, %v80
  %v138 = vmul.f32 %v70, %v80
  %v139 = vmul.f32 %v71, %v80
  %v140 = vmul.f32 %v72, %v80
  %v141 = vmul.f32 %v73, %v80
  %v142 = vmul.f32 %v74, %v80
  %v143 = vmul.f32 %v75, %v80
  %v144 = vmul.f32 %v76, %v80
  %v145 = vmul.f32 %v77, %v80
  %v146 = vld [vmem:[%s2] sm:$0x1]
  %v148 = vperm.slane %v146, 0
  %v150 = vadd.f32 %v82, %v148
  %v151 = vadd.f32 %v83, %v148
  %v152 = vadd.f32 %v84, %v148
  %v153 = vadd.f32 %v85, %v148
  %v154 = vadd.f32 %v86, %v148
  %v155 = vadd.f32 %v87, %v148
  %v156 = vadd.f32 %v88, %v148
  %v157 = vadd.f32 %v89, %v148
  %v158 = vadd.f32 %v90, %v148
  %v159 = vadd.f32 %v91, %v148
  %v160 = vadd.f32 %v92, %v148
  %v161 = vadd.f32 %v93, %v148
  %v162 = vadd.f32 %v94, %v148
  %v163 = vadd.f32 %v95, %v148
  %v164 = vadd.f32 %v96, %v148
  %v165 = vadd.f32 %v97, %v148
  %v166 = vadd.f32 %v98, %v148
  %v167 = vadd.f32 %v99, %v148
  %v168 = vadd.f32 %v100, %v148
  %v169 = vadd.f32 %v101, %v148
  %v170 = vadd.f32 %v102, %v148
  %v171 = vadd.f32 %v103, %v148
  %v172 = vadd.f32 %v104, %v148
  %v173 = vadd.f32 %v105, %v148
  %v174 = vadd.f32 %v106, %v148
  %v175 = vadd.f32 %v107, %v148
  %v176 = vadd.f32 %v108, %v148
  %v177 = vadd.f32 %v109, %v148
  %v178 = vadd.f32 %v110, %v148
  %v179 = vadd.f32 %v111, %v148
  %v180 = vadd.f32 %v112, %v148
  %v181 = vadd.f32 %v113, %v148
  %v182 = vadd.f32 %v114, %v148
  %v183 = vadd.f32 %v115, %v148
  %v184 = vadd.f32 %v116, %v148
  %v185 = vadd.f32 %v117, %v148
  %v186 = vadd.f32 %v118, %v148
  %v187 = vadd.f32 %v119, %v148
  %v188 = vadd.f32 %v120, %v148
  %v189 = vadd.f32 %v121, %v148
  %v190 = vadd.f32 %v122, %v148
  %v191 = vadd.f32 %v123, %v148
  %v192 = vadd.f32 %v124, %v148
  %v193 = vadd.f32 %v125, %v148
  %v194 = vadd.f32 %v126, %v148
  %v195 = vadd.f32 %v127, %v148
  %v196 = vadd.f32 %v128, %v148
  %v197 = vadd.f32 %v129, %v148
  %v198 = vadd.f32 %v130, %v148
  %v199 = vadd.f32 %v131, %v148
  %v200 = vadd.f32 %v132, %v148
  %v201 = vadd.f32 %v133, %v148
  %v202 = vadd.f32 %v134, %v148
  %v203 = vadd.f32 %v135, %v148
  %v204 = vadd.f32 %v136, %v148
  %v205 = vadd.f32 %v137, %v148
  %v206 = vadd.f32 %v138, %v148
  %v207 = vadd.f32 %v139, %v148
  %v208 = vadd.f32 %v140, %v148
  %v209 = vadd.f32 %v141, %v148
  %v210 = vadd.f32 %v142, %v148
  %v211 = vadd.f32 %v143, %v148
  %v212 = vadd.f32 %v144, %v148
  %v213 = vadd.f32 %v145, %v148
  %214 = vst [vmem:[%s3] sm:$0xff] %v150
  %215 = vst [vmem:[%s3 + $0x8] sm:$0xff] %v151
  %216 = vst [vmem:[%s3 + $0x10] sm:$0xff] %v152
  %217 = vst [vmem:[%s3 + $0x18] sm:$0xff] %v153
  %218 = vst [vmem:[%s3 + $0x20] sm:$0xff] %v154
  %219 = vst [vmem:[%s3 + $0x28] sm:$0xff] %v155
  %220 = vst [vmem:[%s3 + $0x30] sm:$0xff] %v156
  %221 = vst [vmem:[%s3 + $0x38] sm:$0xff] %v157
  %222 = vst [vmem:[%s3 + $0x40] sm:$0xff] %v158
  %223 = vst [vmem:[%s3 + $0x48] sm:$0xff] %v159
  %224 = vst [vmem:[%s3 + $0x50] sm:$0xff] %v160
  %225 = vst [vmem:[%s3 + $0x58] sm:$0xff] %v161
  %226 = vst [vmem:[%s3 + $0x60] sm:$0xff] %v162
  %227 = vst [vmem:[%s3 + $0x68] sm:$0xff] %v163
  %228 = vst [vmem:[%s3 + $0x70] sm:$0xff] %v164
  %229 = vst [vmem:[%s3 + $0x78] sm:$0xff] %v165
  %230 = vst [vmem:[%s3 + $0x80] sm:$0xff] %v166
  %231 = vst [vmem:[%s3 + $0x88] sm:$0xff] %v167
  %232 = vst [vmem:[%s3 + $0x90] sm:$0xff] %v168
  %233 = vst [vmem:[%s3 + $0x98] sm:$0xff] %v169
  %234 = vst [vmem:[%s3 + $0xa0] sm:$0xff] %v170
  %235 = vst [vmem:[%s3 + $0xa8] sm:$0xff] %v171
  %236 = vst [vmem:[%s3 + $0xb0] sm:$0xff] %v172
  %237 = vst [vmem:[%s3 + $0xb8] sm:$0xff] %v173
  %238 = vst [vmem:[%s3 + $0xc0] sm:$0xff] %v174
  %239 = vst [vmem:[%s3 + $0xc8] sm:$0xff] %v175
  %240 = vst [vmem:[%s3 + $0xd0] sm:$0xff] %v176
  %241 = vst [vmem:[%s3 + $0xd8] sm:$0xff] %v177
  %242 = vst [vmem:[%s3 + $0xe0] sm:$0xff] %v178
  %243 = vst [vmem:[%s3 + $0xe8] sm:$0xff] %v179
  %244 = vst [vmem:[%s3 + $0xf0] sm:$0xff] %v180
  %245 = vst [vmem:[%s3 + $0xf8] sm:$0xff] %v181
  %246 = vst [vmem:[%s3 + $0x100] sm:$0xff] %v182
  %247 = vst [vmem:[%s3 + $0x108] sm:$0xff] %v183
  %248 = vst [vmem:[%s3 + $0x110] sm:$0xff] %v184
  %249 = vst [vmem:[%s3 + $0x118] sm:$0xff] %v185
  %250 = vst [vmem:[%s3 + $0x120] sm:$0xff] %v186
  %251 = vst [vmem:[%s3 + $0x128] sm:$0xff] %v187
  %252 = vst [vmem:[%s3 + $0x130] sm:$0xff] %v188
  %253 = vst [vmem:[%s3 + $0x138] sm:$0xff] %v189
  %254 = vst [vmem:[%s3 + $0x140] sm:$0xff] %v190
  %255 = vst [vmem:[%s3 + $0x148] sm:$0xff] %v191
  %256 = vst [vmem:[%s3 + $0x150] sm:$0xff] %v192
  %257 = vst [vmem:[%s3 + $0x158] sm:$0xff] %v193
  %258 = vst [vmem:[%s3 + $0x160] sm:$0xff] %v194
  %259 = vst [vmem:[%s3 + $0x168] sm:$0xff] %v195
  %260 = vst [vmem:[%s3 + $0x170] sm:$0xff] %v196
  %261 = vst [vmem:[%s3 + $0x178] sm:$0xff] %v197
  %262 = vst [vmem:[%s3 + $0x180] sm:$0xff] %v198
  %263 = vst [vmem:[%s3 + $0x188] sm:$0xff] %v199
  %264 = vst [vmem:[%s3 + $0x190] sm:$0xff] %v200
  %265 = vst [vmem:[%s3 + $0x198] sm:$0xff] %v201
  %266 = vst [vmem:[%s3 + $0x1a0] sm:$0xff] %v202
  %267 = vst [vmem:[%s3 + $0x1a8] sm:$0xff] %v203
  %268 = vst [vmem:[%s3 + $0x1b0] sm:$0xff] %v204
  %269 = vst [vmem:[%s3 + $0x1b8] sm:$0xff] %v205
  %270 = vst [vmem:[%s3 + $0x1c0] sm:$0xff] %v206
  %271 = vst [vmem:[%s3 + $0x1c8] sm:$0xff] %v207
  %272 = vst [vmem:[%s3 + $0x1d0] sm:$0xff] %v208
  %273 = vst [vmem:[%s3 + $0x1d8] sm:$0xff] %v209
  %274 = vst [vmem:[%s3 + $0x1e0] sm:$0xff] %v210
  %275 = vst [vmem:[%s3 + $0x1e8] sm:$0xff] %v211
  %276 = vst [vmem:[%s3 + $0x1f0] sm:$0xff] %v212
  %277 = vst [vmem:[%s3 + $0x1f8] sm:$0xff] %v213
  // Predicated region
  $region14: #{_lambda_.54} parent=0 // pred_check
    _
  $region15: #{_lambda_.54} parent=0 // pred_check_branch
    %279 = sbr.rel (0) target = $region17
  $region16: #{_lambda_.54} parent=0 // pred_region
    _
  $region17: #{_lambda_.54} parent=0 // pred_fallthru
    _
  // Predicated region
  $region18: #{_lambda_.54} parent=0 // pred_check
    _
  $region19: #{_lambda_.54} parent=0 // pred_check_branch
    %281 = sbr.rel (0) target = $region21
  $region20: #{_lambda_.54} parent=0 // pred_region
    _
  $region21: #{_lambda_.54} parent=0 // pred_fallthru
    _

// kernel: _lambda_.55
$region0: #{_lambda_.55}
  #allocation0 [shape = 'u32[]', space=smem, size = 0x4, offset = 0x4, fixed_abs, tag = 'smem constant byte address 0x4 - core index']
  #allocation1 [shape = 'u32[72,128]{1,0:T(1,128)}', space=vmem, size = 0x9000, scoped, tag = 'internal scratch']
  %s0 = inlined_call_operand.vmem [shape: bf16[512,128], index: 0, kind: input, shape index: {}]
  %s1 = inlined_call_operand.vmem [shape: bf16[128,256], index: 1, kind: input, shape index: {}]
  %s2 = inlined_call_operand.vmem [shape: f32[1,256], index: 2, kind: input, shape index: {}]
  %s3 = inlined_call_operand.vmem [shape: f32[512,256], index: 3, kind: output, shape index: {}]
  %s4 = sld [smem:[#allocation0]]
  $region45: #{_lambda_.55} parent=0
    _
  %s6 = ssub.s32 1, %s4
  %s7 = scalar_select 0, %s6, %s4
  loop: start=0, step=1, limit=4
  $region2: #{_lambda_.55} parent=0 // loop_pre_header
    _
  $region3: #{_lambda_.55} parent=0 // loop_header
    %s9 = sphi 0, %s13
    %p10 = scmp.ge.s32.totalorder %s9, 4
    %s16 = sphi 0, %s28
    %s17 = sphi 0, %s24
    %s18 = sphi 0, %s16
    %s19 = sphi 0, %s17
    %s20 = sphi 0, %s18
    %s21 = sphi 0, %s19
    %s31 = sphi 0, %s33
    %s34 = sphi 0, %s31
    %s35 = sphi 0, %s34
    %s51 = sphi 0, %s35
    %s57 = sphi 0, %s59
    %s60 = sphi 0, %s57
    %s61 = sphi 0, %s60
    %s77 = sphi 0, %s61
    %s83 = sphi 0, %s85
    %s86 = sphi 0, %s83
    %s87 = sphi 0, %s86
    %s103 = sphi 0, %s87
    %s111 = sphi 0, %s113
    %s114 = sphi 0, %s111
    %s115 = sphi 0, %s114
    %s131 = sphi 0, %s115
  $region4: #{_lambda_.55} parent=0 // loop_header_branch
    %12 = sbr.rel (%p10) target = $region8
  $region5: #{_lambda_.55} parent=0 // loop_body
    %s14 = ssub.s32 %s9, 1
    %s15 = ssub.s32 %s9, 2
    %s22 = sadd.s32 1, %s17
    %p23 = scmp.ge.s32.totalorder %s22, 1
    %s24 = scalar_select %p23, 0, %s22
    %s25 = sadd.s32 1, %s16
    %s26 = scalar_select %p23, %s25, %s16
    %p27 = scmp.ge.s32.totalorder %s26, 2
    %s28 = scalar_select %p27, 0, %s26
    %s29 = ssub.s32 %s16, %s28
    %p30 = scmp.eq.s32.totalorder %s29, 0
    %s32 = sadd.s32 %s31, 1
    %s33 = scalar_select %p30, %s31, %s32
    %p36 = pneg %p30
    %p37 = scmp.eq.s32.totalorder %s9, 1
    %p38 = por %p36, %p37
    %p39 = scmp.ne.s32.totalorder %s31, %s34
    %p40 = scmp.eq.s32.totalorder %s9, 0
    %p41 = por %p39, %p40
    %p42 = scmp.ne.s32.totalorder %s31, %s34
    %p43 = scmp.eq.s32.totalorder %s14, 1
    %p44 = por %p42, %p43
    %p45 = scmp.ne.s32.totalorder %s34, %s35
    %p46 = scmp.eq.s32.totalorder %s14, 0
    %p47 = por %p45, %p46
    %p48 = scmp.ne.s32.totalorder %s34, %s35
    %p49 = scmp.eq.s32.totalorder %s15, 1
    %p50 = por %p48, %p49
    %p52 = scmp.ne.s32.totalorder %s35, %s51
    %p53 = scmp.eq.s32.totalorder %s15, 0
    %p54 = por %p52, %p53
    %s55 = ssub.s32 %s17, %s24
    %p56 = scmp.eq.s32.totalorder %s55, 0
    %s58 = sadd.s32 %s57, 1
    %s59 = scalar_select %p56, %s57, %s58
    %p62 = pneg %p56
    %p63 = scmp.eq.s32.totalorder %s9, 1
    %p64 = por %p62, %p63
    %p65 = scmp.ne.s32.totalorder %s57, %s60
    %p66 = scmp.eq.s32.totalorder %s9, 0
    %p67 = por %p65, %p66
    %p68 = scmp.ne.s32.totalorder %s57, %s60
    %p69 = scmp.eq.s32.totalorder %s14, 1
    %p70 = por %p68, %p69
    %p71 = scmp.ne.s32.totalorder %s60, %s61
    %p72 = scmp.eq.s32.totalorder %s14, 0
    %p73 = por %p71, %p72
    %p74 = scmp.ne.s32.totalorder %s60, %s61
    %p75 = scmp.eq.s32.totalorder %s15, 1
    %p76 = por %p74, %p75
    %p78 = scmp.ne.s32.totalorder %s61, %s77
    %p79 = scmp.eq.s32.totalorder %s15, 0
    %p80 = por %p78, %p79
    %s81 = ssub.s32 %s17, %s24
    %p82 = scmp.eq.s32.totalorder %s81, 0
    %s84 = sadd.s32 %s83, 1
    %s85 = scalar_select %p82, %s83, %s84
    %p88 = pneg %p82
    %p89 = scmp.eq.s32.totalorder %s9, 1
    %p90 = por %p88, %p89
    %p91 = scmp.ne.s32.totalorder %s83, %s86
    %p92 = scmp.eq.s32.totalorder %s9, 0
    %p93 = por %p91, %p92
    %p94 = scmp.ne.s32.totalorder %s83, %s86
    %p95 = scmp.eq.s32.totalorder %s14, 1
    %p96 = por %p94, %p95
    %p97 = scmp.ne.s32.totalorder %s86, %s87
    %p98 = scmp.eq.s32.totalorder %s14, 0
    %p99 = por %p97, %p98
    %p100 = scmp.ne.s32.totalorder %s86, %s87
    %p101 = scmp.eq.s32.totalorder %s15, 1
    %p102 = por %p100, %p101
    %p104 = scmp.ne.s32.totalorder %s87, %s103
    %p105 = scmp.eq.s32.totalorder %s15, 0
    %p106 = por %p104, %p105
    %s107 = ssub.s32 %s16, %s28
    %s108 = ssub.s32 %s17, %s24
    %s109 = sor.u32 %s107, %s108
    %p110 = scmp.eq.s32.totalorder %s109, 0
    %s112 = sadd.s32 %s111, 1
    %s113 = scalar_select %p110, %s111, %s112
    %p116 = pneg %p110
    %p117 = scmp.eq.s32.totalorder %s9, 1
    %p118 = por %p116, %p117
    %p119 = scmp.ne.s32.totalorder %s111, %s114
    %p120 = scmp.eq.s32.totalorder %s9, 0
    %p121 = por %p119, %p120
    %p122 = scmp.ne.s32.totalorder %s111, %s114
    %p123 = scmp.eq.s32.totalorder %s14, 1
    %p124 = por %p122, %p123
    %p125 = scmp.ne.s32.totalorder %s114, %s115
    %p126 = scmp.eq.s32.totalorder %s14, 0
    %p127 = por %p125, %p126
    %p128 = scmp.ne.s32.totalorder %s114, %s115
    %p129 = scmp.eq.s32.totalorder %s15, 1
    %p130 = por %p128, %p129
    %p132 = scmp.ne.s32.totalorder %s115, %s131
    %p133 = scmp.eq.s32.totalorder %s15, 0
    %p134 = por %p132, %p133
    %p135 = scmp.le.s32.totalorder 1, %s9
    %p136 = scmp.lt.s32.totalorder %s9, 3
    %p137 = pnand %p135, %p136
    %p138 = pneg %p137
    // Predicated region
    $region9: #{_lambda_.55} parent=5 // pred_check
      _
    $region10: #{_lambda_.55} parent=5 // pred_check_branch
      %140 = sbr.rel (%p137) target = $region12
    $region11: #{_lambda_.55} parent=5 // pred_region
      %s141 = ssub.s32 %s9, 1
      // Predicated region
      $region13: #{_lambda_.55} parent=11 // pred_check
        %p142 = pneg %p73
      $region14: #{_lambda_.55} parent=11 // pred_check_branch
        %144 = sbr.rel (%p142) target = $region16
      $region15: #{_lambda_.55} parent=11 // pred_region
        %s145 = smul.u32 2, %s19
        %p146 = scmp.lt.s32.totalorder %s145, 1
        %s147 = scalar_select %p146, %s145, 1
        %s148 = smul.addr %s147, 4
        %s149 = scalar_lea.vmem %s1, %s148
        %s150 = smul.u32 2, %s19
      $region16: #{_lambda_.55} parent=11 // pred_fallthru
        _
      // Predicated region
      $region17: #{_lambda_.55} parent=11 // pred_check
        %p151 = pneg %p99
      $region18: #{_lambda_.55} parent=11 // pred_check_branch
        %153 = sbr.rel (%p151) target = $region20
      $region19: #{_lambda_.55} parent=11 // pred_region
        %s154 = smul.u32 2, %s19
        %p155 = scmp.lt.s32.totalorder %s154, 1
        %s156 = scalar_select %p155, %s154, 1
        %s157 = scalar_lea.vmem %s2, %s156
        %s158 = smul.u32 2, %s19
      $region20: #{_lambda_.55} parent=11 // pred_fallthru
        _
    $region12: #{_lambda_.55} parent=5 // pred_fallthru
      _
    %p159 = scmp.lt.s32.totalorder %s9, 2
    // Predicated region
    $region21: #{_lambda_.55} parent=5 // pred_check
      %p160 = pneg %p159
    $region22: #{_lambda_.55} parent=5 // pred_check_branch
      %162 = sbr.rel (%p160) target = $region24
    $region23: #{_lambda_.55} parent=5 // pred_region
      // Predicated region
      $region25: #{_lambda_.55} parent=23 // pred_check
        %p163 = pneg %p41
      $region26: #{_lambda_.55} parent=23 // pred_check_branch
        %165 = sbr.rel (%p163) target = $region28
      $region27: #{_lambda_.55} parent=23 // pred_region
        %s166 = smul.u32 32, %s16
        %p167 = scmp.lt.s32.totalorder %s166, 63
        %s168 = scalar_select %p167, %s166, 63
        %s169 = smul.addr %s168, 4
        %s170 = scalar_lea.vmem %s0, %s169
        %s171 = smul.u32 32, %s16
      $region28: #{_lambda_.55} parent=23 // pred_fallthru
        _
    $region24: #{_lambda_.55} parent=5 // pred_fallthru
      _
    %p172 = scmp.le.s32.totalorder 1, %s9
    %p173 = scmp.lt.s32.totalorder %s9, 3
    %p174 = pnand %p172, %p173
    %p175 = pneg %p174
    // Predicated region
    $region29: #{_lambda_.55} parent=5 // pred_check
      _
    $region30: #{_lambda_.55} parent=5 // pred_check_branch
      %177 = sbr.rel (%p174) target = $region32
    $region31: #{_lambda_.55} parent=5 // pred_region
      %s178 = ssub.s32 %s9, 1
      %s179 = smul.u32 32, %s18
      %p180 = scmp.lt.s32.totalorder %s179, 63
      %s181 = scalar_select %p180, %s179, 63
      %s182 = smul.addr %s181, 4
      %s183 = scalar_lea.vmem %s0, %s182
      %p184 = pneg %p47
      %p185 = pneg %p44
      %s186 = smul.u32 2, %s19
      %p187 = scmp.lt.s32.totalorder %s186, 1
      %s188 = scalar_select %p187, %s186, 1
      %s189 = smul.addr %s188, 4
      %s190 = scalar_lea.vmem %s1, %s189
      %p191 = pneg %p73
      %p192 = pneg %p70
      %s193 = smul.u32 2, %s19
      %p194 = scmp.lt.s32.totalorder %s193, 1
      %s195 = scalar_select %p194, %s193, 1
      %s196 = scalar_lea.vmem %s2, %s195
      %p197 = pneg %p99
      %p198 = pneg %p96
      %p199 = pneg %p127
      %p200 = pneg %p124
      %s201 = smul.u32 32, %s18
      %s202 = smul.u32 2, %s19
      %p203 = scmp.lt.s32.totalorder %s201, 63
      %s204 = scalar_select %p203, %s201, 63
      %p205 = scmp.lt.s32.totalorder %s202, 1
      %s206 = scalar_select %p205, %s202, 1
      %s207 = smul.addr %s204, 2
      %s208 = sadd.s32 %s206, %s207
      %s209 = smul.addr %s208, 8
      %s210 = scalar_lea.vmem %s3, %s209
      %s211 = smul.u32 32, %s18
      %p212 = scmp.lt.s32.totalorder %s211, 63
      %s213 = scalar_select %p212, %s211, 63
      %s214 = smul.addr %s213, 4
      %s215 = scalar_lea.vmem %s0, %s214
      %s216 = smul.u32 32, %s18
      %s217 = smul.u32 2, %s19
      %p218 = scmp.lt.s32.totalorder %s217, 1
      %s219 = scalar_select %p218, %s217, 1
      %s220 = smul.addr %s219, 4
      %s221 = scalar_lea.vmem %s1, %s220
      %s222 = smul.u32 2, %s19
      %s223 = smul.u32 2, %s19
      %p224 = scmp.lt.s32.totalorder %s223, 1
      %s225 = scalar_select %p224, %s223, 1
      %s226 = scalar_lea.vmem %s2, %s225
      %s227 = smul.u32 2, %s19
      %s228 = smul.u32 32, %s18
      %s229 = smul.u32 2, %s19
      %p230 = scmp.lt.s32.totalorder %s228, 63
      %s231 = scalar_select %p230, %s228, 63
      %p232 = scmp.lt.s32.totalorder %s229, 1
      %s233 = scalar_select %p232, %s229, 1
      %s234 = smul.addr %s231, 2
      %s235 = sadd.s32 %s233, %s234
      %s236 = smul.addr %s235, 8
      %s237 = scalar_lea.vmem %s3, %s236
      %s238 = smul.u32 32, %s18
      %s239 = smul.u32 2, %s19
      %v240 = vld [vmem:[%s215] sm:$0xf]
      %v241 = vld [vmem:[%s215 + $0x4] sm:$0xf]
      %v242 = vld [vmem:[%s215 + $0x8] sm:$0xf]
      %v243 = vld [vmem:[%s215 + $0xc] sm:$0xf]
      %v244 = vld [vmem:[%s215 + $0x10] sm:$0xf]
      %v245 = vld [vmem:[%s215 + $0x14] sm:$0xf]
      %v246 = vld [vmem:[%s215 + $0x18] sm:$0xf]
      %v247 = vld [vmem:[%s215 + $0x1c] sm:$0xf]
      %v248 = vld [vmem:[%s215 + $0x20] sm:$0xf]
      %v249 = vld [vmem:[%s215 + $0x24] sm:$0xf]
      %v250 = vld [vmem:[%s215 + $0x28] sm:$0xf]
      %v251 = vld [vmem:[%s215 + $0x2c] sm:$0xf]
      %v252 = vld [vmem:[%s215 + $0x30] sm:$0xf]
      %v253 = vld [vmem:[%s215 + $0x34] sm:$0xf]
      %v254 = vld [vmem:[%s215 + $0x38] sm:$0xf]
      %v255 = vld [vmem:[%s215 + $0x3c] sm:$0xf]
      %v256 = vld [vmem:[%s215 + $0x40] sm:$0xf]
      %v257 = vld [vmem:[%s215 + $0x44] sm:$0xf]
      %v258 = vld [vmem:[%s215 + $0x48] sm:$0xf]
      %v259 = vld [vmem:[%s215 + $0x4c] sm:$0xf]
      %v260 = vld [vmem:[%s215 + $0x50] sm:$0xf]
      %v261 = vld [vmem:[%s215 + $0x54] sm:$0xf]
      %v262 = vld [vmem:[%s215 + $0x58] sm:$0xf]
      %v263 = vld [vmem:[%s215 + $0x5c] sm:$0xf]
      %v264 = vld [vmem:[%s215 + $0x60] sm:$0xf]
      %v265 = vld [vmem:[%s215 + $0x64] sm:$0xf]
      %v266 = vld [vmem:[%s215 + $0x68] sm:$0xf]
      %v267 = vld [vmem:[%s215 + $0x6c] sm:$0xf]
      %v268 = vld [vmem:[%s215 + $0x70] sm:$0xf]
      %v269 = vld [vmem:[%s215 + $0x74] sm:$0xf]
      %v270 = vld [vmem:[%s215 + $0x78] sm:$0xf]
      %v271 = vld [vmem:[%s215 + $0x7c] sm:$0xf]
      %v272 = vld [vmem:[%s221] sm:$0xff]
      %v273 = vld [vmem:[%s221 + $0x8] sm:$0xff]
      %v274 = vld [vmem:[%s221 + $0x10] sm:$0xff]
      %v275 = vld [vmem:[%s221 + $0x18] sm:$0xff]
      %v276 = vld [vmem:[%s221 + $0x20] sm:$0xff]
      %v277 = vld [vmem:[%s221 + $0x28] sm:$0xff]
      %v278 = vld [vmem:[%s221 + $0x30] sm:$0xff]
      %v279 = vld [vmem:[%s221 + $0x38] sm:$0xff]
      %v280 = vld [vmem:[%s221 + $0x40] sm:$0xff]
      %v281 = vld [vmem:[%s221 + $0x48] sm:$0xff]
      %v282 = vld [vmem:[%s221 + $0x50] sm:$0xff]
      %v283 = vld [vmem:[%s221 + $0x58] sm:$0xff]
      %v284 = vld [vmem:[%s221 + $0x60] sm:$0xff]
      %v285 = vld [vmem:[%s221 + $0x68] sm:$0xff]
      %v286 = vld [vmem:[%s221 + $0x70] sm:$0xff]
      %v287 = vld [vmem:[%s221 + $0x78] sm:$0xff]
      %v288 = vld [vmem:[%s226] sm:$0x3]
      %v290 = vperm.slane %v288, 0
      %v291 = vperm.slane %v288, 1
      %v326 = vunpack.c.l.b16 %v240
      %v327 = vunpack.c.l.b16 %v241
      %v328 = vunpack.c.l.b16 %v242
      %v329 = vunpack.c.l.b16 %v243
      %v330 = vunpack.c.l.b16 %v244
      %v331 = vunpack.c.l.b16 %v245
      %v332 = vunpack.c.l.b16 %v246
      %v333 = vunpack.c.l.b16 %v247
      %v334 = vunpack.c.l.b16 %v248
      %v335 = vunpack.c.l.b16 %v249
      %v336 = vunpack.c.l.b16 %v250
      %v337 = vunpack.c.l.b16 %v251
      %v338 = vunpack.c.l.b16 %v252
      %v339 = vunpack.c.l.b16 %v253
      %v340 = vunpack.c.l.b16 %v254
      %v341 = vunpack.c.l.b16 %v255
      %v342 = vunpack.c.l.b16 %v256
      %v343 = vunpack.c.l.b16 %v257
      %v344 = vunpack.c.l.b16 %v258
      %v345 = vunpack.c.l.b16 %v259
      %v346 = vunpack.c.l.b16 %v260
      %v347 = vunpack.c.l.b16 %v261
      %v348 = vunpack.c.l.b16 %v262
      %v349 = vunpack.c.l.b16 %v263
      %v350 = vunpack.c.l.b16 %v264
      %v351 = vunpack.c.l.b16 %v265
      %v352 = vunpack.c.l.b16 %v266
      %v353 = vunpack.c.l.b16 %v267
      %v354 = vunpack.c.l.b16 %v268
      %v355 = vunpack.c.l.b16 %v269
      %v356 = vunpack.c.l.b16 %v270
      %v357 = vunpack.c.l.b16 %v271
      %v358 = vpack.c.b16 %v327, %v326
      %v359 = vpack.c.b16 %v329, %v328
      %v360 = vpack.c.b16 %v331, %v330
      %v361 = vpack.c.b16 %v333, %v332
      %v362 = vpack.c.b16 %v335, %v334
      %v363 = vpack.c.b16 %v337, %v336
      %v364 = vpack.c.b16 %v339, %v338
      %v365 = vpack.c.b16 %v341, %v340
      %v366 = vpack.c.b16 %v343, %v342
      %v367 = vpack.c.b16 %v345, %v344
      %v368 = vpack.c.b16 %v347, %v346
      %v369 = vpack.c.b16 %v349, %v348
      %v370 = vpack.c.b16 %v351, %v350
      %v371 = vpack.c.b16 %v353, %v352
      %v372 = vpack.c.b16 %v355, %v354
      %v373 = vpack.c.b16 %v357, %v356
      %v406 = vunpack.c.l.b16 %v272
      %v407 = vunpack.c.h.b16 %v272
      %v408 = vunpack.c.l.b16 %v273
      %v409 = vunpack.c.h.b16 %v273
      %v410 = vunpack.c.l.b16 %v274
      %v411 = vunpack.c.h.b16 %v274
      %v412 = vunpack.c.l.b16 %v275
      %v413 = vunpack.c.h.b16 %v275
      %v414 = vunpack.c.l.b16 %v276
      %v415 = vunpack.c.h.b16 %v276
      %v416 = vunpack.c.l.b16 %v277
      %v417 = vunpack.c.h.b16 %v277
      %v418 = vunpack.c.l.b16 %v278
      %v419 = vunpack.c.h.b16 %v278
      %v420 = vunpack.c.l.b16 %v279
      %v421 = vunpack.c.h.b16 %v279
      %v422 = vunpack.c.l.b16 %v280
      %v423 = vunpack.c.h.b16 %v280
      %v424 = vunpack.c.l.b16 %v281
      %v425 = vunpack.c.h.b16 %v281
      %v426 = vunpack.c.l.b16 %v282
      %v427 = vunpack.c.h.b16 %v282
      %v428 = vunpack.c.l.b16 %v283
      %v429 = vunpack.c.h.b16 %v283
      %v430 = vunpack.c.l.b16 %v284
      %v431 = vunpack.c.h.b16 %v284
      %v432 = vunpack.c.l.b16 %v285
      %v433 = vunpack.c.h.b16 %v285
      %v434 = vunpack.c.l.b16 %v286
      %v435 = vunpack.c.h.b16 %v286
      %v436 = vunpack.c.l.b16 %v287
      %v437 = vunpack.c.h.b16 %v287
      %v438 = vpack.c.b16 %v408, %v406
      %v439 = vpack.c.b16 %v409, %v407
      %v440 = vpack.c.b16 %v412, %v410
      %v441 = vpack.c.b16 %v413, %v411
      %v442 = vpack.c.b16 %v416, %v414
      %v443 = vpack.c.b16 %v417, %v415
      %v444 = vpack.c.b16 %v420, %v418
      %v445 = vpack.c.b16 %v421, %v419
      %v446 = vpack.c.b16 %v424, %v422
      %v447 = vpack.c.b16 %v425, %v423
      %v448 = vpack.c.b16 %v428, %v426
      %v449 = vpack.c.b16 %v429, %v427
      %v450 = vpack.c.b16 %v432, %v430
      %v451 = vpack.c.b16 %v433, %v431
      %v452 = vpack.c.b16 %v436, %v434
      %v453 = vpack.c.b16 %v437, %v435
      %470 = vmatpush.bf16.msra.mxu0 %v452
      %471 = vmatpush.bf16.msra.mxu0 %v450
      %472 = vmatpush.bf16.msra.mxu0 %v448
      %473 = vmatpush.bf16.msra.mxu0 %v446
      %474 = vmatpush.bf16.msra.mxu0 %v444
      %475 = vmatpush.bf16.msra.mxu0 %v442
      %476 = vmatpush.bf16.msra.mxu0 %v440
      %477 = vmatpush.bf16.msra.mxu0 %v438
      %478 = vmatmul.bf16.gmra.mxu0 %v358
      %v479 = vpop.f32.mrf.mxu0
      %v480 = vadd.f32 %v290, %v479
      %v481 = vpop.f32.mrf.mxu0
      %v482 = vadd.f32 %v290, %v481
      %483 = vmatmul.bf16.gmra.mxu0 %v359
      %v484 = vpop.f32.mrf.mxu0
      %v485 = vadd.f32 %v290, %v484
      %v486 = vpop.f32.mrf.mxu0
      %v487 = vadd.f32 %v290, %v486
      %488 = vmatmul.bf16.gmra.mxu0 %v360
      %v489 = vpop.f32.mrf.mxu0
      %v490 = vadd.f32 %v290, %v489
      %v491 = vpop.f32.mrf.mxu0
      %v492 = vadd.f32 %v290, %v491
      %493 = vmatmul.bf16.gmra.mxu0 %v361
      %v494 = vpop.f32.mrf.mxu0
      %v495 = vadd.f32 %v290, %v494
      %v496 = vpop.f32.mrf.mxu0
      %v497 = vadd.f32 %v290, %v496
      %498 = vmatmul.bf16.gmra.mxu0 %v362
      %v499 = vpop.f32.mrf.mxu0
      %v500 = vadd.f32 %v290, %v499
      %v501 = vpop.f32.mrf.mxu0
      %v502 = vadd.f32 %v290, %v501
      %503 = vmatmul.bf16.gmra.mxu0 %v363
      %v504 = vpop.f32.mrf.mxu0
      %v505 = vadd.f32 %v290, %v504
      %v506 = vpop.f32.mrf.mxu0
      %v507 = vadd.f32 %v290, %v506
      %508 = vmatmul.bf16.gmra.mxu0 %v364
      %v509 = vpop.f32.mrf.mxu0
      %v510 = vadd.f32 %v290, %v509
      %v511 = vpop.f32.mrf.mxu0
      %v512 = vadd.f32 %v290, %v511
      %513 = vmatmul.bf16.gmra.mxu0 %v365
      %v514 = vpop.f32.mrf.mxu0
      %v515 = vadd.f32 %v290, %v514
      %v516 = vpop.f32.mrf.mxu0
      %v517 = vadd.f32 %v290, %v516
      %518 = vmatmul.bf16.gmra.mxu0 %v366
      %v519 = vpop.f32.mrf.mxu0
      %v520 = vadd.f32 %v290, %v519
      %v521 = vpop.f32.mrf.mxu0
      %v522 = vadd.f32 %v290, %v521
      %523 = vmatmul.bf16.gmra.mxu0 %v367
      %v524 = vpop.f32.mrf.mxu0
      %v525 = vadd.f32 %v290, %v524
      %v526 = vpop.f32.mrf.mxu0
      %v527 = vadd.f32 %v290, %v526
      %528 = vmatmul.bf16.gmra.mxu0 %v368
      %v529 = vpop.f32.mrf.mxu0
      %v530 = vadd.f32 %v290, %v529
      %v531 = vpop.f32.mrf.mxu0
      %v532 = vadd.f32 %v290, %v531
      %533 = vmatmul.bf16.gmra.mxu0 %v369
      %v534 = vpop.f32.mrf.mxu0
      %v535 = vadd.f32 %v290, %v534
      %v536 = vpop.f32.mrf.mxu0
      %v537 = vadd.f32 %v290, %v536
      %538 = vmatmul.bf16.gmra.mxu0 %v370
      %v539 = vpop.f32.mrf.mxu0
      %v540 = vadd.f32 %v290, %v539
      %v541 = vpop.f32.mrf.mxu0
      %v542 = vadd.f32 %v290, %v541
      %543 = vmatmul.bf16.gmra.mxu0 %v371
      %v544 = vpop.f32.mrf.mxu0
      %v545 = vadd.f32 %v290, %v544
      %v546 = vpop.f32.mrf.mxu0
      %v547 = vadd.f32 %v290, %v546
      %548 = vmatmul.bf16.gmra.mxu0 %v372
      %v549 = vpop.f32.mrf.mxu0
      %v550 = vadd.f32 %v290, %v549
      %v551 = vpop.f32.mrf.mxu0
      %v552 = vadd.f32 %v290, %v551
      %553 = vmatmul.bf16.gmra.mxu0 %v373
      %v554 = vpop.f32.mrf.mxu0
      %v555 = vadd.f32 %v290, %v554
      %v556 = vpop.f32.mrf.mxu0
      %v557 = vadd.f32 %v290, %v556
      %558 = vdwg.mxu0
      %559 = vmatpush.bf16.msra.mxu0 %v453
      %560 = vmatpush.bf16.msra.mxu0 %v451
      %561 = vmatpush.bf16.msra.mxu0 %v449
      %562 = vmatpush.bf16.msra.mxu0 %v447
      %563 = vmatpush.bf16.msra.mxu0 %v445
      %564 = vmatpush.bf16.msra.mxu0 %v443
      %565 = vmatpush.bf16.msra.mxu0 %v441
      %566 = vmatpush.bf16.msra.mxu0 %v439
      %567 = vmatmul.bf16.gmra.mxu0 %v358
      %v568 = vpop.f32.mrf.mxu0
      %v569 = vadd.f32 %v291, %v568
      %v570 = vpop.f32.mrf.mxu0
      %v571 = vadd.f32 %v291, %v570
      %572 = vmatmul.bf16.gmra.mxu0 %v359
      %v573 = vpop.f32.mrf.mxu0
      %v574 = vadd.f32 %v291, %v573
      %v575 = vpop.f32.mrf.mxu0
      %v576 = vadd.f32 %v291, %v575
      %577 = vmatmul.bf16.gmra.mxu0 %v360
      %v578 = vpop.f32.mrf.mxu0
      %v579 = vadd.f32 %v291, %v578
      %v580 = vpop.f32.mrf.mxu0
      %v581 = vadd.f32 %v291, %v580
      %582 = vmatmul.bf16.gmra.mxu0 %v361
      %v583 = vpop.f32.mrf.mxu0
      %v584 = vadd.f32 %v291, %v583
      %v585 = vpop.f32.mrf.mxu0
      %v586 = vadd.f32 %v291, %v585
      %587 = vmatmul.bf16.gmra.mxu0 %v362
      %v588 = vpop.f32.mrf.mxu0
      %v589 = vadd.f32 %v291, %v588
      %v590 = vpop.f32.mrf.mxu0
      %v591 = vadd.f32 %v291, %v590
      %592 = vmatmul.bf16.gmra.mxu0 %v363
      %v593 = vpop.f32.mrf.mxu0
      %v594 = vadd.f32 %v291, %v593
      %v595 = vpop.f32.mrf.mxu0
      %v596 = vadd.f32 %v291, %v595
      %597 = vmatmul.bf16.gmra.mxu0 %v364
      %v598 = vpop.f32.mrf.mxu0
      %v599 = vadd.f32 %v291, %v598
      %v600 = vpop.f32.mrf.mxu0
      %v601 = vadd.f32 %v291, %v600
      %602 = vmatmul.bf16.gmra.mxu0 %v365
      %v603 = vpop.f32.mrf.mxu0
      %v604 = vadd.f32 %v291, %v603
      %v605 = vpop.f32.mrf.mxu0
      %v606 = vadd.f32 %v291, %v605
      %607 = vmatmul.bf16.gmra.mxu0 %v366
      %v608 = vpop.f32.mrf.mxu0
      %v609 = vadd.f32 %v291, %v608
      %v610 = vpop.f32.mrf.mxu0
      %v611 = vadd.f32 %v291, %v610
      %612 = vmatmul.bf16.gmra.mxu0 %v367
      %v613 = vpop.f32.mrf.mxu0
      %v614 = vadd.f32 %v291, %v613
      %v615 = vpop.f32.mrf.mxu0
      %v616 = vadd.f32 %v291, %v615
      %617 = vmatmul.bf16.gmra.mxu0 %v368
      %v618 = vpop.f32.mrf.mxu0
      %v619 = vadd.f32 %v291, %v618
      %v620 = vpop.f32.mrf.mxu0
      %v621 = vadd.f32 %v291, %v620
      %622 = vmatmul.bf16.gmra.mxu0 %v369
      %v623 = vpop.f32.mrf.mxu0
      %v624 = vadd.f32 %v291, %v623
      %v625 = vpop.f32.mrf.mxu0
      %v626 = vadd.f32 %v291, %v625
      %627 = vmatmul.bf16.gmra.mxu0 %v370
      %v628 = vpop.f32.mrf.mxu0
      %v629 = vadd.f32 %v291, %v628
      %v630 = vpop.f32.mrf.mxu0
      %v631 = vadd.f32 %v291, %v630
      %632 = vmatmul.bf16.gmra.mxu0 %v371
      %v633 = vpop.f32.mrf.mxu0
      %v634 = vadd.f32 %v291, %v633
      %v635 = vpop.f32.mrf.mxu0
      %v636 = vadd.f32 %v291, %v635
      %637 = vmatmul.bf16.gmra.mxu0 %v372
      %v638 = vpop.f32.mrf.mxu0
      %v639 = vadd.f32 %v291, %v638
      %v640 = vpop.f32.mrf.mxu0
      %v641 = vadd.f32 %v291, %v640
      %642 = vmatmul.bf16.gmra.mxu0 %v373
      %v643 = vpop.f32.mrf.mxu0
      %v644 = vadd.f32 %v291, %v643
      %v645 = vpop.f32.mrf.mxu0
      %v646 = vadd.f32 %v291, %v645
      %647 = vdwg.mxu0
      %648 = vst [vmem:[%s237] sm:$0xff] %v480
      %649 = vst [vmem:[%s237 + $0x8] sm:$0xff] %v569
      %650 = vst [vmem:[%s237 + $0x10] sm:$0xff] %v482
      %651 = vst [vmem:[%s237 + $0x18] sm:$0xff] %v571
      %652 = vst [vmem:[%s237 + $0x20] sm:$0xff] %v485
      %653 = vst [vmem:[%s237 + $0x28] sm:$0xff] %v574
      %654 = vst [vmem:[%s237 + $0x30] sm:$0xff] %v487
      %655 = vst [vmem:[%s237 + $0x38] sm:$0xff] %v576
      %656 = vst [vmem:[%s237 + $0x40] sm:$0xff] %v490
      %657 = vst [vmem:[%s237 + $0x48] sm:$0xff] %v579
      %658 = vst [vmem:[%s237 + $0x50] sm:$0xff] %v492
      %659 = vst [vmem:[%s237 + $0x58] sm:$0xff] %v581
      %660 = vst [vmem:[%s237 + $0x60] sm:$0xff] %v495
      %661 = vst [vmem:[%s237 + $0x68] sm:$0xff] %v584
      %662 = vst [vmem:[%s237 + $0x70] sm:$0xff] %v497
      %663 = vst [vmem:[%s237 + $0x78] sm:$0xff] %v586
      %664 = vst [vmem:[%s237 + $0x80] sm:$0xff] %v500
      %665 = vst [vmem:[%s237 + $0x88] sm:$0xff] %v589
      %666 = vst [vmem:[%s237 + $0x90] sm:$0xff] %v502
      %667 = vst [vmem:[%s237 + $0x98] sm:$0xff] %v591
      %668 = vst [vmem:[%s237 + $0xa0] sm:$0xff] %v505
      %669 = vst [vmem:[%s237 + $0xa8] sm:$0xff] %v594
      %670 = vst [vmem:[%s237 + $0xb0] sm:$0xff] %v507
      %671 = vst [vmem:[%s237 + $0xb8] sm:$0xff] %v596
      %672 = vst [vmem:[%s237 + $0xc0] sm:$0xff] %v510
      %673 = vst [vmem:[%s237 + $0xc8] sm:$0xff] %v599
      %674 = vst [vmem:[%s237 + $0xd0] sm:$0xff] %v512
      %675 = vst [vmem:[%s237 + $0xd8] sm:$0xff] %v601
      %676 = vst [vmem:[%s237 + $0xe0] sm:$0xff] %v515
      %677 = vst [vmem:[%s237 + $0xe8] sm:$0xff] %v604
      %678 = vst [vmem:[%s237 + $0xf0] sm:$0xff] %v517
      %679 = vst [vmem:[%s237 + $0xf8] sm:$0xff] %v606
      %680 = vst [vmem:[%s237 + $0x100] sm:$0xff] %v520
      %681 = vst [vmem:[%s237 + $0x108] sm:$0xff] %v609
      %682 = vst [vmem:[%s237 + $0x110] sm:$0xff] %v522
      %683 = vst [vmem:[%s237 + $0x118] sm:$0xff] %v611
      %684 = vst [vmem:[%s237 + $0x120] sm:$0xff] %v525
      %685 = vst [vmem:[%s237 + $0x128] sm:$0xff] %v614
      %686 = vst [vmem:[%s237 + $0x130] sm:$0xff] %v527
      %687 = vst [vmem:[%s237 + $0x138] sm:$0xff] %v616
      %688 = vst [vmem:[%s237 + $0x140] sm:$0xff] %v530
      %689 = vst [vmem:[%s237 + $0x148] sm:$0xff] %v619
      %690 = vst [vmem:[%s237 + $0x150] sm:$0xff] %v532
      %691 = vst [vmem:[%s237 + $0x158] sm:$0xff] %v621
      %692 = vst [vmem:[%s237 + $0x160] sm:$0xff] %v535
      %693 = vst [vmem:[%s237 + $0x168] sm:$0xff] %v624
      %694 = vst [vmem:[%s237 + $0x170] sm:$0xff] %v537
      %695 = vst [vmem:[%s237 + $0x178] sm:$0xff] %v626
      %696 = vst [vmem:[%s237 + $0x180] sm:$0xff] %v540
      %697 = vst [vmem:[%s237 + $0x188] sm:$0xff] %v629
      %698 = vst [vmem:[%s237 + $0x190] sm:$0xff] %v542
      %699 = vst [vmem:[%s237 + $0x198] sm:$0xff] %v631
      %700 = vst [vmem:[%s237 + $0x1a0] sm:$0xff] %v545
      %701 = vst [vmem:[%s237 + $0x1a8] sm:$0xff] %v634
      %702 = vst [vmem:[%s237 + $0x1b0] sm:$0xff] %v547
      %703 = vst [vmem:[%s237 + $0x1b8] sm:$0xff] %v636
      %704 = vst [vmem:[%s237 + $0x1c0] sm:$0xff] %v550
      %705 = vst [vmem:[%s237 + $0x1c8] sm:$0xff] %v639
      %706 = vst [vmem:[%s237 + $0x1d0] sm:$0xff] %v552
      %707 = vst [vmem:[%s237 + $0x1d8] sm:$0xff] %v641
      %708 = vst [vmem:[%s237 + $0x1e0] sm:$0xff] %v555
      %709 = vst [vmem:[%s237 + $0x1e8] sm:$0xff] %v644
      %710 = vst [vmem:[%s237 + $0x1f0] sm:$0xff] %v557
      %711 = vst [vmem:[%s237 + $0x1f8] sm:$0xff] %v646
      %s712 = smul.u32 32, %s18
      %s713 = smul.u32 2, %s19
      %p714 = scmp.lt.s32.totalorder %s712, 63
      %s715 = scalar_select %p714, %s712, 63
      %p716 = scmp.lt.s32.totalorder %s713, 1
      %s717 = scalar_select %p716, %s713, 1
      %s718 = smul.addr %s715, 2
      %s719 = sadd.s32 %s717, %s718
      %s720 = smul.addr %s719, 8
      %s721 = scalar_lea.vmem %s3, %s720
      // Predicated region
      $region33: #{_lambda_.55} parent=31 // pred_check
        %p722 = pneg %p124
      $region34: #{_lambda_.55} parent=31 // pred_check_branch
        %724 = sbr.rel (%p722) target = $region36
      $region35: #{_lambda_.55} parent=31 // pred_region
        %s725 = smul.u32 32, %s18
        %s726 = smul.u32 2, %s19
      $region36: #{_lambda_.55} parent=31 // pred_fallthru
        _
    $region32: #{_lambda_.55} parent=5 // pred_fallthru
      _
    %p727 = scmp.le.s32.totalorder 2, %s9
    // Predicated region
    $region37: #{_lambda_.55} parent=5 // pred_check
      %p728 = pneg %p727
    $region38: #{_lambda_.55} parent=5 // pred_check_branch
      %730 = sbr.rel (%p728) target = $region40
    $region39: #{_lambda_.55} parent=5 // pred_region
      %s731 = ssub.s32 %s9, 2
      // Predicated region
      $region41: #{_lambda_.55} parent=39 // pred_check
        %p732 = pneg %p130
      $region42: #{_lambda_.55} parent=39 // pred_check_branch
        %734 = sbr.rel (%p732) target = $region44
      $region43: #{_lambda_.55} parent=39 // pred_region
        %s735 = smul.u32 32, %s20
        %s736 = smul.u32 2, %s21
        %p737 = scmp.lt.s32.totalorder %s735, 63
        %s738 = scalar_select %p737, %s735, 63
        %p739 = scmp.lt.s32.totalorder %s736, 1
        %s740 = scalar_select %p739, %s736, 1
        %s741 = smul.addr %s738, 2
        %s742 = sadd.s32 %s740, %s741
        %s743 = smul.addr %s742, 8
        %s744 = scalar_lea.vmem %s3, %s743
      $region44: #{_lambda_.55} parent=39 // pred_fallthru
        _
    $region40: #{_lambda_.55} parent=5 // pred_fallthru
      _
  $region6: #{_lambda_.55} parent=0 // loop_footer
    %s13 = sadd.s32 1, %s9
  $region7: #{_lambda_.55} parent=0 // loop_footer_branch
    %8 = sbr.rel target = $region3
  $region8: #{_lambda_.55} parent=0 // loop_exit
    _

// kernel: _lambda_.56
$region0: #{_lambda_.56}
  #allocation0 [shape = 'u32[]', space=smem, size = 0x4, offset = 0x4, fixed_abs, tag = 'smem constant byte address 0x4 - core index']
  #allocation1 [shape = 'u32[72,128]{1,0:T(1,128)}', space=vmem, size = 0x9000, scoped, tag = 'internal scratch']
  %s0 = inlined_call_operand.vmem [shape: f32[2048,128], index: 0, kind: input, shape index: {}]
  %s1 = inlined_call_operand.vmem [shape: f32[2,128], index: 1, kind: output, shape index: {}]
  %s2 = sld [smem:[#allocation0]]
  $region41: #{_lambda_.56} parent=0
    _
  %s4 = ssub.s32 1, %s2
  %s5 = scalar_select 0, %s4, %s2
  loop: start=0, step=1, limit=6
  $region2: #{_lambda_.56} parent=0 // loop_pre_header
    _
  $region3: #{_lambda_.56} parent=0 // loop_header
    %s7 = sphi 0, %s11
    %p8 = scmp.ge.s32.totalorder %s7, 6
    %s17 = sphi 0, %s19
    %s20 = sphi 0, %s17
    %s21 = sphi 0, %s20
    %s37 = sphi 0, %s21
    %s41 = sphi 0, %s41
    %s43 = sphi 0, %s41
    %s44 = sphi 0, %s43
    %s58 = sphi 0, %s44
  $region4: #{_lambda_.56} parent=0 // loop_header_branch
    %10 = sbr.rel (%p8) target = $region8
  $region5: #{_lambda_.56} parent=0 // loop_body
    %s12 = ssub.s32 %s7, 1
    %s13 = ssub.s32 %s7, 2
    %s14 = sadd.s32 %s7, 1
    %s15 = ssub.s32 %s7, %s14
    %p16 = scmp.eq.s32.totalorder %s15, 0
    %s18 = sadd.s32 %s17, 1
    %s19 = scalar_select %p16, %s17, %s18
    %p22 = pneg %p16
    %p23 = scmp.eq.s32.totalorder %s7, 3
    %p24 = por %p22, %p23
    %p25 = scmp.ne.s32.totalorder %s17, %s20
    %p26 = scmp.eq.s32.totalorder %s7, 0
    %p27 = por %p25, %p26
    %p28 = scmp.ne.s32.totalorder %s17, %s20
    %p29 = scmp.eq.s32.totalorder %s12, 3
    %p30 = por %p28, %p29
    %p31 = scmp.ne.s32.totalorder %s20, %s21
    %p32 = scmp.eq.s32.totalorder %s12, 0
    %p33 = por %p31, %p32
    %p34 = scmp.ne.s32.totalorder %s20, %s21
    %p35 = scmp.eq.s32.totalorder %s13, 3
    %p36 = por %p34, %p35
    %p38 = scmp.ne.s32.totalorder %s21, %s37
    %p39 = scmp.eq.s32.totalorder %s13, 0
    %p40 = por %p38, %p39
    %s42 = sadd.s32 %s41, 1
    %p45 = scmp.eq.s32.totalorder %s7, 3
    %p46 = scmp.ne.s32.totalorder %s41, %s43
    %p47 = scmp.eq.s32.totalorder %s7, 0
    %p48 = por %p46, %p47
    %p49 = scmp.ne.s32.totalorder %s41, %s43
    %p50 = scmp.eq.s32.totalorder %s12, 3
    %p51 = por %p49, %p50
    %p52 = scmp.ne.s32.totalorder %s43, %s44
    %p53 = scmp.eq.s32.totalorder %s12, 0
    %p54 = por %p52, %p53
    %p55 = scmp.ne.s32.totalorder %s43, %s44
    %p56 = scmp.eq.s32.totalorder %s13, 3
    %p57 = por %p55, %p56
    %p59 = scmp.ne.s32.totalorder %s44, %s58
    %p60 = scmp.eq.s32.totalorder %s13, 0
    %p61 = por %p59, %p60
    %p62 = scmp.le.s32.totalorder 1, %s7
    %p63 = scmp.lt.s32.totalorder %s7, 5
    %p64 = pnand %p62, %p63
    %p65 = pneg %p64
    // Predicated region
    $region9: #{_lambda_.56} parent=5 // pred_check
      _
    $region10: #{_lambda_.56} parent=5 // pred_check_branch
      %67 = sbr.rel (%p64) target = $region12
    $region11: #{_lambda_.56} parent=5 // pred_region
      %s68 = ssub.s32 %s7, 1
    $region12: #{_lambda_.56} parent=5 // pred_fallthru
      _
    %p69 = scmp.lt.s32.totalorder %s7, 4
    // Predicated region
    $region13: #{_lambda_.56} parent=5 // pred_check
      %p70 = pneg %p69
    $region14: #{_lambda_.56} parent=5 // pred_check_branch
      %72 = sbr.rel (%p70) target = $region16
    $region15: #{_lambda_.56} parent=5 // pred_region
      // Predicated region
      $region17: #{_lambda_.56} parent=15 // pred_check
        %p73 = pneg %p27
      $region18: #{_lambda_.56} parent=15 // pred_check_branch
        %75 = sbr.rel (%p73) target = $region20
      $region19: #{_lambda_.56} parent=15 // pred_region
        %s76 = smul.u32 64, %s7
        %p77 = scmp.lt.s32.totalorder %s76, 255
        %s78 = scalar_select %p77, %s76, 255
        %s79 = smul.addr %s78, 8
        %s80 = scalar_lea.vmem %s0, %s79
        %s81 = smul.u32 64, %s7
      $region20: #{_lambda_.56} parent=15 // pred_fallthru
        _
    $region16: #{_lambda_.56} parent=5 // pred_fallthru
      _
    %p82 = scmp.le.s32.totalorder 1, %s7
    %p83 = scmp.lt.s32.totalorder %s7, 5
    %p84 = pnand %p82, %p83
    %p85 = pneg %p84
    // Predicated region
    $region21: #{_lambda_.56} parent=5 // pred_check
      _
    $region22: #{_lambda_.56} parent=5 // pred_check_branch
      %87 = sbr.rel (%p84) target = $region24
    $region23: #{_lambda_.56} parent=5 // pred_region
      %s88 = ssub.s32 %s7, 1
      %s89 = smul.u32 64, %s12
      %p90 = scmp.lt.s32.totalorder %s89, 255
      %s91 = scalar_select %p90, %s89, 255
      %s92 = smul.addr %s91, 8
      %s93 = scalar_lea.vmem %s0, %s92
      %p94 = pneg %p33
      %p95 = pneg %p30
      %p96 = pneg %p54
      %p97 = pneg %p51
      %s98 = smul.u32 64, %s12
      %p99 = scmp.lt.s32.totalorder %s98, 255
      %s100 = scalar_select %p99, %s98, 255
      %s101 = smul.addr %s100, 8
      %s102 = scalar_lea.vmem %s0, %s101
      %s103 = smul.u32 64, %s12
      %p104 = scmp.eq.s32.totalorder %s12, 0
      // Predicated region
      $region25: #{_lambda_.56} parent=23 // pred_check
        %p105 = pneg %p104
      $region26: #{_lambda_.56} parent=23 // pred_check_branch
        %107 = sbr.rel (%p105) target = $region28
      $region27: #{_lambda_.56} parent=23 // pred_region
        %108 = vst [vmem:[%s1] sm:$0x3] 0.0
      $region28: #{_lambda_.56} parent=23 // pred_fallthru
        _
      %v109 = vld [vmem:[%s102] sm:$0xff]
      %v110 = vld [vmem:[%s102 + $0x8] sm:$0xff]
      %v111 = vld [vmem:[%s102 + $0x10] sm:$0xff]
      %v112 = vld [vmem:[%s102 + $0x18] sm:$0xff]
      %v113 = vld [vmem:[%s102 + $0x20] sm:$0xff]
      %v114 = vld [vmem:[%s102 + $0x28] sm:$0xff]
      %v115 = vld [vmem:[%s102 + $0x30] sm:$0xff]
      %v116 = vld [vmem:[%s102 + $0x38] sm:$0xff]
      %v117 = vld [vmem:[%s102 + $0x40] sm:$0xff]
      %v118 = vld [vmem:[%s102 + $0x48] sm:$0xff]
      %v119 = vld [vmem:[%s102 + $0x50] sm:$0xff]
      %v120 = vld [vmem:[%s102 + $0x58] sm:$0xff]
      %v121 = vld [vmem:[%s102 + $0x60] sm:$0xff]
      %v122 = vld [vmem:[%s102 + $0x68] sm:$0xff]
      %v123 = vld [vmem:[%s102 + $0x70] sm:$0xff]
      %v124 = vld [vmem:[%s102 + $0x78] sm:$0xff]
      %v125 = vld [vmem:[%s102 + $0x80] sm:$0xff]
      %v126 = vld [vmem:[%s102 + $0x88] sm:$0xff]
      %v127 = vld [vmem:[%s102 + $0x90] sm:$0xff]
      %v128 = vld [vmem:[%s102 + $0x98] sm:$0xff]
      %v129 = vld [vmem:[%s102 + $0xa0] sm:$0xff]
      %v130 = vld [vmem:[%s102 + $0xa8] sm:$0xff]
      %v131 = vld [vmem:[%s102 + $0xb0] sm:$0xff]
      %v132 = vld [vmem:[%s102 + $0xb8] sm:$0xff]
      %v133 = vld [vmem:[%s102 + $0xc0] sm:$0xff]
      %v134 = vld [vmem:[%s102 + $0xc8] sm:$0xff]
      %v135 = vld [vmem:[%s102 + $0xd0] sm:$0xff]
      %v136 = vld [vmem:[%s102 + $0xd8] sm:$0xff]
      %v137 = vld [vmem:[%s102 + $0xe0] sm:$0xff]
      %v138 = vld [vmem:[%s102 + $0xe8] sm:$0xff]
      %v139 = vld [vmem:[%s102 + $0xf0] sm:$0xff]
      %v140 = vld [vmem:[%s102 + $0xf8] sm:$0xff]
      %v141 = vld [vmem:[%s102 + $0x100] sm:$0xff]
      %v142 = vld [vmem:[%s102 + $0x108] sm:$0xff]
      %v143 = vld [vmem:[%s102 + $0x110] sm:$0xff]
      %v144 = vld [vmem:[%s102 + $0x118] sm:$0xff]
      %v145 = vld [vmem:[%s102 + $0x120] sm:$0xff]
      %v146 = vld [vmem:[%s102 + $0x128] sm:$0xff]
      %v147 = vld [vmem:[%s102 + $0x130] sm:$0xff]
      %v148 = vld [vmem:[%s102 + $0x138] sm:$0xff]
      %v149 = vld [vmem:[%s102 + $0x140] sm:$0xff]
      %v150 = vld [vmem:[%s102 + $0x148] sm:$0xff]
      %v151 = vld [vmem:[%s102 + $0x150] sm:$0xff]
      %v152 = vld [vmem:[%s102 + $0x158] sm:$0xff]
      %v153 = vld [vmem:[%s102 + $0x160] sm:$0xff]
      %v154 = vld [vmem:[%s102 + $0x168] sm:$0xff]
      %v155 = vld [vmem:[%s102 + $0x170] sm:$0xff]
      %v156 = vld [vmem:[%s102 + $0x178] sm:$0xff]
      %v157 = vld [vmem:[%s102 + $0x180] sm:$0xff]
      %v158 = vld [vmem:[%s102 + $0x188] sm:$0xff]
      %v159 = vld [vmem:[%s102 + $0x190] sm:$0xff]
      %v160 = vld [vmem:[%s102 + $0x198] sm:$0xff]
      %v161 = vld [vmem:[%s102 + $0x1a0] sm:$0xff]
      %v162 = vld [vmem:[%s102 + $0x1a8] sm:$0xff]
      %v163 = vld [vmem:[%s102 + $0x1b0] sm:$0xff]
      %v164 = vld [vmem:[%s102 + $0x1b8] sm:$0xff]
      %v165 = vld [vmem:[%s102 + $0x1c0] sm:$0xff]
      %v166 = vld [vmem:[%s102 + $0x1c8] sm:$0xff]
      %v167 = vld [vmem:[%s102 + $0x1d0] sm:$0xff]
      %v168 = vld [vmem:[%s102 + $0x1d8] sm:$0xff]
      %v169 = vld [vmem:[%s102 + $0x1e0] sm:$0xff]
      %v170 = vld [vmem:[%s102 + $0x1e8] sm:$0xff]
      %v171 = vld [vmem:[%s102 + $0x1f0] sm:$0xff]
      %v172 = vld [vmem:[%s102 + $0x1f8] sm:$0xff]
      %v173 = vadd.f32 %v109, %v110
      %v174 = vadd.f32 %v173, %v111
      %v175 = vadd.f32 %v174, %v112
      %v176 = vadd.f32 %v175, %v113
      %v177 = vadd.f32 %v176, %v114
      %v178 = vadd.f32 %v177, %v115
      %v179 = vadd.f32 %v178, %v116
      %v180 = vadd.f32 %v179, %v117
      %v181 = vadd.f32 %v180, %v118
      %v182 = vadd.f32 %v181, %v119
      %v183 = vadd.f32 %v182, %v120
      %v184 = vadd.f32 %v183, %v121
      %v185 = vadd.f32 %v184, %v122
      %v186 = vadd.f32 %v185, %v123
      %v187 = vadd.f32 %v186, %v124
      %v188 = vadd.f32 %v187, %v125
      %v189 = vadd.f32 %v188, %v126
      %v190 = vadd.f32 %v189, %v127
      %v191 = vadd.f32 %v190, %v128
      %v192 = vadd.f32 %v191, %v129
      %v193 = vadd.f32 %v192, %v130
      %v194 = vadd.f32 %v193, %v131
      %v195 = vadd.f32 %v194, %v132
      %v196 = vadd.f32 %v195, %v133
      %v197 = vadd.f32 %v196, %v134
      %v198 = vadd.f32 %v197, %v135
      %v199 = vadd.f32 %v198, %v136
      %v200 = vadd.f32 %v199, %v137
      %v201 = vadd.f32 %v200, %v138
      %v202 = vadd.f32 %v201, %v139
      %v203 = vadd.f32 %v202, %v140
      %v204 = vadd.f32 %v203, %v141
      %v205 = vadd.f32 %v204, %v142
      %v206 = vadd.f32 %v205, %v143
      %v207 = vadd.f32 %v206, %v144
      %v208 = vadd.f32 %v207, %v145
      %v209 = vadd.f32 %v208, %v146
      %v210 = vadd.f32 %v209, %v147
      %v211 = vadd.f32 %v210, %v148
      %v212 = vadd.f32 %v211, %v149
      %v213 = vadd.f32 %v212, %v150
      %v214 = vadd.f32 %v213, %v151
      %v215 = vadd.f32 %v214, %v152
      %v216 = vadd.f32 %v215, %v153
      %v217 = vadd.f32 %v216, %v154
      %v218 = vadd.f32 %v217, %v155
      %v219 = vadd.f32 %v218, %v156
      %v220 = vadd.f32 %v219, %v157
      %v221 = vadd.f32 %v220, %v158
      %v222 = vadd.f32 %v221, %v159
      %v223 = vadd.f32 %v222, %v160
      %v224 = vadd.f32 %v223, %v161
      %v225 = vadd.f32 %v224, %v162
      %v226 = vadd.f32 %v225, %v163
      %v227 = vadd.f32 %v226, %v164
      %v228 = vadd.f32 %v227, %v165
      %v229 = vadd.f32 %v228, %v166
      %v230 = vadd.f32 %v229, %v167
      %v231 = vadd.f32 %v230, %v168
      %v232 = vadd.f32 %v231, %v169
      %v233 = vadd.f32 %v232, %v170
      %v234 = vadd.f32 %v233, %v171
      %v235 = vadd.f32 %v234, %v172
      %v236 = vrot.slane %v235, 4
      %v237 = vadd.f32 %v235, %v236
      %v238 = vrot.slane %v237, 2
      %v239 = vadd.f32 %v237, %v238
      %v240 = vrot.slane %v239, 1
      %v241 = vadd.f32 %v239, %v240
      %v242 = vmul.f32 %v109, %v109
      %v243 = vmul.f32 %v110, %v110
      %v244 = vmul.f32 %v111, %v111
      %v245 = vmul.f32 %v112, %v112
      %v246 = vmul.f32 %v113, %v113
      %v247 = vmul.f32 %v114, %v114
      %v248 = vmul.f32 %v115, %v115
      %v249 = vmul.f32 %v116, %v116
      %v250 = vmul.f32 %v117, %v117
      %v251 = vmul.f32 %v118, %v118
      %v252 = vmul.f32 %v119, %v119
      %v253 = vmul.f32 %v120, %v120
      %v254 = vmul.f32 %v121, %v121
      %v255 = vmul.f32 %v122, %v122
      %v256 = vmul.f32 %v123, %v123
      %v257 = vmul.f32 %v124, %v124
      %v258 = vmul.f32 %v125, %v125
      %v259 = vmul.f32 %v126, %v126
      %v260 = vmul.f32 %v127, %v127
      %v261 = vmul.f32 %v128, %v128
      %v262 = vmul.f32 %v129, %v129
      %v263 = vmul.f32 %v130, %v130
      %v264 = vmul.f32 %v131, %v131
      %v265 = vmul.f32 %v132, %v132
      %v266 = vmul.f32 %v133, %v133
      %v267 = vmul.f32 %v134, %v134
      %v268 = vmul.f32 %v135, %v135
      %v269 = vmul.f32 %v136, %v136
      %v270 = vmul.f32 %v137, %v137
      %v271 = vmul.f32 %v138, %v138
      %v272 = vmul.f32 %v139, %v139
      %v273 = vmul.f32 %v140, %v140
      %v274 = vmul.f32 %v141, %v141
      %v275 = vmul.f32 %v142, %v142
      %v276 = vmul.f32 %v143, %v143
      %v277 = vmul.f32 %v144, %v144
      %v278 = vmul.f32 %v145, %v145
      %v279 = vmul.f32 %v146, %v146
      %v280 = vmul.f32 %v147, %v147
      %v281 = vmul.f32 %v148, %v148
      %v282 = vmul.f32 %v149, %v149
      %v283 = vmul.f32 %v150, %v150
      %v284 = vmul.f32 %v151, %v151
      %v285 = vmul.f32 %v152, %v152
      %v286 = vmul.f32 %v153, %v153
      %v287 = vmul.f32 %v154, %v154
      %v288 = vmul.f32 %v155, %v155
      %v289 = vmul.f32 %v156, %v156
      %v290 = vmul.f32 %v157, %v157
      %v291 = vmul.f32 %v158, %v158
      %v292 = vmul.f32 %v159, %v159
      %v293 = vmul.f32 %v160, %v160
      %v294 = vmul.f32 %v161, %v161
      %v295 = vmul.f32 %v162, %v162
      %v296 = vmul.f32 %v163, %v163
      %v297 = vmul.f32 %v164, %v164
      %v298 = vmul.f32 %v165, %v165
      %v299 = vmul.f32 %v166, %v166
      %v300 = vmul.f32 %v167, %v167
      %v301 = vmul.f32 %v168, %v168
      %v302 = vmul.f32 %v169, %v169
      %v303 = vmul.f32 %v170, %v170
      %v304 = vmul.f32 %v171, %v171
      %v305 = vmul.f32 %v172, %v172
      %v306 = vadd.f32 %v242, %v243
      %v307 = vadd.f32 %v306, %v244
      %v308 = vadd.f32 %v307, %v245
      %v309 = vadd.f32 %v308, %v246
      %v310 = vadd.f32 %v309, %v247
      %v311 = vadd.f32 %v310, %v248
      %v312 = vadd.f32 %v311, %v249
      %v313 = vadd.f32 %v312, %v250
      %v314 = vadd.f32 %v313, %v251
      %v315 = vadd.f32 %v314, %v252
      %v316 = vadd.f32 %v315, %v253
      %v317 = vadd.f32 %v316, %v254
      %v318 = vadd.f32 %v317, %v255
      %v319 = vadd.f32 %v318, %v256
      %v320 = vadd.f32 %v319, %v257
      %v321 = vadd.f32 %v320, %v258
      %v322 = vadd.f32 %v321, %v259
      %v323 = vadd.f32 %v322, %v260
      %v324 = vadd.f32 %v323, %v261
      %v325 = vadd.f32 %v324, %v262
      %v326 = vadd.f32 %v325, %v263
      %v327 = vadd.f32 %v326, %v264
      %v328 = vadd.f32 %v327, %v265
      %v329 = vadd.f32 %v328, %v266
      %v330 = vadd.f32 %v329, %v267
      %v331 = vadd.f32 %v330, %v268
      %v332 = vadd.f32 %v331, %v269
      %v333 = vadd.f32 %v332, %v270
      %v334 = vadd.f32 %v333, %v271
      %v335 = vadd.f32 %v334, %v272
      %v336 = vadd.f32 %v335, %v273
      %v337 = vadd.f32 %v336, %v274
      %v338 = vadd.f32 %v337, %v275
      %v339 = vadd.f32 %v338, %v276
      %v340 = vadd.f32 %v339, %v277
      %v341 = vadd.f32 %v340, %v278
      %v342 = vadd.f32 %v341, %v279
      %v343 = vadd.f32 %v342, %v280
      %v344 = vadd.f32 %v343, %v281
      %v345 = vadd.f32 %v344, %v282
      %v346 = vadd.f32 %v345, %v283
      %v347 = vadd.f32 %v346, %v284
      %v348 = vadd.f32 %v347, %v285
      %v349 = vadd.f32 %v348, %v286
      %v350 = vadd.f32 %v349, %v287
      %v351 = vadd.f32 %v350, %v288
      %v352 = vadd.f32 %v351, %v289
      %v353 = vadd.f32 %v352, %v290
      %v354 = vadd.f32 %v353, %v291
      %v355 = vadd.f32 %v354, %v292
      %v356 = vadd.f32 %v355, %v293
      %v357 = vadd.f32 %v356, %v294
      %v358 = vadd.f32 %v357, %v295
      %v359 = vadd.f32 %v358, %v296
      %v360 = vadd.f32 %v359, %v297
      %v361 = vadd.f32 %v360, %v298
      %v362 = vadd.f32 %v361, %v299
      %v363 = vadd.f32 %v362, %v300
      %v364 = vadd.f32 %v363, %v301
      %v365 = vadd.f32 %v364, %v302
      %v366 = vadd.f32 %v365, %v303
      %v367 = vadd.f32 %v366, %v304
      %v368 = vadd.f32 %v367, %v305
      %v369 = vrot.slane %v368, 4
      %v370 = vadd.f32 %v368, %v369
      %v371 = vrot.slane %v370, 2
      %v372 = vadd.f32 %v370, %v371
      %v373 = vrot.slane %v372, 1
      %v374 = vadd.f32 %v372, %v373
      %v375 = vld [vmem:[%s1] sm:$0x3]
      %vm376 = vcmask 1040384
      %v377 = vsel %vm376, %v241, %v374
      %v378 = vadd.f32 %v375, %v377
      %379 = vst [vmem:[%s1] sm:$0x3] %v378
      // Predicated region
      $region29: #{_lambda_.56} parent=23 // pred_check
        %p380 = pneg %p51
      $region30: #{_lambda_.56} parent=23 // pred_check_branch
        %382 = sbr.rel (%p380) target = $region32
      $region31: #{_lambda_.56} parent=23 // pred_region
        _
      $region32: #{_lambda_.56} parent=23 // pred_fallthru
        _
      // Predicated region
      $region33: #{_lambda_.56} parent=23 // pred_check
        %p383 = pneg %p51
      $region34: #{_lambda_.56} parent=23 // pred_check_branch
        %385 = sbr.rel (%p383) target = $region36
      $region35: #{_lambda_.56} parent=23 // pred_region
        _
      $region36: #{_lambda_.56} parent=23 // pred_fallthru
        _
    $region24: #{_lambda_.56} parent=5 // pred_fallthru
      _
    %p386 = scmp.le.s32.totalorder 2, %s7
    // Predicated region
    $region37: #{_lambda_.56} parent=5 // pred_check
      %p387 = pneg %p386
    $region38: #{_lambda_.56} parent=5 // pred_check_branch
      %389 = sbr.rel (%p387) target = $region40
    $region39: #{_lambda_.56} parent=5 // pred_region
      %s390 = ssub.s32 %s7, 2
    $region40: #{_lambda_.56} parent=5 // pred_fallthru
      _
  $region6: #{_lambda_.56} parent=0 // loop_footer
    %s11 = sadd.s32 1, %s7
  $region7: #{_lambda_.56} parent=0 // loop_footer_branch
    %6 = sbr.rel target = $region3
  $region8: #{_lambda_.56} parent=0 // loop_exit
    _

// kernel: _lambda_.57
$region0: #{_lambda_.57}
  #allocation0 [shape = 'u32[]', space=smem, size = 0x4, offset = 0x4, fixed_abs, tag = 'smem constant byte address 0x4 - core index']
  #allocation1 [shape = 'u32[72,128]{1,0:T(1,128)}', space=vmem, size = 0x9000, scoped, tag = 'internal scratch']
  %s0 = inlined_call_operand.vmem [shape: f32[2048,128], index: 0, kind: input, shape index: {}]
  %s1 = inlined_call_operand.vmem [shape: f32[1,128], index: 1, kind: input, shape index: {}]
  %s2 = inlined_call_operand.vmem [shape: f32[1,128], index: 2, kind: input, shape index: {}]
  %s3 = inlined_call_operand.vmem [shape: f32[2048,128], index: 3, kind: output, shape index: {}]
  %s4 = sld [smem:[#allocation0]]
  $region45: #{_lambda_.57} parent=0
    _
  %s6 = ssub.s32 1, %s4
  %s7 = scalar_select 0, %s6, %s4
  loop: start=0, step=1, limit=6
  $region2: #{_lambda_.57} parent=0 // loop_pre_header
    _
  $region3: #{_lambda_.57} parent=0 // loop_header
    %s9 = sphi 0, %s13
    %p10 = scmp.ge.s32.totalorder %s9, 6
    %s19 = sphi 0, %s21
    %s22 = sphi 0, %s19
    %s23 = sphi 0, %s22
    %s39 = sphi 0, %s23
    %s43 = sphi 0, %s43
    %s45 = sphi 0, %s43
    %s46 = sphi 0, %s45
    %s60 = sphi 0, %s46
    %s64 = sphi 0, %s64
    %s66 = sphi 0, %s64
    %s67 = sphi 0, %s66
    %s81 = sphi 0, %s67
    %s87 = sphi 0, %s89
    %s90 = sphi 0, %s87
    %s91 = sphi 0, %s90
    %s107 = sphi 0, %s91
  $region4: #{_lambda_.57} parent=0 // loop_header_branch
    %12 = sbr.rel (%p10) target = $region8
  $region5: #{_lambda_.57} parent=0 // loop_body
    %s14 = ssub.s32 %s9, 1
    %s15 = ssub.s32 %s9, 2
    %s16 = sadd.s32 %s9, 1
    %s17 = ssub.s32 %s9, %s16
    %p18 = scmp.eq.s32.totalorder %s17, 0
    %s20 = sadd.s32 %s19, 1
    %s21 = scalar_select %p18, %s19, %s20
    %p24 = pneg %p18
    %p25 = scmp.eq.s32.totalorder %s9, 3
    %p26 = por %p24, %p25
    %p27 = scmp.ne.s32.totalorder %s19, %s22
    %p28 = scmp.eq.s32.totalorder %s9, 0
    %p29 = por %p27, %p28
    %p30 = scmp.ne.s32.totalorder %s19, %s22
    %p31 = scmp.eq.s32.totalorder %s14, 3
    %p32 = por %p30, %p31
    %p33 = scmp.ne.s32.totalorder %s22, %s23
    %p34 = scmp.eq.s32.totalorder %s14, 0
    %p35 = por %p33, %p34
    %p36 = scmp.ne.s32.totalorder %s22, %s23
    %p37 = scmp.eq.s32.totalorder %s15, 3
    %p38 = por %p36, %p37
    %p40 = scmp.ne.s32.totalorder %s23, %s39
    %p41 = scmp.eq.s32.totalorder %s15, 0
    %p42 = por %p40, %p41
    %s44 = sadd.s32 %s43, 1
    %p47 = scmp.eq.s32.totalorder %s9, 3
    %p48 = scmp.ne.s32.totalorder %s43, %s45
    %p49 = scmp.eq.s32.totalorder %s9, 0
    %p50 = por %p48, %p49
    %p51 = scmp.ne.s32.totalorder %s43, %s45
    %p52 = scmp.eq.s32.totalorder %s14, 3
    %p53 = por %p51, %p52
    %p54 = scmp.ne.s32.totalorder %s45, %s46
    %p55 = scmp.eq.s32.totalorder %s14, 0
    %p56 = por %p54, %p55
    %p57 = scmp.ne.s32.totalorder %s45, %s46
    %p58 = scmp.eq.s32.totalorder %s15, 3
    %p59 = por %p57, %p58
    %p61 = scmp.ne.s32.totalorder %s46, %s60
    %p62 = scmp.eq.s32.totalorder %s15, 0
    %p63 = por %p61, %p62
    %s65 = sadd.s32 %s64, 1
    %p68 = scmp.eq.s32.totalorder %s9, 3
    %p69 = scmp.ne.s32.totalorder %s64, %s66
    %p70 = scmp.eq.s32.totalorder %s9, 0
    %p71 = por %p69, %p70
    %p72 = scmp.ne.s32.totalorder %s64, %s66
    %p73 = scmp.eq.s32.totalorder %s14, 3
    %p74 = por %p72, %p73
    %p75 = scmp.ne.s32.totalorder %s66, %s67
    %p76 = scmp.eq.s32.totalorder %s14, 0
    %p77 = por %p75, %p76
    %p78 = scmp.ne.s32.totalorder %s66, %s67
    %p79 = scmp.eq.s32.totalorder %s15, 3
    %p80 = por %p78, %p79
    %p82 = scmp.ne.s32.totalorder %s67, %s81
    %p83 = scmp.eq.s32.totalorder %s15, 0
    %p84 = por %p82, %p83
    %s85 = ssub.s32 %s9, %s16
    %p86 = scmp.eq.s32.totalorder %s85, 0
    %s88 = sadd.s32 %s87, 1
    %s89 = scalar_select %p86, %s87, %s88
    %p92 = pneg %p86
    %p93 = scmp.eq.s32.totalorder %s9, 3
    %p94 = por %p92, %p93
    %p95 = scmp.ne.s32.totalorder %s87, %s90
    %p96 = scmp.eq.s32.totalorder %s9, 0
    %p97 = por %p95, %p96
    %p98 = scmp.ne.s32.totalorder %s87, %s90
    %p99 = scmp.eq.s32.totalorder %s14, 3
    %p100 = por %p98, %p99
    %p101 = scmp.ne.s32.totalorder %s90, %s91
    %p102 = scmp.eq.s32.totalorder %s14, 0
    %p103 = por %p101, %p102
    %p104 = scmp.ne.s32.totalorder %s90, %s91
    %p105 = scmp.eq.s32.totalorder %s15, 3
    %p106 = por %p104, %p105
    %p108 = scmp.ne.s32.totalorder %s91, %s107
    %p109 = scmp.eq.s32.totalorder %s15, 0
    %p110 = por %p108, %p109
    %p111 = scmp.le.s32.totalorder 1, %s9
    %p112 = scmp.lt.s32.totalorder %s9, 5
    %p113 = pnand %p111, %p112
    %p114 = pneg %p113
    // Predicated region
    $region9: #{_lambda_.57} parent=5 // pred_check
      _
    $region10: #{_lambda_.57} parent=5 // pred_check_branch
      %116 = sbr.rel (%p113) target = $region12
    $region11: #{_lambda_.57} parent=5 // pred_region
      %s117 = ssub.s32 %s9, 1
      // Predicated region
      $region13: #{_lambda_.57} parent=11 // pred_check
        %p118 = pneg %p56
      $region14: #{_lambda_.57} parent=11 // pred_check_branch
        %120 = sbr.rel (%p118) target = $region16
      $region15: #{_lambda_.57} parent=11 // pred_region
        _
      $region16: #{_lambda_.57} parent=11 // pred_fallthru
        _
      // Predicated region
      $region17: #{_lambda_.57} parent=11 // pred_check
        %p121 = pneg %p77
      $region18: #{_lambda_.57} parent=11 // pred_check_branch
        %123 = sbr.rel (%p121) target = $region20
      $region19: #{_lambda_.57} parent=11 // pred_region
        _
      $region20: #{_lambda_.57} parent=11 // pred_fallthru
        _
    $region12: #{_lambda_.57} parent=5 // pred_fallthru
      _
    %p124 = scmp.lt.s32.totalorder %s9, 4
    // Predicated region
    $region21: #{_lambda_.57} parent=5 // pred_check
      %p125 = pneg %p124
    $region22: #{_lambda_.57} parent=5 // pred_check_branch
      %127 = sbr.rel (%p125) target = $region24
    $region23: #{_lambda_.57} parent=5 // pred_region
      // Predicated region
      $region25: #{_lambda_.57} parent=23 // pred_check
        %p128 = pneg %p29
      $region26: #{_lambda_.57} parent=23 // pred_check_branch
        %130 = sbr.rel (%p128) target = $region28
      $region27: #{_lambda_.57} parent=23 // pred_region
        %s131 = smul.u32 64, %s9
        %p132 = scmp.lt.s32.totalorder %s131, 255
        %s133 = scalar_select %p132, %s131, 255
        %s134 = smul.addr %s133, 8
        %s135 = scalar_lea.vmem %s0, %s134
        %s136 = smul.u32 64, %s9
      $region28: #{_lambda_.57} parent=23 // pred_fallthru
        _
    $region24: #{_lambda_.57} parent=5 // pred_fallthru
      _
    %p137 = scmp.le.s32.totalorder 1, %s9
    %p138 = scmp.lt.s32.totalorder %s9, 5
    %p139 = pnand %p137, %p138
    %p140 = pneg %p139
    // Predicated region
    $region29: #{_lambda_.57} parent=5 // pred_check
      _
    $region30: #{_lambda_.57} parent=5 // pred_check_branch
      %142 = sbr.rel (%p139) target = $region32
    $region31: #{_lambda_.57} parent=5 // pred_region
      %s143 = ssub.s32 %s9, 1
      %s144 = smul.u32 64, %s14
      %p145 = scmp.lt.s32.totalorder %s144, 255
      %s146 = scalar_select %p145, %s144, 255
      %s147 = smul.addr %s146, 8
      %s148 = scalar_lea.vmem %s0, %s147
      %p149 = pneg %p35
      %p150 = pneg %p32
      %p151 = pneg %p56
      %p152 = pneg %p53
      %p153 = pneg %p77
      %p154 = pneg %p74
      %p155 = pneg %p103
      %p156 = pneg %p100
      %s157 = smul.u32 64, %s14
      %p158 = scmp.lt.s32.totalorder %s157, 255
      %s159 = scalar_select %p158, %s157, 255
      %s160 = smul.addr %s159, 8
      %s161 = scalar_lea.vmem %s3, %s160
      %s162 = smul.u32 64, %s14
      %p163 = scmp.lt.s32.totalorder %s162, 255
      %s164 = scalar_select %p163, %s162, 255
      %s165 = smul.addr %s164, 8
      %s166 = scalar_lea.vmem %s0, %s165
      %s167 = smul.u32 64, %s14
      %s168 = smul.u32 64, %s14
      %p169 = scmp.lt.s32.totalorder %s168, 255
      %s170 = scalar_select %p169, %s168, 255
      %s171 = smul.addr %s170, 8
      %s172 = scalar_lea.vmem %s3, %s171
      %s173 = smul.u32 64, %s14
      %v174 = vld [vmem:[%s166] sm:$0xff]
      %v175 = vld [vmem:[%s166 + $0x8] sm:$0xff]
      %v176 = vld [vmem:[%s166 + $0x10] sm:$0xff]
      %v177 = vld [vmem:[%s166 + $0x18] sm:$0xff]
      %v178 = vld [vmem:[%s166 + $0x20] sm:$0xff]
      %v179 = vld [vmem:[%s166 + $0x28] sm:$0xff]
      %v180 = vld [vmem:[%s166 + $0x30] sm:$0xff]
      %v181 = vld [vmem:[%s166 + $0x38] sm:$0xff]
      %v182 = vld [vmem:[%s166 + $0x40] sm:$0xff]
      %v183 = vld [vmem:[%s166 + $0x48] sm:$0xff]
      %v184 = vld [vmem:[%s166 + $0x50] sm:$0xff]
      %v185 = vld [vmem:[%s166 + $0x58] sm:$0xff]
      %v186 = vld [vmem:[%s166 + $0x60] sm:$0xff]
      %v187 = vld [vmem:[%s166 + $0x68] sm:$0xff]
      %v188 = vld [vmem:[%s166 + $0x70] sm:$0xff]
      %v189 = vld [vmem:[%s166 + $0x78] sm:$0xff]
      %v190 = vld [vmem:[%s166 + $0x80] sm:$0xff]
      %v191 = vld [vmem:[%s166 + $0x88] sm:$0xff]
      %v192 = vld [vmem:[%s166 + $0x90] sm:$0xff]
      %v193 = vld [vmem:[%s166 + $0x98] sm:$0xff]
      %v194 = vld [vmem:[%s166 + $0xa0] sm:$0xff]
      %v195 = vld [vmem:[%s166 + $0xa8] sm:$0xff]
      %v196 = vld [vmem:[%s166 + $0xb0] sm:$0xff]
      %v197 = vld [vmem:[%s166 + $0xb8] sm:$0xff]
      %v198 = vld [vmem:[%s166 + $0xc0] sm:$0xff]
      %v199 = vld [vmem:[%s166 + $0xc8] sm:$0xff]
      %v200 = vld [vmem:[%s166 + $0xd0] sm:$0xff]
      %v201 = vld [vmem:[%s166 + $0xd8] sm:$0xff]
      %v202 = vld [vmem:[%s166 + $0xe0] sm:$0xff]
      %v203 = vld [vmem:[%s166 + $0xe8] sm:$0xff]
      %v204 = vld [vmem:[%s166 + $0xf0] sm:$0xff]
      %v205 = vld [vmem:[%s166 + $0xf8] sm:$0xff]
      %v206 = vld [vmem:[%s166 + $0x100] sm:$0xff]
      %v207 = vld [vmem:[%s166 + $0x108] sm:$0xff]
      %v208 = vld [vmem:[%s166 + $0x110] sm:$0xff]
      %v209 = vld [vmem:[%s166 + $0x118] sm:$0xff]
      %v210 = vld [vmem:[%s166 + $0x120] sm:$0xff]
      %v211 = vld [vmem:[%s166 + $0x128] sm:$0xff]
      %v212 = vld [vmem:[%s166 + $0x130] sm:$0xff]
      %v213 = vld [vmem:[%s166 + $0x138] sm:$0xff]
      %v214 = vld [vmem:[%s166 + $0x140] sm:$0xff]
      %v215 = vld [vmem:[%s166 + $0x148] sm:$0xff]
      %v216 = vld [vmem:[%s166 + $0x150] sm:$0xff]
      %v217 = vld [vmem:[%s166 + $0x158] sm:$0xff]
      %v218 = vld [vmem:[%s166 + $0x160] sm:$0xff]
      %v219 = vld [vmem:[%s166 + $0x168] sm:$0xff]
      %v220 = vld [vmem:[%s166 + $0x170] sm:$0xff]
      %v221 = vld [vmem:[%s166 + $0x178] sm:$0xff]
      %v222 = vld [vmem:[%s166 + $0x180] sm:$0xff]
      %v223 = vld [vmem:[%s166 + $0x188] sm:$0xff]
      %v224 = vld [vmem:[%s166 + $0x190] sm:$0xff]
      %v225 = vld [vmem:[%s166 + $0x198] sm:$0xff]
      %v226 = vld [vmem:[%s166 + $0x1a0] sm:$0xff]
      %v227 = vld [vmem:[%s166 + $0x1a8] sm:$0xff]
      %v228 = vld [vmem:[%s166 + $0x1b0] sm:$0xff]
      %v229 = vld [vmem:[%s166 + $0x1b8] sm:$0xff]
      %v230 = vld [vmem:[%s166 + $0x1c0] sm:$0xff]
      %v231 = vld [vmem:[%s166 + $0x1c8] sm:$0xff]
      %v232 = vld [vmem:[%s166 + $0x1d0] sm:$0xff]
      %v233 = vld [vmem:[%s166 + $0x1d8] sm:$0xff]
      %v234 = vld [vmem:[%s166 + $0x1e0] sm:$0xff]
      %v235 = vld [vmem:[%s166 + $0x1e8] sm:$0xff]
      %v236 = vld [vmem:[%s166 + $0x1f0] sm:$0xff]
      %v237 = vld [vmem:[%s166 + $0x1f8] sm:$0xff]
      %v238 = vld [vmem:[%s1] sm:$0x1]
      %v240 = vperm.slane %v238, 0
      %v242 = vmul.f32 %v174, %v240
      %v243 = vmul.f32 %v175, %v240
      %v244 = vmul.f32 %v176, %v240
      %v245 = vmul.f32 %v177, %v240
      %v246 = vmul.f32 %v178, %v240
      %v247 = vmul.f32 %v179, %v240
      %v248 = vmul.f32 %v180, %v240
      %v249 = vmul.f32 %v181, %v240
      %v250 = vmul.f32 %v182, %v240
      %v251 = vmul.f32 %v183, %v240
      %v252 = vmul.f32 %v184, %v240
      %v253 = vmul.f32 %v185, %v240
      %v254 = vmul.f32 %v186, %v240
      %v255 = vmul.f32 %v187, %v240
      %v256 = vmul.f32 %v188, %v240
      %v257 = vmul.f32 %v189, %v240
      %v258 = vmul.f32 %v190, %v240
      %v259 = vmul.f32 %v191, %v240
      %v260 = vmul.f32 %v192, %v240
      %v261 = vmul.f32 %v193, %v240
      %v262 = vmul.f32 %v194, %v240
      %v263 = vmul.f32 %v195, %v240
      %v264 = vmul.f32 %v196, %v240
      %v265 = vmul.f32 %v197, %v240
      %v266 = vmul.f32 %v198, %v240
      %v267 = vmul.f32 %v199, %v240
      %v268 = vmul.f32 %v200, %v240
      %v269 = vmul.f32 %v201, %v240
      %v270 = vmul.f32 %v202, %v240
      %v271 = vmul.f32 %v203, %v240
      %v272 = vmul.f32 %v204, %v240
      %v273 = vmul.f32 %v205, %v240
      %v274 = vmul.f32 %v206, %v240
      %v275 = vmul.f32 %v207, %v240
      %v276 = vmul.f32 %v208, %v240
      %v277 = vmul.f32 %v209, %v240
      %v278 = vmul.f32 %v210, %v240
      %v279 = vmul.f32 %v211, %v240
      %v280 = vmul.f32 %v212, %v240
      %v281 = vmul.f32 %v213, %v240
      %v282 = vmul.f32 %v214, %v240
      %v283 = vmul.f32 %v215, %v240
      %v284 = vmul.f32 %v216, %v240
      %v285 = vmul.f32 %v217, %v240
      %v286 = vmul.f32 %v218, %v240
      %v287 = vmul.f32 %v219, %v240
      %v288 = vmul.f32 %v220, %v240
      %v289 = vmul.f32 %v221, %v240
      %v290 = vmul.f32 %v222, %v240
      %v291 = vmul.f32 %v223, %v240
      %v292 = vmul.f32 %v224, %v240
      %v293 = vmul.f32 %v225, %v240
      %v294 = vmul.f32 %v226, %v240
      %v295 = vmul.f32 %v227, %v240
      %v296 = vmul.f32 %v228, %v240
      %v297 = vmul.f32 %v229, %v240
      %v298 = vmul.f32 %v230, %v240
      %v299 = vmul.f32 %v231, %v240
      %v300 = vmul.f32 %v232, %v240
      %v301 = vmul.f32 %v233, %v240
      %v302 = vmul.f32 %v234, %v240
      %v303 = vmul.f32 %v235, %v240
      %v304 = vmul.f32 %v236, %v240
      %v305 = vmul.f32 %v237, %v240
      %v306 = vld [vmem:[%s2] sm:$0x1]
      %v308 = vperm.slane %v306, 0
      %v310 = vadd.f32 %v242, %v308
      %v311 = vadd.f32 %v243, %v308
      %v312 = vadd.f32 %v244, %v308
      %v313 = vadd.f32 %v245, %v308
      %v314 = vadd.f32 %v246, %v308
      %v315 = vadd.f32 %v247, %v308
      %v316 = vadd.f32 %v248, %v308
      %v317 = vadd.f32 %v249, %v308
      %v318 = vadd.f32 %v250, %v308
      %v319 = vadd.f32 %v251, %v308
      %v320 = vadd.f32 %v252, %v308
      %v321 = vadd.f32 %v253, %v308
      %v322 = vadd.f32 %v254, %v308
      %v323 = vadd.f32 %v255, %v308
      %v324 = vadd.f32 %v256, %v308
      %v325 = vadd.f32 %v257, %v308
      %v326 = vadd.f32 %v258, %v308
      %v327 = vadd.f32 %v259, %v308
      %v328 = vadd.f32 %v260, %v308
      %v329 = vadd.f32 %v261, %v308
      %v330 = vadd.f32 %v262, %v308
      %v331 = vadd.f32 %v263, %v308
      %v332 = vadd.f32 %v264, %v308
      %v333 = vadd.f32 %v265, %v308
      %v334 = vadd.f32 %v266, %v308
      %v335 = vadd.f32 %v267, %v308
      %v336 = vadd.f32 %v268, %v308
      %v337 = vadd.f32 %v269, %v308
      %v338 = vadd.f32 %v270, %v308
      %v339 = vadd.f32 %v271, %v308
      %v340 = vadd.f32 %v272, %v308
      %v341 = vadd.f32 %v273, %v308
      %v342 = vadd.f32 %v274, %v308
      %v343 = vadd.f32 %v275, %v308
      %v344 = vadd.f32 %v276, %v308
      %v345 = vadd.f32 %v277, %v308
      %v346 = vadd.f32 %v278, %v308
      %v347 = vadd.f32 %v279, %v308
      %v348 = vadd.f32 %v280, %v308
      %v349 = vadd.f32 %v281, %v308
      %v350 = vadd.f32 %v282, %v308
      %v351 = vadd.f32 %v283, %v308
      %v352 = vadd.f32 %v284, %v308
      %v353 = vadd.f32 %v285, %v308
      %v354 = vadd.f32 %v286, %v308
      %v355 = vadd.f32 %v287, %v308
      %v356 = vadd.f32 %v288, %v308
      %v357 = vadd.f32 %v289, %v308
      %v358 = vadd.f32 %v290, %v308
      %v359 = vadd.f32 %v291, %v308
      %v360 = vadd.f32 %v292, %v308
      %v361 = vadd.f32 %v293, %v308
      %v362 = vadd.f32 %v294, %v308
      %v363 = vadd.f32 %v295, %v308
      %v364 = vadd.f32 %v296, %v308
      %v365 = vadd.f32 %v297, %v308
      %v366 = vadd.f32 %v298, %v308
      %v367 = vadd.f32 %v299, %v308
      %v368 = vadd.f32 %v300, %v308
      %v369 = vadd.f32 %v301, %v308
      %v370 = vadd.f32 %v302, %v308
      %v371 = vadd.f32 %v303, %v308
      %v372 = vadd.f32 %v304, %v308
      %v373 = vadd.f32 %v305, %v308
      %v374 = vmax.f32 %v310, 0.0
      %v375 = vmax.f32 %v311, 0.0
      %v376 = vmax.f32 %v312, 0.0
      %v377 = vmax.f32 %v313, 0.0
      %v378 = vmax.f32 %v314, 0.0
      %v379 = vmax.f32 %v315, 0.0
      %v380 = vmax.f32 %v316, 0.0
      %v381 = vmax.f32 %v317, 0.0
      %v382 = vmax.f32 %v318, 0.0
      %v383 = vmax.f32 %v319, 0.0
      %v384 = vmax.f32 %v320, 0.0
      %v385 = vmax.f32 %v321, 0.0
      %v386 = vmax.f32 %v322, 0.0
      %v387 = vmax.f32 %v323, 0.0
      %v388 = vmax.f32 %v324, 0.0
      %v389 = vmax.f32 %v325, 0.0
      %v390 = vmax.f32 %v326, 0.0
      %v391 = vmax.f32 %v327, 0.0
      %v392 = vmax.f32 %v328, 0.0
      %v393 = vmax.f32 %v329, 0.0
      %v394 = vmax.f32 %v330, 0.0
      %v395 = vmax.f32 %v331, 0.0
      %v396 = vmax.f32 %v332, 0.0
      %v397 = vmax.f32 %v333, 0.0
      %v398 = vmax.f32 %v334, 0.0
      %v399 = vmax.f32 %v335, 0.0
      %v400 = vmax.f32 %v336, 0.0
      %v401 = vmax.f32 %v337, 0.0
      %v402 = vmax.f32 %v338, 0.0
      %v403 = vmax.f32 %v339, 0.0
      %v404 = vmax.f32 %v340, 0.0
      %v405 = vmax.f32 %v341, 0.0
      %v406 = vmax.f32 %v342, 0.0
      %v407 = vmax.f32 %v343, 0.0
      %v408 = vmax.f32 %v344, 0.0
      %v409 = vmax.f32 %v345, 0.0
      %v410 = vmax.f32 %v346, 0.0
      %v411 = vmax.f32 %v347, 0.0
      %v412 = vmax.f32 %v348, 0.0
      %v413 = vmax.f32 %v349, 0.0
      %v414 = vmax.f32 %v350, 0.0
      %v415 = vmax.f32 %v351, 0.0
      %v416 = vmax.f32 %v352, 0.0
      %v417 = vmax.f32 %v353, 0.0
      %v418 = vmax.f32 %v354, 0.0
      %v419 = vmax.f32 %v355, 0.0
      %v420 = vmax.f32 %v356, 0.0
      %v421 = vmax.f32 %v357, 0.0
      %v422 = vmax.f32 %v358, 0.0
      %v423 = vmax.f32 %v359, 0.0
      %v424 = vmax.f32 %v360, 0.0
      %v425 = vmax.f32 %v361, 0.0
      %v426 = vmax.f32 %v362, 0.0
      %v427 = vmax.f32 %v363, 0.0
      %v428 = vmax.f32 %v364, 0.0
      %v429 = vmax.f32 %v365, 0.0
      %v430 = vmax.f32 %v366, 0.0
      %v431 = vmax.f32 %v367, 0.0
      %v432 = vmax.f32 %v368, 0.0
      %v433 = vmax.f32 %v369, 0.0
      %v434 = vmax.f32 %v370, 0.0
      %v435 = vmax.f32 %v371, 0.0
      %v436 = vmax.f32 %v372, 0.0
      %v437 = vmax.f32 %v373, 0.0
      %438 = vst [vmem:[%s172] sm:$0xff] %v374
      %439 = vst [vmem:[%s172 + $0x8] sm:$0xff] %v375
      %440 = vst [vmem:[%s172 + $0x10] sm:$0xff] %v376
      %441 = vst [vmem:[%s172 + $0x18] sm:$0xff] %v377
      %442 = vst [vmem:[%s172 + $0x20] sm:$0xff] %v378
      %443 = vst [vmem:[%s172 + $0x28] sm:$0xff] %v379
      %444 = vst [vmem:[%s172 + $0x30] sm:$0xff] %v380
      %445 = vst [vmem:[%s172 + $0x38] sm:$0xff] %v381
      %446 = vst [vmem:[%s172 + $0x40] sm:$0xff] %v382
      %447 = vst [vmem:[%s172 + $0x48] sm:$0xff] %v383
      %448 = vst [vmem:[%s172 + $0x50] sm:$0xff] %v384
      %449 = vst [vmem:[%s172 + $0x58] sm:$0xff] %v385
      %450 = vst [vmem:[%s172 + $0x60] sm:$0xff] %v386
      %451 = vst [vmem:[%s172 + $0x68] sm:$0xff] %v387
      %452 = vst [vmem:[%s172 + $0x70] sm:$0xff] %v388
      %453 = vst [vmem:[%s172 + $0x78] sm:$0xff] %v389
      %454 = vst [vmem:[%s172 + $0x80] sm:$0xff] %v390
      %455 = vst [vmem:[%s172 + $0x88] sm:$0xff] %v391
      %456 = vst [vmem:[%s172 + $0x90] sm:$0xff] %v392
      %457 = vst [vmem:[%s172 + $0x98] sm:$0xff] %v393
      %458 = vst [vmem:[%s172 + $0xa0] sm:$0xff] %v394
      %459 = vst [vmem:[%s172 + $0xa8] sm:$0xff] %v395
      %460 = vst [vmem:[%s172 + $0xb0] sm:$0xff] %v396
      %461 = vst [vmem:[%s172 + $0xb8] sm:$0xff] %v397
      %462 = vst [vmem:[%s172 + $0xc0] sm:$0xff] %v398
      %463 = vst [vmem:[%s172 + $0xc8] sm:$0xff] %v399
      %464 = vst [vmem:[%s172 + $0xd0] sm:$0xff] %v400
      %465 = vst [vmem:[%s172 + $0xd8] sm:$0xff] %v401
      %466 = vst [vmem:[%s172 + $0xe0] sm:$0xff] %v402
      %467 = vst [vmem:[%s172 + $0xe8] sm:$0xff] %v403
      %468 = vst [vmem:[%s172 + $0xf0] sm:$0xff] %v404
      %469 = vst [vmem:[%s172 + $0xf8] sm:$0xff] %v405
      %470 = vst [vmem:[%s172 + $0x100] sm:$0xff] %v406
      %471 = vst [vmem:[%s172 + $0x108] sm:$0xff] %v407
      %472 = vst [vmem:[%s172 + $0x110] sm:$0xff] %v408
      %473 = vst [vmem:[%s172 + $0x118] sm:$0xff] %v409
      %474 = vst [vmem:[%s172 + $0x120] sm:$0xff] %v410
      %475 = vst [vmem:[%s172 + $0x128] sm:$0xff] %v411
      %476 = vst [vmem:[%s172 + $0x130] sm:$0xff] %v412
      %477 = vst [vmem:[%s172 + $0x138] sm:$0xff] %v413
      %478 = vst [vmem:[%s172 + $0x140] sm:$0xff] %v414
      %479 = vst [vmem:[%s172 + $0x148] sm:$0xff] %v415
      %480 = vst [vmem:[%s172 + $0x150] sm:$0xff] %v416
      %481 = vst [vmem:[%s172 + $0x158] sm:$0xff] %v417
      %482 = vst [vmem:[%s172 + $0x160] sm:$0xff] %v418
      %483 = vst [vmem:[%s172 + $0x168] sm:$0xff] %v419
      %484 = vst [vmem:[%s172 + $0x170] sm:$0xff] %v420
      %485 = vst [vmem:[%s172 + $0x178] sm:$0xff] %v421
      %486 = vst [vmem:[%s172 + $0x180] sm:$0xff] %v422
      %487 = vst [vmem:[%s172 + $0x188] sm:$0xff] %v423
      %488 = vst [vmem:[%s172 + $0x190] sm:$0xff] %v424
      %489 = vst [vmem:[%s172 + $0x198] sm:$0xff] %v425
      %490 = vst [vmem:[%s172 + $0x1a0] sm:$0xff] %v426
      %491 = vst [vmem:[%s172 + $0x1a8] sm:$0xff] %v427
      %492 = vst [vmem:[%s172 + $0x1b0] sm:$0xff] %v428
      %493 = vst [vmem:[%s172 + $0x1b8] sm:$0xff] %v429
      %494 = vst [vmem:[%s172 + $0x1c0] sm:$0xff] %v430
      %495 = vst [vmem:[%s172 + $0x1c8] sm:$0xff] %v431
      %496 = vst [vmem:[%s172 + $0x1d0] sm:$0xff] %v432
      %497 = vst [vmem:[%s172 + $0x1d8] sm:$0xff] %v433
      %498 = vst [vmem:[%s172 + $0x1e0] sm:$0xff] %v434
      %499 = vst [vmem:[%s172 + $0x1e8] sm:$0xff] %v435
      %500 = vst [vmem:[%s172 + $0x1f0] sm:$0xff] %v436
      %501 = vst [vmem:[%s172 + $0x1f8] sm:$0xff] %v437
      %s502 = smul.u32 64, %s14
      %p503 = scmp.lt.s32.totalorder %s502, 255
      %s504 = scalar_select %p503, %s502, 255
      %s505 = smul.addr %s504, 8
      %s506 = scalar_lea.vmem %s3, %s505
      // Predicated region
      $region33: #{_lambda_.57} parent=31 // pred_check
        %p507 = pneg %p100
      $region34: #{_lambda_.57} parent=31 // pred_check_branch
        %509 = sbr.rel (%p507) target = $region36
      $region35: #{_lambda_.57} parent=31 // pred_region
        %s510 = smul.u32 64, %s14
      $region36: #{_lambda_.57} parent=31 // pred_fallthru
        _
    $region32: #{_lambda_.57} parent=5 // pred_fallthru
      _
    %p511 = scmp.le.s32.totalorder 2, %s9
    // Predicated region
    $region37: #{_lambda_.57} parent=5 // pred_check
      %p512 = pneg %p511
    $region38: #{_lambda_.57} parent=5 // pred_check_branch
      %514 = sbr.rel (%p512) target = $region40
    $region39: #{_lambda_.57} parent=5 // pred_region
      %s515 = ssub.s32 %s9, 2
      // Predicated region
      $region41: #{_lambda_.57} parent=39 // pred_check
        %p516 = pneg %p106
      $region42: #{_lambda_.57} parent=39 // pred_check_branch
        %518 = sbr.rel (%p516) target = $region44
      $region43: #{_lambda_.57} parent=39 // pred_region
        %s519 = smul.u32 64, %s15
        %p520 = scmp.lt.s32.totalorder %s519, 255
        %s521 = scalar_select %p520, %s519, 255
        %s522 = smul.addr %s521, 8
        %s523 = scalar_lea.vmem %s3, %s522
      $region44: #{_lambda_.57} parent=39 // pred_fallthru
        _
    $region40: #{_lambda_.57} parent=5 // pred_fallthru
      _
  $region6: #{_lambda_.57} parent=0 // loop_footer
    %s13 = sadd.s32 1, %s9
  $region7: #{_lambda_.57} parent=0 // loop_footer_branch
    %8 = sbr.rel target = $region3
  $region8: #{_lambda_.57} parent=0 // loop_exit
    _

// kernel: _lambda_.62
$region0: #{_lambda_.62}
  #allocation0 [shape = 'u32[]', space=smem, size = 0x4, offset = 0x4, fixed_abs, tag = 'smem constant byte address 0x4 - core index']
  #allocation1 [shape = 'u32[72,128]{1,0:T(1,128)}', space=vmem, size = 0x9000, scoped, tag = 'internal scratch']
  %s0 = inlined_call_operand.vmem [shape: bf16[2048,128], index: 0, kind: input, shape index: {}]
  %s1 = inlined_call_operand.vmem [shape: bf16[128,128], index: 1, kind: input, shape index: {}]
  %s2 = inlined_call_operand.vmem [shape: f32[1,128], index: 2, kind: input, shape index: {}]
  %s3 = inlined_call_operand.vmem [shape: f32[2048,128], index: 3, kind: output, shape index: {}]
  %s4 = sld [smem:[#allocation0]]
  $region45: #{_lambda_.62} parent=0
    _
  %s6 = ssub.s32 1, %s4
  %s7 = scalar_select 0, %s6, %s4
  loop: start=0, step=1, limit=6
  $region2: #{_lambda_.62} parent=0 // loop_pre_header
    _
  $region3: #{_lambda_.62} parent=0 // loop_header
    %s9 = sphi 0, %s13
    %p10 = scmp.ge.s32.totalorder %s9, 6
    %s16 = sphi 0, %s28
    %s17 = sphi 0, %s24
    %s18 = sphi 0, %s16
    %s19 = sphi 0, %s17
    %s20 = sphi 0, %s18
    %s21 = sphi 0, %s19
    %s31 = sphi 0, %s33
    %s34 = sphi 0, %s31
    %s35 = sphi 0, %s34
    %s51 = sphi 0, %s35
    %s57 = sphi 0, %s59
    %s60 = sphi 0, %s57
    %s61 = sphi 0, %s60
    %s77 = sphi 0, %s61
    %s83 = sphi 0, %s85
    %s86 = sphi 0, %s83
    %s87 = sphi 0, %s86
    %s103 = sphi 0, %s87
    %s111 = sphi 0, %s113
    %s114 = sphi 0, %s111
    %s115 = sphi 0, %s114
    %s131 = sphi 0, %s115
  $region4: #{_lambda_.62} parent=0 // loop_header_branch
    %12 = sbr.rel (%p10) target = $region8
  $region5: #{_lambda_.62} parent=0 // loop_body
    %s14 = ssub.s32 %s9, 1
    %s15 = ssub.s32 %s9, 2
    %s22 = sadd.s32 1, %s17
    %p23 = scmp.ge.s32.totalorder %s22, 1
    %s24 = scalar_select %p23, 0, %s22
    %s25 = sadd.s32 1, %s16
    %s26 = scalar_select %p23, %s25, %s16
    %p27 = scmp.ge.s32.totalorder %s26, 4
    %s28 = scalar_select %p27, 0, %s26
    %s29 = ssub.s32 %s16, %s28
    %p30 = scmp.eq.s32.totalorder %s29, 0
    %s32 = sadd.s32 %s31, 1
    %s33 = scalar_select %p30, %s31, %s32
    %p36 = pneg %p30
    %p37 = scmp.eq.s32.totalorder %s9, 3
    %p38 = por %p36, %p37
    %p39 = scmp.ne.s32.totalorder %s31, %s34
    %p40 = scmp.eq.s32.totalorder %s9, 0
    %p41 = por %p39, %p40
    %p42 = scmp.ne.s32.totalorder %s31, %s34
    %p43 = scmp.eq.s32.totalorder %s14, 3
    %p44 = por %p42, %p43
    %p45 = scmp.ne.s32.totalorder %s34, %s35
    %p46 = scmp.eq.s32.totalorder %s14, 0
    %p47 = por %p45, %p46
    %p48 = scmp.ne.s32.totalorder %s34, %s35
    %p49 = scmp.eq.s32.totalorder %s15, 3
    %p50 = por %p48, %p49
    %p52 = scmp.ne.s32.totalorder %s35, %s51
    %p53 = scmp.eq.s32.totalorder %s15, 0
    %p54 = por %p52, %p53
    %s55 = ssub.s32 %s17, %s24
    %p56 = scmp.eq.s32.totalorder %s55, 0
    %s58 = sadd.s32 %s57, 1
    %s59 = scalar_select %p56, %s57, %s58
    %p62 = pneg %p56
    %p63 = scmp.eq.s32.totalorder %s9, 3
    %p64 = por %p62, %p63
    %p65 = scmp.ne.s32.totalorder %s57, %s60
    %p66 = scmp.eq.s32.totalorder %s9, 0
    %p67 = por %p65, %p66
    %p68 = scmp.ne.s32.totalorder %s57, %s60
    %p69 = scmp.eq.s32.totalorder %s14, 3
    %p70 = por %p68, %p69
    %p71 = scmp.ne.s32.totalorder %s60, %s61
    %p72 = scmp.eq.s32.totalorder %s14, 0
    %p73 = por %p71, %p72
    %p74 = scmp.ne.s32.totalorder %s60, %s61
    %p75 = scmp.eq.s32.totalorder %s15, 3
    %p76 = por %p74, %p75
    %p78 = scmp.ne.s32.totalorder %s61, %s77
    %p79 = scmp.eq.s32.totalorder %s15, 0
    %p80 = por %p78, %p79
    %s81 = ssub.s32 %s17, %s24
    %p82 = scmp.eq.s32.totalorder %s81, 0
    %s84 = sadd.s32 %s83, 1
    %s85 = scalar_select %p82, %s83, %s84
    %p88 = pneg %p82
    %p89 = scmp.eq.s32.totalorder %s9, 3
    %p90 = por %p88, %p89
    %p91 = scmp.ne.s32.totalorder %s83, %s86
    %p92 = scmp.eq.s32.totalorder %s9, 0
    %p93 = por %p91, %p92
    %p94 = scmp.ne.s32.totalorder %s83, %s86
    %p95 = scmp.eq.s32.totalorder %s14, 3
    %p96 = por %p94, %p95
    %p97 = scmp.ne.s32.totalorder %s86, %s87
    %p98 = scmp.eq.s32.totalorder %s14, 0
    %p99 = por %p97, %p98
    %p100 = scmp.ne.s32.totalorder %s86, %s87
    %p101 = scmp.eq.s32.totalorder %s15, 3
    %p102 = por %p100, %p101
    %p104 = scmp.ne.s32.totalorder %s87, %s103
    %p105 = scmp.eq.s32.totalorder %s15, 0
    %p106 = por %p104, %p105
    %s107 = ssub.s32 %s16, %s28
    %s108 = ssub.s32 %s17, %s24
    %s109 = sor.u32 %s107, %s108
    %p110 = scmp.eq.s32.totalorder %s109, 0
    %s112 = sadd.s32 %s111, 1
    %s113 = scalar_select %p110, %s111, %s112
    %p116 = pneg %p110
    %p117 = scmp.eq.s32.totalorder %s9, 3
    %p118 = por %p116, %p117
    %p119 = scmp.ne.s32.totalorder %s111, %s114
    %p120 = scmp.eq.s32.totalorder %s9, 0
    %p121 = por %p119, %p120
    %p122 = scmp.ne.s32.totalorder %s111, %s114
    %p123 = scmp.eq.s32.totalorder %s14, 3
    %p124 = por %p122, %p123
    %p125 = scmp.ne.s32.totalorder %s114, %s115
    %p126 = scmp.eq.s32.totalorder %s14, 0
    %p127 = por %p125, %p126
    %p128 = scmp.ne.s32.totalorder %s114, %s115
    %p129 = scmp.eq.s32.totalorder %s15, 3
    %p130 = por %p128, %p129
    %p132 = scmp.ne.s32.totalorder %s115, %s131
    %p133 = scmp.eq.s32.totalorder %s15, 0
    %p134 = por %p132, %p133
    %p135 = scmp.le.s32.totalorder 1, %s9
    %p136 = scmp.lt.s32.totalorder %s9, 5
    %p137 = pnand %p135, %p136
    %p138 = pneg %p137
    // Predicated region
    $region9: #{_lambda_.62} parent=5 // pred_check
      _
    $region10: #{_lambda_.62} parent=5 // pred_check_branch
      %140 = sbr.rel (%p137) target = $region12
    $region11: #{_lambda_.62} parent=5 // pred_region
      %s141 = ssub.s32 %s9, 1
      // Predicated region
      $region13: #{_lambda_.62} parent=11 // pred_check
        %p142 = pneg %p73
      $region14: #{_lambda_.62} parent=11 // pred_check_branch
        %144 = sbr.rel (%p142) target = $region16
      $region15: #{_lambda_.62} parent=11 // pred_region
        %p145 = scmp.lt.s32.totalorder %s19, 0
        %s146 = scalar_select %p145, %s19, 0
        %s147 = smul.addr %s146, 4
        %s148 = scalar_lea.vmem %s1, %s147
      $region16: #{_lambda_.62} parent=11 // pred_fallthru
        _
      // Predicated region
      $region17: #{_lambda_.62} parent=11 // pred_check
        %p149 = pneg %p99
      $region18: #{_lambda_.62} parent=11 // pred_check_branch
        %151 = sbr.rel (%p149) target = $region20
      $region19: #{_lambda_.62} parent=11 // pred_region
        %p152 = scmp.lt.s32.totalorder %s19, 0
        %s153 = scalar_select %p152, %s19, 0
        %s154 = scalar_lea.vmem %s2, %s153
      $region20: #{_lambda_.62} parent=11 // pred_fallthru
        _
    $region12: #{_lambda_.62} parent=5 // pred_fallthru
      _
    %p155 = scmp.lt.s32.totalorder %s9, 4
    // Predicated region
    $region21: #{_lambda_.62} parent=5 // pred_check
      %p156 = pneg %p155
    $region22: #{_lambda_.62} parent=5 // pred_check_branch
      %158 = sbr.rel (%p156) target = $region24
    $region23: #{_lambda_.62} parent=5 // pred_region
      // Predicated region
      $region25: #{_lambda_.62} parent=23 // pred_check
        %p159 = pneg %p41
      $region26: #{_lambda_.62} parent=23 // pred_check_branch
        %161 = sbr.rel (%p159) target = $region28
      $region27: #{_lambda_.62} parent=23 // pred_region
        %s162 = smul.u32 64, %s16
        %p163 = scmp.lt.s32.totalorder %s162, 255
        %s164 = scalar_select %p163, %s162, 255
        %s165 = smul.addr %s164, 4
        %s166 = scalar_lea.vmem %s0, %s165
        %s167 = smul.u32 64, %s16
      $region28: #{_lambda_.62} parent=23 // pred_fallthru
        _
    $region24: #{_lambda_.62} parent=5 // pred_fallthru
      _
    %p168 = scmp.le.s32.totalorder 1, %s9
    %p169 = scmp.lt.s32.totalorder %s9, 5
    %p170 = pnand %p168, %p169
    %p171 = pneg %p170
    // Predicated region
    $region29: #{_lambda_.62} parent=5 // pred_check
      _
    $region30: #{_lambda_.62} parent=5 // pred_check_branch
      %173 = sbr.rel (%p170) target = $region32
    $region31: #{_lambda_.62} parent=5 // pred_region
      %s174 = ssub.s32 %s9, 1
      %s175 = smul.u32 64, %s18
      %p176 = scmp.lt.s32.totalorder %s175, 255
      %s177 = scalar_select %p176, %s175, 255
      %s178 = smul.addr %s177, 4
      %s179 = scalar_lea.vmem %s0, %s178
      %p180 = pneg %p47
      %p181 = pneg %p44
      %p182 = scmp.lt.s32.totalorder %s19, 0
      %s183 = scalar_select %p182, %s19, 0
      %s184 = smul.addr %s183, 4
      %s185 = scalar_lea.vmem %s1, %s184
      %p186 = pneg %p73
      %p187 = pneg %p70
      %p188 = scmp.lt.s32.totalorder %s19, 0
      %s189 = scalar_select %p188, %s19, 0
      %s190 = scalar_lea.vmem %s2, %s189
      %p191 = pneg %p99
      %p192 = pneg %p96
      %p193 = pneg %p127
      %p194 = pneg %p124
      %s195 = smul.u32 64, %s18
      %p196 = scmp.lt.s32.totalorder %s195, 255
      %s197 = scalar_select %p196, %s195, 255
      %p198 = scmp.lt.s32.totalorder %s19, 0
      %s199 = scalar_select %p198, %s19, 0
      %s200 = sadd.s32 %s199, %s197
      %s201 = smul.addr %s200, 8
      %s202 = scalar_lea.vmem %s3, %s201
      %s203 = smul.u32 64, %s18
      %p204 = scmp.lt.s32.totalorder %s203, 255
      %s205 = scalar_select %p204, %s203, 255
      %s206 = smul.addr %s205, 4
      %s207 = scalar_lea.vmem %s0, %s206
      %s208 = smul.u32 64, %s18
      %p209 = scmp.lt.s32.totalorder %s19, 0
      %s210 = scalar_select %p209, %s19, 0
      %s211 = smul.addr %s210, 4
      %s212 = scalar_lea.vmem %s1, %s211
      %p213 = scmp.lt.s32.totalorder %s19, 0
      %s214 = scalar_select %p213, %s19, 0
      %s215 = scalar_lea.vmem %s2, %s214
      %s216 = smul.u32 64, %s18
      %p217 = scmp.lt.s32.totalorder %s216, 255
      %s218 = scalar_select %p217, %s216, 255
      %p219 = scmp.lt.s32.totalorder %s19, 0
      %s220 = scalar_select %p219, %s19, 0
      %s221 = sadd.s32 %s220, %s218
      %s222 = smul.addr %s221, 8
      %s223 = scalar_lea.vmem %s3, %s222
      %s224 = smul.u32 64, %s18
      %v225 = vld [vmem:[%s207] sm:$0xf]
      %v226 = vld [vmem:[%s207 + $0x4] sm:$0xf]
      %v227 = vld [vmem:[%s207 + $0x8] sm:$0xf]
      %v228 = vld [vmem:[%s207 + $0xc] sm:$0xf]
      %v229 = vld [vmem:[%s207 + $0x10] sm:$0xf]
      %v230 = vld [vmem:[%s207 + $0x14] sm:$0xf]
      %v231 = vld [vmem:[%s207 + $0x18] sm:$0xf]
      %v232 = vld [vmem:[%s207 + $0x1c] sm:$0xf]
      %v233 = vld [vmem:[%s207 + $0x20] sm:$0xf]
      %v234 = vld [vmem:[%s207 + $0x24] sm:$0xf]
      %v235 = vld [vmem:[%s207 + $0x28] sm:$0xf]
      %v236 = vld [vmem:[%s207 + $0x2c] sm:$0xf]
      %v237 = vld [vmem:[%s207 + $0x30] sm:$0xf]
      %v238 = vld [vmem:[%s207 + $0x34] sm:$0xf]
      %v239 = vld [vmem:[%s207 + $0x38] sm:$0xf]
      %v240 = vld [vmem:[%s207 + $0x3c] sm:$0xf]
      %v241 = vld [vmem:[%s207 + $0x40] sm:$0xf]
      %v242 = vld [vmem:[%s207 + $0x44] sm:$0xf]
      %v243 = vld [vmem:[%s207 + $0x48] sm:$0xf]
      %v244 = vld [vmem:[%s207 + $0x4c] sm:$0xf]
      %v245 = vld [vmem:[%s207 + $0x50] sm:$0xf]
      %v246 = vld [vmem:[%s207 + $0x54] sm:$0xf]
      %v247 = vld [vmem:[%s207 + $0x58] sm:$0xf]
      %v248 = vld [vmem:[%s207 + $0x5c] sm:$0xf]
      %v249 = vld [vmem:[%s207 + $0x60] sm:$0xf]
      %v250 = vld [vmem:[%s207 + $0x64] sm:$0xf]
      %v251 = vld [vmem:[%s207 + $0x68] sm:$0xf]
      %v252 = vld [vmem:[%s207 + $0x6c] sm:$0xf]
      %v253 = vld [vmem:[%s207 + $0x70] sm:$0xf]
      %v254 = vld [vmem:[%s207 + $0x74] sm:$0xf]
      %v255 = vld [vmem:[%s207 + $0x78] sm:$0xf]
      %v256 = vld [vmem:[%s207 + $0x7c] sm:$0xf]
      %v257 = vld [vmem:[%s207 + $0x80] sm:$0xf]
      %v258 = vld [vmem:[%s207 + $0x84] sm:$0xf]
      %v259 = vld [vmem:[%s207 + $0x88] sm:$0xf]
      %v260 = vld [vmem:[%s207 + $0x8c] sm:$0xf]
      %v261 = vld [vmem:[%s207 + $0x90] sm:$0xf]
      %v262 = vld [vmem:[%s207 + $0x94] sm:$0xf]
      %v263 = vld [vmem:[%s207 + $0x98] sm:$0xf]
      %v264 = vld [vmem:[%s207 + $0x9c] sm:$0xf]
      %v265 = vld [vmem:[%s207 + $0xa0] sm:$0xf]
      %v266 = vld [vmem:[%s207 + $0xa4] sm:$0xf]
      %v267 = vld [vmem:[%s207 + $0xa8] sm:$0xf]
      %v268 = vld [vmem:[%s207 + $0xac] sm:$0xf]
      %v269 = vld [vmem:[%s207 + $0xb0] sm:$0xf]
      %v270 = vld [vmem:[%s207 + $0xb4] sm:$0xf]
      %v271 = vld [vmem:[%s207 + $0xb8] sm:$0xf]
      %v272 = vld [vmem:[%s207 + $0xbc] sm:$0xf]
      %v273 = vld [vmem:[%s207 + $0xc0] sm:$0xf]
      %v274 = vld [vmem:[%s207 + $0xc4] sm:$0xf]
      %v275 = vld [vmem:[%s207 + $0xc8] sm:$0xf]
      %v276 = vld [vmem:[%s207 + $0xcc] sm:$0xf]
      %v277 = vld [vmem:[%s207 + $0xd0] sm:$0xf]
      %v278 = vld [vmem:[%s207 + $0xd4] sm:$0xf]
      %v279 = vld [vmem:[%s207 + $0xd8] sm:$0xf]
      %v280 = vld [vmem:[%s207 + $0xdc] sm:$0xf]
      %v281 = vld [vmem:[%s207 + $0xe0] sm:$0xf]
      %v282 = vld [vmem:[%s207 + $0xe4] sm:$0xf]
      %v283 = vld [vmem:[%s207 + $0xe8] sm:$0xf]
      %v284 = vld [vmem:[%s207 + $0xec] sm:$0xf]
      %v285 = vld [vmem:[%s207 + $0xf0] sm:$0xf]
      %v286 = vld [vmem:[%s207 + $0xf4] sm:$0xf]
      %v287 = vld [vmem:[%s207 + $0xf8] sm:$0xf]
      %v288 = vld [vmem:[%s207 + $0xfc] sm:$0xf]
      %v289 = vld [vmem:[%s212] sm:$0xf]
      %v290 = vld [vmem:[%s212 + $0x4] sm:$0xf]
      %v291 = vld [vmem:[%s212 + $0x8] sm:$0xf]
      %v292 = vld [vmem:[%s212 + $0xc] sm:$0xf]
      %v293 = vld [vmem:[%s212 + $0x10] sm:$0xf]
      %v294 = vld [vmem:[%s212 + $0x14] sm:$0xf]
      %v295 = vld [vmem:[%s212 + $0x18] sm:$0xf]
      %v296 = vld [vmem:[%s212 + $0x1c] sm:$0xf]
      %v297 = vld [vmem:[%s212 + $0x20] sm:$0xf]
      %v298 = vld [vmem:[%s212 + $0x24] sm:$0xf]
      %v299 = vld [vmem:[%s212 + $0x28] sm:$0xf]
      %v300 = vld [vmem:[%s212 + $0x2c] sm:$0xf]
      %v301 = vld [vmem:[%s212 + $0x30] sm:$0xf]
      %v302 = vld [vmem:[%s212 + $0x34] sm:$0xf]
      %v303 = vld [vmem:[%s212 + $0x38] sm:$0xf]
      %v304 = vld [vmem:[%s212 + $0x3c] sm:$0xf]
      %v305 = vld [vmem:[%s215] sm:$0x1]
      %v307 = vperm.slane %v305, 0
      %v373 = vunpack.c.l.b16 %v225
      %v374 = vunpack.c.l.b16 %v226
      %v375 = vunpack.c.l.b16 %v227
      %v376 = vunpack.c.l.b16 %v228
      %v377 = vunpack.c.l.b16 %v229
      %v378 = vunpack.c.l.b16 %v230
      %v379 = vunpack.c.l.b16 %v231
      %v380 = vunpack.c.l.b16 %v232
      %v381 = vunpack.c.l.b16 %v233
      %v382 = vunpack.c.l.b16 %v234
      %v383 = vunpack.c.l.b16 %v235
      %v384 = vunpack.c.l.b16 %v236
      %v385 = vunpack.c.l.b16 %v237
      %v386 = vunpack.c.l.b16 %v238
      %v387 = vunpack.c.l.b16 %v239
      %v388 = vunpack.c.l.b16 %v240
      %v389 = vunpack.c.l.b16 %v241
      %v390 = vunpack.c.l.b16 %v242
      %v391 = vunpack.c.l.b16 %v243
      %v392 = vunpack.c.l.b16 %v244
      %v393 = vunpack.c.l.b16 %v245
      %v394 = vunpack.c.l.b16 %v246
      %v395 = vunpack.c.l.b16 %v247
      %v396 = vunpack.c.l.b16 %v248
      %v397 = vunpack.c.l.b16 %v249
      %v398 = vunpack.c.l.b16 %v250
      %v399 = vunpack.c.l.b16 %v251
      %v400 = vunpack.c.l.b16 %v252
      %v401 = vunpack.c.l.b16 %v253
      %v402 = vunpack.c.l.b16 %v254
      %v403 = vunpack.c.l.b16 %v255
      %v404 = vunpack.c.l.b16 %v256
      %v405 = vunpack.c.l.b16 %v257
      %v406 = vunpack.c.l.b16 %v258
      %v407 = vunpack.c.l.b16 %v259
      %v408 = vunpack.c.l.b16 %v260
      %v409 = vunpack.c.l.b16 %v261
      %v410 = vunpack.c.l.b16 %v262
      %v411 = vunpack.c.l.b16 %v263
      %v412 = vunpack.c.l.b16 %v264
      %v413 = vunpack.c.l.b16 %v265
      %v414 = vunpack.c.l.b16 %v266
      %v415 = vunpack.c.l.b16 %v267
      %v416 = vunpack.c.l.b16 %v268
      %v417 = vunpack.c.l.b16 %v269
      %v418 = vunpack.c.l.b16 %v270
      %v419 = vunpack.c.l.b16 %v271
      %v420 = vunpack.c.l.b16 %v272
      %v421 = vunpack.c.l.b16 %v273
      %v422 = vunpack.c.l.b16 %v274
      %v423 = vunpack.c.l.b16 %v275
      %v424 = vunpack.c.l.b16 %v276
      %v425 = vunpack.c.l.b16 %v277
      %v426 = vunpack.c.l.b16 %v278
      %v427 = vunpack.c.l.b16 %v279
      %v428 = vunpack.c.l.b16 %v280
      %v429 = vunpack.c.l.b16 %v281
      %v430 = vunpack.c.l.b16 %v282
      %v431 = vunpack.c.l.b16 %v283
      %v432 = vunpack.c.l.b16 %v284
      %v433 = vunpack.c.l.b16 %v285
      %v434 = vunpack.c.l.b16 %v286
      %v435 = vunpack.c.l.b16 %v287
      %v436 = vunpack.c.l.b16 %v288
      %v437 = vpack.c.b16 %v374, %v373
      %v438 = vpack.c.b16 %v376, %v375
      %v439 = vpack.c.b16 %v378, %v377
      %v440 = vpack.c.b16 %v380, %v379
      %v441 = vpack.c.b16 %v382, %v381
      %v442 = vpack.c.b16 %v384, %v383
      %v443 = vpack.c.b16 %v386, %v385
      %v444 = vpack.c.b16 %v388, %v387
      %v445 = vpack.c.b16 %v390, %v389
      %v446 = vpack.c.b16 %v392, %v391
      %v447 = vpack.c.b16 %v394, %v393
      %v448 = vpack.c.b16 %v396, %v395
      %v449 = vpack.c.b16 %v398, %v397
      %v450 = vpack.c.b16 %v400, %v399
      %v451 = vpack.c.b16 %v402, %v401
      %v452 = vpack.c.b16 %v404, %v403
      %v453 = vpack.c.b16 %v406, %v405
      %v454 = vpack.c.b16 %v408, %v407
      %v455 = vpack.c.b16 %v410, %v409
      %v456 = vpack.c.b16 %v412, %v411
      %v457 = vpack.c.b16 %v414, %v413
      %v458 = vpack.c.b16 %v416, %v415
      %v459 = vpack.c.b16 %v418, %v417
      %v460 = vpack.c.b16 %v420, %v419
      %v461 = vpack.c.b16 %v422, %v421
      %v462 = vpack.c.b16 %v424, %v423
      %v463 = vpack.c.b16 %v426, %v425
      %v464 = vpack.c.b16 %v428, %v427
      %v465 = vpack.c.b16 %v430, %v429
      %v466 = vpack.c.b16 %v432, %v431
      %v467 = vpack.c.b16 %v434, %v433
      %v468 = vpack.c.b16 %v436, %v435
      %v517 = vunpack.c.l.b16 %v289
      %v518 = vunpack.c.l.b16 %v290
      %v519 = vunpack.c.l.b16 %v291
      %v520 = vunpack.c.l.b16 %v292
      %v521 = vunpack.c.l.b16 %v293
      %v522 = vunpack.c.l.b16 %v294
      %v523 = vunpack.c.l.b16 %v295
      %v524 = vunpack.c.l.b16 %v296
      %v525 = vunpack.c.l.b16 %v297
      %v526 = vunpack.c.l.b16 %v298
      %v527 = vunpack.c.l.b16 %v299
      %v528 = vunpack.c.l.b16 %v300
      %v529 = vunpack.c.l.b16 %v301
      %v530 = vunpack.c.l.b16 %v302
      %v531 = vunpack.c.l.b16 %v303
      %v532 = vunpack.c.l.b16 %v304
      %v533 = vpack.c.b16 %v518, %v517
      %v534 = vpack.c.b16 %v520, %v519
      %v535 = vpack.c.b16 %v522, %v521
      %v536 = vpack.c.b16 %v524, %v523
      %v537 = vpack.c.b16 %v526, %v525
      %v538 = vpack.c.b16 %v528, %v527
      %v539 = vpack.c.b16 %v530, %v529
      %v540 = vpack.c.b16 %v532, %v531
      %549 = vmatpush.bf16.msra.mxu0 %v540
      %550 = vmatpush.bf16.msra.mxu0 %v539
      %551 = vmatpush.bf16.msra.mxu0 %v538
      %552 = vmatpush.bf16.msra.mxu0 %v537
      %553 = vmatpush.bf16.msra.mxu0 %v536
      %554 = vmatpush.bf16.msra.mxu0 %v535
      %555 = vmatpush.bf16.msra.mxu0 %v534
      %556 = vmatpush.bf16.msra.mxu0 %v533
      %557 = vmatmul.bf16.gmra.mxu0 %v437
      %v558 = vpop.f32.mrf.mxu0
      %v559 = vadd.f32 %v307, %v558
      %v560 = vpop.f32.mrf.mxu0
      %v561 = vadd.f32 %v307, %v560
      %562 = vmatmul.bf16.gmra.mxu0 %v438
      %v563 = vpop.f32.mrf.mxu0
      %v564 = vadd.f32 %v307, %v563
      %v565 = vpop.f32.mrf.mxu0
      %v566 = vadd.f32 %v307, %v565
      %567 = vmatmul.bf16.gmra.mxu0 %v439
      %v568 = vpop.f32.mrf.mxu0
      %v569 = vadd.f32 %v307, %v568
      %v570 = vpop.f32.mrf.mxu0
      %v571 = vadd.f32 %v307, %v570
      %572 = vmatmul.bf16.gmra.mxu0 %v440
      %v573 = vpop.f32.mrf.mxu0
      %v574 = vadd.f32 %v307, %v573
      %v575 = vpop.f32.mrf.mxu0
      %v576 = vadd.f32 %v307, %v575
      %577 = vmatmul.bf16.gmra.mxu0 %v441
      %v578 = vpop.f32.mrf.mxu0
      %v579 = vadd.f32 %v307, %v578
      %v580 = vpop.f32.mrf.mxu0
      %v581 = vadd.f32 %v307, %v580
      %582 = vmatmul.bf16.gmra.mxu0 %v442
      %v583 = vpop.f32.mrf.mxu0
      %v584 = vadd.f32 %v307, %v583
      %v585 = vpop.f32.mrf.mxu0
      %v586 = vadd.f32 %v307, %v585
      %587 = vmatmul.bf16.gmra.mxu0 %v443
      %v588 = vpop.f32.mrf.mxu0
      %v589 = vadd.f32 %v307, %v588
      %v590 = vpop.f32.mrf.mxu0
      %v591 = vadd.f32 %v307, %v590
      %592 = vmatmul.bf16.gmra.mxu0 %v444
      %v593 = vpop.f32.mrf.mxu0
      %v594 = vadd.f32 %v307, %v593
      %v595 = vpop.f32.mrf.mxu0
      %v596 = vadd.f32 %v307, %v595
      %597 = vmatmul.bf16.gmra.mxu0 %v445
      %v598 = vpop.f32.mrf.mxu0
      %v599 = vadd.f32 %v307, %v598
      %v600 = vpop.f32.mrf.mxu0
      %v601 = vadd.f32 %v307, %v600
      %602 = vmatmul.bf16.gmra.mxu0 %v446
      %v603 = vpop.f32.mrf.mxu0
      %v604 = vadd.f32 %v307, %v603
      %v605 = vpop.f32.mrf.mxu0
      %v606 = vadd.f32 %v307, %v605
      %607 = vmatmul.bf16.gmra.mxu0 %v447
      %v608 = vpop.f32.mrf.mxu0
      %v609 = vadd.f32 %v307, %v608
      %v610 = vpop.f32.mrf.mxu0
      %v611 = vadd.f32 %v307, %v610
      %612 = vmatmul.bf16.gmra.mxu0 %v448
      %v613 = vpop.f32.mrf.mxu0
      %v614 = vadd.f32 %v307, %v613
      %v615 = vpop.f32.mrf.mxu0
      %v616 = vadd.f32 %v307, %v615
      %617 = vmatmul.bf16.gmra.mxu0 %v449
      %v618 = vpop.f32.mrf.mxu0
      %v619 = vadd.f32 %v307, %v618
      %v620 = vpop.f32.mrf.mxu0
      %v621 = vadd.f32 %v307, %v620
      %622 = vmatmul.bf16.gmra.mxu0 %v450
      %v623 = vpop.f32.mrf.mxu0
      %v624 = vadd.f32 %v307, %v623
      %v625 = vpop.f32.mrf.mxu0
      %v626 = vadd.f32 %v307, %v625
      %627 = vmatmul.bf16.gmra.mxu0 %v451
      %v628 = vpop.f32.mrf.mxu0
      %v629 = vadd.f32 %v307, %v628
      %v630 = vpop.f32.mrf.mxu0
      %v631 = vadd.f32 %v307, %v630
      %632 = vmatmul.bf16.gmra.mxu0 %v452
      %v633 = vpop.f32.mrf.mxu0
      %v634 = vadd.f32 %v307, %v633
      %v635 = vpop.f32.mrf.mxu0
      %v636 = vadd.f32 %v307, %v635
      %637 = vmatmul.bf16.gmra.mxu0 %v453
      %v638 = vpop.f32.mrf.mxu0
      %v639 = vadd.f32 %v307, %v638
      %v640 = vpop.f32.mrf.mxu0
      %v641 = vadd.f32 %v307, %v640
      %642 = vmatmul.bf16.gmra.mxu0 %v454
      %v643 = vpop.f32.mrf.mxu0
      %v644 = vadd.f32 %v307, %v643
      %v645 = vpop.f32.mrf.mxu0
      %v646 = vadd.f32 %v307, %v645
      %647 = vmatmul.bf16.gmra.mxu0 %v455
      %v648 = vpop.f32.mrf.mxu0
      %v649 = vadd.f32 %v307, %v648
      %v650 = vpop.f32.mrf.mxu0
      %v651 = vadd.f32 %v307, %v650
      %652 = vmatmul.bf16.gmra.mxu0 %v456
      %v653 = vpop.f32.mrf.mxu0
      %v654 = vadd.f32 %v307, %v653
      %v655 = vpop.f32.mrf.mxu0
      %v656 = vadd.f32 %v307, %v655
      %657 = vmatmul.bf16.gmra.mxu0 %v457
      %v658 = vpop.f32.mrf.mxu0
      %v659 = vadd.f32 %v307, %v658
      %v660 = vpop.f32.mrf.mxu0
      %v661 = vadd.f32 %v307, %v660
      %662 = vmatmul.bf16.gmra.mxu0 %v458
      %v663 = vpop.f32.mrf.mxu0
      %v664 = vadd.f32 %v307, %v663
      %v665 = vpop.f32.mrf.mxu0
      %v666 = vadd.f32 %v307, %v665
      %667 = vmatmul.bf16.gmra.mxu0 %v459
      %v668 = vpop.f32.mrf.mxu0
      %v669 = vadd.f32 %v307, %v668
      %v670 = vpop.f32.mrf.mxu0
      %v671 = vadd.f32 %v307, %v670
      %672 = vmatmul.bf16.gmra.mxu0 %v460
      %v673 = vpop.f32.mrf.mxu0
      %v674 = vadd.f32 %v307, %v673
      %v675 = vpop.f32.mrf.mxu0
      %v676 = vadd.f32 %v307, %v675
      %677 = vmatmul.bf16.gmra.mxu0 %v461
      %v678 = vpop.f32.mrf.mxu0
      %v679 = vadd.f32 %v307, %v678
      %v680 = vpop.f32.mrf.mxu0
      %v681 = vadd.f32 %v307, %v680
      %682 = vmatmul.bf16.gmra.mxu0 %v462
      %v683 = vpop.f32.mrf.mxu0
      %v684 = vadd.f32 %v307, %v683
      %v685 = vpop.f32.mrf.mxu0
      %v686 = vadd.f32 %v307, %v685
      %687 = vmatmul.bf16.gmra.mxu0 %v463
      %v688 = vpop.f32.mrf.mxu0
      %v689 = vadd.f32 %v307, %v688
      %v690 = vpop.f32.mrf.mxu0
      %v691 = vadd.f32 %v307, %v690
      %692 = vmatmul.bf16.gmra.mxu0 %v464
      %v693 = vpop.f32.mrf.mxu0
      %v694 = vadd.f32 %v307, %v693
      %v695 = vpop.f32.mrf.mxu0
      %v696 = vadd.f32 %v307, %v695
      %697 = vmatmul.bf16.gmra.mxu0 %v465
      %v698 = vpop.f32.mrf.mxu0
      %v699 = vadd.f32 %v307, %v698
      %v700 = vpop.f32.mrf.mxu0
      %v701 = vadd.f32 %v307, %v700
      %702 = vmatmul.bf16.gmra.mxu0 %v466
      %v703 = vpop.f32.mrf.mxu0
      %v704 = vadd.f32 %v307, %v703
      %v705 = vpop.f32.mrf.mxu0
      %v706 = vadd.f32 %v307, %v705
      %707 = vmatmul.bf16.gmra.mxu0 %v467
      %v708 = vpop.f32.mrf.mxu0
      %v709 = vadd.f32 %v307, %v708
      %v710 = vpop.f32.mrf.mxu0
      %v711 = vadd.f32 %v307, %v710
      %712 = vmatmul.bf16.gmra.mxu0 %v468
      %v713 = vpop.f32.mrf.mxu0
      %v714 = vadd.f32 %v307, %v713
      %v715 = vpop.f32.mrf.mxu0
      %v716 = vadd.f32 %v307, %v715
      %717 = vdwg.mxu0
      %v718 = vmax.f32 %v559, 0.0
      %v719 = vmax.f32 %v561, 0.0
      %v720 = vmax.f32 %v564, 0.0
      %v721 = vmax.f32 %v566, 0.0
      %v722 = vmax.f32 %v569, 0.0
      %v723 = vmax.f32 %v571, 0.0
      %v724 = vmax.f32 %v574, 0.0
      %v725 = vmax.f32 %v576, 0.0
      %v726 = vmax.f32 %v579, 0.0
      %v727 = vmax.f32 %v581, 0.0
      %v728 = vmax.f32 %v584, 0.0
      %v729 = vmax.f32 %v586, 0.0
      %v730 = vmax.f32 %v589, 0.0
      %v731 = vmax.f32 %v591, 0.0
      %v732 = vmax.f32 %v594, 0.0
      %v733 = vmax.f32 %v596, 0.0
      %v734 = vmax.f32 %v599, 0.0
      %v735 = vmax.f32 %v601, 0.0
      %v736 = vmax.f32 %v604, 0.0
      %v737 = vmax.f32 %v606, 0.0
      %v738 = vmax.f32 %v609, 0.0
      %v739 = vmax.f32 %v611, 0.0
      %v740 = vmax.f32 %v614, 0.0
      %v741 = vmax.f32 %v616, 0.0
      %v742 = vmax.f32 %v619, 0.0
      %v743 = vmax.f32 %v621, 0.0
      %v744 = vmax.f32 %v624, 0.0
      %v745 = vmax.f32 %v626, 0.0
      %v746 = vmax.f32 %v629, 0.0
      %v747 = vmax.f32 %v631, 0.0
      %v748 = vmax.f32 %v634, 0.0
      %v749 = vmax.f32 %v636, 0.0
      %v750 = vmax.f32 %v639, 0.0
      %v751 = vmax.f32 %v641, 0.0
      %v752 = vmax.f32 %v644, 0.0
      %v753 = vmax.f32 %v646, 0.0
      %v754 = vmax.f32 %v649, 0.0
      %v755 = vmax.f32 %v651, 0.0
      %v756 = vmax.f32 %v654, 0.0
      %v757 = vmax.f32 %v656, 0.0
      %v758 = vmax.f32 %v659, 0.0
      %v759 = vmax.f32 %v661, 0.0
      %v760 = vmax.f32 %v664, 0.0
      %v761 = vmax.f32 %v666, 0.0
      %v762 = vmax.f32 %v669, 0.0
      %v763 = vmax.f32 %v671, 0.0
      %v764 = vmax.f32 %v674, 0.0
      %v765 = vmax.f32 %v676, 0.0
      %v766 = vmax.f32 %v679, 0.0
      %v767 = vmax.f32 %v681, 0.0
      %v768 = vmax.f32 %v684, 0.0
      %v769 = vmax.f32 %v686, 0.0
      %v770 = vmax.f32 %v689, 0.0
      %v771 = vmax.f32 %v691, 0.0
      %v772 = vmax.f32 %v694, 0.0
      %v773 = vmax.f32 %v696, 0.0
      %v774 = vmax.f32 %v699, 0.0
      %v775 = vmax.f32 %v701, 0.0
      %v776 = vmax.f32 %v704, 0.0
      %v777 = vmax.f32 %v706, 0.0
      %v778 = vmax.f32 %v709, 0.0
      %v779 = vmax.f32 %v711, 0.0
      %v780 = vmax.f32 %v714, 0.0
      %v781 = vmax.f32 %v716, 0.0
      %782 = vst [vmem:[%s223] sm:$0xff] %v718
      %783 = vst [vmem:[%s223 + $0x8] sm:$0xff] %v719
      %784 = vst [vmem:[%s223 + $0x10] sm:$0xff] %v720
      %785 = vst [vmem:[%s223 + $0x18] sm:$0xff] %v721
      %786 = vst [vmem:[%s223 + $0x20] sm:$0xff] %v722
      %787 = vst [vmem:[%s223 + $0x28] sm:$0xff] %v723
      %788 = vst [vmem:[%s223 + $0x30] sm:$0xff] %v724
      %789 = vst [vmem:[%s223 + $0x38] sm:$0xff] %v725
      %790 = vst [vmem:[%s223 + $0x40] sm:$0xff] %v726
      %791 = vst [vmem:[%s223 + $0x48] sm:$0xff] %v727
      %792 = vst [vmem:[%s223 + $0x50] sm:$0xff] %v728
      %793 = vst [vmem:[%s223 + $0x58] sm:$0xff] %v729
      %794 = vst [vmem:[%s223 + $0x60] sm:$0xff] %v730
      %795 = vst [vmem:[%s223 + $0x68] sm:$0xff] %v731
      %796 = vst [vmem:[%s223 + $0x70] sm:$0xff] %v732
      %797 = vst [vmem:[%s223 + $0x78] sm:$0xff] %v733
      %798 = vst [vmem:[%s223 + $0x80] sm:$0xff] %v734
      %799 = vst [vmem:[%s223 + $0x88] sm:$0xff] %v735
      %800 = vst [vmem:[%s223 + $0x90] sm:$0xff] %v736
      %801 = vst [vmem:[%s223 + $0x98] sm:$0xff] %v737
      %802 = vst [vmem:[%s223 + $0xa0] sm:$0xff] %v738
      %803 = vst [vmem:[%s223 + $0xa8] sm:$0xff] %v739
      %804 = vst [vmem:[%s223 + $0xb0] sm:$0xff] %v740
      %805 = vst [vmem:[%s223 + $0xb8] sm:$0xff] %v741
      %806 = vst [vmem:[%s223 + $0xc0] sm:$0xff] %v742
      %807 = vst [vmem:[%s223 + $0xc8] sm:$0xff] %v743
      %808 = vst [vmem:[%s223 + $0xd0] sm:$0xff] %v744
      %809 = vst [vmem:[%s223 + $0xd8] sm:$0xff] %v745
      %810 = vst [vmem:[%s223 + $0xe0] sm:$0xff] %v746
      %811 = vst [vmem:[%s223 + $0xe8] sm:$0xff] %v747
      %812 = vst [vmem:[%s223 + $0xf0] sm:$0xff] %v748
      %813 = vst [vmem:[%s223 + $0xf8] sm:$0xff] %v749
      %814 = vst [vmem:[%s223 + $0x100] sm:$0xff] %v750
      %815 = vst [vmem:[%s223 + $0x108] sm:$0xff] %v751
      %816 = vst [vmem:[%s223 + $0x110] sm:$0xff] %v752
      %817 = vst [vmem:[%s223 + $0x118] sm:$0xff] %v753
      %818 = vst [vmem:[%s223 + $0x120] sm:$0xff] %v754
      %819 = vst [vmem:[%s223 + $0x128] sm:$0xff] %v755
      %820 = vst [vmem:[%s223 + $0x130] sm:$0xff] %v756
      %821 = vst [vmem:[%s223 + $0x138] sm:$0xff] %v757
      %822 = vst [vmem:[%s223 + $0x140] sm:$0xff] %v758
      %823 = vst [vmem:[%s223 + $0x148] sm:$0xff] %v759
      %824 = vst [vmem:[%s223 + $0x150] sm:$0xff] %v760
      %825 = vst [vmem:[%s223 + $0x158] sm:$0xff] %v761
      %826 = vst [vmem:[%s223 + $0x160] sm:$0xff] %v762
      %827 = vst [vmem:[%s223 + $0x168] sm:$0xff] %v763
      %828 = vst [vmem:[%s223 + $0x170] sm:$0xff] %v764
      %829 = vst [vmem:[%s223 + $0x178] sm:$0xff] %v765
      %830 = vst [vmem:[%s223 + $0x180] sm:$0xff] %v766
      %831 = vst [vmem:[%s223 + $0x188] sm:$0xff] %v767
      %832 = vst [vmem:[%s223 + $0x190] sm:$0xff] %v768
      %833 = vst [vmem:[%s223 + $0x198] sm:$0xff] %v769
      %834 = vst [vmem:[%s223 + $0x1a0] sm:$0xff] %v770
      %835 = vst [vmem:[%s223 + $0x1a8] sm:$0xff] %v771
      %836 = vst [vmem:[%s223 + $0x1b0] sm:$0xff] %v772
      %837 = vst [vmem:[%s223 + $0x1b8] sm:$0xff] %v773
      %838 = vst [vmem:[%s223 + $0x1c0] sm:$0xff] %v774
      %839 = vst [vmem:[%s223 + $0x1c8] sm:$0xff] %v775
      %840 = vst [vmem:[%s223 + $0x1d0] sm:$0xff] %v776
      %841 = vst [vmem:[%s223 + $0x1d8] sm:$0xff] %v777
      %842 = vst [vmem:[%s223 + $0x1e0] sm:$0xff] %v778
      %843 = vst [vmem:[%s223 + $0x1e8] sm:$0xff] %v779
      %844 = vst [vmem:[%s223 + $0x1f0] sm:$0xff] %v780
      %845 = vst [vmem:[%s223 + $0x1f8] sm:$0xff] %v781
      %s846 = smul.u32 64, %s18
      %p847 = scmp.lt.s32.totalorder %s846, 255
      %s848 = scalar_select %p847, %s846, 255
      %p849 = scmp.lt.s32.totalorder %s19, 0
      %s850 = scalar_select %p849, %s19, 0
      %s851 = sadd.s32 %s850, %s848
      %s852 = smul.addr %s851, 8
      %s853 = scalar_lea.vmem %s3, %s852
      // Predicated region
      $region33: #{_lambda_.62} parent=31 // pred_check
        %p854 = pneg %p124
      $region34: #{_lambda_.62} parent=31 // pred_check_branch
        %856 = sbr.rel (%p854) target = $region36
      $region35: #{_lambda_.62} parent=31 // pred_region
        %s857 = smul.u32 64, %s18
      $region36: #{_lambda_.62} parent=31 // pred_fallthru
        _
    $region32: #{_lambda_.62} parent=5 // pred_fallthru
      _
    %p858 = scmp.le.s32.totalorder 2, %s9
    // Predicated region
    $region37: #{_lambda_.62} parent=5 // pred_check
      %p859 = pneg %p858
    $region38: #{_lambda_.62} parent=5 // pred_check_branch
      %861 = sbr.rel (%p859) target = $region40
    $region39: #{_lambda_.62} parent=5 // pred_region
      %s862 = ssub.s32 %s9, 2
      // Predicated region
      $region41: #{_lambda_.62} parent=39 // pred_check
        %p863 = pneg %p130
      $region42: #{_lambda_.62} parent=39 // pred_check_branch
        %865 = sbr.rel (%p863) target = $region44
      $region43: #{_lambda_.62} parent=39 // pred_region
        %s866 = smul.u32 64, %s20
        %p867 = scmp.lt.s32.totalorder %s866, 255
        %s868 = scalar_select %p867, %s866, 255
        %p869 = scmp.lt.s32.totalorder %s21, 0
        %s870 = scalar_select %p869, %s21, 0
        %s871 = sadd.s32 %s870, %s868
        %s872 = smul.addr %s871, 8
        %s873 = scalar_lea.vmem %s3, %s872
      $region44: #{_lambda_.62} parent=39 // pred_fallthru
        _
    $region40: #{_lambda_.62} parent=5 // pred_fallthru
      _
  $region6: #{_lambda_.62} parent=0 // loop_footer
    %s13 = sadd.s32 1, %s9
  $region7: #{_lambda_.62} parent=0 // loop_footer_branch
    %8 = sbr.rel target = $region3
  $region8: #{_lambda_.62} parent=0 // loop_exit
    _

// kernel: _lambda_.63
$region0: #{_lambda_.63}
  #allocation0 [shape = 'u32[]', space=smem, size = 0x4, offset = 0x4, fixed_abs, tag = 'smem constant byte address 0x4 - core index']
  #allocation1 [shape = 'u32[72,128]{1,0:T(1,128)}', space=vmem, size = 0x9000, scoped, tag = 'internal scratch']
  %s0 = inlined_call_operand.vmem [shape: bf16[2048,128], index: 0, kind: input, shape index: {}]
  %s1 = inlined_call_operand.vmem [shape: bf16[128,128], index: 1, kind: input, shape index: {}]
  %s2 = inlined_call_operand.vmem [shape: f32[1,128], index: 2, kind: input, shape index: {}]
  %s3 = inlined_call_operand.vmem [shape: f32[2048,128], index: 3, kind: output, shape index: {}]
  %s4 = sld [smem:[#allocation0]]
  $region45: #{_lambda_.63} parent=0
    _
  %s6 = ssub.s32 1, %s4
  %s7 = scalar_select 0, %s6, %s4
  loop: start=0, step=1, limit=6
  $region2: #{_lambda_.63} parent=0 // loop_pre_header
    _
  $region3: #{_lambda_.63} parent=0 // loop_header
    %s9 = sphi 0, %s13
    %p10 = scmp.ge.s32.totalorder %s9, 6
    %s16 = sphi 0, %s28
    %s17 = sphi 0, %s24
    %s18 = sphi 0, %s16
    %s19 = sphi 0, %s17
    %s20 = sphi 0, %s18
    %s21 = sphi 0, %s19
    %s31 = sphi 0, %s33
    %s34 = sphi 0, %s31
    %s35 = sphi 0, %s34
    %s51 = sphi 0, %s35
    %s57 = sphi 0, %s59
    %s60 = sphi 0, %s57
    %s61 = sphi 0, %s60
    %s77 = sphi 0, %s61
    %s83 = sphi 0, %s85
    %s86 = sphi 0, %s83
    %s87 = sphi 0, %s86
    %s103 = sphi 0, %s87
    %s111 = sphi 0, %s113
    %s114 = sphi 0, %s111
    %s115 = sphi 0, %s114
    %s131 = sphi 0, %s115
  $region4: #{_lambda_.63} parent=0 // loop_header_branch
    %12 = sbr.rel (%p10) target = $region8
  $region5: #{_lambda_.63} parent=0 // loop_body
    %s14 = ssub.s32 %s9, 1
    %s15 = ssub.s32 %s9, 2
    %s22 = sadd.s32 1, %s17
    %p23 = scmp.ge.s32.totalorder %s22, 1
    %s24 = scalar_select %p23, 0, %s22
    %s25 = sadd.s32 1, %s16
    %s26 = scalar_select %p23, %s25, %s16
    %p27 = scmp.ge.s32.totalorder %s26, 4
    %s28 = scalar_select %p27, 0, %s26
    %s29 = ssub.s32 %s16, %s28
    %p30 = scmp.eq.s32.totalorder %s29, 0
    %s32 = sadd.s32 %s31, 1
    %s33 = scalar_select %p30, %s31, %s32
    %p36 = pneg %p30
    %p37 = scmp.eq.s32.totalorder %s9, 3
    %p38 = por %p36, %p37
    %p39 = scmp.ne.s32.totalorder %s31, %s34
    %p40 = scmp.eq.s32.totalorder %s9, 0
    %p41 = por %p39, %p40
    %p42 = scmp.ne.s32.totalorder %s31, %s34
    %p43 = scmp.eq.s32.totalorder %s14, 3
    %p44 = por %p42, %p43
    %p45 = scmp.ne.s32.totalorder %s34, %s35
    %p46 = scmp.eq.s32.totalorder %s14, 0
    %p47 = por %p45, %p46
    %p48 = scmp.ne.s32.totalorder %s34, %s35
    %p49 = scmp.eq.s32.totalorder %s15, 3
    %p50 = por %p48, %p49
    %p52 = scmp.ne.s32.totalorder %s35, %s51
    %p53 = scmp.eq.s32.totalorder %s15, 0
    %p54 = por %p52, %p53
    %s55 = ssub.s32 %s17, %s24
    %p56 = scmp.eq.s32.totalorder %s55, 0
    %s58 = sadd.s32 %s57, 1
    %s59 = scalar_select %p56, %s57, %s58
    %p62 = pneg %p56
    %p63 = scmp.eq.s32.totalorder %s9, 3
    %p64 = por %p62, %p63
    %p65 = scmp.ne.s32.totalorder %s57, %s60
    %p66 = scmp.eq.s32.totalorder %s9, 0
    %p67 = por %p65, %p66
    %p68 = scmp.ne.s32.totalorder %s57, %s60
    %p69 = scmp.eq.s32.totalorder %s14, 3
    %p70 = por %p68, %p69
    %p71 = scmp.ne.s32.totalorder %s60, %s61
    %p72 = scmp.eq.s32.totalorder %s14, 0
    %p73 = por %p71, %p72
    %p74 = scmp.ne.s32.totalorder %s60, %s61
    %p75 = scmp.eq.s32.totalorder %s15, 3
    %p76 = por %p74, %p75
    %p78 = scmp.ne.s32.totalorder %s61, %s77
    %p79 = scmp.eq.s32.totalorder %s15, 0
    %p80 = por %p78, %p79
    %s81 = ssub.s32 %s17, %s24
    %p82 = scmp.eq.s32.totalorder %s81, 0
    %s84 = sadd.s32 %s83, 1
    %s85 = scalar_select %p82, %s83, %s84
    %p88 = pneg %p82
    %p89 = scmp.eq.s32.totalorder %s9, 3
    %p90 = por %p88, %p89
    %p91 = scmp.ne.s32.totalorder %s83, %s86
    %p92 = scmp.eq.s32.totalorder %s9, 0
    %p93 = por %p91, %p92
    %p94 = scmp.ne.s32.totalorder %s83, %s86
    %p95 = scmp.eq.s32.totalorder %s14, 3
    %p96 = por %p94, %p95
    %p97 = scmp.ne.s32.totalorder %s86, %s87
    %p98 = scmp.eq.s32.totalorder %s14, 0
    %p99 = por %p97, %p98
    %p100 = scmp.ne.s32.totalorder %s86, %s87
    %p101 = scmp.eq.s32.totalorder %s15, 3
    %p102 = por %p100, %p101
    %p104 = scmp.ne.s32.totalorder %s87, %s103
    %p105 = scmp.eq.s32.totalorder %s15, 0
    %p106 = por %p104, %p105
    %s107 = ssub.s32 %s16, %s28
    %s108 = ssub.s32 %s17, %s24
    %s109 = sor.u32 %s107, %s108
    %p110 = scmp.eq.s32.totalorder %s109, 0
    %s112 = sadd.s32 %s111, 1
    %s113 = scalar_select %p110, %s111, %s112
    %p116 = pneg %p110
    %p117 = scmp.eq.s32.totalorder %s9, 3
    %p118 = por %p116, %p117
    %p119 = scmp.ne.s32.totalorder %s111, %s114
    %p120 = scmp.eq.s32.totalorder %s9, 0
    %p121 = por %p119, %p120
    %p122 = scmp.ne.s32.totalorder %s111, %s114
    %p123 = scmp.eq.s32.totalorder %s14, 3
    %p124 = por %p122, %p123
    %p125 = scmp.ne.s32.totalorder %s114, %s115
    %p126 = scmp.eq.s32.totalorder %s14, 0
    %p127 = por %p125, %p126
    %p128 = scmp.ne.s32.totalorder %s114, %s115
    %p129 = scmp.eq.s32.totalorder %s15, 3
    %p130 = por %p128, %p129
    %p132 = scmp.ne.s32.totalorder %s115, %s131
    %p133 = scmp.eq.s32.totalorder %s15, 0
    %p134 = por %p132, %p133
    %p135 = scmp.le.s32.totalorder 1, %s9
    %p136 = scmp.lt.s32.totalorder %s9, 5
    %p137 = pnand %p135, %p136
    %p138 = pneg %p137
    // Predicated region
    $region9: #{_lambda_.63} parent=5 // pred_check
      _
    $region10: #{_lambda_.63} parent=5 // pred_check_branch
      %140 = sbr.rel (%p137) target = $region12
    $region11: #{_lambda_.63} parent=5 // pred_region
      %s141 = ssub.s32 %s9, 1
      // Predicated region
      $region13: #{_lambda_.63} parent=11 // pred_check
        %p142 = pneg %p73
      $region14: #{_lambda_.63} parent=11 // pred_check_branch
        %144 = sbr.rel (%p142) target = $region16
      $region15: #{_lambda_.63} parent=11 // pred_region
        %p145 = scmp.lt.s32.totalorder %s19, 0
        %s146 = scalar_select %p145, %s19, 0
        %s147 = smul.addr %s146, 4
        %s148 = scalar_lea.vmem %s1, %s147
      $region16: #{_lambda_.63} parent=11 // pred_fallthru
        _
      // Predicated region
      $region17: #{_lambda_.63} parent=11 // pred_check
        %p149 = pneg %p99
      $region18: #{_lambda_.63} parent=11 // pred_check_branch
        %151 = sbr.rel (%p149) target = $region20
      $region19: #{_lambda_.63} parent=11 // pred_region
        %p152 = scmp.lt.s32.totalorder %s19, 0
        %s153 = scalar_select %p152, %s19, 0
        %s154 = scalar_lea.vmem %s2, %s153
      $region20: #{_lambda_.63} parent=11 // pred_fallthru
        _
    $region12: #{_lambda_.63} parent=5 // pred_fallthru
      _
    %p155 = scmp.lt.s32.totalorder %s9, 4
    // Predicated region
    $region21: #{_lambda_.63} parent=5 // pred_check
      %p156 = pneg %p155
    $region22: #{_lambda_.63} parent=5 // pred_check_branch
      %158 = sbr.rel (%p156) target = $region24
    $region23: #{_lambda_.63} parent=5 // pred_region
      // Predicated region
      $region25: #{_lambda_.63} parent=23 // pred_check
        %p159 = pneg %p41
      $region26: #{_lambda_.63} parent=23 // pred_check_branch
        %161 = sbr.rel (%p159) target = $region28
      $region27: #{_lambda_.63} parent=23 // pred_region
        %s162 = smul.u32 64, %s16
        %p163 = scmp.lt.s32.totalorder %s162, 255
        %s164 = scalar_select %p163, %s162, 255
        %s165 = smul.addr %s164, 4
        %s166 = scalar_lea.vmem %s0, %s165
        %s167 = smul.u32 64, %s16
      $region28: #{_lambda_.63} parent=23 // pred_fallthru
        _
    $region24: #{_lambda_.63} parent=5 // pred_fallthru
      _
    %p168 = scmp.le.s32.totalorder 1, %s9
    %p169 = scmp.lt.s32.totalorder %s9, 5
    %p170 = pnand %p168, %p169
    %p171 = pneg %p170
    // Predicated region
    $region29: #{_lambda_.63} parent=5 // pred_check
      _
    $region30: #{_lambda_.63} parent=5 // pred_check_branch
      %173 = sbr.rel (%p170) target = $region32
    $region31: #{_lambda_.63} parent=5 // pred_region
      %s174 = ssub.s32 %s9, 1
      %s175 = smul.u32 64, %s18
      %p176 = scmp.lt.s32.totalorder %s175, 255
      %s177 = scalar_select %p176, %s175, 255
      %s178 = smul.addr %s177, 4
      %s179 = scalar_lea.vmem %s0, %s178
      %p180 = pneg %p47
      %p181 = pneg %p44
      %p182 = scmp.lt.s32.totalorder %s19, 0
      %s183 = scalar_select %p182, %s19, 0
      %s184 = smul.addr %s183, 4
      %s185 = scalar_lea.vmem %s1, %s184
      %p186 = pneg %p73
      %p187 = pneg %p70
      %p188 = scmp.lt.s32.totalorder %s19, 0
      %s189 = scalar_select %p188, %s19, 0
      %s190 = scalar_lea.vmem %s2, %s189
      %p191 = pneg %p99
      %p192 = pneg %p96
      %p193 = pneg %p127
      %p194 = pneg %p124
      %s195 = smul.u32 64, %s18
      %p196 = scmp.lt.s32.totalorder %s195, 255
      %s197 = scalar_select %p196, %s195, 255
      %p198 = scmp.lt.s32.totalorder %s19, 0
      %s199 = scalar_select %p198, %s19, 0
      %s200 = sadd.s32 %s199, %s197
      %s201 = smul.addr %s200, 8
      %s202 = scalar_lea.vmem %s3, %s201
      %s203 = smul.u32 64, %s18
      %p204 = scmp.lt.s32.totalorder %s203, 255
      %s205 = scalar_select %p204, %s203, 255
      %s206 = smul.addr %s205, 4
      %s207 = scalar_lea.vmem %s0, %s206
      %s208 = smul.u32 64, %s18
      %p209 = scmp.lt.s32.totalorder %s19, 0
      %s210 = scalar_select %p209, %s19, 0
      %s211 = smul.addr %s210, 4
      %s212 = scalar_lea.vmem %s1, %s211
      %p213 = scmp.lt.s32.totalorder %s19, 0
      %s214 = scalar_select %p213, %s19, 0
      %s215 = scalar_lea.vmem %s2, %s214
      %s216 = smul.u32 64, %s18
      %p217 = scmp.lt.s32.totalorder %s216, 255
      %s218 = scalar_select %p217, %s216, 255
      %p219 = scmp.lt.s32.totalorder %s19, 0
      %s220 = scalar_select %p219, %s19, 0
      %s221 = sadd.s32 %s220, %s218
      %s222 = smul.addr %s221, 8
      %s223 = scalar_lea.vmem %s3, %s222
      %s224 = smul.u32 64, %s18
      %v225 = vld [vmem:[%s207] sm:$0xf]
      %v226 = vld [vmem:[%s207 + $0x4] sm:$0xf]
      %v227 = vld [vmem:[%s207 + $0x8] sm:$0xf]
      %v228 = vld [vmem:[%s207 + $0xc] sm:$0xf]
      %v229 = vld [vmem:[%s207 + $0x10] sm:$0xf]
      %v230 = vld [vmem:[%s207 + $0x14] sm:$0xf]
      %v231 = vld [vmem:[%s207 + $0x18] sm:$0xf]
      %v232 = vld [vmem:[%s207 + $0x1c] sm:$0xf]
      %v233 = vld [vmem:[%s207 + $0x20] sm:$0xf]
      %v234 = vld [vmem:[%s207 + $0x24] sm:$0xf]
      %v235 = vld [vmem:[%s207 + $0x28] sm:$0xf]
      %v236 = vld [vmem:[%s207 + $0x2c] sm:$0xf]
      %v237 = vld [vmem:[%s207 + $0x30] sm:$0xf]
      %v238 = vld [vmem:[%s207 + $0x34] sm:$0xf]
      %v239 = vld [vmem:[%s207 + $0x38] sm:$0xf]
      %v240 = vld [vmem:[%s207 + $0x3c] sm:$0xf]
      %v241 = vld [vmem:[%s207 + $0x40] sm:$0xf]
      %v242 = vld [vmem:[%s207 + $0x44] sm:$0xf]
      %v243 = vld [vmem:[%s207 + $0x48] sm:$0xf]
      %v244 = vld [vmem:[%s207 + $0x4c] sm:$0xf]
      %v245 = vld [vmem:[%s207 + $0x50] sm:$0xf]
      %v246 = vld [vmem:[%s207 + $0x54] sm:$0xf]
      %v247 = vld [vmem:[%s207 + $0x58] sm:$0xf]
      %v248 = vld [vmem:[%s207 + $0x5c] sm:$0xf]
      %v249 = vld [vmem:[%s207 + $0x60] sm:$0xf]
      %v250 = vld [vmem:[%s207 + $0x64] sm:$0xf]
      %v251 = vld [vmem:[%s207 + $0x68] sm:$0xf]
      %v252 = vld [vmem:[%s207 + $0x6c] sm:$0xf]
      %v253 = vld [vmem:[%s207 + $0x70] sm:$0xf]
      %v254 = vld [vmem:[%s207 + $0x74] sm:$0xf]
      %v255 = vld [vmem:[%s207 + $0x78] sm:$0xf]
      %v256 = vld [vmem:[%s207 + $0x7c] sm:$0xf]
      %v257 = vld [vmem:[%s207 + $0x80] sm:$0xf]
      %v258 = vld [vmem:[%s207 + $0x84] sm:$0xf]
      %v259 = vld [vmem:[%s207 + $0x88] sm:$0xf]
      %v260 = vld [vmem:[%s207 + $0x8c] sm:$0xf]
      %v261 = vld [vmem:[%s207 + $0x90] sm:$0xf]
      %v262 = vld [vmem:[%s207 + $0x94] sm:$0xf]
      %v263 = vld [vmem:[%s207 + $0x98] sm:$0xf]
      %v264 = vld [vmem:[%s207 + $0x9c] sm:$0xf]
      %v265 = vld [vmem:[%s207 + $0xa0] sm:$0xf]
      %v266 = vld [vmem:[%s207 + $0xa4] sm:$0xf]
      %v267 = vld [vmem:[%s207 + $0xa8] sm:$0xf]
      %v268 = vld [vmem:[%s207 + $0xac] sm:$0xf]
      %v269 = vld [vmem:[%s207 + $0xb0] sm:$0xf]
      %v270 = vld [vmem:[%s207 + $0xb4] sm:$0xf]
      %v271 = vld [vmem:[%s207 + $0xb8] sm:$0xf]
      %v272 = vld [vmem:[%s207 + $0xbc] sm:$0xf]
      %v273 = vld [vmem:[%s207 + $0xc0] sm:$0xf]
      %v274 = vld [vmem:[%s207 + $0xc4] sm:$0xf]
      %v275 = vld [vmem:[%s207 + $0xc8] sm:$0xf]
      %v276 = vld [vmem:[%s207 + $0xcc] sm:$0xf]
      %v277 = vld [vmem:[%s207 + $0xd0] sm:$0xf]
      %v278 = vld [vmem:[%s207 + $0xd4] sm:$0xf]
      %v279 = vld [vmem:[%s207 + $0xd8] sm:$0xf]
      %v280 = vld [vmem:[%s207 + $0xdc] sm:$0xf]
      %v281 = vld [vmem:[%s207 + $0xe0] sm:$0xf]
      %v282 = vld [vmem:[%s207 + $0xe4] sm:$0xf]
      %v283 = vld [vmem:[%s207 + $0xe8] sm:$0xf]
      %v284 = vld [vmem:[%s207 + $0xec] sm:$0xf]
      %v285 = vld [vmem:[%s207 + $0xf0] sm:$0xf]
      %v286 = vld [vmem:[%s207 + $0xf4] sm:$0xf]
      %v287 = vld [vmem:[%s207 + $0xf8] sm:$0xf]
      %v288 = vld [vmem:[%s207 + $0xfc] sm:$0xf]
      %v289 = vld [vmem:[%s212] sm:$0xf]
      %v290 = vld [vmem:[%s212 + $0x4] sm:$0xf]
      %v291 = vld [vmem:[%s212 + $0x8] sm:$0xf]
      %v292 = vld [vmem:[%s212 + $0xc] sm:$0xf]
      %v293 = vld [vmem:[%s212 + $0x10] sm:$0xf]
      %v294 = vld [vmem:[%s212 + $0x14] sm:$0xf]
      %v295 = vld [vmem:[%s212 + $0x18] sm:$0xf]
      %v296 = vld [vmem:[%s212 + $0x1c] sm:$0xf]
      %v297 = vld [vmem:[%s212 + $0x20] sm:$0xf]
      %v298 = vld [vmem:[%s212 + $0x24] sm:$0xf]
      %v299 = vld [vmem:[%s212 + $0x28] sm:$0xf]
      %v300 = vld [vmem:[%s212 + $0x2c] sm:$0xf]
      %v301 = vld [vmem:[%s212 + $0x30] sm:$0xf]
      %v302 = vld [vmem:[%s212 + $0x34] sm:$0xf]
      %v303 = vld [vmem:[%s212 + $0x38] sm:$0xf]
      %v304 = vld [vmem:[%s212 + $0x3c] sm:$0xf]
      %v305 = vld [vmem:[%s215] sm:$0x1]
      %v307 = vperm.slane %v305, 0
      %v373 = vunpack.c.l.b16 %v225
      %v374 = vunpack.c.l.b16 %v226
      %v375 = vunpack.c.l.b16 %v227
      %v376 = vunpack.c.l.b16 %v228
      %v377 = vunpack.c.l.b16 %v229
      %v378 = vunpack.c.l.b16 %v230
      %v379 = vunpack.c.l.b16 %v231
      %v380 = vunpack.c.l.b16 %v232
      %v381 = vunpack.c.l.b16 %v233
      %v382 = vunpack.c.l.b16 %v234
      %v383 = vunpack.c.l.b16 %v235
      %v384 = vunpack.c.l.b16 %v236
      %v385 = vunpack.c.l.b16 %v237
      %v386 = vunpack.c.l.b16 %v238
      %v387 = vunpack.c.l.b16 %v239
      %v388 = vunpack.c.l.b16 %v240
      %v389 = vunpack.c.l.b16 %v241
      %v390 = vunpack.c.l.b16 %v242
      %v391 = vunpack.c.l.b16 %v243
      %v392 = vunpack.c.l.b16 %v244
      %v393 = vunpack.c.l.b16 %v245
      %v394 = vunpack.c.l.b16 %v246
      %v395 = vunpack.c.l.b16 %v247
      %v396 = vunpack.c.l.b16 %v248
      %v397 = vunpack.c.l.b16 %v249
      %v398 = vunpack.c.l.b16 %v250
      %v399 = vunpack.c.l.b16 %v251
      %v400 = vunpack.c.l.b16 %v252
      %v401 = vunpack.c.l.b16 %v253
      %v402 = vunpack.c.l.b16 %v254
      %v403 = vunpack.c.l.b16 %v255
      %v404 = vunpack.c.l.b16 %v256
      %v405 = vunpack.c.l.b16 %v257
      %v406 = vunpack.c.l.b16 %v258
      %v407 = vunpack.c.l.b16 %v259
      %v408 = vunpack.c.l.b16 %v260
      %v409 = vunpack.c.l.b16 %v261
      %v410 = vunpack.c.l.b16 %v262
      %v411 = vunpack.c.l.b16 %v263
      %v412 = vunpack.c.l.b16 %v264
      %v413 = vunpack.c.l.b16 %v265
      %v414 = vunpack.c.l.b16 %v266
      %v415 = vunpack.c.l.b16 %v267
      %v416 = vunpack.c.l.b16 %v268
      %v417 = vunpack.c.l.b16 %v269
      %v418 = vunpack.c.l.b16 %v270
      %v419 = vunpack.c.l.b16 %v271
      %v420 = vunpack.c.l.b16 %v272
      %v421 = vunpack.c.l.b16 %v273
      %v422 = vunpack.c.l.b16 %v274
      %v423 = vunpack.c.l.b16 %v275
      %v424 = vunpack.c.l.b16 %v276
      %v425 = vunpack.c.l.b16 %v277
      %v426 = vunpack.c.l.b16 %v278
      %v427 = vunpack.c.l.b16 %v279
      %v428 = vunpack.c.l.b16 %v280
      %v429 = vunpack.c.l.b16 %v281
      %v430 = vunpack.c.l.b16 %v282
      %v431 = vunpack.c.l.b16 %v283
      %v432 = vunpack.c.l.b16 %v284
      %v433 = vunpack.c.l.b16 %v285
      %v434 = vunpack.c.l.b16 %v286
      %v435 = vunpack.c.l.b16 %v287
      %v436 = vunpack.c.l.b16 %v288
      %v437 = vpack.c.b16 %v374, %v373
      %v438 = vpack.c.b16 %v376, %v375
      %v439 = vpack.c.b16 %v378, %v377
      %v440 = vpack.c.b16 %v380, %v379
      %v441 = vpack.c.b16 %v382, %v381
      %v442 = vpack.c.b16 %v384, %v383
      %v443 = vpack.c.b16 %v386, %v385
      %v444 = vpack.c.b16 %v388, %v387
      %v445 = vpack.c.b16 %v390, %v389
      %v446 = vpack.c.b16 %v392, %v391
      %v447 = vpack.c.b16 %v394, %v393
      %v448 = vpack.c.b16 %v396, %v395
      %v449 = vpack.c.b16 %v398, %v397
      %v450 = vpack.c.b16 %v400, %v399
      %v451 = vpack.c.b16 %v402, %v401
      %v452 = vpack.c.b16 %v404, %v403
      %v453 = vpack.c.b16 %v406, %v405
      %v454 = vpack.c.b16 %v408, %v407
      %v455 = vpack.c.b16 %v410, %v409
      %v456 = vpack.c.b16 %v412, %v411
      %v457 = vpack.c.b16 %v414, %v413
      %v458 = vpack.c.b16 %v416, %v415
      %v459 = vpack.c.b16 %v418, %v417
      %v460 = vpack.c.b16 %v420, %v419
      %v461 = vpack.c.b16 %v422, %v421
      %v462 = vpack.c.b16 %v424, %v423
      %v463 = vpack.c.b16 %v426, %v425
      %v464 = vpack.c.b16 %v428, %v427
      %v465 = vpack.c.b16 %v430, %v429
      %v466 = vpack.c.b16 %v432, %v431
      %v467 = vpack.c.b16 %v434, %v433
      %v468 = vpack.c.b16 %v436, %v435
      %v517 = vunpack.c.l.b16 %v289
      %v518 = vunpack.c.l.b16 %v290
      %v519 = vunpack.c.l.b16 %v291
      %v520 = vunpack.c.l.b16 %v292
      %v521 = vunpack.c.l.b16 %v293
      %v522 = vunpack.c.l.b16 %v294
      %v523 = vunpack.c.l.b16 %v295
      %v524 = vunpack.c.l.b16 %v296
      %v525 = vunpack.c.l.b16 %v297
      %v526 = vunpack.c.l.b16 %v298
      %v527 = vunpack.c.l.b16 %v299
      %v528 = vunpack.c.l.b16 %v300
      %v529 = vunpack.c.l.b16 %v301
      %v530 = vunpack.c.l.b16 %v302
      %v531 = vunpack.c.l.b16 %v303
      %v532 = vunpack.c.l.b16 %v304
      %v533 = vpack.c.b16 %v518, %v517
      %v534 = vpack.c.b16 %v520, %v519
      %v535 = vpack.c.b16 %v522, %v521
      %v536 = vpack.c.b16 %v524, %v523
      %v537 = vpack.c.b16 %v526, %v525
      %v538 = vpack.c.b16 %v528, %v527
      %v539 = vpack.c.b16 %v530, %v529
      %v540 = vpack.c.b16 %v532, %v531
      %549 = vmatpush.bf16.msra.mxu0 %v540
      %550 = vmatpush.bf16.msra.mxu0 %v539
      %551 = vmatpush.bf16.msra.mxu0 %v538
      %552 = vmatpush.bf16.msra.mxu0 %v537
      %553 = vmatpush.bf16.msra.mxu0 %v536
      %554 = vmatpush.bf16.msra.mxu0 %v535
      %555 = vmatpush.bf16.msra.mxu0 %v534
      %556 = vmatpush.bf16.msra.mxu0 %v533
      %557 = vmatmul.bf16.gmra.mxu0 %v437
      %v558 = vpop.f32.mrf.mxu0
      %v559 = vadd.f32 %v307, %v558
      %v560 = vpop.f32.mrf.mxu0
      %v561 = vadd.f32 %v307, %v560
      %562 = vmatmul.bf16.gmra.mxu0 %v438
      %v563 = vpop.f32.mrf.mxu0
      %v564 = vadd.f32 %v307, %v563
      %v565 = vpop.f32.mrf.mxu0
      %v566 = vadd.f32 %v307, %v565
      %567 = vmatmul.bf16.gmra.mxu0 %v439
      %v568 = vpop.f32.mrf.mxu0
      %v569 = vadd.f32 %v307, %v568
      %v570 = vpop.f32.mrf.mxu0
      %v571 = vadd.f32 %v307, %v570
      %572 = vmatmul.bf16.gmra.mxu0 %v440
      %v573 = vpop.f32.mrf.mxu0
      %v574 = vadd.f32 %v307, %v573
      %v575 = vpop.f32.mrf.mxu0
      %v576 = vadd.f32 %v307, %v575
      %577 = vmatmul.bf16.gmra.mxu0 %v441
      %v578 = vpop.f32.mrf.mxu0
      %v579 = vadd.f32 %v307, %v578
      %v580 = vpop.f32.mrf.mxu0
      %v581 = vadd.f32 %v307, %v580
      %582 = vmatmul.bf16.gmra.mxu0 %v442
      %v583 = vpop.f32.mrf.mxu0
      %v584 = vadd.f32 %v307, %v583
      %v585 = vpop.f32.mrf.mxu0
      %v586 = vadd.f32 %v307, %v585
      %587 = vmatmul.bf16.gmra.mxu0 %v443
      %v588 = vpop.f32.mrf.mxu0
      %v589 = vadd.f32 %v307, %v588
      %v590 = vpop.f32.mrf.mxu0
      %v591 = vadd.f32 %v307, %v590
      %592 = vmatmul.bf16.gmra.mxu0 %v444
      %v593 = vpop.f32.mrf.mxu0
      %v594 = vadd.f32 %v307, %v593
      %v595 = vpop.f32.mrf.mxu0
      %v596 = vadd.f32 %v307, %v595
      %597 = vmatmul.bf16.gmra.mxu0 %v445
      %v598 = vpop.f32.mrf.mxu0
      %v599 = vadd.f32 %v307, %v598
      %v600 = vpop.f32.mrf.mxu0
      %v601 = vadd.f32 %v307, %v600
      %602 = vmatmul.bf16.gmra.mxu0 %v446
      %v603 = vpop.f32.mrf.mxu0
      %v604 = vadd.f32 %v307, %v603
      %v605 = vpop.f32.mrf.mxu0
      %v606 = vadd.f32 %v307, %v605
      %607 = vmatmul.bf16.gmra.mxu0 %v447
      %v608 = vpop.f32.mrf.mxu0
      %v609 = vadd.f32 %v307, %v608
      %v610 = vpop.f32.mrf.mxu0
      %v611 = vadd.f32 %v307, %v610
      %612 = vmatmul.bf16.gmra.mxu0 %v448
      %v613 = vpop.f32.mrf.mxu0
      %v614 = vadd.f32 %v307, %v613
      %v615 = vpop.f32.mrf.mxu0
      %v616 = vadd.f32 %v307, %v615
      %617 = vmatmul.bf16.gmra.mxu0 %v449
      %v618 = vpop.f32.mrf.mxu0
      %v619 = vadd.f32 %v307, %v618
      %v620 = vpop.f32.mrf.mxu0
      %v621 = vadd.f32 %v307, %v620
      %622 = vmatmul.bf16.gmra.mxu0 %v450
      %v623 = vpop.f32.mrf.mxu0
      %v624 = vadd.f32 %v307, %v623
      %v625 = vpop.f32.mrf.mxu0
      %v626 = vadd.f32 %v307, %v625
      %627 = vmatmul.bf16.gmra.mxu0 %v451
      %v628 = vpop.f32.mrf.mxu0
      %v629 = vadd.f32 %v307, %v628
      %v630 = vpop.f32.mrf.mxu0
      %v631 = vadd.f32 %v307, %v630
      %632 = vmatmul.bf16.gmra.mxu0 %v452
      %v633 = vpop.f32.mrf.mxu0
      %v634 = vadd.f32 %v307, %v633
      %v635 = vpop.f32.mrf.mxu0
      %v636 = vadd.f32 %v307, %v635
      %637 = vmatmul.bf16.gmra.mxu0 %v453
      %v638 = vpop.f32.mrf.mxu0
      %v639 = vadd.f32 %v307, %v638
      %v640 = vpop.f32.mrf.mxu0
      %v641 = vadd.f32 %v307, %v640
      %642 = vmatmul.bf16.gmra.mxu0 %v454
      %v643 = vpop.f32.mrf.mxu0
      %v644 = vadd.f32 %v307, %v643
      %v645 = vpop.f32.mrf.mxu0
      %v646 = vadd.f32 %v307, %v645
      %647 = vmatmul.bf16.gmra.mxu0 %v455
      %v648 = vpop.f32.mrf.mxu0
      %v649 = vadd.f32 %v307, %v648
      %v650 = vpop.f32.mrf.mxu0
      %v651 = vadd.f32 %v307, %v650
      %652 = vmatmul.bf16.gmra.mxu0 %v456
      %v653 = vpop.f32.mrf.mxu0
      %v654 = vadd.f32 %v307, %v653
      %v655 = vpop.f32.mrf.mxu0
      %v656 = vadd.f32 %v307, %v655
      %657 = vmatmul.bf16.gmra.mxu0 %v457
      %v658 = vpop.f32.mrf.mxu0
      %v659 = vadd.f32 %v307, %v658
      %v660 = vpop.f32.mrf.mxu0
      %v661 = vadd.f32 %v307, %v660
      %662 = vmatmul.bf16.gmra.mxu0 %v458
      %v663 = vpop.f32.mrf.mxu0
      %v664 = vadd.f32 %v307, %v663
      %v665 = vpop.f32.mrf.mxu0
      %v666 = vadd.f32 %v307, %v665
      %667 = vmatmul.bf16.gmra.mxu0 %v459
      %v668 = vpop.f32.mrf.mxu0
      %v669 = vadd.f32 %v307, %v668
      %v670 = vpop.f32.mrf.mxu0
      %v671 = vadd.f32 %v307, %v670
      %672 = vmatmul.bf16.gmra.mxu0 %v460
      %v673 = vpop.f32.mrf.mxu0
      %v674 = vadd.f32 %v307, %v673
      %v675 = vpop.f32.mrf.mxu0
      %v676 = vadd.f32 %v307, %v675
      %677 = vmatmul.bf16.gmra.mxu0 %v461
      %v678 = vpop.f32.mrf.mxu0
      %v679 = vadd.f32 %v307, %v678
      %v680 = vpop.f32.mrf.mxu0
      %v681 = vadd.f32 %v307, %v680
      %682 = vmatmul.bf16.gmra.mxu0 %v462
      %v683 = vpop.f32.mrf.mxu0
      %v684 = vadd.f32 %v307, %v683
      %v685 = vpop.f32.mrf.mxu0
      %v686 = vadd.f32 %v307, %v685
      %687 = vmatmul.bf16.gmra.mxu0 %v463
      %v688 = vpop.f32.mrf.mxu0
      %v689 = vadd.f32 %v307, %v688
      %v690 = vpop.f32.mrf.mxu0
      %v691 = vadd.f32 %v307, %v690
      %692 = vmatmul.bf16.gmra.mxu0 %v464
      %v693 = vpop.f32.mrf.mxu0
      %v694 = vadd.f32 %v307, %v693
      %v695 = vpop.f32.mrf.mxu0
      %v696 = vadd.f32 %v307, %v695
      %697 = vmatmul.bf16.gmra.mxu0 %v465
      %v698 = vpop.f32.mrf.mxu0
      %v699 = vadd.f32 %v307, %v698
      %v700 = vpop.f32.mrf.mxu0
      %v701 = vadd.f32 %v307, %v700
      %702 = vmatmul.bf16.gmra.mxu0 %v466
      %v703 = vpop.f32.mrf.mxu0
      %v704 = vadd.f32 %v307, %v703
      %v705 = vpop.f32.mrf.mxu0
      %v706 = vadd.f32 %v307, %v705
      %707 = vmatmul.bf16.gmra.mxu0 %v467
      %v708 = vpop.f32.mrf.mxu0
      %v709 = vadd.f32 %v307, %v708
      %v710 = vpop.f32.mrf.mxu0
      %v711 = vadd.f32 %v307, %v710
      %712 = vmatmul.bf16.gmra.mxu0 %v468
      %v713 = vpop.f32.mrf.mxu0
      %v714 = vadd.f32 %v307, %v713
      %v715 = vpop.f32.mrf.mxu0
      %v716 = vadd.f32 %v307, %v715
      %717 = vdwg.mxu0
      %718 = vst [vmem:[%s223] sm:$0xff] %v559
      %719 = vst [vmem:[%s223 + $0x8] sm:$0xff] %v561
      %720 = vst [vmem:[%s223 + $0x10] sm:$0xff] %v564
      %721 = vst [vmem:[%s223 + $0x18] sm:$0xff] %v566
      %722 = vst [vmem:[%s223 + $0x20] sm:$0xff] %v569
      %723 = vst [vmem:[%s223 + $0x28] sm:$0xff] %v571
      %724 = vst [vmem:[%s223 + $0x30] sm:$0xff] %v574
      %725 = vst [vmem:[%s223 + $0x38] sm:$0xff] %v576
      %726 = vst [vmem:[%s223 + $0x40] sm:$0xff] %v579
      %727 = vst [vmem:[%s223 + $0x48] sm:$0xff] %v581
      %728 = vst [vmem:[%s223 + $0x50] sm:$0xff] %v584
      %729 = vst [vmem:[%s223 + $0x58] sm:$0xff] %v586
      %730 = vst [vmem:[%s223 + $0x60] sm:$0xff] %v589
      %731 = vst [vmem:[%s223 + $0x68] sm:$0xff] %v591
      %732 = vst [vmem:[%s223 + $0x70] sm:$0xff] %v594
      %733 = vst [vmem:[%s223 + $0x78] sm:$0xff] %v596
      %734 = vst [vmem:[%s223 + $0x80] sm:$0xff] %v599
      %735 = vst [vmem:[%s223 + $0x88] sm:$0xff] %v601
      %736 = vst [vmem:[%s223 + $0x90] sm:$0xff] %v604
      %737 = vst [vmem:[%s223 + $0x98] sm:$0xff] %v606
      %738 = vst [vmem:[%s223 + $0xa0] sm:$0xff] %v609
      %739 = vst [vmem:[%s223 + $0xa8] sm:$0xff] %v611
      %740 = vst [vmem:[%s223 + $0xb0] sm:$0xff] %v614
      %741 = vst [vmem:[%s223 + $0xb8] sm:$0xff] %v616
      %742 = vst [vmem:[%s223 + $0xc0] sm:$0xff] %v619
      %743 = vst [vmem:[%s223 + $0xc8] sm:$0xff] %v621
      %744 = vst [vmem:[%s223 + $0xd0] sm:$0xff] %v624
      %745 = vst [vmem:[%s223 + $0xd8] sm:$0xff] %v626
      %746 = vst [vmem:[%s223 + $0xe0] sm:$0xff] %v629
      %747 = vst [vmem:[%s223 + $0xe8] sm:$0xff] %v631
      %748 = vst [vmem:[%s223 + $0xf0] sm:$0xff] %v634
      %749 = vst [vmem:[%s223 + $0xf8] sm:$0xff] %v636
      %750 = vst [vmem:[%s223 + $0x100] sm:$0xff] %v639
      %751 = vst [vmem:[%s223 + $0x108] sm:$0xff] %v641
      %752 = vst [vmem:[%s223 + $0x110] sm:$0xff] %v644
      %753 = vst [vmem:[%s223 + $0x118] sm:$0xff] %v646
      %754 = vst [vmem:[%s223 + $0x120] sm:$0xff] %v649
      %755 = vst [vmem:[%s223 + $0x128] sm:$0xff] %v651
      %756 = vst [vmem:[%s223 + $0x130] sm:$0xff] %v654
      %757 = vst [vmem:[%s223 + $0x138] sm:$0xff] %v656
      %758 = vst [vmem:[%s223 + $0x140] sm:$0xff] %v659
      %759 = vst [vmem:[%s223 + $0x148] sm:$0xff] %v661
      %760 = vst [vmem:[%s223 + $0x150] sm:$0xff] %v664
      %761 = vst [vmem:[%s223 + $0x158] sm:$0xff] %v666
      %762 = vst [vmem:[%s223 + $0x160] sm:$0xff] %v669
      %763 = vst [vmem:[%s223 + $0x168] sm:$0xff] %v671
      %764 = vst [vmem:[%s223 + $0x170] sm:$0xff] %v674
      %765 = vst [vmem:[%s223 + $0x178] sm:$0xff] %v676
      %766 = vst [vmem:[%s223 + $0x180] sm:$0xff] %v679
      %767 = vst [vmem:[%s223 + $0x188] sm:$0xff] %v681
      %768 = vst [vmem:[%s223 + $0x190] sm:$0xff] %v684
      %769 = vst [vmem:[%s223 + $0x198] sm:$0xff] %v686
      %770 = vst [vmem:[%s223 + $0x1a0] sm:$0xff] %v689
      %771 = vst [vmem:[%s223 + $0x1a8] sm:$0xff] %v691
      %772 = vst [vmem:[%s223 + $0x1b0] sm:$0xff] %v694
      %773 = vst [vmem:[%s223 + $0x1b8] sm:$0xff] %v696
      %774 = vst [vmem:[%s223 + $0x1c0] sm:$0xff] %v699
      %775 = vst [vmem:[%s223 + $0x1c8] sm:$0xff] %v701
      %776 = vst [vmem:[%s223 + $0x1d0] sm:$0xff] %v704
      %777 = vst [vmem:[%s223 + $0x1d8] sm:$0xff] %v706
      %778 = vst [vmem:[%s223 + $0x1e0] sm:$0xff] %v709
      %779 = vst [vmem:[%s223 + $0x1e8] sm:$0xff] %v711
      %780 = vst [vmem:[%s223 + $0x1f0] sm:$0xff] %v714
      %781 = vst [vmem:[%s223 + $0x1f8] sm:$0xff] %v716
      %s782 = smul.u32 64, %s18
      %p783 = scmp.lt.s32.totalorder %s782, 255
      %s784 = scalar_select %p783, %s782, 255
      %p785 = scmp.lt.s32.totalorder %s19, 0
      %s786 = scalar_select %p785, %s19, 0
      %s787 = sadd.s32 %s786, %s784
      %s788 = smul.addr %s787, 8
      %s789 = scalar_lea.vmem %s3, %s788
      // Predicated region
      $region33: #{_lambda_.63} parent=31 // pred_check
        %p790 = pneg %p124
      $region34: #{_lambda_.63} parent=31 // pred_check_branch
        %792 = sbr.rel (%p790) target = $region36
      $region35: #{_lambda_.63} parent=31 // pred_region
        %s793 = smul.u32 64, %s18
      $region36: #{_lambda_.63} parent=31 // pred_fallthru
        _
    $region32: #{_lambda_.63} parent=5 // pred_fallthru
      _
    %p794 = scmp.le.s32.totalorder 2, %s9
    // Predicated region
    $region37: #{_lambda_.63} parent=5 // pred_check
      %p795 = pneg %p794
    $region38: #{_lambda_.63} parent=5 // pred_check_branch
      %797 = sbr.rel (%p795) target = $region40
    $region39: #{_lambda_.63} parent=5 // pred_region
      %s798 = ssub.s32 %s9, 2
      // Predicated region
      $region41: #{_lambda_.63} parent=39 // pred_check
        %p799 = pneg %p130
      $region42: #{_lambda_.63} parent=39 // pred_check_branch
        %801 = sbr.rel (%p799) target = $region44
      $region43: #{_lambda_.63} parent=39 // pred_region
        %s802 = smul.u32 64, %s20
        %p803 = scmp.lt.s32.totalorder %s802, 255
        %s804 = scalar_select %p803, %s802, 255
        %p805 = scmp.lt.s32.totalorder %s21, 0
        %s806 = scalar_select %p805, %s21, 0
        %s807 = sadd.s32 %s806, %s804
        %s808 = smul.addr %s807, 8
        %s809 = scalar_lea.vmem %s3, %s808
      $region44: #{_lambda_.63} parent=39 // pred_fallthru
        _
    $region40: #{_lambda_.63} parent=5 // pred_fallthru
      _
  $region6: #{_lambda_.63} parent=0 // loop_footer
    %s13 = sadd.s32 1, %s9
  $region7: #{_lambda_.63} parent=0 // loop_footer_branch
    %8 = sbr.rel target = $region3
  $region8: #{_lambda_.63} parent=0 // loop_exit
    _

</llo_original>
